<compile_context>
chip_gen: v6e
topology: v6e:2x2x1
jax: 0.10.0
libtpu: 0.0.40
codegen_flags: <defaults>
</compile_context>

<pallas_src>
import functools

import jax
import jax.numpy as jnp
import numpy as np
from jax.experimental import pallas as pl
from jax.experimental.pallas import tpu as pltpu

NUM_NODE_TYPES = 17

# ----------------------- synthetic config -----------------------------------
NODE_INPUT_DIM = 8
EDGE_INPUT_DIM = 8
NODE_FEATURE_DIM = 32
EDGE_FEATURE_DIM = 32
EDGE_FEATURE_HIDDEN = 64
NODE_EMB_SIZES = (64, NODE_FEATURE_DIM)       # config.NODE_EMB.OUTPUT_SIZES
EDGE_EMB_SIZES = (64, EDGE_FEATURE_DIM)       # config.EDGE_EMB.OUTPUT_SIZES
EDGE_CLASS_SIZES = (32, 1)                    # config.EDGE_CLASS.OUTPUT_SIZES
NODE_CLASS_SIZES = (32, 1)                    # config.NODE_CLASS.OUTPUT_SIZES
CLASS_SIZES = (32, NUM_NODE_TYPES)            # config.CLASS.OUTPUT_SIZES
SKIP = True                                   # config.SKIP
EDGE_STEPS = 2                                # config.STEPS
END_WITH_RELU = False                         # config.NODE_EMB.END_WITH_RELU

H1 = NODE_EMB_SIZES[0]                        # per-type hidden width (64)
WIDE = NUM_NODE_TYPES * H1                    # 17 * 64 = 1088
PAD_LANES = 128                               # lane-dense head output width


# ----------------------- static layout of the narrow weight slab -------------
def _narrow_entries():
    F = NODE_FEATURE_DIM
    H = EDGE_FEATURE_HIDDEN
    return [
        ("ne_w2", WIDE, F),
        ("ne_b2", NUM_NODE_TYPES, F),
        ("ee_w1", EDGE_INPUT_DIM, EDGE_EMB_SIZES[0]),
        ("ee_b1", 1, EDGE_EMB_SIZES[0]),
        ("ee_w2", EDGE_EMB_SIZES[0], EDGE_EMB_SIZES[1]),
        ("ee_b2", 1, EDGE_EMB_SIZES[1]),
        ("we1_d0", F, H), ("we1_d1", F, H),
        ("we1_s0", F, H), ("we1_s1", F, H),
        ("we1_e0", F, H), ("we1_e1", F, H),
        ("be1", 1, H),
        ("we2", H, EDGE_FEATURE_DIM),
        ("be2", 1, EDGE_FEATURE_DIM),
        ("wn1_x0", F, F), ("wn1_x1", F, F), ("wn1_a", EDGE_FEATURE_DIM, F),
        ("bn1", 1, F),
        ("ec_w1", EDGE_FEATURE_DIM, EDGE_CLASS_SIZES[0]),
        ("ec_b1", 1, EDGE_CLASS_SIZES[0]),
        ("ec_w2", EDGE_CLASS_SIZES[0], PAD_LANES),
        ("ec_b2", 1, PAD_LANES),
        ("hd_w1", NODE_FEATURE_DIM, 2 * NODE_CLASS_SIZES[0]),
        ("hd_b1", 1, 2 * NODE_CLASS_SIZES[0]),
        ("hd_w2", 2 * NODE_CLASS_SIZES[0], PAD_LANES),
        ("hd_b2", 1, PAD_LANES),
    ]


def _layout(entries):
    offs, row = {}, 0
    for name, r, c in entries:
        offs[name] = (row, r, c)
        row += ((r + 7) // 8) * 8            # keep every row-start 8-aligned
    return offs, row


NARROW_OFFSETS, NARROW_ROWS = _layout(_narrow_entries())
WIDE_ROWS = 16                               # ne_w1 rows 0:8, ne_b1 row 8


# ----------------------- fused forward kernel --------------------------------
def _fused_forward_kernel(feat_ref, idx_ref, wwide_ref, wnarrow_ref, out_ref,
                          *, n, e, final_relu, steps):
    f32 = jnp.float32
    relu = lambda v: jnp.maximum(v, 0.0)

    def W(name):                               # static slice of the weight slab
        r0, rows, cols = NARROW_OFFSETS[name]
        return wnarrow_ref[r0:r0 + rows, 0:cols]

    # ---- unpack coalesced inputs (static, 8-aligned row slices) ----
    x = feat_ref[0:n, :]                       # (N, 8)
    ea = feat_ref[n:n + e, :]                  # (E, 8)
    nt = idx_ref[0:n, :]                       # (N, 1) int32
    src = idx_ref[n:n + e, :]                  # (E, 1) int32
    dst = idx_ref[n + e:n + 2 * e, :]          # (E, 1) int32

    # ---- in-kernel one-hots / lane masks (VPU, nothing shipped from HBM) ----
    lane_t = jax.lax.broadcasted_iota(jnp.int32, (n, NUM_NODE_TYPES), 1)
    oh = (lane_t == nt).astype(f32)                                  # (N, 17)
    lane_w = jax.lax.broadcasted_iota(jnp.int32, (n, WIDE), 1)
    base = nt * H1
    tmask = ((lane_w >= base) & (lane_w < base + H1)).astype(f32)    # (N, 1088)
    col_n = jax.lax.broadcasted_iota(jnp.int32, (e, n), 1)
    src_oh = (col_n == src).astype(f32)                              # (E, N)
    dst_oh = (col_n == dst).astype(f32)                              # (E, N)

    # ---- per-type node embedding: two wide matmuls + lane masking ----
    ne_w1 = wwide_ref[0:NODE_INPUT_DIM, :]                           # (8, 1088)
    ne_b1 = wwide_ref[NODE_INPUT_DIM:NODE_INPUT_DIM + 1, :]          # (1, 1088)
    h0 = relu(jnp.dot(x, ne_w1, preferred_element_type=f32) + ne_b1) * tmask
    nf0 = (jnp.dot(h0, W("ne_w2"), preferred_element_type=f32)
           + jnp.dot(oh, W("ne_b2"), preferred_element_type=f32))
    if final_relu:
        nf0 = relu(nf0)                                              # (N, 32)

    # ---- edge embedding MLP ----
    he0 = relu(jnp.dot(ea, W("ee_w1"), preferred_element_type=f32) + W("ee_b1"))
    ef0 = jnp.dot(he0, W("ee_w2"), preferred_element_type=f32) + W("ee_b2")
    if final_relu:
        ef0 = relu(ef0)                                              # (E, 32)

    # ---- message passing (skip concats as split matmuls, invariants hoisted) ----
    nf0_src = jnp.dot(src_oh, nf0, preferred_element_type=f32)       # gather
    nf0_dst = jnp.dot(dst_oh, nf0, preferred_element_type=f32)
    edge_const = (jnp.dot(nf0_dst, W("we1_d0"), preferred_element_type=f32)
                  + jnp.dot(nf0_src, W("we1_s0"), preferred_element_type=f32)
                  + jnp.dot(ef0, W("we1_e0"), preferred_element_type=f32)
                  + W("be1"))
    node_const = jnp.dot(nf0, W("wn1_x0"), preferred_element_type=f32) + W("bn1")

    nf, ef = nf0, ef0
    for _ in range(steps):                                           # static unroll
        nf_src = jnp.dot(src_oh, nf, preferred_element_type=f32)
        nf_dst = jnp.dot(dst_oh, nf, preferred_element_type=f32)
        h = relu(edge_const
                 + jnp.dot(nf_dst, W("we1_d1"), preferred_element_type=f32)
                 + jnp.dot(nf_src, W("we1_s1"), preferred_element_type=f32)
                 + jnp.dot(ef, W("we1_e1"), preferred_element_type=f32))
        e_new = relu(jnp.dot(h, W("we2"), preferred_element_type=f32) + W("be2"))
        # scatter-add onto dst nodes: contract axis 0 of dst_oh with axis 0 of e_new
        agg = jax.lax.dot_general(dst_oh, e_new,
                                  dimension_numbers=(((0,), (0,)), ((), ())),
                                  preferred_element_type=f32)        # (N, 32)
        nf = relu(node_const
                  + jnp.dot(nf, W("wn1_x1"), preferred_element_type=f32)
                  + jnp.dot(agg, W("wn1_a"), preferred_element_type=f32))
        ef = e_new

    # ---- heads, one lane-dense 128-wide output slab ----
    hn = relu(jnp.dot(nf, W("hd_w1"), preferred_element_type=f32) + W("hd_b1"))
    out_ref[0:n, :] = (jnp.dot(hn, W("hd_w2"), preferred_element_type=f32)
                       + W("hd_b2"))           # col 0 = node pred, 1:18 = class
    he = relu(jnp.dot(ef, W("ec_w1"), preferred_element_type=f32) + W("ec_b1"))
    out_ref[n:n + e, :] = (jnp.dot(he, W("ec_w2"), preferred_element_type=f32)
                           + W("ec_b2"))       # col 0 = edge prediction


# ----------------------- parameter initialization ----------------------------
def _init_linear(key, d_in, d_out):
    kw, kb = jax.random.split(key)
    bound = 1.0 / jnp.sqrt(jnp.float32(d_in))
    w = jax.random.uniform(kw, (d_in, d_out), jnp.float32, -bound, bound)
    b = jax.random.uniform(kb, (1, d_out), jnp.float32, -bound, bound)
    return w, b


def _init_mlp2(key, d_in, sizes):
    k1, k2 = jax.random.split(key)
    w1, b1 = _init_linear(k1, d_in, sizes[0])
    w2, b2 = _init_linear(k2, sizes[0], sizes[1])
    return (w1, b1, w2, b2)


def init_params(key):
    keys = jax.random.split(key, 8)
    tkeys = jax.random.split(keys[0], NUM_NODE_TYPES)
    w1s, b1s, w2s, b2s = [], [], [], []
    for tk in tkeys:
        w1, b1, w2, b2 = _init_mlp2(tk, NODE_INPUT_DIM, NODE_EMB_SIZES)
        w1s.append(w1); b1s.append(b1[0]); w2s.append(w2); b2s.append(b2[0])
    node_emb = (jnp.stack(w1s), jnp.stack(b1s), jnp.stack(w2s), jnp.stack(b2s))

    edge_emb = _init_mlp2(keys[1], EDGE_INPUT_DIM, EDGE_EMB_SIZES)

    fn_in = NODE_FEATURE_DIM * (2 if SKIP else 1)
    fe_in = EDGE_FEATURE_DIM * (2 if SKIP else 1)
    ke1, ke2, kn1 = jax.random.split(keys[2], 3)
    we1, be1 = _init_linear(ke1, 2 * fn_in + fe_in, EDGE_FEATURE_HIDDEN)
    we2, be2 = _init_linear(ke2, EDGE_FEATURE_HIDDEN, EDGE_FEATURE_DIM)
    wn1, bn1 = _init_linear(kn1, fn_in + EDGE_FEATURE_DIM, NODE_FEATURE_DIM)
    mpn = (we1, be1, we2, be2, wn1, bn1)

    edge_cls = _init_mlp2(keys[3], EDGE_FEATURE_DIM, EDGE_CLASS_SIZES)
    node_cls = _init_mlp2(keys[4], NODE_FEATURE_DIM, NODE_CLASS_SIZES)
    cls = _init_mlp2(keys[5], NODE_FEATURE_DIM, CLASS_SIZES)

    return dict(node_emb=node_emb, edge_emb=edge_emb, mpn=mpn,
                edge_cls=edge_cls, node_cls=node_cls, cls=cls)


def pack_params(p):
    """Repack torch-style parameters into two coalesced weight slabs."""
    F = NODE_FEATURE_DIM

    # ---- wide slab: 17 type-MLP first layers concatenated column-wise ----
    nw1, nb1, nw2, nb2 = p["node_emb"]          # (17,8,64),(17,64),(17,64,32),(17,32)
    wide = np.zeros((WIDE_ROWS, WIDE), np.float32)
    wide[0:NODE_INPUT_DIM, :] = np.asarray(
        jnp.transpose(nw1, (1, 0, 2)).reshape(NODE_INPUT_DIM, WIDE))
    wide[NODE_INPUT_DIM, :] = np.asarray(nb1.reshape(WIDE))

    # ---- narrow 128-lane slab: everything else, 8-row aligned ----
    nar = np.zeros((NARROW_ROWS, PAD_LANES), np.float32)

    def put(name, arr):
        arr = np.asarray(arr, np.float32)
        r0, r, c = NARROW_OFFSETS[name]
        assert arr.shape == (r, c), (name, arr.shape, (r, c))
        nar[r0:r0 + r, 0:c] = arr

    put("ne_w2", np.asarray(nw2).reshape(WIDE, F))
    put("ne_b2", np.asarray(nb2))

    ee_w1, ee_b1, ee_w2, ee_b2 = p["edge_emb"]
    put("ee_w1", ee_w1); put("ee_b1", ee_b1)
    put("ee_w2", ee_w2); put("ee_b2", ee_b2)

    we1, be1, we2, be2, wn1, bn1 = p["mpn"]     # concat order [initial | current]
    we1 = np.asarray(we1)
    put("we1_d0", we1[0 * F:1 * F]); put("we1_d1", we1[1 * F:2 * F])
    put("we1_s0", we1[2 * F:3 * F]); put("we1_s1", we1[3 * F:4 * F])
    put("we1_e0", we1[4 * F:5 * F]); put("we1_e1", we1[5 * F:6 * F])
    put("be1", be1)
    put("we2", we2); put("be2", be2)
    wn1 = np.asarray(wn1)
    put("wn1_x0", wn1[0 * F:1 * F]); put("wn1_x1", wn1[1 * F:2 * F])
    put("wn1_a", wn1[2 * F:3 * F]); put("bn1", bn1)

    # edge head: pad 1-lane output into a 128-lane block (col 0 = prediction)
    ec_w1, ec_b1, ec_w2, ec_b2 = p["edge_cls"]
    ec_w2p = np.zeros((EDGE_CLASS_SIZES[0], PAD_LANES), np.float32)
    ec_w2p[:, 0:1] = np.asarray(ec_w2)
    ec_b2p = np.zeros((1, PAD_LANES), np.float32)
    ec_b2p[:, 0:1] = np.asarray(ec_b2)
    put("ec_w1", ec_w1); put("ec_b1", ec_b1)
    put("ec_w2", ec_w2p); put("ec_b2", ec_b2p)

    # fused node-classification + classification heads (block-diag 2nd layer)
    nc_w1, nc_b1, nc_w2, nc_b2 = p["node_cls"]
    cl_w1, cl_b1, cl_w2, cl_b2 = p["cls"]
    H = NODE_CLASS_SIZES[0]
    hd_w1 = np.concatenate([np.asarray(nc_w1), np.asarray(cl_w1)], axis=1)
    hd_b1 = np.concatenate([np.asarray(nc_b1), np.asarray(cl_b1)], axis=1)
    hd_w2 = np.zeros((2 * H, PAD_LANES), np.float32)
    hd_w2[:H, 0:1] = np.asarray(nc_w2)
    hd_w2[H:, 1:1 + NUM_NODE_TYPES] = np.asarray(cl_w2)
    hd_b2 = np.zeros((1, PAD_LANES), np.float32)
    hd_b2[:, 0:1] = np.asarray(nc_b2)
    hd_b2[:, 1:1 + NUM_NODE_TYPES] = np.asarray(cl_b2)
    put("hd_w1", hd_w1); put("hd_b1", hd_b1)
    put("hd_w2", hd_w2); put("hd_b2", hd_b2)

    return jnp.asarray(wide), jnp.asarray(nar)


# ----------------------- forward (module semantics) --------------------------
@jax.jit
def forward(w_wide, w_narrow, x, edge_attr, edge_index, node_types):
    n = x.shape[0]
    e = edge_attr.shape[0]

    # coalesce activations + indices into two small slabs (2 input DMAs)
    feat = jnp.concatenate([x, edge_attr], axis=0).astype(jnp.float32)   # (N+E, 8)
    idx = jnp.concatenate([node_types.reshape(n, 1),
                           edge_index[0].reshape(e, 1),
                           edge_index[1].reshape(e, 1)],
                          axis=0).astype(jnp.int32)                      # (N+2E, 1)

    vmem = pl.BlockSpec(memory_space=pltpu.MemorySpace.VMEM)
    kern = functools.partial(_fused_forward_kernel, n=n, e=e,
                             final_relu=END_WITH_RELU, steps=EDGE_STEPS)
    out = pl.pallas_call(
        kern,
        out_shape=jax.ShapeDtypeStruct((n + e, PAD_LANES), jnp.float32),
        in_specs=[vmem, vmem, vmem, vmem],
        out_specs=vmem,
    )(feat, idx, w_wide, w_narrow)

    preds_edge = [out[n:n + e, 0]]
    preds_node = [out[0:n, 0]]
    preds_class = [out[0:n, 1:1 + NUM_NODE_TYPES]]
    return preds_edge, preds_node, preds_class


# ----------------------- pure-JAX f32 reference ------------------------------
def reference_forward(params, x, edge_attr, edge_index, node_types):
    relu = jax.nn.relu
    n = x.shape[0]

    nw1, nb1, nw2, nb2 = params["node_emb"]
    nf0 = jnp.zeros((n, NODE_FEATURE_DIM), jnp.float32)
    for t in range(NUM_NODE_TYPES):
        o = relu(x @ nw1[t] + nb1[t]) @ nw2[t] + nb2[t]
        if END_WITH_RELU:
            o = relu(o)
        nf0 = jnp.where((node_types == t)[:, None], o, nf0)

    ew1, eb1, ew2, eb2 = params["edge_emb"]
    ef0 = relu(edge_attr @ ew1 + eb1) @ ew2 + eb2
    if END_WITH_RELU:
        ef0 = relu(ef0)

    we1, be1, we2, be2, wn1, bn1 = params["mpn"]
    src, dst = edge_index[0], edge_index[1]
    nf, ef = nf0, ef0
    for _ in range(EDGE_STEPS):
        nfc = jnp.concatenate([nf0, nf], axis=1) if SKIP else nf
        efc = jnp.concatenate([ef0, ef], axis=1) if SKIP else ef
        h = relu(jnp.concatenate([nfc[dst], nfc[src], efc], axis=1) @ we1 + be1)
        e_new = relu(h @ we2 + be2)
        agg = jnp.zeros((n, e_new.shape[1]), jnp.float32).at[dst].add(e_new)
        nf = relu(jnp.concatenate([nfc, agg], axis=1) @ wn1 + bn1)
        ef = e_new

    ew1c, eb1c, ew2c, eb2c = params["edge_cls"]
    pe = (relu(ef @ ew1c + eb1c) @ ew2c + eb2c)[:, 0]
    nw1c, nb1c, nw2c, nb2c = params["node_cls"]
    pn = (relu(nf @ nw1c + nb1c) @ nw2c + nb2c)[:, 0]
    cw1, cb1, cw2, cb2 = params["cls"]
    pc = relu(nf @ cw1 + cb1) @ cw2 + cb2
    return pe, pn, pc


# ----------------------- main -------------------------------------------------
if __name__ == "__main__":
    key = jax.random.PRNGKey(0)
    k_param, k_x, k_e, k_ei, k_nt = jax.random.split(key, 5)

    N, E = 64, 128
    params = init_params(k_param)
    w_wide, w_narrow = pack_params(params)
    x = jax.random.normal(k_x, (N, NODE_INPUT_DIM), jnp.float32)
    edge_attr = jax.random.normal(k_e, (E, EDGE_INPUT_DIM), jnp.float32)
    edge_index = jax.random.randint(k_ei, (2, E), 0, N, jnp.int32)
    node_types = jax.random.randint(k_nt, (N,), 0, NUM_NODE_TYPES, jnp.int32)

    preds_edge, preds_node, preds_class = forward(w_wide, w_narrow, x, edge_attr,
                                                  edge_index, node_types)
    jax.block_until_ready((preds_edge, preds_node, preds_class))

    assert preds_edge[0].shape == (E,)
    assert preds_node[0].shape == (N,)
    assert preds_class[0].shape == (N, NUM_NODE_TYPES)

    # validate against a pure-JAX f32 reference.  Kernel math is all-f32 now;
    # the tolerance only needs to cover MXU vs XLA matmul precision differences.
    ref_e, ref_n, ref_c = reference_forward(params, x, edge_attr, edge_index,
                                            node_types)
    np.testing.assert_allclose(np.asarray(preds_edge[0]), np.asarray(ref_e),
                               rtol=2e-2, atol=2e-2)
    np.testing.assert_allclose(np.asarray(preds_node[0]), np.asarray(ref_n),
                               rtol=2e-2, atol=2e-2)
    np.testing.assert_allclose(np.asarray(preds_class[0]), np.asarray(ref_c),
                               rtol=2e-2, atol=2e-2)

    print("KERNEL_OK")
</pallas_src>

<mosaic_0001>
module attributes {stable_mosaic.version = 11 : i64} {
  func.func @_fused_forward_kernel(%arg0: memref<192x8xf32, #tpu.memory_space<vmem>>, %arg1: memref<320x1xi32, #tpu.memory_space<vmem>>, %arg2: memref<16x1088xf32, #tpu.memory_space<vmem>>, %arg3: memref<1768x128xf32, #tpu.memory_space<vmem>>, %arg4: memref<192x128xf32, #tpu.memory_space<vmem>>) attributes {dimension_semantics = [], scalar_prefetch = 0 : i64, scratch_operands = 0 : i64, tpu.core_type = #tpu.core_type<tc>} {
    %c0 = arith.constant 0 : index
    %c0_0 = arith.constant 0 : index
    %0 = vector.load %arg0[%c0, %c0_0] : memref<192x8xf32, #tpu.memory_space<vmem>>, vector<64x8xf32>
    %c64 = arith.constant 64 : index
    %c0_1 = arith.constant 0 : index
    %1 = vector.load %arg0[%c64, %c0_1] : memref<192x8xf32, #tpu.memory_space<vmem>>, vector<128x8xf32>
    %c0_2 = arith.constant 0 : index
    %c0_3 = arith.constant 0 : index
    %2 = vector.load %arg1[%c0_2, %c0_3] : memref<320x1xi32, #tpu.memory_space<vmem>>, vector<64x1xi32>
    %c64_4 = arith.constant 64 : index
    %c0_5 = arith.constant 0 : index
    %3 = vector.load %arg1[%c64_4, %c0_5] : memref<320x1xi32, #tpu.memory_space<vmem>>, vector<128x1xi32>
    %c192 = arith.constant 192 : index
    %c0_6 = arith.constant 0 : index
    %4 = vector.load %arg1[%c192, %c0_6] : memref<320x1xi32, #tpu.memory_space<vmem>>, vector<128x1xi32>
    %5 = tpu.iota {dimensions = array<i32: 1>} : vector<64x17xi32>
    %6 = vector.broadcast %2 : vector<64x1xi32> to vector<64x17xi32>
    %7 = arith.cmpi eq, %5, %6 : vector<64x17xi32>
    %8 = arith.extui %7 : vector<64x17xi1> to vector<64x17xi32>
    %9 = arith.sitofp %8 : vector<64x17xi32> to vector<64x17xf32>
    %10 = tpu.iota {dimensions = array<i32: 1>} : vector<64x1088xi32>
    %c64_i32 = arith.constant 64 : i32
    %11 = vector.broadcast %c64_i32 : i32 to vector<64x1xi32>
    %12 = arith.muli %2, %11 : vector<64x1xi32>
    %13 = vector.broadcast %12 : vector<64x1xi32> to vector<64x1088xi32>
    %14 = arith.cmpi sge, %10, %13 : vector<64x1088xi32>
    %c64_i32_7 = arith.constant 64 : i32
    %15 = vector.broadcast %c64_i32_7 : i32 to vector<64x1xi32>
    %16 = arith.addi %12, %15 : vector<64x1xi32>
    %17 = vector.broadcast %16 : vector<64x1xi32> to vector<64x1088xi32>
    %18 = arith.cmpi slt, %10, %17 : vector<64x1088xi32>
    %19 = arith.andi %14, %18 : vector<64x1088xi1>
    %20 = arith.extui %19 : vector<64x1088xi1> to vector<64x1088xi32>
    %21 = arith.sitofp %20 : vector<64x1088xi32> to vector<64x1088xf32>
    %22 = tpu.iota {dimensions = array<i32: 1>} : vector<128x64xi32>
    %23 = vector.broadcast %3 : vector<128x1xi32> to vector<128x64xi32>
    %24 = arith.cmpi eq, %22, %23 : vector<128x64xi32>
    %25 = arith.extui %24 : vector<128x64xi1> to vector<128x64xi32>
    %26 = arith.sitofp %25 : vector<128x64xi32> to vector<128x64xf32>
    %27 = vector.broadcast %4 : vector<128x1xi32> to vector<128x64xi32>
    %28 = arith.cmpi eq, %22, %27 : vector<128x64xi32>
    %29 = arith.extui %28 : vector<128x64xi1> to vector<128x64xi32>
    %30 = arith.sitofp %29 : vector<128x64xi32> to vector<128x64xf32>
    %c0_8 = arith.constant 0 : index
    %c0_9 = arith.constant 0 : index
    %31 = vector.load %arg2[%c0_8, %c0_9] : memref<16x1088xf32, #tpu.memory_space<vmem>>, vector<8x1088xf32>
    %c8 = arith.constant 8 : index
    %c0_10 = arith.constant 0 : index
    %32 = vector.load %arg2[%c8, %c0_10] : memref<16x1088xf32, #tpu.memory_space<vmem>>, vector<1x1088xf32>
    %cst = arith.constant dense<0.000000e+00> : vector<64x1088xf32>
    %33 = tpu.matmul %0, %31, %cst {dimension_numbers = #tpu.dot_dimension_numbers<[1], [0], [0], [1], [0, 0, 1, 1], [], []>} : vector<64x8xf32>, vector<8x1088xf32>, vector<64x1088xf32> -> vector<64x1088xf32>
    %34 = vector.broadcast %32 : vector<1x1088xf32> to vector<64x1088xf32>
    %35 = arith.addf %33, %34 : vector<64x1088xf32>
    %cst_11 = arith.constant 0.000000e+00 : f32
    %36 = vector.broadcast %cst_11 : f32 to vector<64x1088xf32>
    %37 = arith.maximumf %35, %36 : vector<64x1088xf32>
    %38 = arith.mulf %37, %21 : vector<64x1088xf32>
    %c0_12 = arith.constant 0 : index
    %c0_13 = arith.constant 0 : index
    %39 = vector.load %arg3[%c0_12, %c0_13] : memref<1768x128xf32, #tpu.memory_space<vmem>>, vector<1088x32xf32>
    %cst_14 = arith.constant dense<0.000000e+00> : vector<64x32xf32>
    %40 = tpu.matmul %38, %39, %cst_14 {dimension_numbers = #tpu.dot_dimension_numbers<[1], [0], [0], [1], [0, 0, 1, 1], [], []>} : vector<64x1088xf32>, vector<1088x32xf32>, vector<64x32xf32> -> vector<64x32xf32>
    %c1088 = arith.constant 1088 : index
    %c0_15 = arith.constant 0 : index
    %41 = vector.load %arg3[%c1088, %c0_15] : memref<1768x128xf32, #tpu.memory_space<vmem>>, vector<17x32xf32>
    %cst_16 = arith.constant dense<0.000000e+00> : vector<64x32xf32>
    %42 = tpu.matmul %9, %41, %cst_16 {dimension_numbers = #tpu.dot_dimension_numbers<[1], [0], [0], [1], [0, 0, 1, 1], [], []>} : vector<64x17xf32>, vector<17x32xf32>, vector<64x32xf32> -> vector<64x32xf32>
    %43 = arith.addf %40, %42 : vector<64x32xf32>
    %c1112 = arith.constant 1112 : index
    %c0_17 = arith.constant 0 : index
    %44 = vector.load %arg3[%c1112, %c0_17] : memref<1768x128xf32, #tpu.memory_space<vmem>>, vector<8x64xf32>
    %cst_18 = arith.constant dense<0.000000e+00> : vector<128x64xf32>
    %45 = tpu.matmul %1, %44, %cst_18 {dimension_numbers = #tpu.dot_dimension_numbers<[1], [0], [0], [1], [0, 0, 1, 1], [], []>} : vector<128x8xf32>, vector<8x64xf32>, vector<128x64xf32> -> vector<128x64xf32>
    %c1120 = arith.constant 1120 : index
    %c0_19 = arith.constant 0 : index
    %46 = vector.load %arg3[%c1120, %c0_19] : memref<1768x128xf32, #tpu.memory_space<vmem>>, vector<1x64xf32>
    %47 = vector.broadcast %46 : vector<1x64xf32> to vector<128x64xf32>
    %48 = arith.addf %45, %47 : vector<128x64xf32>
    %cst_20 = arith.constant 0.000000e+00 : f32
    %49 = vector.broadcast %cst_20 : f32 to vector<128x64xf32>
    %50 = arith.maximumf %48, %49 : vector<128x64xf32>
    %c1128 = arith.constant 1128 : index
    %c0_21 = arith.constant 0 : index
    %51 = vector.load %arg3[%c1128, %c0_21] : memref<1768x128xf32, #tpu.memory_space<vmem>>, vector<64x32xf32>
    %cst_22 = arith.constant dense<0.000000e+00> : vector<128x32xf32>
    %52 = tpu.matmul %50, %51, %cst_22 {dimension_numbers = #tpu.dot_dimension_numbers<[1], [0], [0], [1], [0, 0, 1, 1], [], []>} : vector<128x64xf32>, vector<64x32xf32>, vector<128x32xf32> -> vector<128x32xf32>
    %c1192 = arith.constant 1192 : index
    %c0_23 = arith.constant 0 : index
    %53 = vector.load %arg3[%c1192, %c0_23] : memref<1768x128xf32, #tpu.memory_space<vmem>>, vector<1x32xf32>
    %54 = vector.broadcast %53 : vector<1x32xf32> to vector<128x32xf32>
    %55 = arith.addf %52, %54 : vector<128x32xf32>
    %cst_24 = arith.constant dense<0.000000e+00> : vector<128x32xf32>
    %56 = tpu.matmul %26, %43, %cst_24 {dimension_numbers = #tpu.dot_dimension_numbers<[1], [0], [0], [1], [0, 0, 1, 1], [], []>} : vector<128x64xf32>, vector<64x32xf32>, vector<128x32xf32> -> vector<128x32xf32>
    %cst_25 = arith.constant dense<0.000000e+00> : vector<128x32xf32>
    %57 = tpu.matmul %30, %43, %cst_25 {dimension_numbers = #tpu.dot_dimension_numbers<[1], [0], [0], [1], [0, 0, 1, 1], [], []>} : vector<128x64xf32>, vector<64x32xf32>, vector<128x32xf32> -> vector<128x32xf32>
    %c1200 = arith.constant 1200 : index
    %c0_26 = arith.constant 0 : index
    %58 = vector.load %arg3[%c1200, %c0_26] : memref<1768x128xf32, #tpu.memory_space<vmem>>, vector<32x64xf32>
    %cst_27 = arith.constant dense<0.000000e+00> : vector<128x64xf32>
    %59 = tpu.matmul %57, %58, %cst_27 {dimension_numbers = #tpu.dot_dimension_numbers<[1], [0], [0], [1], [0, 0, 1, 1], [], []>} : vector<128x32xf32>, vector<32x64xf32>, vector<128x64xf32> -> vector<128x64xf32>
    %c1264 = arith.constant 1264 : index
    %c0_28 = arith.constant 0 : index
    %60 = vector.load %arg3[%c1264, %c0_28] : memref<1768x128xf32, #tpu.memory_space<vmem>>, vector<32x64xf32>
    %cst_29 = arith.constant dense<0.000000e+00> : vector<128x64xf32>
    %61 = tpu.matmul %56, %60, %cst_29 {dimension_numbers = #tpu.dot_dimension_numbers<[1], [0], [0], [1], [0, 0, 1, 1], [], []>} : vector<128x32xf32>, vector<32x64xf32>, vector<128x64xf32> -> vector<128x64xf32>
    %62 = arith.addf %59, %61 : vector<128x64xf32>
    %c1328 = arith.constant 1328 : index
    %c0_30 = arith.constant 0 : index
    %63 = vector.load %arg3[%c1328, %c0_30] : memref<1768x128xf32, #tpu.memory_space<vmem>>, vector<32x64xf32>
    %cst_31 = arith.constant dense<0.000000e+00> : vector<128x64xf32>
    %64 = tpu.matmul %55, %63, %cst_31 {dimension_numbers = #tpu.dot_dimension_numbers<[1], [0], [0], [1], [0, 0, 1, 1], [], []>} : vector<128x32xf32>, vector<32x64xf32>, vector<128x64xf32> -> vector<128x64xf32>
    %65 = arith.addf %62, %64 : vector<128x64xf32>
    %c1392 = arith.constant 1392 : index
    %c0_32 = arith.constant 0 : index
    %66 = vector.load %arg3[%c1392, %c0_32] : memref<1768x128xf32, #tpu.memory_space<vmem>>, vector<1x64xf32>
    %67 = vector.broadcast %66 : vector<1x64xf32> to vector<128x64xf32>
    %68 = arith.addf %65, %67 : vector<128x64xf32>
    %c1472 = arith.constant 1472 : index
    %c0_33 = arith.constant 0 : index
    %69 = vector.load %arg3[%c1472, %c0_33] : memref<1768x128xf32, #tpu.memory_space<vmem>>, vector<32x32xf32>
    %cst_34 = arith.constant dense<0.000000e+00> : vector<64x32xf32>
    %70 = tpu.matmul %43, %69, %cst_34 {dimension_numbers = #tpu.dot_dimension_numbers<[1], [0], [0], [1], [0, 0, 1, 1], [], []>} : vector<64x32xf32>, vector<32x32xf32>, vector<64x32xf32> -> vector<64x32xf32>
    %c1568 = arith.constant 1568 : index
    %c0_35 = arith.constant 0 : index
    %71 = vector.load %arg3[%c1568, %c0_35] : memref<1768x128xf32, #tpu.memory_space<vmem>>, vector<1x32xf32>
    %72 = vector.broadcast %71 : vector<1x32xf32> to vector<64x32xf32>
    %73 = arith.addf %70, %72 : vector<64x32xf32>
    %cst_36 = arith.constant dense<0.000000e+00> : vector<128x32xf32>
    %74 = tpu.matmul %26, %43, %cst_36 {dimension_numbers = #tpu.dot_dimension_numbers<[1], [0], [0], [1], [0, 0, 1, 1], [], []>} : vector<128x64xf32>, vector<64x32xf32>, vector<128x32xf32> -> vector<128x32xf32>
    %cst_37 = arith.constant dense<0.000000e+00> : vector<128x32xf32>
    %75 = tpu.matmul %30, %43, %cst_37 {dimension_numbers = #tpu.dot_dimension_numbers<[1], [0], [0], [1], [0, 0, 1, 1], [], []>} : vector<128x64xf32>, vector<64x32xf32>, vector<128x32xf32> -> vector<128x32xf32>
    %c1232 = arith.constant 1232 : index
    %c0_38 = arith.constant 0 : index
    %76 = vector.load %arg3[%c1232, %c0_38] : memref<1768x128xf32, #tpu.memory_space<vmem>>, vector<32x64xf32>
    %cst_39 = arith.constant dense<0.000000e+00> : vector<128x64xf32>
    %77 = tpu.matmul %75, %76, %cst_39 {dimension_numbers = #tpu.dot_dimension_numbers<[1], [0], [0], [1], [0, 0, 1, 1], [], []>} : vector<128x32xf32>, vector<32x64xf32>, vector<128x64xf32> -> vector<128x64xf32>
    %78 = arith.addf %68, %77 : vector<128x64xf32>
    %c1296 = arith.constant 1296 : index
    %c0_40 = arith.constant 0 : index
    %79 = vector.load %arg3[%c1296, %c0_40] : memref<1768x128xf32, #tpu.memory_space<vmem>>, vector<32x64xf32>
    %cst_41 = arith.constant dense<0.000000e+00> : vector<128x64xf32>
    %80 = tpu.matmul %74, %79, %cst_41 {dimension_numbers = #tpu.dot_dimension_numbers<[1], [0], [0], [1], [0, 0, 1, 1], [], []>} : vector<128x32xf32>, vector<32x64xf32>, vector<128x64xf32> -> vector<128x64xf32>
    %81 = arith.addf %78, %80 : vector<128x64xf32>
    %c1360 = arith.constant 1360 : index
    %c0_42 = arith.constant 0 : index
    %82 = vector.load %arg3[%c1360, %c0_42] : memref<1768x128xf32, #tpu.memory_space<vmem>>, vector<32x64xf32>
    %cst_43 = arith.constant dense<0.000000e+00> : vector<128x64xf32>
    %83 = tpu.matmul %55, %82, %cst_43 {dimension_numbers = #tpu.dot_dimension_numbers<[1], [0], [0], [1], [0, 0, 1, 1], [], []>} : vector<128x32xf32>, vector<32x64xf32>, vector<128x64xf32> -> vector<128x64xf32>
    %84 = arith.addf %81, %83 : vector<128x64xf32>
    %cst_44 = arith.constant 0.000000e+00 : f32
    %85 = vector.broadcast %cst_44 : f32 to vector<128x64xf32>
    %86 = arith.maximumf %84, %85 : vector<128x64xf32>
    %c1400 = arith.constant 1400 : index
    %c0_45 = arith.constant 0 : index
    %87 = vector.load %arg3[%c1400, %c0_45] : memref<1768x128xf32, #tpu.memory_space<vmem>>, vector<64x32xf32>
    %cst_46 = arith.constant dense<0.000000e+00> : vector<128x32xf32>
    %88 = tpu.matmul %86, %87, %cst_46 {dimension_numbers = #tpu.dot_dimension_numbers<[1], [0], [0], [1], [0, 0, 1, 1], [], []>} : vector<128x64xf32>, vector<64x32xf32>, vector<128x32xf32> -> vector<128x32xf32>
    %c1464 = arith.constant 1464 : index
    %c0_47 = arith.constant 0 : index
    %89 = vector.load %arg3[%c1464, %c0_47] : memref<1768x128xf32, #tpu.memory_space<vmem>>, vector<1x32xf32>
    %90 = vector.broadcast %89 : vector<1x32xf32> to vector<128x32xf32>
    %91 = arith.addf %88, %90 : vector<128x32xf32>
    %cst_48 = arith.constant 0.000000e+00 : f32
    %92 = vector.broadcast %cst_48 : f32 to vector<128x32xf32>
    %93 = arith.maximumf %91, %92 : vector<128x32xf32>
    %cst_49 = arith.constant dense<0.000000e+00> : vector<64x32xf32>
    %94 = tpu.matmul %30, %93, %cst_49 {dimension_numbers = #tpu.dot_dimension_numbers<[0], [0], [1], [1], [0, 1, 1, 1], [], []>} : vector<128x64xf32>, vector<128x32xf32>, vector<64x32xf32> -> vector<64x32xf32>
    %c1504 = arith.constant 1504 : index
    %c0_50 = arith.constant 0 : index
    %95 = vector.load %arg3[%c1504, %c0_50] : memref<1768x128xf32, #tpu.memory_space<vmem>>, vector<32x32xf32>
    %cst_51 = arith.constant dense<0.000000e+00> : vector<64x32xf32>
    %96 = tpu.matmul %43, %95, %cst_51 {dimension_numbers = #tpu.dot_dimension_numbers<[1], [0], [0], [1], [0, 0, 1, 1], [], []>} : vector<64x32xf32>, vector<32x32xf32>, vector<64x32xf32> -> vector<64x32xf32>
    %97 = arith.addf %73, %96 : vector<64x32xf32>
    %c1536 = arith.constant 1536 : index
    %c0_52 = arith.constant 0 : index
    %98 = vector.load %arg3[%c1536, %c0_52] : memref<1768x128xf32, #tpu.memory_space<vmem>>, vector<32x32xf32>
    %cst_53 = arith.constant dense<0.000000e+00> : vector<64x32xf32>
    %99 = tpu.matmul %94, %98, %cst_53 {dimension_numbers = #tpu.dot_dimension_numbers<[1], [0], [0], [1], [0, 0, 1, 1], [], []>} : vector<64x32xf32>, vector<32x32xf32>, vector<64x32xf32> -> vector<64x32xf32>
    %100 = arith.addf %97, %99 : vector<64x32xf32>
    %cst_54 = arith.constant 0.000000e+00 : f32
    %101 = vector.broadcast %cst_54 : f32 to vector<64x32xf32>
    %102 = arith.maximumf %100, %101 : vector<64x32xf32>
    %cst_55 = arith.constant dense<0.000000e+00> : vector<128x32xf32>
    %103 = tpu.matmul %26, %102, %cst_55 {dimension_numbers = #tpu.dot_dimension_numbers<[1], [0], [0], [1], [0, 0, 1, 1], [], []>} : vector<128x64xf32>, vector<64x32xf32>, vector<128x32xf32> -> vector<128x32xf32>
    %cst_56 = arith.constant dense<0.000000e+00> : vector<128x32xf32>
    %104 = tpu.matmul %30, %102, %cst_56 {dimension_numbers = #tpu.dot_dimension_numbers<[1], [0], [0], [1], [0, 0, 1, 1], [], []>} : vector<128x64xf32>, vector<64x32xf32>, vector<128x32xf32> -> vector<128x32xf32>
    %c1232_57 = arith.constant 1232 : index
    %c0_58 = arith.constant 0 : index
    %105 = vector.load %arg3[%c1232_57, %c0_58] : memref<1768x128xf32, #tpu.memory_space<vmem>>, vector<32x64xf32>
    %cst_59 = arith.constant dense<0.000000e+00> : vector<128x64xf32>
    %106 = tpu.matmul %104, %105, %cst_59 {dimension_numbers = #tpu.dot_dimension_numbers<[1], [0], [0], [1], [0, 0, 1, 1], [], []>} : vector<128x32xf32>, vector<32x64xf32>, vector<128x64xf32> -> vector<128x64xf32>
    %107 = arith.addf %68, %106 : vector<128x64xf32>
    %c1296_60 = arith.constant 1296 : index
    %c0_61 = arith.constant 0 : index
    %108 = vector.load %arg3[%c1296_60, %c0_61] : memref<1768x128xf32, #tpu.memory_space<vmem>>, vector<32x64xf32>
    %cst_62 = arith.constant dense<0.000000e+00> : vector<128x64xf32>
    %109 = tpu.matmul %103, %108, %cst_62 {dimension_numbers = #tpu.dot_dimension_numbers<[1], [0], [0], [1], [0, 0, 1, 1], [], []>} : vector<128x32xf32>, vector<32x64xf32>, vector<128x64xf32> -> vector<128x64xf32>
    %110 = arith.addf %107, %109 : vector<128x64xf32>
    %c1360_63 = arith.constant 1360 : index
    %c0_64 = arith.constant 0 : index
    %111 = vector.load %arg3[%c1360_63, %c0_64] : memref<1768x128xf32, #tpu.memory_space<vmem>>, vector<32x64xf32>
    %cst_65 = arith.constant dense<0.000000e+00> : vector<128x64xf32>
    %112 = tpu.matmul %93, %111, %cst_65 {dimension_numbers = #tpu.dot_dimension_numbers<[1], [0], [0], [1], [0, 0, 1, 1], [], []>} : vector<128x32xf32>, vector<32x64xf32>, vector<128x64xf32> -> vector<128x64xf32>
    %113 = arith.addf %110, %112 : vector<128x64xf32>
    %cst_66 = arith.constant 0.000000e+00 : f32
    %114 = vector.broadcast %cst_66 : f32 to vector<128x64xf32>
    %115 = arith.maximumf %113, %114 : vector<128x64xf32>
    %c1400_67 = arith.constant 1400 : index
    %c0_68 = arith.constant 0 : index
    %116 = vector.load %arg3[%c1400_67, %c0_68] : memref<1768x128xf32, #tpu.memory_space<vmem>>, vector<64x32xf32>
    %cst_69 = arith.constant dense<0.000000e+00> : vector<128x32xf32>
    %117 = tpu.matmul %115, %116, %cst_69 {dimension_numbers = #tpu.dot_dimension_numbers<[1], [0], [0], [1], [0, 0, 1, 1], [], []>} : vector<128x64xf32>, vector<64x32xf32>, vector<128x32xf32> -> vector<128x32xf32>
    %c1464_70 = arith.constant 1464 : index
    %c0_71 = arith.constant 0 : index
    %118 = vector.load %arg3[%c1464_70, %c0_71] : memref<1768x128xf32, #tpu.memory_space<vmem>>, vector<1x32xf32>
    %119 = vector.broadcast %118 : vector<1x32xf32> to vector<128x32xf32>
    %120 = arith.addf %117, %119 : vector<128x32xf32>
    %cst_72 = arith.constant 0.000000e+00 : f32
    %121 = vector.broadcast %cst_72 : f32 to vector<128x32xf32>
    %122 = arith.maximumf %120, %121 : vector<128x32xf32>
    %cst_73 = arith.constant dense<0.000000e+00> : vector<64x32xf32>
    %123 = tpu.matmul %30, %122, %cst_73 {dimension_numbers = #tpu.dot_dimension_numbers<[0], [0], [1], [1], [0, 1, 1, 1], [], []>} : vector<128x64xf32>, vector<128x32xf32>, vector<64x32xf32> -> vector<64x32xf32>
    %c1504_74 = arith.constant 1504 : index
    %c0_75 = arith.constant 0 : index
    %124 = vector.load %arg3[%c1504_74, %c0_75] : memref<1768x128xf32, #tpu.memory_space<vmem>>, vector<32x32xf32>
    %cst_76 = arith.constant dense<0.000000e+00> : vector<64x32xf32>
    %125 = tpu.matmul %102, %124, %cst_76 {dimension_numbers = #tpu.dot_dimension_numbers<[1], [0], [0], [1], [0, 0, 1, 1], [], []>} : vector<64x32xf32>, vector<32x32xf32>, vector<64x32xf32> -> vector<64x32xf32>
    %126 = arith.addf %73, %125 : vector<64x32xf32>
    %c1536_77 = arith.constant 1536 : index
    %c0_78 = arith.constant 0 : index
    %127 = vector.load %arg3[%c1536_77, %c0_78] : memref<1768x128xf32, #tpu.memory_space<vmem>>, vector<32x32xf32>
    %cst_79 = arith.constant dense<0.000000e+00> : vector<64x32xf32>
    %128 = tpu.matmul %123, %127, %cst_79 {dimension_numbers = #tpu.dot_dimension_numbers<[1], [0], [0], [1], [0, 0, 1, 1], [], []>} : vector<64x32xf32>, vector<32x32xf32>, vector<64x32xf32> -> vector<64x32xf32>
    %129 = arith.addf %126, %128 : vector<64x32xf32>
    %cst_80 = arith.constant 0.000000e+00 : f32
    %130 = vector.broadcast %cst_80 : f32 to vector<64x32xf32>
    %131 = arith.maximumf %129, %130 : vector<64x32xf32>
    %c1656 = arith.constant 1656 : index
    %c0_81 = arith.constant 0 : index
    %132 = vector.load %arg3[%c1656, %c0_81] : memref<1768x128xf32, #tpu.memory_space<vmem>>, vector<32x64xf32>
    %cst_82 = arith.constant dense<0.000000e+00> : vector<64x64xf32>
    %133 = tpu.matmul %131, %132, %cst_82 {dimension_numbers = #tpu.dot_dimension_numbers<[1], [0], [0], [1], [0, 0, 1, 1], [], []>} : vector<64x32xf32>, vector<32x64xf32>, vector<64x64xf32> -> vector<64x64xf32>
    %c1688 = arith.constant 1688 : index
    %c0_83 = arith.constant 0 : index
    %134 = vector.load %arg3[%c1688, %c0_83] : memref<1768x128xf32, #tpu.memory_space<vmem>>, vector<1x64xf32>
    %135 = vector.broadcast %134 : vector<1x64xf32> to vector<64x64xf32>
    %136 = arith.addf %133, %135 : vector<64x64xf32>
    %cst_84 = arith.constant 0.000000e+00 : f32
    %137 = vector.broadcast %cst_84 : f32 to vector<64x64xf32>
    %138 = arith.maximumf %136, %137 : vector<64x64xf32>
    %c1696 = arith.constant 1696 : index
    %c0_85 = arith.constant 0 : index
    %139 = vector.load %arg3[%c1696, %c0_85] : memref<1768x128xf32, #tpu.memory_space<vmem>>, vector<64x128xf32>
    %cst_86 = arith.constant dense<0.000000e+00> : vector<64x128xf32>
    %140 = tpu.matmul %138, %139, %cst_86 {dimension_numbers = #tpu.dot_dimension_numbers<[1], [0], [0], [1], [0, 0, 1, 1], [], []>} : vector<64x64xf32>, vector<64x128xf32>, vector<64x128xf32> -> vector<64x128xf32>
    %c1760 = arith.constant 1760 : index
    %c0_87 = arith.constant 0 : index
    %141 = vector.load %arg3[%c1760, %c0_87] : memref<1768x128xf32, #tpu.memory_space<vmem>>, vector<1x128xf32>
    %142 = vector.broadcast %141 : vector<1x128xf32> to vector<64x128xf32>
    %143 = arith.addf %140, %142 : vector<64x128xf32>
    %c0_88 = arith.constant 0 : index
    %c0_89 = arith.constant 0 : index
    %144 = vector.load %arg4[%c0_88, %c0_89] : memref<192x128xf32, #tpu.memory_space<vmem>>, vector<64x128xf32>
    tpu.vector_store %arg4[%c0_88, %c0_89], %143 {strides = array<i32>} : memref<192x128xf32, #tpu.memory_space<vmem>>, vector<64x128xf32>,
    %c1576 = arith.constant 1576 : index
    %c0_90 = arith.constant 0 : index
    %145 = vector.load %arg3[%c1576, %c0_90] : memref<1768x128xf32, #tpu.memory_space<vmem>>, vector<32x32xf32>
    %cst_91 = arith.constant dense<0.000000e+00> : vector<128x32xf32>
    %146 = tpu.matmul %122, %145, %cst_91 {dimension_numbers = #tpu.dot_dimension_numbers<[1], [0], [0], [1], [0, 0, 1, 1], [], []>} : vector<128x32xf32>, vector<32x32xf32>, vector<128x32xf32> -> vector<128x32xf32>
    %c1608 = arith.constant 1608 : index
    %c0_92 = arith.constant 0 : index
    %147 = vector.load %arg3[%c1608, %c0_92] : memref<1768x128xf32, #tpu.memory_space<vmem>>, vector<1x32xf32>
    %148 = vector.broadcast %147 : vector<1x32xf32> to vector<128x32xf32>
    %149 = arith.addf %146, %148 : vector<128x32xf32>
    %cst_93 = arith.constant 0.000000e+00 : f32
    %150 = vector.broadcast %cst_93 : f32 to vector<128x32xf32>
    %151 = arith.maximumf %149, %150 : vector<128x32xf32>
    %c1616 = arith.constant 1616 : index
    %c0_94 = arith.constant 0 : index
    %152 = vector.load %arg3[%c1616, %c0_94] : memref<1768x128xf32, #tpu.memory_space<vmem>>, vector<32x128xf32>
    %cst_95 = arith.constant dense<0.000000e+00> : vector<128x128xf32>
    %153 = tpu.matmul %151, %152, %cst_95 {dimension_numbers = #tpu.dot_dimension_numbers<[1], [0], [0], [1], [0, 0, 1, 1], [], []>} : vector<128x32xf32>, vector<32x128xf32>, vector<128x128xf32> -> vector<128x128xf32>
    %c1648 = arith.constant 1648 : index
    %c0_96 = arith.constant 0 : index
    %154 = vector.load %arg3[%c1648, %c0_96] : memref<1768x128xf32, #tpu.memory_space<vmem>>, vector<1x128xf32>
    %155 = vector.broadcast %154 : vector<1x128xf32> to vector<128x128xf32>
    %156 = arith.addf %153, %155 : vector<128x128xf32>
    %c64_97 = arith.constant 64 : index
    %c0_98 = arith.constant 0 : index
    %157 = vector.load %arg4[%c64_97, %c0_98] : memref<192x128xf32, #tpu.memory_space<vmem>>, vector<128x128xf32>
    tpu.vector_store %arg4[%c64_97, %c0_98], %156 {strides = array<i32>} : memref<192x128xf32, #tpu.memory_space<vmem>>, vector<128x128xf32>,
    return
  }
}

</mosaic_0001>

<llo_original>
// kernel: forward.1
$region0: #{forward.1}
  #allocation0 [shape = 'u32[]', space=smem, size = 0x4, offset = 0x4, fixed_abs, tag = 'smem constant byte address 0x4 - core index']
  #allocation1 [shape = 'u32[144,128]{1,0:T(1,128)}', space=vmem, size = 0x12000, scoped, tag = 'internal scratch']
  %s0 = inlined_call_operand.vmem [shape: f32[192,8], index: 0, kind: input, shape index: {}]
  %s1 = inlined_call_operand.vmem [shape: s32[320,1], index: 1, kind: input, shape index: {}]
  %s2 = inlined_call_operand.vmem [shape: f32[16,1088], index: 2, kind: input, shape index: {}]
  %s3 = inlined_call_operand.hbm [shape: f32[1768,128], index: 3, kind: input, shape index: {}]
  %s4 = inlined_call_operand.vmem [shape: f32[192,128], index: 4, kind: output, shape index: {}]
  %s5 = sld [smem:[#allocation0]]
  $region30: #{forward.1} parent=0
    _
  %s7 = ssub.s32 1, %s5
  %s8 = scalar_select 0, %s7, %s5
  $region1: #{forward.1} parent=0
    #allocation2 [shape = 'u8[905216]{0}', space=vmem, size = 0xdd000, scoped, tag = 'input window, operand 3, single buffered']
    #allocation3 [shape = 's32[1]{0}', space=sflag, size = 0x4, scoped, tag = 'scoped memory for forward.1']
    %9 = vsyncpa [#allocation3], 0
    // Predicated region
    $region2: #{forward.1} parent=1 // pred_check
      _
    $region3: #{forward.1} parent=1 // pred_check_branch
      %11 = sbr.rel (0) target = $region5
    $region4: #{forward.1} parent=1 // pred_region
      _
    $region5: #{forward.1} parent=1 // pred_fallthru
      _
    // Predicated region
    $region6: #{forward.1} parent=1 // pred_check
      _
    $region7: #{forward.1} parent=1 // pred_check_branch
      %13 = sbr.rel (0) target = $region9
    $region8: #{forward.1} parent=1 // pred_region
      _
    $region9: #{forward.1} parent=1 // pred_fallthru
      _
    // Predicated region
    $region10: #{forward.1} parent=1 // pred_check
      _
    $region11: #{forward.1} parent=1 // pred_check_branch
      %15 = sbr.rel (0) target = $region13
    $region12: #{forward.1} parent=1 // pred_region
      _
    $region13: #{forward.1} parent=1 // pred_fallthru
      _
    // Predicated region
    $region14: #{forward.1} parent=1 // pred_check
      _
    $region15: #{forward.1} parent=1 // pred_check_branch
      %17 = sbr.rel (0) target = $region17
    $region16: #{forward.1} parent=1 // pred_region
      %s19 = ssub.s32 28288, 28288
      %20 = vsyncadd [#allocation3], %s19
      %s21 = sshll.u32 [#allocation2], 4
      %s22 = int_to_ptr.vmem [resolvable:$true] %s21
      %27 = dma.hbm_to_vmem [thread:$0]  %s3, 28288, %s22, [#allocation3], 128, 128, 8
    $region17: #{forward.1} parent=1 // pred_fallthru
      _
    // Predicated region
    $region18: #{forward.1} parent=1 // pred_check
      _
    $region19: #{forward.1} parent=1 // pred_check_branch
      %29 = sbr.rel (0) target = $region21
    $region20: #{forward.1} parent=1 // pred_region
      %30 = dma.done [#allocation3], 28288
    $region21: #{forward.1} parent=1 // pred_fallthru
      _
    %v31 = vld [vmem:[%s0] sm:$0xff]
    %v32 = vld [vmem:[%s0 + $0x8] sm:$0xff]
    %v33 = vld [vmem:[%s0 + $0x10] sm:$0xff]
    %v34 = vld [vmem:[%s0 + $0x18] sm:$0xff]
    %v35 = vld [vmem:[%s0 + $0x20] sm:$0xff]
    %v36 = vld [vmem:[%s0 + $0x28] sm:$0xff]
    %v37 = vld [vmem:[%s0 + $0x30] sm:$0xff]
    %v38 = vld [vmem:[%s0 + $0x38] sm:$0xff]
    %v39 = vld [vmem:[%s0 + $0x40] sm:$0xff]
    %v40 = vld [vmem:[%s0 + $0x48] sm:$0xff]
    %v41 = vld [vmem:[%s0 + $0x50] sm:$0xff]
    %v42 = vld [vmem:[%s0 + $0x58] sm:$0xff]
    %v43 = vld [vmem:[%s0 + $0x60] sm:$0xff]
    %v44 = vld [vmem:[%s0 + $0x68] sm:$0xff]
    %v45 = vld [vmem:[%s0 + $0x70] sm:$0xff]
    %v46 = vld [vmem:[%s0 + $0x78] sm:$0xff]
    %v47 = vld [vmem:[%s0 + $0x80] sm:$0xff]
    %v48 = vld [vmem:[%s0 + $0x88] sm:$0xff]
    %v49 = vld [vmem:[%s0 + $0x90] sm:$0xff]
    %v50 = vld [vmem:[%s0 + $0x98] sm:$0xff]
    %v51 = vld [vmem:[%s0 + $0xa0] sm:$0xff]
    %v52 = vld [vmem:[%s0 + $0xa8] sm:$0xff]
    %v53 = vld [vmem:[%s0 + $0xb0] sm:$0xff]
    %v54 = vld [vmem:[%s0 + $0xb8] sm:$0xff]
    %v55 = vld [vmem:[%s1] sm:$0xff]
    %v56 = vld [vmem:[%s1 + $0x8] sm:$0xff]
    %v57 = vld [vmem:[%s1 + $0x10] sm:$0xff]
    %v58 = vld [vmem:[%s1 + $0x18] sm:$0xff]
    %v59 = vld [vmem:[%s1 + $0x20] sm:$0xff]
    %v60 = vld [vmem:[%s1 + $0x28] sm:$0xff]
    %v61 = vld [vmem:[%s1 + $0x30] sm:$0xff]
    %v62 = vld [vmem:[%s1 + $0x38] sm:$0xff]
    %v63 = vld [vmem:[%s1 + $0x40] sm:$0xff]
    %v64 = vld [vmem:[%s1 + $0x48] sm:$0xff]
    %v65 = vld [vmem:[%s1 + $0x50] sm:$0xff]
    %v66 = vld [vmem:[%s1 + $0x58] sm:$0xff]
    %v67 = vld [vmem:[%s1 + $0x60] sm:$0xff]
    %v68 = vld [vmem:[%s1 + $0x68] sm:$0xff]
    %v69 = vld [vmem:[%s1 + $0x70] sm:$0xff]
    %v70 = vld [vmem:[%s1 + $0x78] sm:$0xff]
    %v71 = vld [vmem:[%s1 + $0x80] sm:$0xff]
    %v72 = vld [vmem:[%s1 + $0x88] sm:$0xff]
    %v73 = vld [vmem:[%s1 + $0x90] sm:$0xff]
    %v74 = vld [vmem:[%s1 + $0x98] sm:$0xff]
    %v75 = vld [vmem:[%s1 + $0xa0] sm:$0xff]
    %v76 = vld [vmem:[%s1 + $0xa8] sm:$0xff]
    %v77 = vld [vmem:[%s1 + $0xb0] sm:$0xff]
    %v78 = vld [vmem:[%s1 + $0xb8] sm:$0xff]
    %v79 = vld [vmem:[%s1 + $0xc0] sm:$0xff]
    %v80 = vld [vmem:[%s1 + $0xc8] sm:$0xff]
    %v81 = vld [vmem:[%s1 + $0xd0] sm:$0xff]
    %v82 = vld [vmem:[%s1 + $0xd8] sm:$0xff]
    %v83 = vld [vmem:[%s1 + $0xe0] sm:$0xff]
    %v84 = vld [vmem:[%s1 + $0xe8] sm:$0xff]
    %v85 = vld [vmem:[%s1 + $0xf0] sm:$0xff]
    %v86 = vld [vmem:[%s1 + $0xf8] sm:$0xff]
    %v87 = vld [vmem:[%s1 + $0x100] sm:$0xff]
    %v88 = vld [vmem:[%s1 + $0x108] sm:$0xff]
    %v89 = vld [vmem:[%s1 + $0x110] sm:$0xff]
    %v90 = vld [vmem:[%s1 + $0x118] sm:$0xff]
    %v91 = vld [vmem:[%s1 + $0x120] sm:$0xff]
    %v92 = vld [vmem:[%s1 + $0x128] sm:$0xff]
    %v93 = vld [vmem:[%s1 + $0x130] sm:$0xff]
    %v94 = vld [vmem:[%s1 + $0x138] sm:$0xff]
    %v95 = vlaneseq
    %v96 = vand.u32 %v95, 127
    %97 = vset.pattern.permute.xlu0 0
    %98 = vperm.xlu0 %97, %v55
    %v99 = vpop.permute.xlu0 %98
    %100 = vset.pattern.permute.xlu0 0
    %101 = vperm.xlu0 %100, %v56
    %v102 = vpop.permute.xlu0 %101
    %103 = vset.pattern.permute.xlu0 0
    %104 = vperm.xlu0 %103, %v57
    %v105 = vpop.permute.xlu0 %104
    %106 = vset.pattern.permute.xlu0 0
    %107 = vperm.xlu0 %106, %v58
    %v108 = vpop.permute.xlu0 %107
    %109 = vset.pattern.permute.xlu0 0
    %110 = vperm.xlu0 %109, %v59
    %v111 = vpop.permute.xlu0 %110
    %112 = vset.pattern.permute.xlu0 0
    %113 = vperm.xlu0 %112, %v60
    %v114 = vpop.permute.xlu0 %113
    %115 = vset.pattern.permute.xlu0 0
    %116 = vperm.xlu0 %115, %v61
    %v117 = vpop.permute.xlu0 %116
    %118 = vset.pattern.permute.xlu0 0
    %119 = vperm.xlu0 %118, %v62
    %v120 = vpop.permute.xlu0 %119
    %vm121 = vcmp.eq.s32.totalorder %v96, %v99
    %vm122 = vcmp.eq.s32.totalorder %v96, %v102
    %vm123 = vcmp.eq.s32.totalorder %v96, %v105
    %vm124 = vcmp.eq.s32.totalorder %v96, %v108
    %vm125 = vcmp.eq.s32.totalorder %v96, %v111
    %vm126 = vcmp.eq.s32.totalorder %v96, %v114
    %vm127 = vcmp.eq.s32.totalorder %v96, %v117
    %vm128 = vcmp.eq.s32.totalorder %v96, %v120
    %v129 = vsel %vm121, 1, 0
    %v130 = vsel %vm122, 1, 0
    %v131 = vsel %vm123, 1, 0
    %v132 = vsel %vm124, 1, 0
    %v133 = vsel %vm125, 1, 0
    %v134 = vsel %vm126, 1, 0
    %v135 = vsel %vm127, 1, 0
    %v136 = vsel %vm128, 1, 0
    %v137 = vcvt.s32.f32 %v129
    %v138 = vcvt.s32.f32 %v130
    %v139 = vcvt.s32.f32 %v131
    %v140 = vcvt.s32.f32 %v132
    %v141 = vcvt.s32.f32 %v133
    %v142 = vcvt.s32.f32 %v134
    %v143 = vcvt.s32.f32 %v135
    %v144 = vcvt.s32.f32 %v136
    %v145 = vadd.s32 %v96, 128
    %v146 = vadd.s32 %v96, 256
    %v147 = vadd.s32 %v96, 384
    %v148 = vadd.s32 %v96, 512
    %v149 = vadd.s32 %v96, 640
    %v150 = vadd.s32 %v96, 768
    %v151 = vadd.s32 %v96, 896
    %v152 = vadd.s32 %v96, 1024
    %v153 = vmul.u32 %v55, 64
    %v154 = vmul.u32 %v56, 64
    %v155 = vmul.u32 %v57, 64
    %v156 = vmul.u32 %v58, 64
    %v157 = vmul.u32 %v59, 64
    %v158 = vmul.u32 %v60, 64
    %v159 = vmul.u32 %v61, 64
    %v160 = vmul.u32 %v62, 64
    %161 = vset.pattern.permute.xlu0 0
    %162 = vperm.xlu0 %161, %v153
    %v163 = vpop.permute.xlu0 %162
    %164 = vset.pattern.permute.xlu0 0
    %165 = vperm.xlu0 %164, %v154
    %v166 = vpop.permute.xlu0 %165
    %167 = vset.pattern.permute.xlu0 0
    %168 = vperm.xlu0 %167, %v155
    %v169 = vpop.permute.xlu0 %168
    %170 = vset.pattern.permute.xlu0 0
    %171 = vperm.xlu0 %170, %v156
    %v172 = vpop.permute.xlu0 %171
    %173 = vset.pattern.permute.xlu0 0
    %174 = vperm.xlu0 %173, %v157
    %v175 = vpop.permute.xlu0 %174
    %176 = vset.pattern.permute.xlu0 0
    %177 = vperm.xlu0 %176, %v158
    %v178 = vpop.permute.xlu0 %177
    %179 = vset.pattern.permute.xlu0 0
    %180 = vperm.xlu0 %179, %v159
    %v181 = vpop.permute.xlu0 %180
    %182 = vset.pattern.permute.xlu0 0
    %183 = vperm.xlu0 %182, %v160
    %v184 = vpop.permute.xlu0 %183
    %vm185 = vcmp.ge.s32.totalorder %v96, %v163
    %vm186 = vcmp.ge.s32.totalorder %v145, %v163
    %vm187 = vcmp.ge.s32.totalorder %v146, %v163
    %vm188 = vcmp.ge.s32.totalorder %v147, %v163
    %vm189 = vcmp.ge.s32.totalorder %v148, %v163
    %vm190 = vcmp.ge.s32.totalorder %v149, %v163
    %vm191 = vcmp.ge.s32.totalorder %v150, %v163
    %vm192 = vcmp.ge.s32.totalorder %v151, %v163
    %vm193 = vcmp.ge.s32.totalorder %v152, %v163
    %vm194 = vcmp.ge.s32.totalorder %v96, %v166
    %vm195 = vcmp.ge.s32.totalorder %v145, %v166
    %vm196 = vcmp.ge.s32.totalorder %v146, %v166
    %vm197 = vcmp.ge.s32.totalorder %v147, %v166
    %vm198 = vcmp.ge.s32.totalorder %v148, %v166
    %vm199 = vcmp.ge.s32.totalorder %v149, %v166
    %vm200 = vcmp.ge.s32.totalorder %v150, %v166
    %vm201 = vcmp.ge.s32.totalorder %v151, %v166
    %vm202 = vcmp.ge.s32.totalorder %v152, %v166
    %vm203 = vcmp.ge.s32.totalorder %v96, %v169
    %vm204 = vcmp.ge.s32.totalorder %v145, %v169
    %vm205 = vcmp.ge.s32.totalorder %v146, %v169
    %vm206 = vcmp.ge.s32.totalorder %v147, %v169
    %vm207 = vcmp.ge.s32.totalorder %v148, %v169
    %vm208 = vcmp.ge.s32.totalorder %v149, %v169
    %vm209 = vcmp.ge.s32.totalorder %v150, %v169
    %vm210 = vcmp.ge.s32.totalorder %v151, %v169
    %vm211 = vcmp.ge.s32.totalorder %v152, %v169
    %vm212 = vcmp.ge.s32.totalorder %v96, %v172
    %vm213 = vcmp.ge.s32.totalorder %v145, %v172
    %vm214 = vcmp.ge.s32.totalorder %v146, %v172
    %vm215 = vcmp.ge.s32.totalorder %v147, %v172
    %vm216 = vcmp.ge.s32.totalorder %v148, %v172
    %vm217 = vcmp.ge.s32.totalorder %v149, %v172
    %vm218 = vcmp.ge.s32.totalorder %v150, %v172
    %vm219 = vcmp.ge.s32.totalorder %v151, %v172
    %vm220 = vcmp.ge.s32.totalorder %v152, %v172
    %vm221 = vcmp.ge.s32.totalorder %v96, %v175
    %vm222 = vcmp.ge.s32.totalorder %v145, %v175
    %vm223 = vcmp.ge.s32.totalorder %v146, %v175
    %vm224 = vcmp.ge.s32.totalorder %v147, %v175
    %vm225 = vcmp.ge.s32.totalorder %v148, %v175
    %vm226 = vcmp.ge.s32.totalorder %v149, %v175
    %vm227 = vcmp.ge.s32.totalorder %v150, %v175
    %vm228 = vcmp.ge.s32.totalorder %v151, %v175
    %vm229 = vcmp.ge.s32.totalorder %v152, %v175
    %vm230 = vcmp.ge.s32.totalorder %v96, %v178
    %vm231 = vcmp.ge.s32.totalorder %v145, %v178
    %vm232 = vcmp.ge.s32.totalorder %v146, %v178
    %vm233 = vcmp.ge.s32.totalorder %v147, %v178
    %vm234 = vcmp.ge.s32.totalorder %v148, %v178
    %vm235 = vcmp.ge.s32.totalorder %v149, %v178
    %vm236 = vcmp.ge.s32.totalorder %v150, %v178
    %vm237 = vcmp.ge.s32.totalorder %v151, %v178
    %vm238 = vcmp.ge.s32.totalorder %v152, %v178
    %vm239 = vcmp.ge.s32.totalorder %v96, %v181
    %vm240 = vcmp.ge.s32.totalorder %v145, %v181
    %vm241 = vcmp.ge.s32.totalorder %v146, %v181
    %vm242 = vcmp.ge.s32.totalorder %v147, %v181
    %vm243 = vcmp.ge.s32.totalorder %v148, %v181
    %vm244 = vcmp.ge.s32.totalorder %v149, %v181
    %vm245 = vcmp.ge.s32.totalorder %v150, %v181
    %vm246 = vcmp.ge.s32.totalorder %v151, %v181
    %vm247 = vcmp.ge.s32.totalorder %v152, %v181
    %vm248 = vcmp.ge.s32.totalorder %v96, %v184
    %vm249 = vcmp.ge.s32.totalorder %v145, %v184
    %vm250 = vcmp.ge.s32.totalorder %v146, %v184
    %vm251 = vcmp.ge.s32.totalorder %v147, %v184
    %vm252 = vcmp.ge.s32.totalorder %v148, %v184
    %vm253 = vcmp.ge.s32.totalorder %v149, %v184
    %vm254 = vcmp.ge.s32.totalorder %v150, %v184
    %vm255 = vcmp.ge.s32.totalorder %v151, %v184
    %vm256 = vcmp.ge.s32.totalorder %v152, %v184
    %v257 = vadd.s32 %v153, 64
    %v258 = vadd.s32 %v154, 64
    %v259 = vadd.s32 %v155, 64
    %v260 = vadd.s32 %v156, 64
    %v261 = vadd.s32 %v157, 64
    %v262 = vadd.s32 %v158, 64
    %v263 = vadd.s32 %v159, 64
    %v264 = vadd.s32 %v160, 64
    %265 = vset.pattern.permute.xlu0 0
    %266 = vperm.xlu0 %265, %v257
    %v267 = vpop.permute.xlu0 %266
    %268 = vset.pattern.permute.xlu0 0
    %269 = vperm.xlu0 %268, %v258
    %v270 = vpop.permute.xlu0 %269
    %271 = vset.pattern.permute.xlu0 0
    %272 = vperm.xlu0 %271, %v259
    %v273 = vpop.permute.xlu0 %272
    %274 = vset.pattern.permute.xlu0 0
    %275 = vperm.xlu0 %274, %v260
    %v276 = vpop.permute.xlu0 %275
    %277 = vset.pattern.permute.xlu0 0
    %278 = vperm.xlu0 %277, %v261
    %v279 = vpop.permute.xlu0 %278
    %280 = vset.pattern.permute.xlu0 0
    %281 = vperm.xlu0 %280, %v262
    %v282 = vpop.permute.xlu0 %281
    %283 = vset.pattern.permute.xlu0 0
    %284 = vperm.xlu0 %283, %v263
    %v285 = vpop.permute.xlu0 %284
    %286 = vset.pattern.permute.xlu0 0
    %287 = vperm.xlu0 %286, %v264
    %v288 = vpop.permute.xlu0 %287
    %vm289 = vcmp.lt.s32.totalorder %v96, %v267
    %vm290 = vcmp.lt.s32.totalorder %v145, %v267
    %vm291 = vcmp.lt.s32.totalorder %v146, %v267
    %vm292 = vcmp.lt.s32.totalorder %v147, %v267
    %vm293 = vcmp.lt.s32.totalorder %v148, %v267
    %vm294 = vcmp.lt.s32.totalorder %v149, %v267
    %vm295 = vcmp.lt.s32.totalorder %v150, %v267
    %vm296 = vcmp.lt.s32.totalorder %v151, %v267
    %vm297 = vcmp.lt.s32.totalorder %v152, %v267
    %vm298 = vcmp.lt.s32.totalorder %v96, %v270
    %vm299 = vcmp.lt.s32.totalorder %v145, %v270
    %vm300 = vcmp.lt.s32.totalorder %v146, %v270
    %vm301 = vcmp.lt.s32.totalorder %v147, %v270
    %vm302 = vcmp.lt.s32.totalorder %v148, %v270
    %vm303 = vcmp.lt.s32.totalorder %v149, %v270
    %vm304 = vcmp.lt.s32.totalorder %v150, %v270
    %vm305 = vcmp.lt.s32.totalorder %v151, %v270
    %vm306 = vcmp.lt.s32.totalorder %v152, %v270
    %vm307 = vcmp.lt.s32.totalorder %v96, %v273
    %vm308 = vcmp.lt.s32.totalorder %v145, %v273
    %vm309 = vcmp.lt.s32.totalorder %v146, %v273
    %vm310 = vcmp.lt.s32.totalorder %v147, %v273
    %vm311 = vcmp.lt.s32.totalorder %v148, %v273
    %vm312 = vcmp.lt.s32.totalorder %v149, %v273
    %vm313 = vcmp.lt.s32.totalorder %v150, %v273
    %vm314 = vcmp.lt.s32.totalorder %v151, %v273
    %vm315 = vcmp.lt.s32.totalorder %v152, %v273
    %vm316 = vcmp.lt.s32.totalorder %v96, %v276
    %vm317 = vcmp.lt.s32.totalorder %v145, %v276
    %vm318 = vcmp.lt.s32.totalorder %v146, %v276
    %vm319 = vcmp.lt.s32.totalorder %v147, %v276
    %vm320 = vcmp.lt.s32.totalorder %v148, %v276
    %vm321 = vcmp.lt.s32.totalorder %v149, %v276
    %vm322 = vcmp.lt.s32.totalorder %v150, %v276
    %vm323 = vcmp.lt.s32.totalorder %v151, %v276
    %vm324 = vcmp.lt.s32.totalorder %v152, %v276
    %vm325 = vcmp.lt.s32.totalorder %v96, %v279
    %vm326 = vcmp.lt.s32.totalorder %v145, %v279
    %vm327 = vcmp.lt.s32.totalorder %v146, %v279
    %vm328 = vcmp.lt.s32.totalorder %v147, %v279
    %vm329 = vcmp.lt.s32.totalorder %v148, %v279
    %vm330 = vcmp.lt.s32.totalorder %v149, %v279
    %vm331 = vcmp.lt.s32.totalorder %v150, %v279
    %vm332 = vcmp.lt.s32.totalorder %v151, %v279
    %vm333 = vcmp.lt.s32.totalorder %v152, %v279
    %vm334 = vcmp.lt.s32.totalorder %v96, %v282
    %vm335 = vcmp.lt.s32.totalorder %v145, %v282
    %vm336 = vcmp.lt.s32.totalorder %v146, %v282
    %vm337 = vcmp.lt.s32.totalorder %v147, %v282
    %vm338 = vcmp.lt.s32.totalorder %v148, %v282
    %vm339 = vcmp.lt.s32.totalorder %v149, %v282
    %vm340 = vcmp.lt.s32.totalorder %v150, %v282
    %vm341 = vcmp.lt.s32.totalorder %v151, %v282
    %vm342 = vcmp.lt.s32.totalorder %v152, %v282
    %vm343 = vcmp.lt.s32.totalorder %v96, %v285
    %vm344 = vcmp.lt.s32.totalorder %v145, %v285
    %vm345 = vcmp.lt.s32.totalorder %v146, %v285
    %vm346 = vcmp.lt.s32.totalorder %v147, %v285
    %vm347 = vcmp.lt.s32.totalorder %v148, %v285
    %vm348 = vcmp.lt.s32.totalorder %v149, %v285
    %vm349 = vcmp.lt.s32.totalorder %v150, %v285
    %vm350 = vcmp.lt.s32.totalorder %v151, %v285
    %vm351 = vcmp.lt.s32.totalorder %v152, %v285
    %vm352 = vcmp.lt.s32.totalorder %v96, %v288
    %vm353 = vcmp.lt.s32.totalorder %v145, %v288
    %vm354 = vcmp.lt.s32.totalorder %v146, %v288
    %vm355 = vcmp.lt.s32.totalorder %v147, %v288
    %vm356 = vcmp.lt.s32.totalorder %v148, %v288
    %vm357 = vcmp.lt.s32.totalorder %v149, %v288
    %vm358 = vcmp.lt.s32.totalorder %v150, %v288
    %vm359 = vcmp.lt.s32.totalorder %v151, %v288
    %vm360 = vcmp.lt.s32.totalorder %v152, %v288
    %vm361 = vmand %vm185, %vm289
    %vm362 = vmand %vm186, %vm290
    %vm363 = vmand %vm187, %vm291
    %vm364 = vmand %vm188, %vm292
    %vm365 = vmand %vm189, %vm293
    %vm366 = vmand %vm190, %vm294
    %vm367 = vmand %vm191, %vm295
    %vm368 = vmand %vm192, %vm296
    %vm369 = vmand %vm193, %vm297
    %vm370 = vmand %vm194, %vm298
    %vm371 = vmand %vm195, %vm299
    %vm372 = vmand %vm196, %vm300
    %vm373 = vmand %vm197, %vm301
    %vm374 = vmand %vm198, %vm302
    %vm375 = vmand %vm199, %vm303
    %vm376 = vmand %vm200, %vm304
    %vm377 = vmand %vm201, %vm305
    %vm378 = vmand %vm202, %vm306
    %vm379 = vmand %vm203, %vm307
    %vm380 = vmand %vm204, %vm308
    %vm381 = vmand %vm205, %vm309
    %vm382 = vmand %vm206, %vm310
    %vm383 = vmand %vm207, %vm311
    %vm384 = vmand %vm208, %vm312
    %vm385 = vmand %vm209, %vm313
    %vm386 = vmand %vm210, %vm314
    %vm387 = vmand %vm211, %vm315
    %vm388 = vmand %vm212, %vm316
    %vm389 = vmand %vm213, %vm317
    %vm390 = vmand %vm214, %vm318
    %vm391 = vmand %vm215, %vm319
    %vm392 = vmand %vm216, %vm320
    %vm393 = vmand %vm217, %vm321
    %vm394 = vmand %vm218, %vm322
    %vm395 = vmand %vm219, %vm323
    %vm396 = vmand %vm220, %vm324
    %vm397 = vmand %vm221, %vm325
    %vm398 = vmand %vm222, %vm326
    %vm399 = vmand %vm223, %vm327
    %vm400 = vmand %vm224, %vm328
    %vm401 = vmand %vm225, %vm329
    %vm402 = vmand %vm226, %vm330
    %vm403 = vmand %vm227, %vm331
    %vm404 = vmand %vm228, %vm332
    %vm405 = vmand %vm229, %vm333
    %vm406 = vmand %vm230, %vm334
    %vm407 = vmand %vm231, %vm335
    %vm408 = vmand %vm232, %vm336
    %vm409 = vmand %vm233, %vm337
    %vm410 = vmand %vm234, %vm338
    %vm411 = vmand %vm235, %vm339
    %vm412 = vmand %vm236, %vm340
    %vm413 = vmand %vm237, %vm341
    %vm414 = vmand %vm238, %vm342
    %vm415 = vmand %vm239, %vm343
    %vm416 = vmand %vm240, %vm344
    %vm417 = vmand %vm241, %vm345
    %vm418 = vmand %vm242, %vm346
    %vm419 = vmand %vm243, %vm347
    %vm420 = vmand %vm244, %vm348
    %vm421 = vmand %vm245, %vm349
    %vm422 = vmand %vm246, %vm350
    %vm423 = vmand %vm247, %vm351
    %vm424 = vmand %vm248, %vm352
    %vm425 = vmand %vm249, %vm353
    %vm426 = vmand %vm250, %vm354
    %vm427 = vmand %vm251, %vm355
    %vm428 = vmand %vm252, %vm356
    %vm429 = vmand %vm253, %vm357
    %vm430 = vmand %vm254, %vm358
    %vm431 = vmand %vm255, %vm359
    %vm432 = vmand %vm256, %vm360
    %v433 = vsel %vm361, 1, 0
    %v434 = vsel %vm362, 1, 0
    %v435 = vsel %vm363, 1, 0
    %v436 = vsel %vm364, 1, 0
    %v437 = vsel %vm365, 1, 0
    %v438 = vsel %vm366, 1, 0
    %v439 = vsel %vm367, 1, 0
    %v440 = vsel %vm368, 1, 0
    %v441 = vsel %vm369, 1, 0
    %v442 = vsel %vm370, 1, 0
    %v443 = vsel %vm371, 1, 0
    %v444 = vsel %vm372, 1, 0
    %v445 = vsel %vm373, 1, 0
    %v446 = vsel %vm374, 1, 0
    %v447 = vsel %vm375, 1, 0
    %v448 = vsel %vm376, 1, 0
    %v449 = vsel %vm377, 1, 0
    %v450 = vsel %vm378, 1, 0
    %v451 = vsel %vm379, 1, 0
    %v452 = vsel %vm380, 1, 0
    %v453 = vsel %vm381, 1, 0
    %v454 = vsel %vm382, 1, 0
    %v455 = vsel %vm383, 1, 0
    %v456 = vsel %vm384, 1, 0
    %v457 = vsel %vm385, 1, 0
    %v458 = vsel %vm386, 1, 0
    %v459 = vsel %vm387, 1, 0
    %v460 = vsel %vm388, 1, 0
    %v461 = vsel %vm389, 1, 0
    %v462 = vsel %vm390, 1, 0
    %v463 = vsel %vm391, 1, 0
    %v464 = vsel %vm392, 1, 0
    %v465 = vsel %vm393, 1, 0
    %v466 = vsel %vm394, 1, 0
    %v467 = vsel %vm395, 1, 0
    %v468 = vsel %vm396, 1, 0
    %v469 = vsel %vm397, 1, 0
    %v470 = vsel %vm398, 1, 0
    %v471 = vsel %vm399, 1, 0
    %v472 = vsel %vm400, 1, 0
    %v473 = vsel %vm401, 1, 0
    %v474 = vsel %vm402, 1, 0
    %v475 = vsel %vm403, 1, 0
    %v476 = vsel %vm404, 1, 0
    %v477 = vsel %vm405, 1, 0
    %v478 = vsel %vm406, 1, 0
    %v479 = vsel %vm407, 1, 0
    %v480 = vsel %vm408, 1, 0
    %v481 = vsel %vm409, 1, 0
    %v482 = vsel %vm410, 1, 0
    %v483 = vsel %vm411, 1, 0
    %v484 = vsel %vm412, 1, 0
    %v485 = vsel %vm413, 1, 0
    %v486 = vsel %vm414, 1, 0
    %v487 = vsel %vm415, 1, 0
    %v488 = vsel %vm416, 1, 0
    %v489 = vsel %vm417, 1, 0
    %v490 = vsel %vm418, 1, 0
    %v491 = vsel %vm419, 1, 0
    %v492 = vsel %vm420, 1, 0
    %v493 = vsel %vm421, 1, 0
    %v494 = vsel %vm422, 1, 0
    %v495 = vsel %vm423, 1, 0
    %v496 = vsel %vm424, 1, 0
    %v497 = vsel %vm425, 1, 0
    %v498 = vsel %vm426, 1, 0
    %v499 = vsel %vm427, 1, 0
    %v500 = vsel %vm428, 1, 0
    %v501 = vsel %vm429, 1, 0
    %v502 = vsel %vm430, 1, 0
    %v503 = vsel %vm431, 1, 0
    %v504 = vsel %vm432, 1, 0
    %v505 = vcvt.s32.f32 %v433
    %v506 = vcvt.s32.f32 %v434
    %v507 = vcvt.s32.f32 %v435
    %v508 = vcvt.s32.f32 %v436
    %v509 = vcvt.s32.f32 %v437
    %v510 = vcvt.s32.f32 %v438
    %v511 = vcvt.s32.f32 %v439
    %v512 = vcvt.s32.f32 %v440
    %v513 = vcvt.s32.f32 %v441
    %v514 = vcvt.s32.f32 %v442
    %v515 = vcvt.s32.f32 %v443
    %v516 = vcvt.s32.f32 %v444
    %v517 = vcvt.s32.f32 %v445
    %v518 = vcvt.s32.f32 %v446
    %v519 = vcvt.s32.f32 %v447
    %v520 = vcvt.s32.f32 %v448
    %v521 = vcvt.s32.f32 %v449
    %v522 = vcvt.s32.f32 %v450
    %v523 = vcvt.s32.f32 %v451
    %v524 = vcvt.s32.f32 %v452
    %v525 = vcvt.s32.f32 %v453
    %v526 = vcvt.s32.f32 %v454
    %v527 = vcvt.s32.f32 %v455
    %v528 = vcvt.s32.f32 %v456
    %v529 = vcvt.s32.f32 %v457
    %v530 = vcvt.s32.f32 %v458
    %v531 = vcvt.s32.f32 %v459
    %v532 = vcvt.s32.f32 %v460
    %v533 = vcvt.s32.f32 %v461
    %v534 = vcvt.s32.f32 %v462
    %v535 = vcvt.s32.f32 %v463
    %v536 = vcvt.s32.f32 %v464
    %v537 = vcvt.s32.f32 %v465
    %v538 = vcvt.s32.f32 %v466
    %v539 = vcvt.s32.f32 %v467
    %v540 = vcvt.s32.f32 %v468
    %v541 = vcvt.s32.f32 %v469
    %v542 = vcvt.s32.f32 %v470
    %v543 = vcvt.s32.f32 %v471
    %v544 = vcvt.s32.f32 %v472
    %v545 = vcvt.s32.f32 %v473
    %v546 = vcvt.s32.f32 %v474
    %v547 = vcvt.s32.f32 %v475
    %v548 = vcvt.s32.f32 %v476
    %v549 = vcvt.s32.f32 %v477
    %v550 = vcvt.s32.f32 %v478
    %v551 = vcvt.s32.f32 %v479
    %v552 = vcvt.s32.f32 %v480
    %v553 = vcvt.s32.f32 %v481
    %v554 = vcvt.s32.f32 %v482
    %v555 = vcvt.s32.f32 %v483
    %v556 = vcvt.s32.f32 %v484
    %v557 = vcvt.s32.f32 %v485
    %v558 = vcvt.s32.f32 %v486
    %v559 = vcvt.s32.f32 %v487
    %v560 = vcvt.s32.f32 %v488
    %v561 = vcvt.s32.f32 %v489
    %v562 = vcvt.s32.f32 %v490
    %v563 = vcvt.s32.f32 %v491
    %v564 = vcvt.s32.f32 %v492
    %v565 = vcvt.s32.f32 %v493
    %v566 = vcvt.s32.f32 %v494
    %v567 = vcvt.s32.f32 %v495
    %v568 = vcvt.s32.f32 %v496
    %v569 = vcvt.s32.f32 %v497
    %v570 = vcvt.s32.f32 %v498
    %v571 = vcvt.s32.f32 %v499
    %v572 = vcvt.s32.f32 %v500
    %v573 = vcvt.s32.f32 %v501
    %v574 = vcvt.s32.f32 %v502
    %v575 = vcvt.s32.f32 %v503
    %v576 = vcvt.s32.f32 %v504
    %577 = vset.pattern.permute.xlu0 0
    %578 = vperm.xlu0 %577, %v63
    %v579 = vpop.permute.xlu0 %578
    %580 = vset.pattern.permute.xlu0 0
    %581 = vperm.xlu0 %580, %v64
    %v582 = vpop.permute.xlu0 %581
    %583 = vset.pattern.permute.xlu0 0
    %584 = vperm.xlu0 %583, %v65
    %v585 = vpop.permute.xlu0 %584
    %586 = vset.pattern.permute.xlu0 0
    %587 = vperm.xlu0 %586, %v66
    %v588 = vpop.permute.xlu0 %587
    %589 = vset.pattern.permute.xlu0 0
    %590 = vperm.xlu0 %589, %v67
    %v591 = vpop.permute.xlu0 %590
    %592 = vset.pattern.permute.xlu0 0
    %593 = vperm.xlu0 %592, %v68
    %v594 = vpop.permute.xlu0 %593
    %595 = vset.pattern.permute.xlu0 0
    %596 = vperm.xlu0 %595, %v69
    %v597 = vpop.permute.xlu0 %596
    %598 = vset.pattern.permute.xlu0 0
    %599 = vperm.xlu0 %598, %v70
    %v600 = vpop.permute.xlu0 %599
    %601 = vset.pattern.permute.xlu0 0
    %602 = vperm.xlu0 %601, %v71
    %v603 = vpop.permute.xlu0 %602
    %604 = vset.pattern.permute.xlu0 0
    %605 = vperm.xlu0 %604, %v72
    %v606 = vpop.permute.xlu0 %605
    %607 = vset.pattern.permute.xlu0 0
    %608 = vperm.xlu0 %607, %v73
    %v609 = vpop.permute.xlu0 %608
    %610 = vset.pattern.permute.xlu0 0
    %611 = vperm.xlu0 %610, %v74
    %v612 = vpop.permute.xlu0 %611
    %613 = vset.pattern.permute.xlu0 0
    %614 = vperm.xlu0 %613, %v75
    %v615 = vpop.permute.xlu0 %614
    %616 = vset.pattern.permute.xlu0 0
    %617 = vperm.xlu0 %616, %v76
    %v618 = vpop.permute.xlu0 %617
    %619 = vset.pattern.permute.xlu0 0
    %620 = vperm.xlu0 %619, %v77
    %v621 = vpop.permute.xlu0 %620
    %622 = vset.pattern.permute.xlu0 0
    %623 = vperm.xlu0 %622, %v78
    %v624 = vpop.permute.xlu0 %623
    %vm625 = vcmp.eq.s32.totalorder %v96, %v579
    %vm626 = vcmp.eq.s32.totalorder %v96, %v582
    %vm627 = vcmp.eq.s32.totalorder %v96, %v585
    %vm628 = vcmp.eq.s32.totalorder %v96, %v588
    %vm629 = vcmp.eq.s32.totalorder %v96, %v591
    %vm630 = vcmp.eq.s32.totalorder %v96, %v594
    %vm631 = vcmp.eq.s32.totalorder %v96, %v597
    %vm632 = vcmp.eq.s32.totalorder %v96, %v600
    %vm633 = vcmp.eq.s32.totalorder %v96, %v603
    %vm634 = vcmp.eq.s32.totalorder %v96, %v606
    %vm635 = vcmp.eq.s32.totalorder %v96, %v609
    %vm636 = vcmp.eq.s32.totalorder %v96, %v612
    %vm637 = vcmp.eq.s32.totalorder %v96, %v615
    %vm638 = vcmp.eq.s32.totalorder %v96, %v618
    %vm639 = vcmp.eq.s32.totalorder %v96, %v621
    %vm640 = vcmp.eq.s32.totalorder %v96, %v624
    %v641 = vsel %vm625, 1, 0
    %v642 = vsel %vm626, 1, 0
    %v643 = vsel %vm627, 1, 0
    %v644 = vsel %vm628, 1, 0
    %v645 = vsel %vm629, 1, 0
    %v646 = vsel %vm630, 1, 0
    %v647 = vsel %vm631, 1, 0
    %v648 = vsel %vm632, 1, 0
    %v649 = vsel %vm633, 1, 0
    %v650 = vsel %vm634, 1, 0
    %v651 = vsel %vm635, 1, 0
    %v652 = vsel %vm636, 1, 0
    %v653 = vsel %vm637, 1, 0
    %v654 = vsel %vm638, 1, 0
    %v655 = vsel %vm639, 1, 0
    %v656 = vsel %vm640, 1, 0
    %v657 = vcvt.s32.f32 %v641
    %v658 = vcvt.s32.f32 %v642
    %v659 = vcvt.s32.f32 %v643
    %v660 = vcvt.s32.f32 %v644
    %v661 = vcvt.s32.f32 %v645
    %v662 = vcvt.s32.f32 %v646
    %v663 = vcvt.s32.f32 %v647
    %v664 = vcvt.s32.f32 %v648
    %v665 = vcvt.s32.f32 %v649
    %v666 = vcvt.s32.f32 %v650
    %v667 = vcvt.s32.f32 %v651
    %v668 = vcvt.s32.f32 %v652
    %v669 = vcvt.s32.f32 %v653
    %v670 = vcvt.s32.f32 %v654
    %v671 = vcvt.s32.f32 %v655
    %v672 = vcvt.s32.f32 %v656
    %673 = vset.pattern.permute.xlu0 0
    %674 = vperm.xlu0 %673, %v79
    %v675 = vpop.permute.xlu0 %674
    %676 = vset.pattern.permute.xlu0 0
    %677 = vperm.xlu0 %676, %v80
    %v678 = vpop.permute.xlu0 %677
    %679 = vset.pattern.permute.xlu0 0
    %680 = vperm.xlu0 %679, %v81
    %v681 = vpop.permute.xlu0 %680
    %682 = vset.pattern.permute.xlu0 0
    %683 = vperm.xlu0 %682, %v82
    %v684 = vpop.permute.xlu0 %683
    %685 = vset.pattern.permute.xlu0 0
    %686 = vperm.xlu0 %685, %v83
    %v687 = vpop.permute.xlu0 %686
    %688 = vset.pattern.permute.xlu0 0
    %689 = vperm.xlu0 %688, %v84
    %v690 = vpop.permute.xlu0 %689
    %691 = vset.pattern.permute.xlu0 0
    %692 = vperm.xlu0 %691, %v85
    %v693 = vpop.permute.xlu0 %692
    %694 = vset.pattern.permute.xlu0 0
    %695 = vperm.xlu0 %694, %v86
    %v696 = vpop.permute.xlu0 %695
    %697 = vset.pattern.permute.xlu0 0
    %698 = vperm.xlu0 %697, %v87
    %v699 = vpop.permute.xlu0 %698
    %700 = vset.pattern.permute.xlu0 0
    %701 = vperm.xlu0 %700, %v88
    %v702 = vpop.permute.xlu0 %701
    %703 = vset.pattern.permute.xlu0 0
    %704 = vperm.xlu0 %703, %v89
    %v705 = vpop.permute.xlu0 %704
    %706 = vset.pattern.permute.xlu0 0
    %707 = vperm.xlu0 %706, %v90
    %v708 = vpop.permute.xlu0 %707
    %709 = vset.pattern.permute.xlu0 0
    %710 = vperm.xlu0 %709, %v91
    %v711 = vpop.permute.xlu0 %710
    %712 = vset.pattern.permute.xlu0 0
    %713 = vperm.xlu0 %712, %v92
    %v714 = vpop.permute.xlu0 %713
    %715 = vset.pattern.permute.xlu0 0
    %716 = vperm.xlu0 %715, %v93
    %v717 = vpop.permute.xlu0 %716
    %718 = vset.pattern.permute.xlu0 0
    %719 = vperm.xlu0 %718, %v94
    %v720 = vpop.permute.xlu0 %719
    %vm721 = vcmp.eq.s32.totalorder %v96, %v675
    %vm722 = vcmp.eq.s32.totalorder %v96, %v678
    %vm723 = vcmp.eq.s32.totalorder %v96, %v681
    %vm724 = vcmp.eq.s32.totalorder %v96, %v684
    %vm725 = vcmp.eq.s32.totalorder %v96, %v687
    %vm726 = vcmp.eq.s32.totalorder %v96, %v690
    %vm727 = vcmp.eq.s32.totalorder %v96, %v693
    %vm728 = vcmp.eq.s32.totalorder %v96, %v696
    %vm729 = vcmp.eq.s32.totalorder %v96, %v699
    %vm730 = vcmp.eq.s32.totalorder %v96, %v702
    %vm731 = vcmp.eq.s32.totalorder %v96, %v705
    %vm732 = vcmp.eq.s32.totalorder %v96, %v708
    %vm733 = vcmp.eq.s32.totalorder %v96, %v711
    %vm734 = vcmp.eq.s32.totalorder %v96, %v714
    %vm735 = vcmp.eq.s32.totalorder %v96, %v717
    %vm736 = vcmp.eq.s32.totalorder %v96, %v720
    %v737 = vsel %vm721, 1, 0
    %v738 = vsel %vm722, 1, 0
    %v739 = vsel %vm723, 1, 0
    %v740 = vsel %vm724, 1, 0
    %v741 = vsel %vm725, 1, 0
    %v742 = vsel %vm726, 1, 0
    %v743 = vsel %vm727, 1, 0
    %v744 = vsel %vm728, 1, 0
    %v745 = vsel %vm729, 1, 0
    %v746 = vsel %vm730, 1, 0
    %v747 = vsel %vm731, 1, 0
    %v748 = vsel %vm732, 1, 0
    %v749 = vsel %vm733, 1, 0
    %v750 = vsel %vm734, 1, 0
    %v751 = vsel %vm735, 1, 0
    %v752 = vsel %vm736, 1, 0
    %v753 = vcvt.s32.f32 %v737
    %v754 = vcvt.s32.f32 %v738
    %v755 = vcvt.s32.f32 %v739
    %v756 = vcvt.s32.f32 %v740
    %v757 = vcvt.s32.f32 %v741
    %v758 = vcvt.s32.f32 %v742
    %v759 = vcvt.s32.f32 %v743
    %v760 = vcvt.s32.f32 %v744
    %v761 = vcvt.s32.f32 %v745
    %v762 = vcvt.s32.f32 %v746
    %v763 = vcvt.s32.f32 %v747
    %v764 = vcvt.s32.f32 %v748
    %v765 = vcvt.s32.f32 %v749
    %v766 = vcvt.s32.f32 %v750
    %v767 = vcvt.s32.f32 %v751
    %v768 = vcvt.s32.f32 %v752
    %v769 = vld [vmem:[%s2] sm:$0xff]
    %v770 = vld [vmem:[%s2 + $0x8] sm:$0xff]
    %v771 = vld [vmem:[%s2 + $0x10] sm:$0xff]
    %v772 = vld [vmem:[%s2 + $0x18] sm:$0xff]
    %v773 = vld [vmem:[%s2 + $0x20] sm:$0xff]
    %v774 = vld [vmem:[%s2 + $0x28] sm:$0xff]
    %v775 = vld [vmem:[%s2 + $0x30] sm:$0xff]
    %v776 = vld [vmem:[%s2 + $0x38] sm:$0xff]
    %v777 = vld [vmem:[%s2 + $0x40] sm:$0xff]
    %s778 = scalar_lea.vmem %s2, 72
    %v779 = vld [vmem:[%s778] ss:$8 sm:$0xf]
    %v780 = vld [vmem:[%s778] ss:$8 sm:$0xf0]
    %v781 = vor.u32 %v779, %v780
    %s782 = scalar_lea.vmem %s2, 136
    %v783 = vld [vmem:[%s782] ss:$8 sm:$0x1]
    %v786 = vlaneseq
    %v787 = vshrl.u32 %v786, 7
    %v788 = vsub.s32 0, %v787
    %v789 = vrot.slane %v781, %v788
    %v790 = vlaneseq
    %v791 = vshrl.u32 %v790, 7
    %v792 = vsub.s32 1, %v791
    %v793 = vrot.slane %v781, %v792
    %v794 = vlaneseq
    %v795 = vshrl.u32 %v794, 7
    %v796 = vsub.s32 2, %v795
    %v797 = vrot.slane %v781, %v796
    %v798 = vlaneseq
    %v799 = vshrl.u32 %v798, 7
    %v800 = vsub.s32 3, %v799
    %v801 = vrot.slane %v781, %v800
    %v802 = vlaneseq
    %v803 = vshrl.u32 %v802, 7
    %v804 = vsub.s32 4, %v803
    %v805 = vrot.slane %v781, %v804
    %v806 = vlaneseq
    %v807 = vshrl.u32 %v806, 7
    %v808 = vsub.s32 5, %v807
    %v809 = vrot.slane %v781, %v808
    %v810 = vlaneseq
    %v811 = vshrl.u32 %v810, 7
    %v812 = vsub.s32 6, %v811
    %v813 = vrot.slane %v781, %v812
    %v814 = vlaneseq
    %v815 = vshrl.u32 %v814, 7
    %v816 = vsub.s32 7, %v815
    %v817 = vrot.slane %v781, %v816
    %v818 = vlaneseq
    %v819 = vshrl.u32 %v818, 7
    %v820 = vsub.s32 0, %v819
    %v821 = vrot.slane %v783, %v820
    %vm831 = vcmask 64512
    %v833 = vsel %vm831, %v31, 0
    %v836 = vsel %vm831, %v32, 0
    %v839 = vsel %vm831, %v33, 0
    %v842 = vsel %vm831, %v34, 0
    %v845 = vsel %vm831, %v35, 0
    %v848 = vsel %vm831, %v36, 0
    %v851 = vsel %vm831, %v37, 0
    %v854 = vsel %vm831, %v38, 0
    %856 = vmatprep.subr.mxu0 0.0
    %857 = vmatpush1.msra.mxu0 0.0
    %858 = vmatprep.subr.mxu0 0.0
    %859 = vmatpush1.msra.mxu0 0.0
    %860 = vmatprep.subr.mxu0 0.0
    %861 = vmatpush1.msra.mxu0 0.0
    %862 = vmatprep.subr.mxu0 0.0
    %863 = vmatpush1.msra.mxu0 0.0
    %864 = vmatprep.subr.mxu0 0.0
    %865 = vmatpush1.msra.mxu0 0.0
    %866 = vmatprep.subr.mxu0 0.0
    %867 = vmatpush1.msra.mxu0 0.0
    %868 = vmatprep.subr.mxu0 0.0
    %869 = vmatpush1.msra.mxu0 0.0
    %870 = vmatprep.subr.mxu0 0.0
    %871 = vmatpush1.msra.mxu0 0.0
    %872 = vmatprep.subr.mxu0 0.0
    %873 = vmatpush1.msra.mxu0 0.0
    %874 = vmatprep.subr.mxu0 0.0
    %875 = vmatpush1.msra.mxu0 0.0
    %876 = vmatprep.subr.mxu0 0.0
    %877 = vmatpush1.msra.mxu0 0.0
    %878 = vmatprep.subr.mxu0 0.0
    %879 = vmatpush1.msra.mxu0 0.0
    %880 = vmatprep.subr.mxu0 0.0
    %881 = vmatpush1.msra.mxu0 0.0
    %882 = vmatprep.subr.mxu0 0.0
    %883 = vmatpush1.msra.mxu0 0.0
    %884 = vmatprep.subr.mxu0 0.0
    %885 = vmatpush1.msra.mxu0 0.0
    %886 = vmatprep.subr.mxu0 %v770
    %887 = vmatpush1.msra.mxu0 %v769
    %888 = vmatprep.subr.mxu0 0.0
    %889 = vmatpush2.msra.mxu0 0.0
    %890 = vmatprep.subr.mxu0 0.0
    %891 = vmatpush2.msra.mxu0 0.0
    %892 = vmatprep.subr.mxu0 0.0
    %893 = vmatpush2.msra.mxu0 0.0
    %894 = vmatprep.subr.mxu0 0.0
    %895 = vmatpush2.msra.mxu0 0.0
    %896 = vmatprep.subr.mxu0 0.0
    %897 = vmatpush2.msra.mxu0 0.0
    %898 = vmatprep.subr.mxu0 0.0
    %899 = vmatpush2.msra.mxu0 0.0
    %900 = vmatprep.subr.mxu0 0.0
    %901 = vmatpush2.msra.mxu0 0.0
    %902 = vmatprep.subr.mxu0 0.0
    %903 = vmatpush2.msra.mxu0 0.0
    %904 = vmatprep.subr.mxu0 0.0
    %905 = vmatpush2.msra.mxu0 0.0
    %906 = vmatprep.subr.mxu0 0.0
    %907 = vmatpush2.msra.mxu0 0.0
    %908 = vmatprep.subr.mxu0 0.0
    %909 = vmatpush2.msra.mxu0 0.0
    %910 = vmatprep.subr.mxu0 0.0
    %911 = vmatpush2.msra.mxu0 0.0
    %912 = vmatprep.subr.mxu0 0.0
    %913 = vmatpush2.msra.mxu0 0.0
    %914 = vmatprep.subr.mxu0 0.0
    %915 = vmatpush2.msra.mxu0 0.0
    %916 = vmatprep.subr.mxu0 0.0
    %917 = vmatpush2.msra.mxu0 0.0
    %918 = vmatprep.subr.mxu0 0.0
    %919 = vmatpush2.msra.mxu0 0.0
    %920 = vmatprep.mubr.f32.mxu0 0.0
    %921 = vmatmul.mubr.f32.gmra.mxu0 %v833
    %v922 = vpop.f32.mrf.mxu0
    %v923 = vadd.f32 %v789, %v922
    %v924 = vpop.f32.mrf.mxu0
    %v925 = vadd.f32 %v793, %v924
    %926 = vmatprep.mubr.f32.mxu0 0.0
    %927 = vmatmul.mubr.f32.gmra.mxu0 %v836
    %v928 = vpop.f32.mrf.mxu0
    %v929 = vadd.f32 %v789, %v928
    %v930 = vpop.f32.mrf.mxu0
    %v931 = vadd.f32 %v793, %v930
    %932 = vmatprep.mubr.f32.mxu0 0.0
    %933 = vmatmul.mubr.f32.gmra.mxu0 %v839
    %v934 = vpop.f32.mrf.mxu0
    %v935 = vadd.f32 %v789, %v934
    %v936 = vpop.f32.mrf.mxu0
    %v937 = vadd.f32 %v793, %v936
    %938 = vmatprep.mubr.f32.mxu0 0.0
    %939 = vmatmul.mubr.f32.gmra.mxu0 %v842
    %v940 = vpop.f32.mrf.mxu0
    %v941 = vadd.f32 %v789, %v940
    %v942 = vpop.f32.mrf.mxu0
    %v943 = vadd.f32 %v793, %v942
    %944 = vmatprep.mubr.f32.mxu0 0.0
    %945 = vmatmul.mubr.f32.gmra.mxu0 %v845
    %v946 = vpop.f32.mrf.mxu0
    %v947 = vadd.f32 %v789, %v946
    %v948 = vpop.f32.mrf.mxu0
    %v949 = vadd.f32 %v793, %v948
    %950 = vmatprep.mubr.f32.mxu0 0.0
    %951 = vmatmul.mubr.f32.gmra.mxu0 %v848
    %v952 = vpop.f32.mrf.mxu0
    %v953 = vadd.f32 %v789, %v952
    %v954 = vpop.f32.mrf.mxu0
    %v955 = vadd.f32 %v793, %v954
    %956 = vmatprep.mubr.f32.mxu0 0.0
    %957 = vmatmul.mubr.f32.gmra.mxu0 %v851
    %v958 = vpop.f32.mrf.mxu0
    %v959 = vadd.f32 %v789, %v958
    %v960 = vpop.f32.mrf.mxu0
    %v961 = vadd.f32 %v793, %v960
    %962 = vmatprep.mubr.f32.mxu0 0.0
    %963 = vmatmul.mubr.f32.gmra.mxu0 %v854
    %v964 = vpop.f32.mrf.mxu0
    %v965 = vadd.f32 %v789, %v964
    %v966 = vpop.f32.mrf.mxu0
    %v967 = vadd.f32 %v793, %v966
    %968 = vdwg.mxu0
    %969 = vmatprep.subr.mxu0 0.0
    %970 = vmatpush1.msra.mxu0 0.0
    %971 = vmatprep.subr.mxu0 0.0
    %972 = vmatpush1.msra.mxu0 0.0
    %973 = vmatprep.subr.mxu0 0.0
    %974 = vmatpush1.msra.mxu0 0.0
    %975 = vmatprep.subr.mxu0 0.0
    %976 = vmatpush1.msra.mxu0 0.0
    %977 = vmatprep.subr.mxu0 0.0
    %978 = vmatpush1.msra.mxu0 0.0
    %979 = vmatprep.subr.mxu0 0.0
    %980 = vmatpush1.msra.mxu0 0.0
    %981 = vmatprep.subr.mxu0 0.0
    %982 = vmatpush1.msra.mxu0 0.0
    %983 = vmatprep.subr.mxu0 0.0
    %984 = vmatpush1.msra.mxu0 0.0
    %985 = vmatprep.subr.mxu0 0.0
    %986 = vmatpush1.msra.mxu0 0.0
    %987 = vmatprep.subr.mxu0 0.0
    %988 = vmatpush1.msra.mxu0 0.0
    %989 = vmatprep.subr.mxu0 0.0
    %990 = vmatpush1.msra.mxu0 0.0
    %991 = vmatprep.subr.mxu0 0.0
    %992 = vmatpush1.msra.mxu0 0.0
    %993 = vmatprep.subr.mxu0 0.0
    %994 = vmatpush1.msra.mxu0 0.0
    %995 = vmatprep.subr.mxu0 0.0
    %996 = vmatpush1.msra.mxu0 0.0
    %997 = vmatprep.subr.mxu0 0.0
    %998 = vmatpush1.msra.mxu0 0.0
    %999 = vmatprep.subr.mxu0 %v772
    %1000 = vmatpush1.msra.mxu0 %v771
    %1001 = vmatprep.subr.mxu0 0.0
    %1002 = vmatpush2.msra.mxu0 0.0
    %1003 = vmatprep.subr.mxu0 0.0
    %1004 = vmatpush2.msra.mxu0 0.0
    %1005 = vmatprep.subr.mxu0 0.0
    %1006 = vmatpush2.msra.mxu0 0.0
    %1007 = vmatprep.subr.mxu0 0.0
    %1008 = vmatpush2.msra.mxu0 0.0
    %1009 = vmatprep.subr.mxu0 0.0
    %1010 = vmatpush2.msra.mxu0 0.0
    %1011 = vmatprep.subr.mxu0 0.0
    %1012 = vmatpush2.msra.mxu0 0.0
    %1013 = vmatprep.subr.mxu0 0.0
    %1014 = vmatpush2.msra.mxu0 0.0
    %1015 = vmatprep.subr.mxu0 0.0
    %1016 = vmatpush2.msra.mxu0 0.0
    %1017 = vmatprep.subr.mxu0 0.0
    %1018 = vmatpush2.msra.mxu0 0.0
    %1019 = vmatprep.subr.mxu0 0.0
    %1020 = vmatpush2.msra.mxu0 0.0
    %1021 = vmatprep.subr.mxu0 0.0
    %1022 = vmatpush2.msra.mxu0 0.0
    %1023 = vmatprep.subr.mxu0 0.0
    %1024 = vmatpush2.msra.mxu0 0.0
    %1025 = vmatprep.subr.mxu0 0.0
    %1026 = vmatpush2.msra.mxu0 0.0
    %1027 = vmatprep.subr.mxu0 0.0
    %1028 = vmatpush2.msra.mxu0 0.0
    %1029 = vmatprep.subr.mxu0 0.0
    %1030 = vmatpush2.msra.mxu0 0.0
    %1031 = vmatprep.subr.mxu0 0.0
    %1032 = vmatpush2.msra.mxu0 0.0
    %1033 = vmatprep.mubr.f32.mxu0 0.0
    %1034 = vmatmul.mubr.f32.gmra.mxu0 %v833
    %v1035 = vpop.f32.mrf.mxu0
    %v1036 = vadd.f32 %v797, %v1035
    %v1037 = vpop.f32.mrf.mxu0
    %v1038 = vadd.f32 %v801, %v1037
    %1039 = vmatprep.mubr.f32.mxu0 0.0
    %1040 = vmatmul.mubr.f32.gmra.mxu0 %v836
    %v1041 = vpop.f32.mrf.mxu0
    %v1042 = vadd.f32 %v797, %v1041
    %v1043 = vpop.f32.mrf.mxu0
    %v1044 = vadd.f32 %v801, %v1043
    %1045 = vmatprep.mubr.f32.mxu0 0.0
    %1046 = vmatmul.mubr.f32.gmra.mxu0 %v839
    %v1047 = vpop.f32.mrf.mxu0
    %v1048 = vadd.f32 %v797, %v1047
    %v1049 = vpop.f32.mrf.mxu0
    %v1050 = vadd.f32 %v801, %v1049
    %1051 = vmatprep.mubr.f32.mxu0 0.0
    %1052 = vmatmul.mubr.f32.gmra.mxu0 %v842
    %v1053 = vpop.f32.mrf.mxu0
    %v1054 = vadd.f32 %v797, %v1053
    %v1055 = vpop.f32.mrf.mxu0
    %v1056 = vadd.f32 %v801, %v1055
    %1057 = vmatprep.mubr.f32.mxu0 0.0
    %1058 = vmatmul.mubr.f32.gmra.mxu0 %v845
    %v1059 = vpop.f32.mrf.mxu0
    %v1060 = vadd.f32 %v797, %v1059
    %v1061 = vpop.f32.mrf.mxu0
    %v1062 = vadd.f32 %v801, %v1061
    %1063 = vmatprep.mubr.f32.mxu0 0.0
    %1064 = vmatmul.mubr.f32.gmra.mxu0 %v848
    %v1065 = vpop.f32.mrf.mxu0
    %v1066 = vadd.f32 %v797, %v1065
    %v1067 = vpop.f32.mrf.mxu0
    %v1068 = vadd.f32 %v801, %v1067
    %1069 = vmatprep.mubr.f32.mxu0 0.0
    %1070 = vmatmul.mubr.f32.gmra.mxu0 %v851
    %v1071 = vpop.f32.mrf.mxu0
    %v1072 = vadd.f32 %v797, %v1071
    %v1073 = vpop.f32.mrf.mxu0
    %v1074 = vadd.f32 %v801, %v1073
    %1075 = vmatprep.mubr.f32.mxu0 0.0
    %1076 = vmatmul.mubr.f32.gmra.mxu0 %v854
    %v1077 = vpop.f32.mrf.mxu0
    %v1078 = vadd.f32 %v797, %v1077
    %v1079 = vpop.f32.mrf.mxu0
    %v1080 = vadd.f32 %v801, %v1079
    %1081 = vdwg.mxu0
    %1082 = vmatprep.subr.mxu0 0.0
    %1083 = vmatpush1.msra.mxu0 0.0
    %1084 = vmatprep.subr.mxu0 0.0
    %1085 = vmatpush1.msra.mxu0 0.0
    %1086 = vmatprep.subr.mxu0 0.0
    %1087 = vmatpush1.msra.mxu0 0.0
    %1088 = vmatprep.subr.mxu0 0.0
    %1089 = vmatpush1.msra.mxu0 0.0
    %1090 = vmatprep.subr.mxu0 0.0
    %1091 = vmatpush1.msra.mxu0 0.0
    %1092 = vmatprep.subr.mxu0 0.0
    %1093 = vmatpush1.msra.mxu0 0.0
    %1094 = vmatprep.subr.mxu0 0.0
    %1095 = vmatpush1.msra.mxu0 0.0
    %1096 = vmatprep.subr.mxu0 0.0
    %1097 = vmatpush1.msra.mxu0 0.0
    %1098 = vmatprep.subr.mxu0 0.0
    %1099 = vmatpush1.msra.mxu0 0.0
    %1100 = vmatprep.subr.mxu0 0.0
    %1101 = vmatpush1.msra.mxu0 0.0
    %1102 = vmatprep.subr.mxu0 0.0
    %1103 = vmatpush1.msra.mxu0 0.0
    %1104 = vmatprep.subr.mxu0 0.0
    %1105 = vmatpush1.msra.mxu0 0.0
    %1106 = vmatprep.subr.mxu0 0.0
    %1107 = vmatpush1.msra.mxu0 0.0
    %1108 = vmatprep.subr.mxu0 0.0
    %1109 = vmatpush1.msra.mxu0 0.0
    %1110 = vmatprep.subr.mxu0 0.0
    %1111 = vmatpush1.msra.mxu0 0.0
    %1112 = vmatprep.subr.mxu0 %v774
    %1113 = vmatpush1.msra.mxu0 %v773
    %1114 = vmatprep.subr.mxu0 0.0
    %1115 = vmatpush2.msra.mxu0 0.0
    %1116 = vmatprep.subr.mxu0 0.0
    %1117 = vmatpush2.msra.mxu0 0.0
    %1118 = vmatprep.subr.mxu0 0.0
    %1119 = vmatpush2.msra.mxu0 0.0
    %1120 = vmatprep.subr.mxu0 0.0
    %1121 = vmatpush2.msra.mxu0 0.0
    %1122 = vmatprep.subr.mxu0 0.0
    %1123 = vmatpush2.msra.mxu0 0.0
    %1124 = vmatprep.subr.mxu0 0.0
    %1125 = vmatpush2.msra.mxu0 0.0
    %1126 = vmatprep.subr.mxu0 0.0
    %1127 = vmatpush2.msra.mxu0 0.0
    %1128 = vmatprep.subr.mxu0 0.0
    %1129 = vmatpush2.msra.mxu0 0.0
    %1130 = vmatprep.subr.mxu0 0.0
    %1131 = vmatpush2.msra.mxu0 0.0
    %1132 = vmatprep.subr.mxu0 0.0
    %1133 = vmatpush2.msra.mxu0 0.0
    %1134 = vmatprep.subr.mxu0 0.0
    %1135 = vmatpush2.msra.mxu0 0.0
    %1136 = vmatprep.subr.mxu0 0.0
    %1137 = vmatpush2.msra.mxu0 0.0
    %1138 = vmatprep.subr.mxu0 0.0
    %1139 = vmatpush2.msra.mxu0 0.0
    %1140 = vmatprep.subr.mxu0 0.0
    %1141 = vmatpush2.msra.mxu0 0.0
    %1142 = vmatprep.subr.mxu0 0.0
    %1143 = vmatpush2.msra.mxu0 0.0
    %1144 = vmatprep.subr.mxu0 0.0
    %1145 = vmatpush2.msra.mxu0 0.0
    %1146 = vmatprep.mubr.f32.mxu0 0.0
    %1147 = vmatmul.mubr.f32.gmra.mxu0 %v833
    %v1148 = vpop.f32.mrf.mxu0
    %v1149 = vadd.f32 %v805, %v1148
    %v1150 = vpop.f32.mrf.mxu0
    %v1151 = vadd.f32 %v809, %v1150
    %1152 = vmatprep.mubr.f32.mxu0 0.0
    %1153 = vmatmul.mubr.f32.gmra.mxu0 %v836
    %v1154 = vpop.f32.mrf.mxu0
    %v1155 = vadd.f32 %v805, %v1154
    %v1156 = vpop.f32.mrf.mxu0
    %v1157 = vadd.f32 %v809, %v1156
    %1158 = vmatprep.mubr.f32.mxu0 0.0
    %1159 = vmatmul.mubr.f32.gmra.mxu0 %v839
    %v1160 = vpop.f32.mrf.mxu0
    %v1161 = vadd.f32 %v805, %v1160
    %v1162 = vpop.f32.mrf.mxu0
    %v1163 = vadd.f32 %v809, %v1162
    %1164 = vmatprep.mubr.f32.mxu0 0.0
    %1165 = vmatmul.mubr.f32.gmra.mxu0 %v842
    %v1166 = vpop.f32.mrf.mxu0
    %v1167 = vadd.f32 %v805, %v1166
    %v1168 = vpop.f32.mrf.mxu0
    %v1169 = vadd.f32 %v809, %v1168
    %1170 = vmatprep.mubr.f32.mxu0 0.0
    %1171 = vmatmul.mubr.f32.gmra.mxu0 %v845
    %v1172 = vpop.f32.mrf.mxu0
    %v1173 = vadd.f32 %v805, %v1172
    %v1174 = vpop.f32.mrf.mxu0
    %v1175 = vadd.f32 %v809, %v1174
    %1176 = vmatprep.mubr.f32.mxu0 0.0
    %1177 = vmatmul.mubr.f32.gmra.mxu0 %v848
    %v1178 = vpop.f32.mrf.mxu0
    %v1179 = vadd.f32 %v805, %v1178
    %v1180 = vpop.f32.mrf.mxu0
    %v1181 = vadd.f32 %v809, %v1180
    %1182 = vmatprep.mubr.f32.mxu0 0.0
    %1183 = vmatmul.mubr.f32.gmra.mxu0 %v851
    %v1184 = vpop.f32.mrf.mxu0
    %v1185 = vadd.f32 %v805, %v1184
    %v1186 = vpop.f32.mrf.mxu0
    %v1187 = vadd.f32 %v809, %v1186
    %1188 = vmatprep.mubr.f32.mxu0 0.0
    %1189 = vmatmul.mubr.f32.gmra.mxu0 %v854
    %v1190 = vpop.f32.mrf.mxu0
    %v1191 = vadd.f32 %v805, %v1190
    %v1192 = vpop.f32.mrf.mxu0
    %v1193 = vadd.f32 %v809, %v1192
    %1194 = vdwg.mxu0
    %1195 = vmatprep.subr.mxu0 0.0
    %1196 = vmatpush1.msra.mxu0 0.0
    %1197 = vmatprep.subr.mxu0 0.0
    %1198 = vmatpush1.msra.mxu0 0.0
    %1199 = vmatprep.subr.mxu0 0.0
    %1200 = vmatpush1.msra.mxu0 0.0
    %1201 = vmatprep.subr.mxu0 0.0
    %1202 = vmatpush1.msra.mxu0 0.0
    %1203 = vmatprep.subr.mxu0 0.0
    %1204 = vmatpush1.msra.mxu0 0.0
    %1205 = vmatprep.subr.mxu0 0.0
    %1206 = vmatpush1.msra.mxu0 0.0
    %1207 = vmatprep.subr.mxu0 0.0
    %1208 = vmatpush1.msra.mxu0 0.0
    %1209 = vmatprep.subr.mxu0 0.0
    %1210 = vmatpush1.msra.mxu0 0.0
    %1211 = vmatprep.subr.mxu0 0.0
    %1212 = vmatpush1.msra.mxu0 0.0
    %1213 = vmatprep.subr.mxu0 0.0
    %1214 = vmatpush1.msra.mxu0 0.0
    %1215 = vmatprep.subr.mxu0 0.0
    %1216 = vmatpush1.msra.mxu0 0.0
    %1217 = vmatprep.subr.mxu0 0.0
    %1218 = vmatpush1.msra.mxu0 0.0
    %1219 = vmatprep.subr.mxu0 0.0
    %1220 = vmatpush1.msra.mxu0 0.0
    %1221 = vmatprep.subr.mxu0 0.0
    %1222 = vmatpush1.msra.mxu0 0.0
    %1223 = vmatprep.subr.mxu0 0.0
    %1224 = vmatpush1.msra.mxu0 0.0
    %1225 = vmatprep.subr.mxu0 %v776
    %1226 = vmatpush1.msra.mxu0 %v775
    %1227 = vmatprep.subr.mxu0 0.0
    %1228 = vmatpush2.msra.mxu0 0.0
    %1229 = vmatprep.subr.mxu0 0.0
    %1230 = vmatpush2.msra.mxu0 0.0
    %1231 = vmatprep.subr.mxu0 0.0
    %1232 = vmatpush2.msra.mxu0 0.0
    %1233 = vmatprep.subr.mxu0 0.0
    %1234 = vmatpush2.msra.mxu0 0.0
    %1235 = vmatprep.subr.mxu0 0.0
    %1236 = vmatpush2.msra.mxu0 0.0
    %1237 = vmatprep.subr.mxu0 0.0
    %1238 = vmatpush2.msra.mxu0 0.0
    %1239 = vmatprep.subr.mxu0 0.0
    %1240 = vmatpush2.msra.mxu0 0.0
    %1241 = vmatprep.subr.mxu0 0.0
    %1242 = vmatpush2.msra.mxu0 0.0
    %1243 = vmatprep.subr.mxu0 0.0
    %1244 = vmatpush2.msra.mxu0 0.0
    %1245 = vmatprep.subr.mxu0 0.0
    %1246 = vmatpush2.msra.mxu0 0.0
    %1247 = vmatprep.subr.mxu0 0.0
    %1248 = vmatpush2.msra.mxu0 0.0
    %1249 = vmatprep.subr.mxu0 0.0
    %1250 = vmatpush2.msra.mxu0 0.0
    %1251 = vmatprep.subr.mxu0 0.0
    %1252 = vmatpush2.msra.mxu0 0.0
    %1253 = vmatprep.subr.mxu0 0.0
    %1254 = vmatpush2.msra.mxu0 0.0
    %1255 = vmatprep.subr.mxu0 0.0
    %1256 = vmatpush2.msra.mxu0 0.0
    %1257 = vmatprep.subr.mxu0 0.0
    %1258 = vmatpush2.msra.mxu0 0.0
    %1259 = vmatprep.mubr.f32.mxu0 0.0
    %1260 = vmatmul.mubr.f32.gmra.mxu0 %v833
    %v1261 = vpop.f32.mrf.mxu0
    %v1262 = vadd.f32 %v813, %v1261
    %v1263 = vpop.f32.mrf.mxu0
    %v1264 = vadd.f32 %v817, %v1263
    %1265 = vmatprep.mubr.f32.mxu0 0.0
    %1266 = vmatmul.mubr.f32.gmra.mxu0 %v836
    %v1267 = vpop.f32.mrf.mxu0
    %v1268 = vadd.f32 %v813, %v1267
    %v1269 = vpop.f32.mrf.mxu0
    %v1270 = vadd.f32 %v817, %v1269
    %1271 = vmatprep.mubr.f32.mxu0 0.0
    %1272 = vmatmul.mubr.f32.gmra.mxu0 %v839
    %v1273 = vpop.f32.mrf.mxu0
    %v1274 = vadd.f32 %v813, %v1273
    %v1275 = vpop.f32.mrf.mxu0
    %v1276 = vadd.f32 %v817, %v1275
    %1277 = vmatprep.mubr.f32.mxu0 0.0
    %1278 = vmatmul.mubr.f32.gmra.mxu0 %v842
    %v1279 = vpop.f32.mrf.mxu0
    %v1280 = vadd.f32 %v813, %v1279
    %v1281 = vpop.f32.mrf.mxu0
    %v1282 = vadd.f32 %v817, %v1281
    %1283 = vmatprep.mubr.f32.mxu0 0.0
    %1284 = vmatmul.mubr.f32.gmra.mxu0 %v845
    %v1285 = vpop.f32.mrf.mxu0
    %v1286 = vadd.f32 %v813, %v1285
    %v1287 = vpop.f32.mrf.mxu0
    %v1288 = vadd.f32 %v817, %v1287
    %1289 = vmatprep.mubr.f32.mxu0 0.0
    %1290 = vmatmul.mubr.f32.gmra.mxu0 %v848
    %v1291 = vpop.f32.mrf.mxu0
    %v1292 = vadd.f32 %v813, %v1291
    %v1293 = vpop.f32.mrf.mxu0
    %v1294 = vadd.f32 %v817, %v1293
    %1295 = vmatprep.mubr.f32.mxu0 0.0
    %1296 = vmatmul.mubr.f32.gmra.mxu0 %v851
    %v1297 = vpop.f32.mrf.mxu0
    %v1298 = vadd.f32 %v813, %v1297
    %v1299 = vpop.f32.mrf.mxu0
    %v1300 = vadd.f32 %v817, %v1299
    %1301 = vmatprep.mubr.f32.mxu0 0.0
    %1302 = vmatmul.mubr.f32.gmra.mxu0 %v854
    %v1303 = vpop.f32.mrf.mxu0
    %v1304 = vadd.f32 %v813, %v1303
    %v1305 = vpop.f32.mrf.mxu0
    %v1306 = vadd.f32 %v817, %v1305
    %1307 = vdwg.mxu0
    %1308 = vmatprep.subr.mxu0 0.0
    %1309 = vmatpush1.msra.mxu0 0.0
    %1310 = vmatprep.subr.mxu0 0.0
    %1311 = vmatpush1.msra.mxu0 0.0
    %1312 = vmatprep.subr.mxu0 0.0
    %1313 = vmatpush1.msra.mxu0 0.0
    %1314 = vmatprep.subr.mxu0 0.0
    %1315 = vmatpush1.msra.mxu0 0.0
    %1316 = vmatprep.subr.mxu0 0.0
    %1317 = vmatpush1.msra.mxu0 0.0
    %1318 = vmatprep.subr.mxu0 0.0
    %1319 = vmatpush1.msra.mxu0 0.0
    %1320 = vmatprep.subr.mxu0 0.0
    %1321 = vmatpush1.msra.mxu0 0.0
    %1322 = vmatprep.subr.mxu0 0.0
    %1323 = vmatpush1.msra.mxu0 0.0
    %1324 = vmatprep.subr.mxu0 0.0
    %1325 = vmatpush1.msra.mxu0 0.0
    %1326 = vmatprep.subr.mxu0 0.0
    %1327 = vmatpush1.msra.mxu0 0.0
    %1328 = vmatprep.subr.mxu0 0.0
    %1329 = vmatpush1.msra.mxu0 0.0
    %1330 = vmatprep.subr.mxu0 0.0
    %1331 = vmatpush1.msra.mxu0 0.0
    %1332 = vmatprep.subr.mxu0 0.0
    %1333 = vmatpush1.msra.mxu0 0.0
    %1334 = vmatprep.subr.mxu0 0.0
    %1335 = vmatpush1.msra.mxu0 0.0
    %1336 = vmatprep.subr.mxu0 0.0
    %1337 = vmatpush1.msra.mxu0 0.0
    %1338 = vmatprep.subr.mxu0 0.0
    %1339 = vmatpush1.msra.mxu0 %v777
    %1340 = vmatprep.subr.mxu0 0.0
    %1341 = vmatpush2.msra.mxu0 0.0
    %1342 = vmatprep.subr.mxu0 0.0
    %1343 = vmatpush2.msra.mxu0 0.0
    %1344 = vmatprep.subr.mxu0 0.0
    %1345 = vmatpush2.msra.mxu0 0.0
    %1346 = vmatprep.subr.mxu0 0.0
    %1347 = vmatpush2.msra.mxu0 0.0
    %1348 = vmatprep.subr.mxu0 0.0
    %1349 = vmatpush2.msra.mxu0 0.0
    %1350 = vmatprep.subr.mxu0 0.0
    %1351 = vmatpush2.msra.mxu0 0.0
    %1352 = vmatprep.subr.mxu0 0.0
    %1353 = vmatpush2.msra.mxu0 0.0
    %1354 = vmatprep.subr.mxu0 0.0
    %1355 = vmatpush2.msra.mxu0 0.0
    %1356 = vmatprep.subr.mxu0 0.0
    %1357 = vmatpush2.msra.mxu0 0.0
    %1358 = vmatprep.subr.mxu0 0.0
    %1359 = vmatpush2.msra.mxu0 0.0
    %1360 = vmatprep.subr.mxu0 0.0
    %1361 = vmatpush2.msra.mxu0 0.0
    %1362 = vmatprep.subr.mxu0 0.0
    %1363 = vmatpush2.msra.mxu0 0.0
    %1364 = vmatprep.subr.mxu0 0.0
    %1365 = vmatpush2.msra.mxu0 0.0
    %1366 = vmatprep.subr.mxu0 0.0
    %1367 = vmatpush2.msra.mxu0 0.0
    %1368 = vmatprep.subr.mxu0 0.0
    %1369 = vmatpush2.msra.mxu0 0.0
    %1370 = vmatprep.subr.mxu0 0.0
    %1371 = vmatpush2.msra.mxu0 0.0
    %1372 = vmatprep.mubr.f32.mxu0 0.0
    %1373 = vmatmul.mubr.f32.gmra.mxu0 %v833
    %v1374 = vpop.f32.mrf.mxu0
    %v1375 = vadd.f32 %v821, %v1374
    %v1376 = vpop.f32.mrf.mxu0
    %1377 = vmatprep.mubr.f32.mxu0 0.0
    %1378 = vmatmul.mubr.f32.gmra.mxu0 %v836
    %v1379 = vpop.f32.mrf.mxu0
    %v1380 = vadd.f32 %v821, %v1379
    %v1381 = vpop.f32.mrf.mxu0
    %1382 = vmatprep.mubr.f32.mxu0 0.0
    %1383 = vmatmul.mubr.f32.gmra.mxu0 %v839
    %v1384 = vpop.f32.mrf.mxu0
    %v1385 = vadd.f32 %v821, %v1384
    %v1386 = vpop.f32.mrf.mxu0
    %1387 = vmatprep.mubr.f32.mxu0 0.0
    %1388 = vmatmul.mubr.f32.gmra.mxu0 %v842
    %v1389 = vpop.f32.mrf.mxu0
    %v1390 = vadd.f32 %v821, %v1389
    %v1391 = vpop.f32.mrf.mxu0
    %1392 = vmatprep.mubr.f32.mxu0 0.0
    %1393 = vmatmul.mubr.f32.gmra.mxu0 %v845
    %v1394 = vpop.f32.mrf.mxu0
    %v1395 = vadd.f32 %v821, %v1394
    %v1396 = vpop.f32.mrf.mxu0
    %1397 = vmatprep.mubr.f32.mxu0 0.0
    %1398 = vmatmul.mubr.f32.gmra.mxu0 %v848
    %v1399 = vpop.f32.mrf.mxu0
    %v1400 = vadd.f32 %v821, %v1399
    %v1401 = vpop.f32.mrf.mxu0
    %1402 = vmatprep.mubr.f32.mxu0 0.0
    %1403 = vmatmul.mubr.f32.gmra.mxu0 %v851
    %v1404 = vpop.f32.mrf.mxu0
    %v1405 = vadd.f32 %v821, %v1404
    %v1406 = vpop.f32.mrf.mxu0
    %1407 = vmatprep.mubr.f32.mxu0 0.0
    %1408 = vmatmul.mubr.f32.gmra.mxu0 %v854
    %v1409 = vpop.f32.mrf.mxu0
    %v1410 = vadd.f32 %v821, %v1409
    %v1411 = vpop.f32.mrf.mxu0
    %1412 = vdwg.mxu0
    %v1413 = vmax.f32 %v923, 0.0
    %v1414 = vmax.f32 %v925, 0.0
    %v1415 = vmax.f32 %v1036, 0.0
    %v1416 = vmax.f32 %v1038, 0.0
    %v1417 = vmax.f32 %v1149, 0.0
    %v1418 = vmax.f32 %v1151, 0.0
    %v1419 = vmax.f32 %v1262, 0.0
    %v1420 = vmax.f32 %v1264, 0.0
    %v1421 = vmax.f32 %v1375, 0.0
    %v1422 = vmax.f32 %v929, 0.0
    %v1423 = vmax.f32 %v931, 0.0
    %v1424 = vmax.f32 %v1042, 0.0
    %v1425 = vmax.f32 %v1044, 0.0
    %v1426 = vmax.f32 %v1155, 0.0
    %v1427 = vmax.f32 %v1157, 0.0
    %v1428 = vmax.f32 %v1268, 0.0
    %v1429 = vmax.f32 %v1270, 0.0
    %v1430 = vmax.f32 %v1380, 0.0
    %v1431 = vmax.f32 %v935, 0.0
    %v1432 = vmax.f32 %v937, 0.0
    %v1433 = vmax.f32 %v1048, 0.0
    %v1434 = vmax.f32 %v1050, 0.0
    %v1435 = vmax.f32 %v1161, 0.0
    %v1436 = vmax.f32 %v1163, 0.0
    %v1437 = vmax.f32 %v1274, 0.0
    %v1438 = vmax.f32 %v1276, 0.0
    %v1439 = vmax.f32 %v1385, 0.0
    %v1440 = vmax.f32 %v941, 0.0
    %v1441 = vmax.f32 %v943, 0.0
    %v1442 = vmax.f32 %v1054, 0.0
    %v1443 = vmax.f32 %v1056, 0.0
    %v1444 = vmax.f32 %v1167, 0.0
    %v1445 = vmax.f32 %v1169, 0.0
    %v1446 = vmax.f32 %v1280, 0.0
    %v1447 = vmax.f32 %v1282, 0.0
    %v1448 = vmax.f32 %v1390, 0.0
    %v1449 = vmax.f32 %v947, 0.0
    %v1450 = vmax.f32 %v949, 0.0
    %v1451 = vmax.f32 %v1060, 0.0
    %v1452 = vmax.f32 %v1062, 0.0
    %v1453 = vmax.f32 %v1173, 0.0
    %v1454 = vmax.f32 %v1175, 0.0
    %v1455 = vmax.f32 %v1286, 0.0
    %v1456 = vmax.f32 %v1288, 0.0
    %v1457 = vmax.f32 %v1395, 0.0
    %v1458 = vmax.f32 %v953, 0.0
    %v1459 = vmax.f32 %v955, 0.0
    %v1460 = vmax.f32 %v1066, 0.0
    %v1461 = vmax.f32 %v1068, 0.0
    %v1462 = vmax.f32 %v1179, 0.0
    %v1463 = vmax.f32 %v1181, 0.0
    %v1464 = vmax.f32 %v1292, 0.0
    %v1465 = vmax.f32 %v1294, 0.0
    %v1466 = vmax.f32 %v1400, 0.0
    %v1467 = vmax.f32 %v959, 0.0
    %v1468 = vmax.f32 %v961, 0.0
    %v1469 = vmax.f32 %v1072, 0.0
    %v1470 = vmax.f32 %v1074, 0.0
    %v1471 = vmax.f32 %v1185, 0.0
    %v1472 = vmax.f32 %v1187, 0.0
    %v1473 = vmax.f32 %v1298, 0.0
    %v1474 = vmax.f32 %v1300, 0.0
    %v1475 = vmax.f32 %v1405, 0.0
    %v1476 = vmax.f32 %v965, 0.0
    %v1477 = vmax.f32 %v967, 0.0
    %v1478 = vmax.f32 %v1078, 0.0
    %v1479 = vmax.f32 %v1080, 0.0
    %v1480 = vmax.f32 %v1191, 0.0
    %v1481 = vmax.f32 %v1193, 0.0
    %v1482 = vmax.f32 %v1304, 0.0
    %v1483 = vmax.f32 %v1306, 0.0
    %v1484 = vmax.f32 %v1410, 0.0
    %v1485 = vmul.f32 %v1413, %v505
    %v1486 = vmul.f32 %v1414, %v506
    %v1487 = vmul.f32 %v1415, %v507
    %v1488 = vmul.f32 %v1416, %v508
    %v1489 = vmul.f32 %v1417, %v509
    %v1490 = vmul.f32 %v1418, %v510
    %v1491 = vmul.f32 %v1419, %v511
    %v1492 = vmul.f32 %v1420, %v512
    %v1493 = vmul.f32 %v1421, %v513
    %v1494 = vmul.f32 %v1422, %v514
    %v1495 = vmul.f32 %v1423, %v515
    %v1496 = vmul.f32 %v1424, %v516
    %v1497 = vmul.f32 %v1425, %v517
    %v1498 = vmul.f32 %v1426, %v518
    %v1499 = vmul.f32 %v1427, %v519
    %v1500 = vmul.f32 %v1428, %v520
    %v1501 = vmul.f32 %v1429, %v521
    %v1502 = vmul.f32 %v1430, %v522
    %v1503 = vmul.f32 %v1431, %v523
    %v1504 = vmul.f32 %v1432, %v524
    %v1505 = vmul.f32 %v1433, %v525
    %v1506 = vmul.f32 %v1434, %v526
    %v1507 = vmul.f32 %v1435, %v527
    %v1508 = vmul.f32 %v1436, %v528
    %v1509 = vmul.f32 %v1437, %v529
    %v1510 = vmul.f32 %v1438, %v530
    %v1511 = vmul.f32 %v1439, %v531
    %v1512 = vmul.f32 %v1440, %v532
    %v1513 = vmul.f32 %v1441, %v533
    %v1514 = vmul.f32 %v1442, %v534
    %v1515 = vmul.f32 %v1443, %v535
    %v1516 = vmul.f32 %v1444, %v536
    %v1517 = vmul.f32 %v1445, %v537
    %v1518 = vmul.f32 %v1446, %v538
    %v1519 = vmul.f32 %v1447, %v539
    %v1520 = vmul.f32 %v1448, %v540
    %v1521 = vmul.f32 %v1449, %v541
    %v1522 = vmul.f32 %v1450, %v542
    %v1523 = vmul.f32 %v1451, %v543
    %v1524 = vmul.f32 %v1452, %v544
    %v1525 = vmul.f32 %v1453, %v545
    %v1526 = vmul.f32 %v1454, %v546
    %v1527 = vmul.f32 %v1455, %v547
    %v1528 = vmul.f32 %v1456, %v548
    %v1529 = vmul.f32 %v1457, %v549
    %v1530 = vmul.f32 %v1458, %v550
    %v1531 = vmul.f32 %v1459, %v551
    %v1532 = vmul.f32 %v1460, %v552
    %v1533 = vmul.f32 %v1461, %v553
    %v1534 = vmul.f32 %v1462, %v554
    %v1535 = vmul.f32 %v1463, %v555
    %v1536 = vmul.f32 %v1464, %v556
    %v1537 = vmul.f32 %v1465, %v557
    %v1538 = vmul.f32 %v1466, %v558
    %v1539 = vmul.f32 %v1467, %v559
    %v1540 = vmul.f32 %v1468, %v560
    %v1541 = vmul.f32 %v1469, %v561
    %v1542 = vmul.f32 %v1470, %v562
    %v1543 = vmul.f32 %v1471, %v563
    %v1544 = vmul.f32 %v1472, %v564
    %v1545 = vmul.f32 %v1473, %v565
    %v1546 = vmul.f32 %v1474, %v566
    %v1547 = vmul.f32 %v1475, %v567
    %v1548 = vmul.f32 %v1476, %v568
    %v1549 = vmul.f32 %v1477, %v569
    %v1550 = vmul.f32 %v1478, %v570
    %v1551 = vmul.f32 %v1479, %v571
    %v1552 = vmul.f32 %v1480, %v572
    %v1553 = vmul.f32 %v1481, %v573
    %v1554 = vmul.f32 %v1482, %v574
    %v1555 = vmul.f32 %v1483, %v575
    %v1556 = vmul.f32 %v1484, %v576
    %v1557 = vld [vmem:[#allocation2] sm:$0xff]
    %v1558 = vld [vmem:[#allocation2 + $0x8] sm:$0xff]
    %v1559 = vld [vmem:[#allocation2 + $0x10] sm:$0xff]
    %v1560 = vld [vmem:[#allocation2 + $0x18] sm:$0xff]
    %v1561 = vld [vmem:[#allocation2 + $0x20] sm:$0xff]
    %v1562 = vld [vmem:[#allocation2 + $0x28] sm:$0xff]
    %v1563 = vld [vmem:[#allocation2 + $0x30] sm:$0xff]
    %v1564 = vld [vmem:[#allocation2 + $0x38] sm:$0xff]
    %v1565 = vld [vmem:[#allocation2 + $0x40] sm:$0xff]
    %v1566 = vld [vmem:[#allocation2 + $0x48] sm:$0xff]
    %v1567 = vld [vmem:[#allocation2 + $0x50] sm:$0xff]
    %v1568 = vld [vmem:[#allocation2 + $0x58] sm:$0xff]
    %v1569 = vld [vmem:[#allocation2 + $0x60] sm:$0xff]
    %v1570 = vld [vmem:[#allocation2 + $0x68] sm:$0xff]
    %v1571 = vld [vmem:[#allocation2 + $0x70] sm:$0xff]
    %v1572 = vld [vmem:[#allocation2 + $0x78] sm:$0xff]
    %v1573 = vld [vmem:[#allocation2 + $0x80] sm:$0xff]
    %v1574 = vld [vmem:[#allocation2 + $0x88] sm:$0xff]
    %v1575 = vld [vmem:[#allocation2 + $0x90] sm:$0xff]
    %v1576 = vld [vmem:[#allocation2 + $0x98] sm:$0xff]
    %v1577 = vld [vmem:[#allocation2 + $0xa0] sm:$0xff]
    %v1578 = vld [vmem:[#allocation2 + $0xa8] sm:$0xff]
    %v1579 = vld [vmem:[#allocation2 + $0xb0] sm:$0xff]
    %v1580 = vld [vmem:[#allocation2 + $0xb8] sm:$0xff]
    %v1581 = vld [vmem:[#allocation2 + $0xc0] sm:$0xff]
    %v1582 = vld [vmem:[#allocation2 + $0xc8] sm:$0xff]
    %v1583 = vld [vmem:[#allocation2 + $0xd0] sm:$0xff]
    %v1584 = vld [vmem:[#allocation2 + $0xd8] sm:$0xff]
    %v1585 = vld [vmem:[#allocation2 + $0xe0] sm:$0xff]
    %v1586 = vld [vmem:[#allocation2 + $0xe8] sm:$0xff]
    %v1587 = vld [vmem:[#allocation2 + $0xf0] sm:$0xff]
    %v1588 = vld [vmem:[#allocation2 + $0xf8] sm:$0xff]
    %v1589 = vld [vmem:[#allocation2 + $0x100] sm:$0xff]
    %v1590 = vld [vmem:[#allocation2 + $0x108] sm:$0xff]
    %v1591 = vld [vmem:[#allocation2 + $0x110] sm:$0xff]
    %v1592 = vld [vmem:[#allocation2 + $0x118] sm:$0xff]
    %v1593 = vld [vmem:[#allocation2 + $0x120] sm:$0xff]
    %v1594 = vld [vmem:[#allocation2 + $0x128] sm:$0xff]
    %v1595 = vld [vmem:[#allocation2 + $0x130] sm:$0xff]
    %v1596 = vld [vmem:[#allocation2 + $0x138] sm:$0xff]
    %v1597 = vld [vmem:[#allocation2 + $0x140] sm:$0xff]
    %v1598 = vld [vmem:[#allocation2 + $0x148] sm:$0xff]
    %v1599 = vld [vmem:[#allocation2 + $0x150] sm:$0xff]
    %v1600 = vld [vmem:[#allocation2 + $0x158] sm:$0xff]
    %v1601 = vld [vmem:[#allocation2 + $0x160] sm:$0xff]
    %v1602 = vld [vmem:[#allocation2 + $0x168] sm:$0xff]
    %v1603 = vld [vmem:[#allocation2 + $0x170] sm:$0xff]
    %v1604 = vld [vmem:[#allocation2 + $0x178] sm:$0xff]
    %v1605 = vld [vmem:[#allocation2 + $0x180] sm:$0xff]
    %v1606 = vld [vmem:[#allocation2 + $0x188] sm:$0xff]
    %v1607 = vld [vmem:[#allocation2 + $0x190] sm:$0xff]
    %v1608 = vld [vmem:[#allocation2 + $0x198] sm:$0xff]
    %v1609 = vld [vmem:[#allocation2 + $0x1a0] sm:$0xff]
    %v1610 = vld [vmem:[#allocation2 + $0x1a8] sm:$0xff]
    %v1611 = vld [vmem:[#allocation2 + $0x1b0] sm:$0xff]
    %v1612 = vld [vmem:[#allocation2 + $0x1b8] sm:$0xff]
    %v1613 = vld [vmem:[#allocation2 + $0x1c0] sm:$0xff]
    %v1614 = vld [vmem:[#allocation2 + $0x1c8] sm:$0xff]
    %v1615 = vld [vmem:[#allocation2 + $0x1d0] sm:$0xff]
    %v1616 = vld [vmem:[#allocation2 + $0x1d8] sm:$0xff]
    %v1617 = vld [vmem:[#allocation2 + $0x1e0] sm:$0xff]
    %v1618 = vld [vmem:[#allocation2 + $0x1e8] sm:$0xff]
    %v1619 = vld [vmem:[#allocation2 + $0x1f0] sm:$0xff]
    %v1620 = vld [vmem:[#allocation2 + $0x1f8] sm:$0xff]
    %v1621 = vld [vmem:[#allocation2 + $0x200] sm:$0xff]
    %v1622 = vld [vmem:[#allocation2 + $0x208] sm:$0xff]
    %v1623 = vld [vmem:[#allocation2 + $0x210] sm:$0xff]
    %v1624 = vld [vmem:[#allocation2 + $0x218] sm:$0xff]
    %v1625 = vld [vmem:[#allocation2 + $0x220] sm:$0xff]
    %v1626 = vld [vmem:[#allocation2 + $0x228] sm:$0xff]
    %v1627 = vld [vmem:[#allocation2 + $0x230] sm:$0xff]
    %v1628 = vld [vmem:[#allocation2 + $0x238] sm:$0xff]
    %v1629 = vld [vmem:[#allocation2 + $0x240] sm:$0xff]
    %v1630 = vld [vmem:[#allocation2 + $0x248] sm:$0xff]
    %v1631 = vld [vmem:[#allocation2 + $0x250] sm:$0xff]
    %v1632 = vld [vmem:[#allocation2 + $0x258] sm:$0xff]
    %v1633 = vld [vmem:[#allocation2 + $0x260] sm:$0xff]
    %v1634 = vld [vmem:[#allocation2 + $0x268] sm:$0xff]
    %v1635 = vld [vmem:[#allocation2 + $0x270] sm:$0xff]
    %v1636 = vld [vmem:[#allocation2 + $0x278] sm:$0xff]
    %v1637 = vld [vmem:[#allocation2 + $0x280] sm:$0xff]
    %v1638 = vld [vmem:[#allocation2 + $0x288] sm:$0xff]
    %v1639 = vld [vmem:[#allocation2 + $0x290] sm:$0xff]
    %v1640 = vld [vmem:[#allocation2 + $0x298] sm:$0xff]
    %v1641 = vld [vmem:[#allocation2 + $0x2a0] sm:$0xff]
    %v1642 = vld [vmem:[#allocation2 + $0x2a8] sm:$0xff]
    %v1643 = vld [vmem:[#allocation2 + $0x2b0] sm:$0xff]
    %v1644 = vld [vmem:[#allocation2 + $0x2b8] sm:$0xff]
    %v1645 = vld [vmem:[#allocation2 + $0x2c0] sm:$0xff]
    %v1646 = vld [vmem:[#allocation2 + $0x2c8] sm:$0xff]
    %v1647 = vld [vmem:[#allocation2 + $0x2d0] sm:$0xff]
    %v1648 = vld [vmem:[#allocation2 + $0x2d8] sm:$0xff]
    %v1649 = vld [vmem:[#allocation2 + $0x2e0] sm:$0xff]
    %v1650 = vld [vmem:[#allocation2 + $0x2e8] sm:$0xff]
    %v1651 = vld [vmem:[#allocation2 + $0x2f0] sm:$0xff]
    %v1652 = vld [vmem:[#allocation2 + $0x2f8] sm:$0xff]
    %v1653 = vld [vmem:[#allocation2 + $0x300] sm:$0xff]
    %v1654 = vld [vmem:[#allocation2 + $0x308] sm:$0xff]
    %v1655 = vld [vmem:[#allocation2 + $0x310] sm:$0xff]
    %v1656 = vld [vmem:[#allocation2 + $0x318] sm:$0xff]
    %v1657 = vld [vmem:[#allocation2 + $0x320] sm:$0xff]
    %v1658 = vld [vmem:[#allocation2 + $0x328] sm:$0xff]
    %v1659 = vld [vmem:[#allocation2 + $0x330] sm:$0xff]
    %v1660 = vld [vmem:[#allocation2 + $0x338] sm:$0xff]
    %v1661 = vld [vmem:[#allocation2 + $0x340] sm:$0xff]
    %v1662 = vld [vmem:[#allocation2 + $0x348] sm:$0xff]
    %v1663 = vld [vmem:[#allocation2 + $0x350] sm:$0xff]
    %v1664 = vld [vmem:[#allocation2 + $0x358] sm:$0xff]
    %v1665 = vld [vmem:[#allocation2 + $0x360] sm:$0xff]
    %v1666 = vld [vmem:[#allocation2 + $0x368] sm:$0xff]
    %v1667 = vld [vmem:[#allocation2 + $0x370] sm:$0xff]
    %v1668 = vld [vmem:[#allocation2 + $0x378] sm:$0xff]
    %v1669 = vld [vmem:[#allocation2 + $0x380] sm:$0xff]
    %v1670 = vld [vmem:[#allocation2 + $0x388] sm:$0xff]
    %v1671 = vld [vmem:[#allocation2 + $0x390] sm:$0xff]
    %v1672 = vld [vmem:[#allocation2 + $0x398] sm:$0xff]
    %v1673 = vld [vmem:[#allocation2 + $0x3a0] sm:$0xff]
    %v1674 = vld [vmem:[#allocation2 + $0x3a8] sm:$0xff]
    %v1675 = vld [vmem:[#allocation2 + $0x3b0] sm:$0xff]
    %v1676 = vld [vmem:[#allocation2 + $0x3b8] sm:$0xff]
    %v1677 = vld [vmem:[#allocation2 + $0x3c0] sm:$0xff]
    %v1678 = vld [vmem:[#allocation2 + $0x3c8] sm:$0xff]
    %v1679 = vld [vmem:[#allocation2 + $0x3d0] sm:$0xff]
    %v1680 = vld [vmem:[#allocation2 + $0x3d8] sm:$0xff]
    %v1681 = vld [vmem:[#allocation2 + $0x3e0] sm:$0xff]
    %v1682 = vld [vmem:[#allocation2 + $0x3e8] sm:$0xff]
    %v1683 = vld [vmem:[#allocation2 + $0x3f0] sm:$0xff]
    %v1684 = vld [vmem:[#allocation2 + $0x3f8] sm:$0xff]
    %v1685 = vld [vmem:[#allocation2 + $0x400] sm:$0xff]
    %v1686 = vld [vmem:[#allocation2 + $0x408] sm:$0xff]
    %v1687 = vld [vmem:[#allocation2 + $0x410] sm:$0xff]
    %v1688 = vld [vmem:[#allocation2 + $0x418] sm:$0xff]
    %v1689 = vld [vmem:[#allocation2 + $0x420] sm:$0xff]
    %v1690 = vld [vmem:[#allocation2 + $0x428] sm:$0xff]
    %v1691 = vld [vmem:[#allocation2 + $0x430] sm:$0xff]
    %v1692 = vld [vmem:[#allocation2 + $0x438] sm:$0xff]
    %v1693 = vld [vmem:[#allocation2 + $0x440] sm:$0xff]
    %v1694 = vld [vmem:[#allocation2 + $0x448] sm:$0xff]
    %v1695 = vld [vmem:[#allocation2 + $0x450] sm:$0x1]
    %vm1696 = vcmask 138240
    %v1698 = vsel %vm1696, %v137, 0
    %v1701 = vsel %vm1696, %v138, 0
    %v1704 = vsel %vm1696, %v139, 0
    %v1707 = vsel %vm1696, %v140, 0
    %v1710 = vsel %vm1696, %v141, 0
    %v1713 = vsel %vm1696, %v142, 0
    %v1716 = vsel %vm1696, %v143, 0
    %v1719 = vsel %vm1696, %v144, 0
    %vm1721 = vcmask 1040384
    %v1723 = vsel %vm1721, %v1695, 0
    %1725 = vmatprep.subr.mxu0 0.0
    %1726 = vmatpush1.msra.mxu0 0.0
    %1727 = vmatprep.subr.mxu0 0.0
    %1728 = vmatpush1.msra.mxu0 0.0
    %1729 = vmatprep.subr.mxu0 0.0
    %1730 = vmatpush1.msra.mxu0 0.0
    %1731 = vmatprep.subr.mxu0 0.0
    %1732 = vmatpush1.msra.mxu0 0.0
    %1733 = vmatprep.subr.mxu0 0.0
    %1734 = vmatpush1.msra.mxu0 0.0
    %1735 = vmatprep.subr.mxu0 0.0
    %1736 = vmatpush1.msra.mxu0 0.0
    %1737 = vmatprep.subr.mxu0 0.0
    %1738 = vmatpush1.msra.mxu0 0.0
    %1739 = vmatprep.subr.mxu0 0.0
    %1740 = vmatpush1.msra.mxu0 0.0
    %1741 = vmatprep.subr.mxu0 0.0
    %1742 = vmatpush1.msra.mxu0 0.0
    %1743 = vmatprep.subr.mxu0 0.0
    %1744 = vmatpush1.msra.mxu0 0.0
    %1745 = vmatprep.subr.mxu0 0.0
    %1746 = vmatpush1.msra.mxu0 0.0
    %1747 = vmatprep.subr.mxu0 0.0
    %1748 = vmatpush1.msra.mxu0 0.0
    %1749 = vmatprep.subr.mxu0 0.0
    %1750 = vmatpush1.msra.mxu0 0.0
    %1751 = vmatprep.subr.mxu0 0.0
    %1752 = vmatpush1.msra.mxu0 %v1723
    %1753 = vmatprep.subr.mxu0 0.0
    %1754 = vmatpush1.msra.mxu0 %v1694
    %1755 = vmatprep.subr.mxu0 0.0
    %1756 = vmatpush1.msra.mxu0 %v1693
    %1757 = vmatprep.subr.mxu0 0.0
    %1758 = vmatpush2.msra.mxu0 0.0
    %1759 = vmatprep.subr.mxu0 0.0
    %1760 = vmatpush2.msra.mxu0 0.0
    %1761 = vmatprep.subr.mxu0 0.0
    %1762 = vmatpush2.msra.mxu0 0.0
    %1763 = vmatprep.subr.mxu0 0.0
    %1764 = vmatpush2.msra.mxu0 0.0
    %1765 = vmatprep.subr.mxu0 0.0
    %1766 = vmatpush2.msra.mxu0 0.0
    %1767 = vmatprep.subr.mxu0 0.0
    %1768 = vmatpush2.msra.mxu0 0.0
    %1769 = vmatprep.subr.mxu0 0.0
    %1770 = vmatpush2.msra.mxu0 0.0
    %1771 = vmatprep.subr.mxu0 0.0
    %1772 = vmatpush2.msra.mxu0 0.0
    %1773 = vmatprep.subr.mxu0 0.0
    %1774 = vmatpush2.msra.mxu0 0.0
    %1775 = vmatprep.subr.mxu0 0.0
    %1776 = vmatpush2.msra.mxu0 0.0
    %1777 = vmatprep.subr.mxu0 0.0
    %1778 = vmatpush2.msra.mxu0 0.0
    %1779 = vmatprep.subr.mxu0 0.0
    %1780 = vmatpush2.msra.mxu0 0.0
    %1781 = vmatprep.subr.mxu0 0.0
    %1782 = vmatpush2.msra.mxu0 0.0
    %1783 = vmatprep.subr.mxu0 0.0
    %1784 = vmatpush2.msra.mxu0 0.0
    %1785 = vmatprep.subr.mxu0 0.0
    %1786 = vmatpush2.msra.mxu0 0.0
    %1787 = vmatprep.subr.mxu0 0.0
    %1788 = vmatpush2.msra.mxu0 0.0
    %1789 = vmatprep.mubr.f32.mxu0 0.0
    %1790 = vmatmul.mubr.f32.gmra.mxu0 %v1698
    %v1791 = vpop.f32.mrf.mxu0
    %v1792 = vadd.f32 0.0, %v1791
    %v1793 = vpop.f32.mrf.mxu0
    %1794 = vmatprep.mubr.f32.mxu0 0.0
    %1795 = vmatmul.mubr.f32.gmra.mxu0 %v1701
    %v1796 = vpop.f32.mrf.mxu0
    %v1797 = vadd.f32 0.0, %v1796
    %v1798 = vpop.f32.mrf.mxu0
    %1799 = vmatprep.mubr.f32.mxu0 0.0
    %1800 = vmatmul.mubr.f32.gmra.mxu0 %v1704
    %v1801 = vpop.f32.mrf.mxu0
    %v1802 = vadd.f32 0.0, %v1801
    %v1803 = vpop.f32.mrf.mxu0
    %1804 = vmatprep.mubr.f32.mxu0 0.0
    %1805 = vmatmul.mubr.f32.gmra.mxu0 %v1707
    %v1806 = vpop.f32.mrf.mxu0
    %v1807 = vadd.f32 0.0, %v1806
    %v1808 = vpop.f32.mrf.mxu0
    %1809 = vmatprep.mubr.f32.mxu0 0.0
    %1810 = vmatmul.mubr.f32.gmra.mxu0 %v1710
    %v1811 = vpop.f32.mrf.mxu0
    %v1812 = vadd.f32 0.0, %v1811
    %v1813 = vpop.f32.mrf.mxu0
    %1814 = vmatprep.mubr.f32.mxu0 0.0
    %1815 = vmatmul.mubr.f32.gmra.mxu0 %v1713
    %v1816 = vpop.f32.mrf.mxu0
    %v1817 = vadd.f32 0.0, %v1816
    %v1818 = vpop.f32.mrf.mxu0
    %1819 = vmatprep.mubr.f32.mxu0 0.0
    %1820 = vmatmul.mubr.f32.gmra.mxu0 %v1716
    %v1821 = vpop.f32.mrf.mxu0
    %v1822 = vadd.f32 0.0, %v1821
    %v1823 = vpop.f32.mrf.mxu0
    %1824 = vmatprep.mubr.f32.mxu0 0.0
    %1825 = vmatmul.mubr.f32.gmra.mxu0 %v1719
    %v1826 = vpop.f32.mrf.mxu0
    %v1827 = vadd.f32 0.0, %v1826
    %v1828 = vpop.f32.mrf.mxu0
    %1829 = vdwg.mxu0
    %vm1830 = vcmask 523264
    %v1832 = vsel %vm1830, %v1493, 0
    %v1835 = vsel %vm1830, %v1502, 0
    %v1838 = vsel %vm1830, %v1511, 0
    %v1841 = vsel %vm1830, %v1520, 0
    %v1844 = vsel %vm1830, %v1529, 0
    %v1847 = vsel %vm1830, %v1538, 0
    %v1850 = vsel %vm1830, %v1547, 0
    %v1853 = vsel %vm1830, %v1556, 0
    %1855 = vmatprep.subr.mxu0 0.0
    %1856 = vmatpush1.msra.mxu0 %v1572
    %1857 = vmatprep.subr.mxu0 0.0
    %1858 = vmatpush1.msra.mxu0 %v1571
    %1859 = vmatprep.subr.mxu0 0.0
    %1860 = vmatpush1.msra.mxu0 %v1570
    %1861 = vmatprep.subr.mxu0 0.0
    %1862 = vmatpush1.msra.mxu0 %v1569
    %1863 = vmatprep.subr.mxu0 0.0
    %1864 = vmatpush1.msra.mxu0 %v1568
    %1865 = vmatprep.subr.mxu0 0.0
    %1866 = vmatpush1.msra.mxu0 %v1567
    %1867 = vmatprep.subr.mxu0 0.0
    %1868 = vmatpush1.msra.mxu0 %v1566
    %1869 = vmatprep.subr.mxu0 0.0
    %1870 = vmatpush1.msra.mxu0 %v1565
    %1871 = vmatprep.subr.mxu0 0.0
    %1872 = vmatpush1.msra.mxu0 %v1564
    %1873 = vmatprep.subr.mxu0 0.0
    %1874 = vmatpush1.msra.mxu0 %v1563
    %1875 = vmatprep.subr.mxu0 0.0
    %1876 = vmatpush1.msra.mxu0 %v1562
    %1877 = vmatprep.subr.mxu0 0.0
    %1878 = vmatpush1.msra.mxu0 %v1561
    %1879 = vmatprep.subr.mxu0 0.0
    %1880 = vmatpush1.msra.mxu0 %v1560
    %1881 = vmatprep.subr.mxu0 0.0
    %1882 = vmatpush1.msra.mxu0 %v1559
    %1883 = vmatprep.subr.mxu0 0.0
    %1884 = vmatpush1.msra.mxu0 %v1558
    %1885 = vmatprep.subr.mxu0 0.0
    %1886 = vmatpush1.msra.mxu0 %v1557
    %1887 = vmatprep.subr.mxu0 0.0
    %1888 = vmatpush2.msra.mxu0 %v1588
    %1889 = vmatprep.subr.mxu0 0.0
    %1890 = vmatpush2.msra.mxu0 %v1587
    %1891 = vmatprep.subr.mxu0 0.0
    %1892 = vmatpush2.msra.mxu0 %v1586
    %1893 = vmatprep.subr.mxu0 0.0
    %1894 = vmatpush2.msra.mxu0 %v1585
    %1895 = vmatprep.subr.mxu0 0.0
    %1896 = vmatpush2.msra.mxu0 %v1584
    %1897 = vmatprep.subr.mxu0 0.0
    %1898 = vmatpush2.msra.mxu0 %v1583
    %1899 = vmatprep.subr.mxu0 0.0
    %1900 = vmatpush2.msra.mxu0 %v1582
    %1901 = vmatprep.subr.mxu0 0.0
    %1902 = vmatpush2.msra.mxu0 %v1581
    %1903 = vmatprep.subr.mxu0 0.0
    %1904 = vmatpush2.msra.mxu0 %v1580
    %1905 = vmatprep.subr.mxu0 0.0
    %1906 = vmatpush2.msra.mxu0 %v1579
    %1907 = vmatprep.subr.mxu0 0.0
    %1908 = vmatpush2.msra.mxu0 %v1578
    %1909 = vmatprep.subr.mxu0 0.0
    %1910 = vmatpush2.msra.mxu0 %v1577
    %1911 = vmatprep.subr.mxu0 0.0
    %1912 = vmatpush2.msra.mxu0 %v1576
    %1913 = vmatprep.subr.mxu0 0.0
    %1914 = vmatpush2.msra.mxu0 %v1575
    %1915 = vmatprep.subr.mxu0 0.0
    %1916 = vmatpush2.msra.mxu0 %v1574
    %1917 = vmatprep.subr.mxu0 0.0
    %1918 = vmatpush2.msra.mxu0 %v1573
    %1919 = vmatprep.mubr.f32.mxu0 %v1486
    %1920 = vmatmul.mubr.f32.gmra.mxu0 %v1485
    %v1921 = vpop.f32.mrf.mxu0
    %v1922 = vadd.f32 %v1792, %v1921
    %v1923 = vpop.f32.mrf.mxu0
    %1924 = vmatprep.mubr.f32.mxu0 %v1495
    %1925 = vmatmul.mubr.f32.gmra.mxu0 %v1494
    %v1926 = vpop.f32.mrf.mxu0
    %v1927 = vadd.f32 %v1797, %v1926
    %v1928 = vpop.f32.mrf.mxu0
    %1929 = vmatprep.mubr.f32.mxu0 %v1504
    %1930 = vmatmul.mubr.f32.gmra.mxu0 %v1503
    %v1931 = vpop.f32.mrf.mxu0
    %v1932 = vadd.f32 %v1802, %v1931
    %v1933 = vpop.f32.mrf.mxu0
    %1934 = vmatprep.mubr.f32.mxu0 %v1513
    %1935 = vmatmul.mubr.f32.gmra.mxu0 %v1512
    %v1936 = vpop.f32.mrf.mxu0
    %v1937 = vadd.f32 %v1807, %v1936
    %v1938 = vpop.f32.mrf.mxu0
    %1939 = vmatprep.mubr.f32.mxu0 %v1522
    %1940 = vmatmul.mubr.f32.gmra.mxu0 %v1521
    %v1941 = vpop.f32.mrf.mxu0
    %v1942 = vadd.f32 %v1812, %v1941
    %v1943 = vpop.f32.mrf.mxu0
    %1944 = vmatprep.mubr.f32.mxu0 %v1531
    %1945 = vmatmul.mubr.f32.gmra.mxu0 %v1530
    %v1946 = vpop.f32.mrf.mxu0
    %v1947 = vadd.f32 %v1817, %v1946
    %v1948 = vpop.f32.mrf.mxu0
    %1949 = vmatprep.mubr.f32.mxu0 %v1540
    %1950 = vmatmul.mubr.f32.gmra.mxu0 %v1539
    %v1951 = vpop.f32.mrf.mxu0
    %v1952 = vadd.f32 %v1822, %v1951
    %v1953 = vpop.f32.mrf.mxu0
    %1954 = vmatprep.mubr.f32.mxu0 %v1549
    %1955 = vmatmul.mubr.f32.gmra.mxu0 %v1548
    %v1956 = vpop.f32.mrf.mxu0
    %v1957 = vadd.f32 %v1827, %v1956
    %v1958 = vpop.f32.mrf.mxu0
    %1959 = vdwg.mxu0
    %1960 = vmatprep.subr.mxu0 0.0
    %1961 = vmatpush1.msra.mxu0 %v1604
    %1962 = vmatprep.subr.mxu0 0.0
    %1963 = vmatpush1.msra.mxu0 %v1603
    %1964 = vmatprep.subr.mxu0 0.0
    %1965 = vmatpush1.msra.mxu0 %v1602
    %1966 = vmatprep.subr.mxu0 0.0
    %1967 = vmatpush1.msra.mxu0 %v1601
    %1968 = vmatprep.subr.mxu0 0.0
    %1969 = vmatpush1.msra.mxu0 %v1600
    %1970 = vmatprep.subr.mxu0 0.0
    %1971 = vmatpush1.msra.mxu0 %v1599
    %1972 = vmatprep.subr.mxu0 0.0
    %1973 = vmatpush1.msra.mxu0 %v1598
    %1974 = vmatprep.subr.mxu0 0.0
    %1975 = vmatpush1.msra.mxu0 %v1597
    %1976 = vmatprep.subr.mxu0 0.0
    %1977 = vmatpush1.msra.mxu0 %v1596
    %1978 = vmatprep.subr.mxu0 0.0
    %1979 = vmatpush1.msra.mxu0 %v1595
    %1980 = vmatprep.subr.mxu0 0.0
    %1981 = vmatpush1.msra.mxu0 %v1594
    %1982 = vmatprep.subr.mxu0 0.0
    %1983 = vmatpush1.msra.mxu0 %v1593
    %1984 = vmatprep.subr.mxu0 0.0
    %1985 = vmatpush1.msra.mxu0 %v1592
    %1986 = vmatprep.subr.mxu0 0.0
    %1987 = vmatpush1.msra.mxu0 %v1591
    %1988 = vmatprep.subr.mxu0 0.0
    %1989 = vmatpush1.msra.mxu0 %v1590
    %1990 = vmatprep.subr.mxu0 0.0
    %1991 = vmatpush1.msra.mxu0 %v1589
    %1992 = vmatprep.subr.mxu0 0.0
    %1993 = vmatpush2.msra.mxu0 %v1620
    %1994 = vmatprep.subr.mxu0 0.0
    %1995 = vmatpush2.msra.mxu0 %v1619
    %1996 = vmatprep.subr.mxu0 0.0
    %1997 = vmatpush2.msra.mxu0 %v1618
    %1998 = vmatprep.subr.mxu0 0.0
    %1999 = vmatpush2.msra.mxu0 %v1617
    %2000 = vmatprep.subr.mxu0 0.0
    %2001 = vmatpush2.msra.mxu0 %v1616
    %2002 = vmatprep.subr.mxu0 0.0
    %2003 = vmatpush2.msra.mxu0 %v1615
    %2004 = vmatprep.subr.mxu0 0.0
    %2005 = vmatpush2.msra.mxu0 %v1614
    %2006 = vmatprep.subr.mxu0 0.0
    %2007 = vmatpush2.msra.mxu0 %v1613
    %2008 = vmatprep.subr.mxu0 0.0
    %2009 = vmatpush2.msra.mxu0 %v1612
    %2010 = vmatprep.subr.mxu0 0.0
    %2011 = vmatpush2.msra.mxu0 %v1611
    %2012 = vmatprep.subr.mxu0 0.0
    %2013 = vmatpush2.msra.mxu0 %v1610
    %2014 = vmatprep.subr.mxu0 0.0
    %2015 = vmatpush2.msra.mxu0 %v1609
    %2016 = vmatprep.subr.mxu0 0.0
    %2017 = vmatpush2.msra.mxu0 %v1608
    %2018 = vmatprep.subr.mxu0 0.0
    %2019 = vmatpush2.msra.mxu0 %v1607
    %2020 = vmatprep.subr.mxu0 0.0
    %2021 = vmatpush2.msra.mxu0 %v1606
    %2022 = vmatprep.subr.mxu0 0.0
    %2023 = vmatpush2.msra.mxu0 %v1605
    %2024 = vmatprep.mubr.f32.mxu0 %v1488
    %2025 = vmatmul.mubr.f32.gmra.mxu0 %v1487
    %v2026 = vpop.f32.mrf.mxu0
    %v2027 = vadd.f32 %v1922, %v2026
    %v2028 = vpop.f32.mrf.mxu0
    %2029 = vmatprep.mubr.f32.mxu0 %v1497
    %2030 = vmatmul.mubr.f32.gmra.mxu0 %v1496
    %v2031 = vpop.f32.mrf.mxu0
    %v2032 = vadd.f32 %v1927, %v2031
    %v2033 = vpop.f32.mrf.mxu0
    %2034 = vmatprep.mubr.f32.mxu0 %v1506
    %2035 = vmatmul.mubr.f32.gmra.mxu0 %v1505
    %v2036 = vpop.f32.mrf.mxu0
    %v2037 = vadd.f32 %v1932, %v2036
    %v2038 = vpop.f32.mrf.mxu0
    %2039 = vmatprep.mubr.f32.mxu0 %v1515
    %2040 = vmatmul.mubr.f32.gmra.mxu0 %v1514
    %v2041 = vpop.f32.mrf.mxu0
    %v2042 = vadd.f32 %v1937, %v2041
    %v2043 = vpop.f32.mrf.mxu0
    %2044 = vmatprep.mubr.f32.mxu0 %v1524
    %2045 = vmatmul.mubr.f32.gmra.mxu0 %v1523
    %v2046 = vpop.f32.mrf.mxu0
    %v2047 = vadd.f32 %v1942, %v2046
    %v2048 = vpop.f32.mrf.mxu0
    %2049 = vmatprep.mubr.f32.mxu0 %v1533
    %2050 = vmatmul.mubr.f32.gmra.mxu0 %v1532
    %v2051 = vpop.f32.mrf.mxu0
    %v2052 = vadd.f32 %v1947, %v2051
    %v2053 = vpop.f32.mrf.mxu0
    %2054 = vmatprep.mubr.f32.mxu0 %v1542
    %2055 = vmatmul.mubr.f32.gmra.mxu0 %v1541
    %v2056 = vpop.f32.mrf.mxu0
    %v2057 = vadd.f32 %v1952, %v2056
    %v2058 = vpop.f32.mrf.mxu0
    %2059 = vmatprep.mubr.f32.mxu0 %v1551
    %2060 = vmatmul.mubr.f32.gmra.mxu0 %v1550
    %v2061 = vpop.f32.mrf.mxu0
    %v2062 = vadd.f32 %v1957, %v2061
    %v2063 = vpop.f32.mrf.mxu0
    %2064 = vdwg.mxu0
    %2065 = vmatprep.subr.mxu0 0.0
    %2066 = vmatpush1.msra.mxu0 %v1636
    %2067 = vmatprep.subr.mxu0 0.0
    %2068 = vmatpush1.msra.mxu0 %v1635
    %2069 = vmatprep.subr.mxu0 0.0
    %2070 = vmatpush1.msra.mxu0 %v1634
    %2071 = vmatprep.subr.mxu0 0.0
    %2072 = vmatpush1.msra.mxu0 %v1633
    %2073 = vmatprep.subr.mxu0 0.0
    %2074 = vmatpush1.msra.mxu0 %v1632
    %2075 = vmatprep.subr.mxu0 0.0
    %2076 = vmatpush1.msra.mxu0 %v1631
    %2077 = vmatprep.subr.mxu0 0.0
    %2078 = vmatpush1.msra.mxu0 %v1630
    %2079 = vmatprep.subr.mxu0 0.0
    %2080 = vmatpush1.msra.mxu0 %v1629
    %2081 = vmatprep.subr.mxu0 0.0
    %2082 = vmatpush1.msra.mxu0 %v1628
    %2083 = vmatprep.subr.mxu0 0.0
    %2084 = vmatpush1.msra.mxu0 %v1627
    %2085 = vmatprep.subr.mxu0 0.0
    %2086 = vmatpush1.msra.mxu0 %v1626
    %2087 = vmatprep.subr.mxu0 0.0
    %2088 = vmatpush1.msra.mxu0 %v1625
    %2089 = vmatprep.subr.mxu0 0.0
    %2090 = vmatpush1.msra.mxu0 %v1624
    %2091 = vmatprep.subr.mxu0 0.0
    %2092 = vmatpush1.msra.mxu0 %v1623
    %2093 = vmatprep.subr.mxu0 0.0
    %2094 = vmatpush1.msra.mxu0 %v1622
    %2095 = vmatprep.subr.mxu0 0.0
    %2096 = vmatpush1.msra.mxu0 %v1621
    %2097 = vmatprep.subr.mxu0 0.0
    %2098 = vmatpush2.msra.mxu0 %v1652
    %2099 = vmatprep.subr.mxu0 0.0
    %2100 = vmatpush2.msra.mxu0 %v1651
    %2101 = vmatprep.subr.mxu0 0.0
    %2102 = vmatpush2.msra.mxu0 %v1650
    %2103 = vmatprep.subr.mxu0 0.0
    %2104 = vmatpush2.msra.mxu0 %v1649
    %2105 = vmatprep.subr.mxu0 0.0
    %2106 = vmatpush2.msra.mxu0 %v1648
    %2107 = vmatprep.subr.mxu0 0.0
    %2108 = vmatpush2.msra.mxu0 %v1647
    %2109 = vmatprep.subr.mxu0 0.0
    %2110 = vmatpush2.msra.mxu0 %v1646
    %2111 = vmatprep.subr.mxu0 0.0
    %2112 = vmatpush2.msra.mxu0 %v1645
    %2113 = vmatprep.subr.mxu0 0.0
    %2114 = vmatpush2.msra.mxu0 %v1644
    %2115 = vmatprep.subr.mxu0 0.0
    %2116 = vmatpush2.msra.mxu0 %v1643
    %2117 = vmatprep.subr.mxu0 0.0
    %2118 = vmatpush2.msra.mxu0 %v1642
    %2119 = vmatprep.subr.mxu0 0.0
    %2120 = vmatpush2.msra.mxu0 %v1641
    %2121 = vmatprep.subr.mxu0 0.0
    %2122 = vmatpush2.msra.mxu0 %v1640
    %2123 = vmatprep.subr.mxu0 0.0
    %2124 = vmatpush2.msra.mxu0 %v1639
    %2125 = vmatprep.subr.mxu0 0.0
    %2126 = vmatpush2.msra.mxu0 %v1638
    %2127 = vmatprep.subr.mxu0 0.0
    %2128 = vmatpush2.msra.mxu0 %v1637
    %2129 = vmatprep.mubr.f32.mxu0 %v1490
    %2130 = vmatmul.mubr.f32.gmra.mxu0 %v1489
    %v2131 = vpop.f32.mrf.mxu0
    %v2132 = vadd.f32 %v2027, %v2131
    %v2133 = vpop.f32.mrf.mxu0
    %2134 = vmatprep.mubr.f32.mxu0 %v1499
    %2135 = vmatmul.mubr.f32.gmra.mxu0 %v1498
    %v2136 = vpop.f32.mrf.mxu0
    %v2137 = vadd.f32 %v2032, %v2136
    %v2138 = vpop.f32.mrf.mxu0
    %2139 = vmatprep.mubr.f32.mxu0 %v1508
    %2140 = vmatmul.mubr.f32.gmra.mxu0 %v1507
    %v2141 = vpop.f32.mrf.mxu0
    %v2142 = vadd.f32 %v2037, %v2141
    %v2143 = vpop.f32.mrf.mxu0
    %2144 = vmatprep.mubr.f32.mxu0 %v1517
    %2145 = vmatmul.mubr.f32.gmra.mxu0 %v1516
    %v2146 = vpop.f32.mrf.mxu0
    %v2147 = vadd.f32 %v2042, %v2146
    %v2148 = vpop.f32.mrf.mxu0
    %2149 = vmatprep.mubr.f32.mxu0 %v1526
    %2150 = vmatmul.mubr.f32.gmra.mxu0 %v1525
    %v2151 = vpop.f32.mrf.mxu0
    %v2152 = vadd.f32 %v2047, %v2151
    %v2153 = vpop.f32.mrf.mxu0
    %2154 = vmatprep.mubr.f32.mxu0 %v1535
    %2155 = vmatmul.mubr.f32.gmra.mxu0 %v1534
    %v2156 = vpop.f32.mrf.mxu0
    %v2157 = vadd.f32 %v2052, %v2156
    %v2158 = vpop.f32.mrf.mxu0
    %2159 = vmatprep.mubr.f32.mxu0 %v1544
    %2160 = vmatmul.mubr.f32.gmra.mxu0 %v1543
    %v2161 = vpop.f32.mrf.mxu0
    %v2162 = vadd.f32 %v2057, %v2161
    %v2163 = vpop.f32.mrf.mxu0
    %2164 = vmatprep.mubr.f32.mxu0 %v1553
    %2165 = vmatmul.mubr.f32.gmra.mxu0 %v1552
    %v2166 = vpop.f32.mrf.mxu0
    %v2167 = vadd.f32 %v2062, %v2166
    %v2168 = vpop.f32.mrf.mxu0
    %2169 = vdwg.mxu0
    %2170 = vmatprep.subr.mxu0 0.0
    %2171 = vmatpush1.msra.mxu0 %v1668
    %2172 = vmatprep.subr.mxu0 0.0
    %2173 = vmatpush1.msra.mxu0 %v1667
    %2174 = vmatprep.subr.mxu0 0.0
    %2175 = vmatpush1.msra.mxu0 %v1666
    %2176 = vmatprep.subr.mxu0 0.0
    %2177 = vmatpush1.msra.mxu0 %v1665
    %2178 = vmatprep.subr.mxu0 0.0
    %2179 = vmatpush1.msra.mxu0 %v1664
    %2180 = vmatprep.subr.mxu0 0.0
    %2181 = vmatpush1.msra.mxu0 %v1663
    %2182 = vmatprep.subr.mxu0 0.0
    %2183 = vmatpush1.msra.mxu0 %v1662
    %2184 = vmatprep.subr.mxu0 0.0
    %2185 = vmatpush1.msra.mxu0 %v1661
    %2186 = vmatprep.subr.mxu0 0.0
    %2187 = vmatpush1.msra.mxu0 %v1660
    %2188 = vmatprep.subr.mxu0 0.0
    %2189 = vmatpush1.msra.mxu0 %v1659
    %2190 = vmatprep.subr.mxu0 0.0
    %2191 = vmatpush1.msra.mxu0 %v1658
    %2192 = vmatprep.subr.mxu0 0.0
    %2193 = vmatpush1.msra.mxu0 %v1657
    %2194 = vmatprep.subr.mxu0 0.0
    %2195 = vmatpush1.msra.mxu0 %v1656
    %2196 = vmatprep.subr.mxu0 0.0
    %2197 = vmatpush1.msra.mxu0 %v1655
    %2198 = vmatprep.subr.mxu0 0.0
    %2199 = vmatpush1.msra.mxu0 %v1654
    %2200 = vmatprep.subr.mxu0 0.0
    %2201 = vmatpush1.msra.mxu0 %v1653
    %2202 = vmatprep.subr.mxu0 0.0
    %2203 = vmatpush2.msra.mxu0 %v1684
    %2204 = vmatprep.subr.mxu0 0.0
    %2205 = vmatpush2.msra.mxu0 %v1683
    %2206 = vmatprep.subr.mxu0 0.0
    %2207 = vmatpush2.msra.mxu0 %v1682
    %2208 = vmatprep.subr.mxu0 0.0
    %2209 = vmatpush2.msra.mxu0 %v1681
    %2210 = vmatprep.subr.mxu0 0.0
    %2211 = vmatpush2.msra.mxu0 %v1680
    %2212 = vmatprep.subr.mxu0 0.0
    %2213 = vmatpush2.msra.mxu0 %v1679
    %2214 = vmatprep.subr.mxu0 0.0
    %2215 = vmatpush2.msra.mxu0 %v1678
    %2216 = vmatprep.subr.mxu0 0.0
    %2217 = vmatpush2.msra.mxu0 %v1677
    %2218 = vmatprep.subr.mxu0 0.0
    %2219 = vmatpush2.msra.mxu0 %v1676
    %2220 = vmatprep.subr.mxu0 0.0
    %2221 = vmatpush2.msra.mxu0 %v1675
    %2222 = vmatprep.subr.mxu0 0.0
    %2223 = vmatpush2.msra.mxu0 %v1674
    %2224 = vmatprep.subr.mxu0 0.0
    %2225 = vmatpush2.msra.mxu0 %v1673
    %2226 = vmatprep.subr.mxu0 0.0
    %2227 = vmatpush2.msra.mxu0 %v1672
    %2228 = vmatprep.subr.mxu0 0.0
    %2229 = vmatpush2.msra.mxu0 %v1671
    %2230 = vmatprep.subr.mxu0 0.0
    %2231 = vmatpush2.msra.mxu0 %v1670
    %2232 = vmatprep.subr.mxu0 0.0
    %2233 = vmatpush2.msra.mxu0 %v1669
    %2234 = vmatprep.mubr.f32.mxu0 %v1492
    %2235 = vmatmul.mubr.f32.gmra.mxu0 %v1491
    %v2236 = vpop.f32.mrf.mxu0
    %v2237 = vadd.f32 %v2132, %v2236
    %v2238 = vpop.f32.mrf.mxu0
    %2239 = vmatprep.mubr.f32.mxu0 %v1501
    %2240 = vmatmul.mubr.f32.gmra.mxu0 %v1500
    %v2241 = vpop.f32.mrf.mxu0
    %v2242 = vadd.f32 %v2137, %v2241
    %v2243 = vpop.f32.mrf.mxu0
    %2244 = vmatprep.mubr.f32.mxu0 %v1510
    %2245 = vmatmul.mubr.f32.gmra.mxu0 %v1509
    %v2246 = vpop.f32.mrf.mxu0
    %v2247 = vadd.f32 %v2142, %v2246
    %v2248 = vpop.f32.mrf.mxu0
    %2249 = vmatprep.mubr.f32.mxu0 %v1519
    %2250 = vmatmul.mubr.f32.gmra.mxu0 %v1518
    %v2251 = vpop.f32.mrf.mxu0
    %v2252 = vadd.f32 %v2147, %v2251
    %v2253 = vpop.f32.mrf.mxu0
    %2254 = vmatprep.mubr.f32.mxu0 %v1528
    %2255 = vmatmul.mubr.f32.gmra.mxu0 %v1527
    %v2256 = vpop.f32.mrf.mxu0
    %v2257 = vadd.f32 %v2152, %v2256
    %v2258 = vpop.f32.mrf.mxu0
    %2259 = vmatprep.mubr.f32.mxu0 %v1537
    %2260 = vmatmul.mubr.f32.gmra.mxu0 %v1536
    %v2261 = vpop.f32.mrf.mxu0
    %v2262 = vadd.f32 %v2157, %v2261
    %v2263 = vpop.f32.mrf.mxu0
    %2264 = vmatprep.mubr.f32.mxu0 %v1546
    %2265 = vmatmul.mubr.f32.gmra.mxu0 %v1545
    %v2266 = vpop.f32.mrf.mxu0
    %v2267 = vadd.f32 %v2162, %v2266
    %v2268 = vpop.f32.mrf.mxu0
    %2269 = vmatprep.mubr.f32.mxu0 %v1555
    %2270 = vmatmul.mubr.f32.gmra.mxu0 %v1554
    %v2271 = vpop.f32.mrf.mxu0
    %v2272 = vadd.f32 %v2167, %v2271
    %v2273 = vpop.f32.mrf.mxu0
    %2274 = vdwg.mxu0
    %2275 = vmatprep.subr.mxu0 0.0
    %2276 = vmatpush1.msra.mxu0 0.0
    %2277 = vmatprep.subr.mxu0 0.0
    %2278 = vmatpush1.msra.mxu0 0.0
    %2279 = vmatprep.subr.mxu0 0.0
    %2280 = vmatpush1.msra.mxu0 0.0
    %2281 = vmatprep.subr.mxu0 0.0
    %2282 = vmatpush1.msra.mxu0 0.0
    %2283 = vmatprep.subr.mxu0 0.0
    %2284 = vmatpush1.msra.mxu0 0.0
    %2285 = vmatprep.subr.mxu0 0.0
    %2286 = vmatpush1.msra.mxu0 0.0
    %2287 = vmatprep.subr.mxu0 0.0
    %2288 = vmatpush1.msra.mxu0 0.0
    %2289 = vmatprep.subr.mxu0 0.0
    %2290 = vmatpush1.msra.mxu0 0.0
    %2291 = vmatprep.subr.mxu0 0.0
    %2292 = vmatpush1.msra.mxu0 %v1692
    %2293 = vmatprep.subr.mxu0 0.0
    %2294 = vmatpush1.msra.mxu0 %v1691
    %2295 = vmatprep.subr.mxu0 0.0
    %2296 = vmatpush1.msra.mxu0 %v1690
    %2297 = vmatprep.subr.mxu0 0.0
    %2298 = vmatpush1.msra.mxu0 %v1689
    %2299 = vmatprep.subr.mxu0 0.0
    %2300 = vmatpush1.msra.mxu0 %v1688
    %2301 = vmatprep.subr.mxu0 0.0
    %2302 = vmatpush1.msra.mxu0 %v1687
    %2303 = vmatprep.subr.mxu0 0.0
    %2304 = vmatpush1.msra.mxu0 %v1686
    %2305 = vmatprep.subr.mxu0 0.0
    %2306 = vmatpush1.msra.mxu0 %v1685
    %2307 = vmatprep.subr.mxu0 0.0
    %2308 = vmatpush2.msra.mxu0 0.0
    %2309 = vmatprep.subr.mxu0 0.0
    %2310 = vmatpush2.msra.mxu0 0.0
    %2311 = vmatprep.subr.mxu0 0.0
    %2312 = vmatpush2.msra.mxu0 0.0
    %2313 = vmatprep.subr.mxu0 0.0
    %2314 = vmatpush2.msra.mxu0 0.0
    %2315 = vmatprep.subr.mxu0 0.0
    %2316 = vmatpush2.msra.mxu0 0.0
    %2317 = vmatprep.subr.mxu0 0.0
    %2318 = vmatpush2.msra.mxu0 0.0
    %2319 = vmatprep.subr.mxu0 0.0
    %2320 = vmatpush2.msra.mxu0 0.0
    %2321 = vmatprep.subr.mxu0 0.0
    %2322 = vmatpush2.msra.mxu0 0.0
    %2323 = vmatprep.subr.mxu0 0.0
    %2324 = vmatpush2.msra.mxu0 0.0
    %2325 = vmatprep.subr.mxu0 0.0
    %2326 = vmatpush2.msra.mxu0 0.0
    %2327 = vmatprep.subr.mxu0 0.0
    %2328 = vmatpush2.msra.mxu0 0.0
    %2329 = vmatprep.subr.mxu0 0.0
    %2330 = vmatpush2.msra.mxu0 0.0
    %2331 = vmatprep.subr.mxu0 0.0
    %2332 = vmatpush2.msra.mxu0 0.0
    %2333 = vmatprep.subr.mxu0 0.0
    %2334 = vmatpush2.msra.mxu0 0.0
    %2335 = vmatprep.subr.mxu0 0.0
    %2336 = vmatpush2.msra.mxu0 0.0
    %2337 = vmatprep.subr.mxu0 0.0
    %2338 = vmatpush2.msra.mxu0 0.0
    %2339 = vmatprep.mubr.f32.mxu0 0.0
    %2340 = vmatmul.mubr.f32.gmra.mxu0 %v1832
    %v2341 = vpop.f32.mrf.mxu0
    %v2342 = vadd.f32 %v2237, %v2341
    %v2343 = vpop.f32.mrf.mxu0
    %2344 = vmatprep.mubr.f32.mxu0 0.0
    %2345 = vmatmul.mubr.f32.gmra.mxu0 %v1835
    %v2346 = vpop.f32.mrf.mxu0
    %v2347 = vadd.f32 %v2242, %v2346
    %v2348 = vpop.f32.mrf.mxu0
    %2349 = vmatprep.mubr.f32.mxu0 0.0
    %2350 = vmatmul.mubr.f32.gmra.mxu0 %v1838
    %v2351 = vpop.f32.mrf.mxu0
    %v2352 = vadd.f32 %v2247, %v2351
    %v2353 = vpop.f32.mrf.mxu0
    %2354 = vmatprep.mubr.f32.mxu0 0.0
    %2355 = vmatmul.mubr.f32.gmra.mxu0 %v1841
    %v2356 = vpop.f32.mrf.mxu0
    %v2357 = vadd.f32 %v2252, %v2356
    %v2358 = vpop.f32.mrf.mxu0
    %2359 = vmatprep.mubr.f32.mxu0 0.0
    %2360 = vmatmul.mubr.f32.gmra.mxu0 %v1844
    %v2361 = vpop.f32.mrf.mxu0
    %v2362 = vadd.f32 %v2257, %v2361
    %v2363 = vpop.f32.mrf.mxu0
    %2364 = vmatprep.mubr.f32.mxu0 0.0
    %2365 = vmatmul.mubr.f32.gmra.mxu0 %v1847
    %v2366 = vpop.f32.mrf.mxu0
    %v2367 = vadd.f32 %v2262, %v2366
    %v2368 = vpop.f32.mrf.mxu0
    %2369 = vmatprep.mubr.f32.mxu0 0.0
    %2370 = vmatmul.mubr.f32.gmra.mxu0 %v1850
    %v2371 = vpop.f32.mrf.mxu0
    %v2372 = vadd.f32 %v2267, %v2371
    %v2373 = vpop.f32.mrf.mxu0
    %2374 = vmatprep.mubr.f32.mxu0 0.0
    %2375 = vmatmul.mubr.f32.gmra.mxu0 %v1853
    %v2376 = vpop.f32.mrf.mxu0
    %v2377 = vadd.f32 %v2272, %v2376
    %v2378 = vpop.f32.mrf.mxu0
    %2379 = vdwg.mxu0
    %v2380 = vld [vmem:[#allocation2 + $0x458] sm:$0xff]
    %v2381 = vld [vmem:[#allocation2 + $0x460] sm:$0x1]
    %v2382 = vlaneseq
    %v2383 = vshrl.u32 %v2382, 7
    %v2384 = vsub.s32 0, %v2383
    %v2385 = vrot.slane %v2381, %v2384
    %v2387 = vsel %vm831, %v39, 0
    %v2390 = vsel %vm831, %v40, 0
    %v2393 = vsel %vm831, %v41, 0
    %v2396 = vsel %vm831, %v42, 0
    %v2399 = vsel %vm831, %v43, 0
    %v2402 = vsel %vm831, %v44, 0
    %v2405 = vsel %vm831, %v45, 0
    %v2408 = vsel %vm831, %v46, 0
    %v2411 = vsel %vm831, %v47, 0
    %v2414 = vsel %vm831, %v48, 0
    %v2417 = vsel %vm831, %v49, 0
    %v2420 = vsel %vm831, %v50, 0
    %v2423 = vsel %vm831, %v51, 0
    %v2426 = vsel %vm831, %v52, 0
    %v2429 = vsel %vm831, %v53, 0
    %v2432 = vsel %vm831, %v54, 0
    %2434 = vmatprep.subr.mxu0 0.0
    %2435 = vmatpush1.msra.mxu0 0.0
    %2436 = vmatprep.subr.mxu0 0.0
    %2437 = vmatpush1.msra.mxu0 0.0
    %2438 = vmatprep.subr.mxu0 0.0
    %2439 = vmatpush1.msra.mxu0 0.0
    %2440 = vmatprep.subr.mxu0 0.0
    %2441 = vmatpush1.msra.mxu0 0.0
    %2442 = vmatprep.subr.mxu0 0.0
    %2443 = vmatpush1.msra.mxu0 0.0
    %2444 = vmatprep.subr.mxu0 0.0
    %2445 = vmatpush1.msra.mxu0 0.0
    %2446 = vmatprep.subr.mxu0 0.0
    %2447 = vmatpush1.msra.mxu0 0.0
    %2448 = vmatprep.subr.mxu0 0.0
    %2449 = vmatpush1.msra.mxu0 0.0
    %2450 = vmatprep.subr.mxu0 0.0
    %2451 = vmatpush1.msra.mxu0 0.0
    %2452 = vmatprep.subr.mxu0 0.0
    %2453 = vmatpush1.msra.mxu0 0.0
    %2454 = vmatprep.subr.mxu0 0.0
    %2455 = vmatpush1.msra.mxu0 0.0
    %2456 = vmatprep.subr.mxu0 0.0
    %2457 = vmatpush1.msra.mxu0 0.0
    %2458 = vmatprep.subr.mxu0 0.0
    %2459 = vmatpush1.msra.mxu0 0.0
    %2460 = vmatprep.subr.mxu0 0.0
    %2461 = vmatpush1.msra.mxu0 0.0
    %2462 = vmatprep.subr.mxu0 0.0
    %2463 = vmatpush1.msra.mxu0 0.0
    %2464 = vmatprep.subr.mxu0 0.0
    %2465 = vmatpush1.msra.mxu0 %v2380
    %2466 = vmatprep.subr.mxu0 0.0
    %2467 = vmatpush2.msra.mxu0 0.0
    %2468 = vmatprep.subr.mxu0 0.0
    %2469 = vmatpush2.msra.mxu0 0.0
    %2470 = vmatprep.subr.mxu0 0.0
    %2471 = vmatpush2.msra.mxu0 0.0
    %2472 = vmatprep.subr.mxu0 0.0
    %2473 = vmatpush2.msra.mxu0 0.0
    %2474 = vmatprep.subr.mxu0 0.0
    %2475 = vmatpush2.msra.mxu0 0.0
    %2476 = vmatprep.subr.mxu0 0.0
    %2477 = vmatpush2.msra.mxu0 0.0
    %2478 = vmatprep.subr.mxu0 0.0
    %2479 = vmatpush2.msra.mxu0 0.0
    %2480 = vmatprep.subr.mxu0 0.0
    %2481 = vmatpush2.msra.mxu0 0.0
    %2482 = vmatprep.subr.mxu0 0.0
    %2483 = vmatpush2.msra.mxu0 0.0
    %2484 = vmatprep.subr.mxu0 0.0
    %2485 = vmatpush2.msra.mxu0 0.0
    %2486 = vmatprep.subr.mxu0 0.0
    %2487 = vmatpush2.msra.mxu0 0.0
    %2488 = vmatprep.subr.mxu0 0.0
    %2489 = vmatpush2.msra.mxu0 0.0
    %2490 = vmatprep.subr.mxu0 0.0
    %2491 = vmatpush2.msra.mxu0 0.0
    %2492 = vmatprep.subr.mxu0 0.0
    %2493 = vmatpush2.msra.mxu0 0.0
    %2494 = vmatprep.subr.mxu0 0.0
    %2495 = vmatpush2.msra.mxu0 0.0
    %2496 = vmatprep.subr.mxu0 0.0
    %2497 = vmatpush2.msra.mxu0 0.0
    %2498 = vmatprep.mubr.f32.mxu0 0.0
    %2499 = vmatmul.mubr.f32.gmra.mxu0 %v2387
    %v2500 = vpop.f32.mrf.mxu0
    %v2501 = vadd.f32 %v2385, %v2500
    %v2502 = vpop.f32.mrf.mxu0
    %2503 = vmatprep.mubr.f32.mxu0 0.0
    %2504 = vmatmul.mubr.f32.gmra.mxu0 %v2390
    %v2505 = vpop.f32.mrf.mxu0
    %v2506 = vadd.f32 %v2385, %v2505
    %v2507 = vpop.f32.mrf.mxu0
    %2508 = vmatprep.mubr.f32.mxu0 0.0
    %2509 = vmatmul.mubr.f32.gmra.mxu0 %v2393
    %v2510 = vpop.f32.mrf.mxu0
    %v2511 = vadd.f32 %v2385, %v2510
    %v2512 = vpop.f32.mrf.mxu0
    %2513 = vmatprep.mubr.f32.mxu0 0.0
    %2514 = vmatmul.mubr.f32.gmra.mxu0 %v2396
    %v2515 = vpop.f32.mrf.mxu0
    %v2516 = vadd.f32 %v2385, %v2515
    %v2517 = vpop.f32.mrf.mxu0
    %2518 = vmatprep.mubr.f32.mxu0 0.0
    %2519 = vmatmul.mubr.f32.gmra.mxu0 %v2399
    %v2520 = vpop.f32.mrf.mxu0
    %v2521 = vadd.f32 %v2385, %v2520
    %v2522 = vpop.f32.mrf.mxu0
    %2523 = vmatprep.mubr.f32.mxu0 0.0
    %2524 = vmatmul.mubr.f32.gmra.mxu0 %v2402
    %v2525 = vpop.f32.mrf.mxu0
    %v2526 = vadd.f32 %v2385, %v2525
    %v2527 = vpop.f32.mrf.mxu0
    %2528 = vmatprep.mubr.f32.mxu0 0.0
    %2529 = vmatmul.mubr.f32.gmra.mxu0 %v2405
    %v2530 = vpop.f32.mrf.mxu0
    %v2531 = vadd.f32 %v2385, %v2530
    %v2532 = vpop.f32.mrf.mxu0
    %2533 = vmatprep.mubr.f32.mxu0 0.0
    %2534 = vmatmul.mubr.f32.gmra.mxu0 %v2408
    %v2535 = vpop.f32.mrf.mxu0
    %v2536 = vadd.f32 %v2385, %v2535
    %v2537 = vpop.f32.mrf.mxu0
    %2538 = vmatprep.mubr.f32.mxu0 0.0
    %2539 = vmatmul.mubr.f32.gmra.mxu0 %v2411
    %v2540 = vpop.f32.mrf.mxu0
    %v2541 = vadd.f32 %v2385, %v2540
    %v2542 = vpop.f32.mrf.mxu0
    %2543 = vmatprep.mubr.f32.mxu0 0.0
    %2544 = vmatmul.mubr.f32.gmra.mxu0 %v2414
    %v2545 = vpop.f32.mrf.mxu0
    %v2546 = vadd.f32 %v2385, %v2545
    %v2547 = vpop.f32.mrf.mxu0
    %2548 = vmatprep.mubr.f32.mxu0 0.0
    %2549 = vmatmul.mubr.f32.gmra.mxu0 %v2417
    %v2550 = vpop.f32.mrf.mxu0
    %v2551 = vadd.f32 %v2385, %v2550
    %v2552 = vpop.f32.mrf.mxu0
    %2553 = vmatprep.mubr.f32.mxu0 0.0
    %2554 = vmatmul.mubr.f32.gmra.mxu0 %v2420
    %v2555 = vpop.f32.mrf.mxu0
    %v2556 = vadd.f32 %v2385, %v2555
    %v2557 = vpop.f32.mrf.mxu0
    %2558 = vmatprep.mubr.f32.mxu0 0.0
    %2559 = vmatmul.mubr.f32.gmra.mxu0 %v2423
    %v2560 = vpop.f32.mrf.mxu0
    %v2561 = vadd.f32 %v2385, %v2560
    %v2562 = vpop.f32.mrf.mxu0
    %2563 = vmatprep.mubr.f32.mxu0 0.0
    %2564 = vmatmul.mubr.f32.gmra.mxu0 %v2426
    %v2565 = vpop.f32.mrf.mxu0
    %v2566 = vadd.f32 %v2385, %v2565
    %v2567 = vpop.f32.mrf.mxu0
    %2568 = vmatprep.mubr.f32.mxu0 0.0
    %2569 = vmatmul.mubr.f32.gmra.mxu0 %v2429
    %v2570 = vpop.f32.mrf.mxu0
    %v2571 = vadd.f32 %v2385, %v2570
    %v2572 = vpop.f32.mrf.mxu0
    %2573 = vmatprep.mubr.f32.mxu0 0.0
    %2574 = vmatmul.mubr.f32.gmra.mxu0 %v2432
    %v2575 = vpop.f32.mrf.mxu0
    %v2576 = vadd.f32 %v2385, %v2575
    %v2577 = vpop.f32.mrf.mxu0
    %2578 = vdwg.mxu0
    %v2579 = vmax.f32 %v2501, 0.0
    %v2580 = vmax.f32 %v2506, 0.0
    %v2581 = vmax.f32 %v2511, 0.0
    %v2582 = vmax.f32 %v2516, 0.0
    %v2583 = vmax.f32 %v2521, 0.0
    %v2584 = vmax.f32 %v2526, 0.0
    %v2585 = vmax.f32 %v2531, 0.0
    %v2586 = vmax.f32 %v2536, 0.0
    %v2587 = vmax.f32 %v2541, 0.0
    %v2588 = vmax.f32 %v2546, 0.0
    %v2589 = vmax.f32 %v2551, 0.0
    %v2590 = vmax.f32 %v2556, 0.0
    %v2591 = vmax.f32 %v2561, 0.0
    %v2592 = vmax.f32 %v2566, 0.0
    %v2593 = vmax.f32 %v2571, 0.0
    %v2594 = vmax.f32 %v2576, 0.0
    %v2595 = vld [vmem:[#allocation2 + $0x468] sm:$0xff]
    %v2596 = vld [vmem:[#allocation2 + $0x470] sm:$0xff]
    %v2597 = vld [vmem:[#allocation2 + $0x478] sm:$0xff]
    %v2598 = vld [vmem:[#allocation2 + $0x480] sm:$0xff]
    %v2599 = vld [vmem:[#allocation2 + $0x488] sm:$0xff]
    %v2600 = vld [vmem:[#allocation2 + $0x490] sm:$0xff]
    %v2601 = vld [vmem:[#allocation2 + $0x498] sm:$0xff]
    %v2602 = vld [vmem:[#allocation2 + $0x4a0] sm:$0xff]
    %v2603 = vld [vmem:[#allocation2 + $0x4a8] sm:$0x1]
    %v2604 = vlaneseq
    %v2605 = vshrl.u32 %v2604, 7
    %v2606 = vsub.s32 0, %v2605
    %v2607 = vrot.slane %v2603, %v2606
    %v2609 = vsel %vm1830, %v2579, 0
    %v2612 = vsel %vm1830, %v2580, 0
    %v2615 = vsel %vm1830, %v2581, 0
    %v2618 = vsel %vm1830, %v2582, 0
    %v2621 = vsel %vm1830, %v2583, 0
    %v2624 = vsel %vm1830, %v2584, 0
    %v2627 = vsel %vm1830, %v2585, 0
    %v2630 = vsel %vm1830, %v2586, 0
    %v2633 = vsel %vm1830, %v2587, 0
    %v2636 = vsel %vm1830, %v2588, 0
    %v2639 = vsel %vm1830, %v2589, 0
    %v2642 = vsel %vm1830, %v2590, 0
    %v2645 = vsel %vm1830, %v2591, 0
    %v2648 = vsel %vm1830, %v2592, 0
    %v2651 = vsel %vm1830, %v2593, 0
    %v2654 = vsel %vm1830, %v2594, 0
    %2656 = vmatprep.subr.mxu0 0.0
    %2657 = vmatpush1.msra.mxu0 0.0
    %2658 = vmatprep.subr.mxu0 0.0
    %2659 = vmatpush1.msra.mxu0 0.0
    %2660 = vmatprep.subr.mxu0 0.0
    %2661 = vmatpush1.msra.mxu0 0.0
    %2662 = vmatprep.subr.mxu0 0.0
    %2663 = vmatpush1.msra.mxu0 0.0
    %2664 = vmatprep.subr.mxu0 0.0
    %2665 = vmatpush1.msra.mxu0 0.0
    %2666 = vmatprep.subr.mxu0 0.0
    %2667 = vmatpush1.msra.mxu0 0.0
    %2668 = vmatprep.subr.mxu0 0.0
    %2669 = vmatpush1.msra.mxu0 0.0
    %2670 = vmatprep.subr.mxu0 0.0
    %2671 = vmatpush1.msra.mxu0 0.0
    %2672 = vmatprep.subr.mxu0 0.0
    %2673 = vmatpush1.msra.mxu0 %v2602
    %2674 = vmatprep.subr.mxu0 0.0
    %2675 = vmatpush1.msra.mxu0 %v2601
    %2676 = vmatprep.subr.mxu0 0.0
    %2677 = vmatpush1.msra.mxu0 %v2600
    %2678 = vmatprep.subr.mxu0 0.0
    %2679 = vmatpush1.msra.mxu0 %v2599
    %2680 = vmatprep.subr.mxu0 0.0
    %2681 = vmatpush1.msra.mxu0 %v2598
    %2682 = vmatprep.subr.mxu0 0.0
    %2683 = vmatpush1.msra.mxu0 %v2597
    %2684 = vmatprep.subr.mxu0 0.0
    %2685 = vmatpush1.msra.mxu0 %v2596
    %2686 = vmatprep.subr.mxu0 0.0
    %2687 = vmatpush1.msra.mxu0 %v2595
    %2688 = vmatprep.subr.mxu0 0.0
    %2689 = vmatpush2.msra.mxu0 0.0
    %2690 = vmatprep.subr.mxu0 0.0
    %2691 = vmatpush2.msra.mxu0 0.0
    %2692 = vmatprep.subr.mxu0 0.0
    %2693 = vmatpush2.msra.mxu0 0.0
    %2694 = vmatprep.subr.mxu0 0.0
    %2695 = vmatpush2.msra.mxu0 0.0
    %2696 = vmatprep.subr.mxu0 0.0
    %2697 = vmatpush2.msra.mxu0 0.0
    %2698 = vmatprep.subr.mxu0 0.0
    %2699 = vmatpush2.msra.mxu0 0.0
    %2700 = vmatprep.subr.mxu0 0.0
    %2701 = vmatpush2.msra.mxu0 0.0
    %2702 = vmatprep.subr.mxu0 0.0
    %2703 = vmatpush2.msra.mxu0 0.0
    %2704 = vmatprep.subr.mxu0 0.0
    %2705 = vmatpush2.msra.mxu0 0.0
    %2706 = vmatprep.subr.mxu0 0.0
    %2707 = vmatpush2.msra.mxu0 0.0
    %2708 = vmatprep.subr.mxu0 0.0
    %2709 = vmatpush2.msra.mxu0 0.0
    %2710 = vmatprep.subr.mxu0 0.0
    %2711 = vmatpush2.msra.mxu0 0.0
    %2712 = vmatprep.subr.mxu0 0.0
    %2713 = vmatpush2.msra.mxu0 0.0
    %2714 = vmatprep.subr.mxu0 0.0
    %2715 = vmatpush2.msra.mxu0 0.0
    %2716 = vmatprep.subr.mxu0 0.0
    %2717 = vmatpush2.msra.mxu0 0.0
    %2718 = vmatprep.subr.mxu0 0.0
    %2719 = vmatpush2.msra.mxu0 0.0
    %2720 = vmatprep.mubr.f32.mxu0 0.0
    %2721 = vmatmul.mubr.f32.gmra.mxu0 %v2609
    %v2722 = vpop.f32.mrf.mxu0
    %v2723 = vadd.f32 %v2607, %v2722
    %v2724 = vpop.f32.mrf.mxu0
    %2725 = vmatprep.mubr.f32.mxu0 0.0
    %2726 = vmatmul.mubr.f32.gmra.mxu0 %v2612
    %v2727 = vpop.f32.mrf.mxu0
    %v2728 = vadd.f32 %v2607, %v2727
    %v2729 = vpop.f32.mrf.mxu0
    %2730 = vmatprep.mubr.f32.mxu0 0.0
    %2731 = vmatmul.mubr.f32.gmra.mxu0 %v2615
    %v2732 = vpop.f32.mrf.mxu0
    %v2733 = vadd.f32 %v2607, %v2732
    %v2734 = vpop.f32.mrf.mxu0
    %2735 = vmatprep.mubr.f32.mxu0 0.0
    %2736 = vmatmul.mubr.f32.gmra.mxu0 %v2618
    %v2737 = vpop.f32.mrf.mxu0
    %v2738 = vadd.f32 %v2607, %v2737
    %v2739 = vpop.f32.mrf.mxu0
    %2740 = vmatprep.mubr.f32.mxu0 0.0
    %2741 = vmatmul.mubr.f32.gmra.mxu0 %v2621
    %v2742 = vpop.f32.mrf.mxu0
    %v2743 = vadd.f32 %v2607, %v2742
    %v2744 = vpop.f32.mrf.mxu0
    %2745 = vmatprep.mubr.f32.mxu0 0.0
    %2746 = vmatmul.mubr.f32.gmra.mxu0 %v2624
    %v2747 = vpop.f32.mrf.mxu0
    %v2748 = vadd.f32 %v2607, %v2747
    %v2749 = vpop.f32.mrf.mxu0
    %2750 = vmatprep.mubr.f32.mxu0 0.0
    %2751 = vmatmul.mubr.f32.gmra.mxu0 %v2627
    %v2752 = vpop.f32.mrf.mxu0
    %v2753 = vadd.f32 %v2607, %v2752
    %v2754 = vpop.f32.mrf.mxu0
    %2755 = vmatprep.mubr.f32.mxu0 0.0
    %2756 = vmatmul.mubr.f32.gmra.mxu0 %v2630
    %v2757 = vpop.f32.mrf.mxu0
    %v2758 = vadd.f32 %v2607, %v2757
    %v2759 = vpop.f32.mrf.mxu0
    %2760 = vmatprep.mubr.f32.mxu0 0.0
    %2761 = vmatmul.mubr.f32.gmra.mxu0 %v2633
    %v2762 = vpop.f32.mrf.mxu0
    %v2763 = vadd.f32 %v2607, %v2762
    %v2764 = vpop.f32.mrf.mxu0
    %2765 = vmatprep.mubr.f32.mxu0 0.0
    %2766 = vmatmul.mubr.f32.gmra.mxu0 %v2636
    %v2767 = vpop.f32.mrf.mxu0
    %v2768 = vadd.f32 %v2607, %v2767
    %v2769 = vpop.f32.mrf.mxu0
    %2770 = vmatprep.mubr.f32.mxu0 0.0
    %2771 = vmatmul.mubr.f32.gmra.mxu0 %v2639
    %v2772 = vpop.f32.mrf.mxu0
    %v2773 = vadd.f32 %v2607, %v2772
    %v2774 = vpop.f32.mrf.mxu0
    %2775 = vmatprep.mubr.f32.mxu0 0.0
    %2776 = vmatmul.mubr.f32.gmra.mxu0 %v2642
    %v2777 = vpop.f32.mrf.mxu0
    %v2778 = vadd.f32 %v2607, %v2777
    %v2779 = vpop.f32.mrf.mxu0
    %2780 = vmatprep.mubr.f32.mxu0 0.0
    %2781 = vmatmul.mubr.f32.gmra.mxu0 %v2645
    %v2782 = vpop.f32.mrf.mxu0
    %v2783 = vadd.f32 %v2607, %v2782
    %v2784 = vpop.f32.mrf.mxu0
    %2785 = vmatprep.mubr.f32.mxu0 0.0
    %2786 = vmatmul.mubr.f32.gmra.mxu0 %v2648
    %v2787 = vpop.f32.mrf.mxu0
    %v2788 = vadd.f32 %v2607, %v2787
    %v2789 = vpop.f32.mrf.mxu0
    %2790 = vmatprep.mubr.f32.mxu0 0.0
    %2791 = vmatmul.mubr.f32.gmra.mxu0 %v2651
    %v2792 = vpop.f32.mrf.mxu0
    %v2793 = vadd.f32 %v2607, %v2792
    %v2794 = vpop.f32.mrf.mxu0
    %2795 = vmatprep.mubr.f32.mxu0 0.0
    %2796 = vmatmul.mubr.f32.gmra.mxu0 %v2654
    %v2797 = vpop.f32.mrf.mxu0
    %v2798 = vadd.f32 %v2607, %v2797
    %v2799 = vpop.f32.mrf.mxu0
    %2800 = vdwg.mxu0
    %v2802 = vsel %vm1830, %v657, 0
    %v2805 = vsel %vm1830, %v658, 0
    %v2808 = vsel %vm1830, %v659, 0
    %v2811 = vsel %vm1830, %v660, 0
    %v2814 = vsel %vm1830, %v661, 0
    %v2817 = vsel %vm1830, %v662, 0
    %v2820 = vsel %vm1830, %v663, 0
    %v2823 = vsel %vm1830, %v664, 0
    %v2826 = vsel %vm1830, %v665, 0
    %v2829 = vsel %vm1830, %v666, 0
    %v2832 = vsel %vm1830, %v667, 0
    %v2835 = vsel %vm1830, %v668, 0
    %v2838 = vsel %vm1830, %v669, 0
    %v2841 = vsel %vm1830, %v670, 0
    %v2844 = vsel %vm1830, %v671, 0
    %v2847 = vsel %vm1830, %v672, 0
    %2849 = vmatprep.subr.mxu0 0.0
    %2850 = vmatpush1.msra.mxu0 0.0
    %2851 = vmatprep.subr.mxu0 0.0
    %2852 = vmatpush1.msra.mxu0 0.0
    %2853 = vmatprep.subr.mxu0 0.0
    %2854 = vmatpush1.msra.mxu0 0.0
    %2855 = vmatprep.subr.mxu0 0.0
    %2856 = vmatpush1.msra.mxu0 0.0
    %2857 = vmatprep.subr.mxu0 0.0
    %2858 = vmatpush1.msra.mxu0 0.0
    %2859 = vmatprep.subr.mxu0 0.0
    %2860 = vmatpush1.msra.mxu0 0.0
    %2861 = vmatprep.subr.mxu0 0.0
    %2862 = vmatpush1.msra.mxu0 0.0
    %2863 = vmatprep.subr.mxu0 0.0
    %2864 = vmatpush1.msra.mxu0 0.0
    %2865 = vmatprep.subr.mxu0 0.0
    %2866 = vmatpush1.msra.mxu0 %v2377
    %2867 = vmatprep.subr.mxu0 0.0
    %2868 = vmatpush1.msra.mxu0 %v2372
    %2869 = vmatprep.subr.mxu0 0.0
    %2870 = vmatpush1.msra.mxu0 %v2367
    %2871 = vmatprep.subr.mxu0 0.0
    %2872 = vmatpush1.msra.mxu0 %v2362
    %2873 = vmatprep.subr.mxu0 0.0
    %2874 = vmatpush1.msra.mxu0 %v2357
    %2875 = vmatprep.subr.mxu0 0.0
    %2876 = vmatpush1.msra.mxu0 %v2352
    %2877 = vmatprep.subr.mxu0 0.0
    %2878 = vmatpush1.msra.mxu0 %v2347
    %2879 = vmatprep.subr.mxu0 0.0
    %2880 = vmatpush1.msra.mxu0 %v2342
    %2881 = vmatprep.subr.mxu0 0.0
    %2882 = vmatpush2.msra.mxu0 0.0
    %2883 = vmatprep.subr.mxu0 0.0
    %2884 = vmatpush2.msra.mxu0 0.0
    %2885 = vmatprep.subr.mxu0 0.0
    %2886 = vmatpush2.msra.mxu0 0.0
    %2887 = vmatprep.subr.mxu0 0.0
    %2888 = vmatpush2.msra.mxu0 0.0
    %2889 = vmatprep.subr.mxu0 0.0
    %2890 = vmatpush2.msra.mxu0 0.0
    %2891 = vmatprep.subr.mxu0 0.0
    %2892 = vmatpush2.msra.mxu0 0.0
    %2893 = vmatprep.subr.mxu0 0.0
    %2894 = vmatpush2.msra.mxu0 0.0
    %2895 = vmatprep.subr.mxu0 0.0
    %2896 = vmatpush2.msra.mxu0 0.0
    %2897 = vmatprep.subr.mxu0 0.0
    %2898 = vmatpush2.msra.mxu0 0.0
    %2899 = vmatprep.subr.mxu0 0.0
    %2900 = vmatpush2.msra.mxu0 0.0
    %2901 = vmatprep.subr.mxu0 0.0
    %2902 = vmatpush2.msra.mxu0 0.0
    %2903 = vmatprep.subr.mxu0 0.0
    %2904 = vmatpush2.msra.mxu0 0.0
    %2905 = vmatprep.subr.mxu0 0.0
    %2906 = vmatpush2.msra.mxu0 0.0
    %2907 = vmatprep.subr.mxu0 0.0
    %2908 = vmatpush2.msra.mxu0 0.0
    %2909 = vmatprep.subr.mxu0 0.0
    %2910 = vmatpush2.msra.mxu0 0.0
    %2911 = vmatprep.subr.mxu0 0.0
    %2912 = vmatpush2.msra.mxu0 0.0
    %2913 = vmatprep.mubr.f32.mxu0 0.0
    %2914 = vmatmul.mubr.f32.gmra.mxu0 %v2802
    %v2915 = vpop.f32.mrf.mxu0
    %v2916 = vadd.f32 0.0, %v2915
    %v2917 = vpop.f32.mrf.mxu0
    %2918 = vmatprep.mubr.f32.mxu0 0.0
    %2919 = vmatmul.mubr.f32.gmra.mxu0 %v2805
    %v2920 = vpop.f32.mrf.mxu0
    %v2921 = vadd.f32 0.0, %v2920
    %v2922 = vpop.f32.mrf.mxu0
    %2923 = vmatprep.mubr.f32.mxu0 0.0
    %2924 = vmatmul.mubr.f32.gmra.mxu0 %v2808
    %v2925 = vpop.f32.mrf.mxu0
    %v2926 = vadd.f32 0.0, %v2925
    %v2927 = vpop.f32.mrf.mxu0
    %2928 = vmatprep.mubr.f32.mxu0 0.0
    %2929 = vmatmul.mubr.f32.gmra.mxu0 %v2811
    %v2930 = vpop.f32.mrf.mxu0
    %v2931 = vadd.f32 0.0, %v2930
    %v2932 = vpop.f32.mrf.mxu0
    %2933 = vmatprep.mubr.f32.mxu0 0.0
    %2934 = vmatmul.mubr.f32.gmra.mxu0 %v2814
    %v2935 = vpop.f32.mrf.mxu0
    %v2936 = vadd.f32 0.0, %v2935
    %v2937 = vpop.f32.mrf.mxu0
    %2938 = vmatprep.mubr.f32.mxu0 0.0
    %2939 = vmatmul.mubr.f32.gmra.mxu0 %v2817
    %v2940 = vpop.f32.mrf.mxu0
    %v2941 = vadd.f32 0.0, %v2940
    %v2942 = vpop.f32.mrf.mxu0
    %2943 = vmatprep.mubr.f32.mxu0 0.0
    %2944 = vmatmul.mubr.f32.gmra.mxu0 %v2820
    %v2945 = vpop.f32.mrf.mxu0
    %v2946 = vadd.f32 0.0, %v2945
    %v2947 = vpop.f32.mrf.mxu0
    %2948 = vmatprep.mubr.f32.mxu0 0.0
    %2949 = vmatmul.mubr.f32.gmra.mxu0 %v2823
    %v2950 = vpop.f32.mrf.mxu0
    %v2951 = vadd.f32 0.0, %v2950
    %v2952 = vpop.f32.mrf.mxu0
    %2953 = vmatprep.mubr.f32.mxu0 0.0
    %2954 = vmatmul.mubr.f32.gmra.mxu0 %v2826
    %v2955 = vpop.f32.mrf.mxu0
    %v2956 = vadd.f32 0.0, %v2955
    %v2957 = vpop.f32.mrf.mxu0
    %2958 = vmatprep.mubr.f32.mxu0 0.0
    %2959 = vmatmul.mubr.f32.gmra.mxu0 %v2829
    %v2960 = vpop.f32.mrf.mxu0
    %v2961 = vadd.f32 0.0, %v2960
    %v2962 = vpop.f32.mrf.mxu0
    %2963 = vmatprep.mubr.f32.mxu0 0.0
    %2964 = vmatmul.mubr.f32.gmra.mxu0 %v2832
    %v2965 = vpop.f32.mrf.mxu0
    %v2966 = vadd.f32 0.0, %v2965
    %v2967 = vpop.f32.mrf.mxu0
    %2968 = vmatprep.mubr.f32.mxu0 0.0
    %2969 = vmatmul.mubr.f32.gmra.mxu0 %v2835
    %v2970 = vpop.f32.mrf.mxu0
    %v2971 = vadd.f32 0.0, %v2970
    %v2972 = vpop.f32.mrf.mxu0
    %2973 = vmatprep.mubr.f32.mxu0 0.0
    %2974 = vmatmul.mubr.f32.gmra.mxu0 %v2838
    %v2975 = vpop.f32.mrf.mxu0
    %v2976 = vadd.f32 0.0, %v2975
    %v2977 = vpop.f32.mrf.mxu0
    %2978 = vmatprep.mubr.f32.mxu0 0.0
    %2979 = vmatmul.mubr.f32.gmra.mxu0 %v2841
    %v2980 = vpop.f32.mrf.mxu0
    %v2981 = vadd.f32 0.0, %v2980
    %v2982 = vpop.f32.mrf.mxu0
    %2983 = vmatprep.mubr.f32.mxu0 0.0
    %2984 = vmatmul.mubr.f32.gmra.mxu0 %v2844
    %v2985 = vpop.f32.mrf.mxu0
    %v2986 = vadd.f32 0.0, %v2985
    %v2987 = vpop.f32.mrf.mxu0
    %2988 = vmatprep.mubr.f32.mxu0 0.0
    %2989 = vmatmul.mubr.f32.gmra.mxu0 %v2847
    %v2990 = vpop.f32.mrf.mxu0
    %v2991 = vadd.f32 0.0, %v2990
    %v2992 = vpop.f32.mrf.mxu0
    %2993 = vdwg.mxu0
    %v2995 = vsel %vm1830, %v753, 0
    %v2998 = vsel %vm1830, %v754, 0
    %v3001 = vsel %vm1830, %v755, 0
    %v3004 = vsel %vm1830, %v756, 0
    %v3007 = vsel %vm1830, %v757, 0
    %v3010 = vsel %vm1830, %v758, 0
    %v3013 = vsel %vm1830, %v759, 0
    %v3016 = vsel %vm1830, %v760, 0
    %v3019 = vsel %vm1830, %v761, 0
    %v3022 = vsel %vm1830, %v762, 0
    %v3025 = vsel %vm1830, %v763, 0
    %v3028 = vsel %vm1830, %v764, 0
    %v3031 = vsel %vm1830, %v765, 0
    %v3034 = vsel %vm1830, %v766, 0
    %v3037 = vsel %vm1830, %v767, 0
    %v3040 = vsel %vm1830, %v768, 0
    %3042 = vmatprep.subr.mxu0 0.0
    %3043 = vmatpush1.msra.mxu0 0.0
    %3044 = vmatprep.subr.mxu0 0.0
    %3045 = vmatpush1.msra.mxu0 0.0
    %3046 = vmatprep.subr.mxu0 0.0
    %3047 = vmatpush1.msra.mxu0 0.0
    %3048 = vmatprep.subr.mxu0 0.0
    %3049 = vmatpush1.msra.mxu0 0.0
    %3050 = vmatprep.subr.mxu0 0.0
    %3051 = vmatpush1.msra.mxu0 0.0
    %3052 = vmatprep.subr.mxu0 0.0
    %3053 = vmatpush1.msra.mxu0 0.0
    %3054 = vmatprep.subr.mxu0 0.0
    %3055 = vmatpush1.msra.mxu0 0.0
    %3056 = vmatprep.subr.mxu0 0.0
    %3057 = vmatpush1.msra.mxu0 0.0
    %3058 = vmatprep.subr.mxu0 0.0
    %3059 = vmatpush1.msra.mxu0 %v2377
    %3060 = vmatprep.subr.mxu0 0.0
    %3061 = vmatpush1.msra.mxu0 %v2372
    %3062 = vmatprep.subr.mxu0 0.0
    %3063 = vmatpush1.msra.mxu0 %v2367
    %3064 = vmatprep.subr.mxu0 0.0
    %3065 = vmatpush1.msra.mxu0 %v2362
    %3066 = vmatprep.subr.mxu0 0.0
    %3067 = vmatpush1.msra.mxu0 %v2357
    %3068 = vmatprep.subr.mxu0 0.0
    %3069 = vmatpush1.msra.mxu0 %v2352
    %3070 = vmatprep.subr.mxu0 0.0
    %3071 = vmatpush1.msra.mxu0 %v2347
    %3072 = vmatprep.subr.mxu0 0.0
    %3073 = vmatpush1.msra.mxu0 %v2342
    %3074 = vmatprep.subr.mxu0 0.0
    %3075 = vmatpush2.msra.mxu0 0.0
    %3076 = vmatprep.subr.mxu0 0.0
    %3077 = vmatpush2.msra.mxu0 0.0
    %3078 = vmatprep.subr.mxu0 0.0
    %3079 = vmatpush2.msra.mxu0 0.0
    %3080 = vmatprep.subr.mxu0 0.0
    %3081 = vmatpush2.msra.mxu0 0.0
    %3082 = vmatprep.subr.mxu0 0.0
    %3083 = vmatpush2.msra.mxu0 0.0
    %3084 = vmatprep.subr.mxu0 0.0
    %3085 = vmatpush2.msra.mxu0 0.0
    %3086 = vmatprep.subr.mxu0 0.0
    %3087 = vmatpush2.msra.mxu0 0.0
    %3088 = vmatprep.subr.mxu0 0.0
    %3089 = vmatpush2.msra.mxu0 0.0
    %3090 = vmatprep.subr.mxu0 0.0
    %3091 = vmatpush2.msra.mxu0 0.0
    %3092 = vmatprep.subr.mxu0 0.0
    %3093 = vmatpush2.msra.mxu0 0.0
    %3094 = vmatprep.subr.mxu0 0.0
    %3095 = vmatpush2.msra.mxu0 0.0
    %3096 = vmatprep.subr.mxu0 0.0
    %3097 = vmatpush2.msra.mxu0 0.0
    %3098 = vmatprep.subr.mxu0 0.0
    %3099 = vmatpush2.msra.mxu0 0.0
    %3100 = vmatprep.subr.mxu0 0.0
    %3101 = vmatpush2.msra.mxu0 0.0
    %3102 = vmatprep.subr.mxu0 0.0
    %3103 = vmatpush2.msra.mxu0 0.0
    %3104 = vmatprep.subr.mxu0 0.0
    %3105 = vmatpush2.msra.mxu0 0.0
    %3106 = vmatprep.mubr.f32.mxu0 0.0
    %3107 = vmatmul.mubr.f32.gmra.mxu0 %v2995
    %v3108 = vpop.f32.mrf.mxu0
    %v3109 = vadd.f32 0.0, %v3108
    %v3110 = vpop.f32.mrf.mxu0
    %3111 = vmatprep.mubr.f32.mxu0 0.0
    %3112 = vmatmul.mubr.f32.gmra.mxu0 %v2998
    %v3113 = vpop.f32.mrf.mxu0
    %v3114 = vadd.f32 0.0, %v3113
    %v3115 = vpop.f32.mrf.mxu0
    %3116 = vmatprep.mubr.f32.mxu0 0.0
    %3117 = vmatmul.mubr.f32.gmra.mxu0 %v3001
    %v3118 = vpop.f32.mrf.mxu0
    %v3119 = vadd.f32 0.0, %v3118
    %v3120 = vpop.f32.mrf.mxu0
    %3121 = vmatprep.mubr.f32.mxu0 0.0
    %3122 = vmatmul.mubr.f32.gmra.mxu0 %v3004
    %v3123 = vpop.f32.mrf.mxu0
    %v3124 = vadd.f32 0.0, %v3123
    %v3125 = vpop.f32.mrf.mxu0
    %3126 = vmatprep.mubr.f32.mxu0 0.0
    %3127 = vmatmul.mubr.f32.gmra.mxu0 %v3007
    %v3128 = vpop.f32.mrf.mxu0
    %v3129 = vadd.f32 0.0, %v3128
    %v3130 = vpop.f32.mrf.mxu0
    %3131 = vmatprep.mubr.f32.mxu0 0.0
    %3132 = vmatmul.mubr.f32.gmra.mxu0 %v3010
    %v3133 = vpop.f32.mrf.mxu0
    %v3134 = vadd.f32 0.0, %v3133
    %v3135 = vpop.f32.mrf.mxu0
    %3136 = vmatprep.mubr.f32.mxu0 0.0
    %3137 = vmatmul.mubr.f32.gmra.mxu0 %v3013
    %v3138 = vpop.f32.mrf.mxu0
    %v3139 = vadd.f32 0.0, %v3138
    %v3140 = vpop.f32.mrf.mxu0
    %3141 = vmatprep.mubr.f32.mxu0 0.0
    %3142 = vmatmul.mubr.f32.gmra.mxu0 %v3016
    %v3143 = vpop.f32.mrf.mxu0
    %v3144 = vadd.f32 0.0, %v3143
    %v3145 = vpop.f32.mrf.mxu0
    %3146 = vmatprep.mubr.f32.mxu0 0.0
    %3147 = vmatmul.mubr.f32.gmra.mxu0 %v3019
    %v3148 = vpop.f32.mrf.mxu0
    %v3149 = vadd.f32 0.0, %v3148
    %v3150 = vpop.f32.mrf.mxu0
    %3151 = vmatprep.mubr.f32.mxu0 0.0
    %3152 = vmatmul.mubr.f32.gmra.mxu0 %v3022
    %v3153 = vpop.f32.mrf.mxu0
    %v3154 = vadd.f32 0.0, %v3153
    %v3155 = vpop.f32.mrf.mxu0
    %3156 = vmatprep.mubr.f32.mxu0 0.0
    %3157 = vmatmul.mubr.f32.gmra.mxu0 %v3025
    %v3158 = vpop.f32.mrf.mxu0
    %v3159 = vadd.f32 0.0, %v3158
    %v3160 = vpop.f32.mrf.mxu0
    %3161 = vmatprep.mubr.f32.mxu0 0.0
    %3162 = vmatmul.mubr.f32.gmra.mxu0 %v3028
    %v3163 = vpop.f32.mrf.mxu0
    %v3164 = vadd.f32 0.0, %v3163
    %v3165 = vpop.f32.mrf.mxu0
    %3166 = vmatprep.mubr.f32.mxu0 0.0
    %3167 = vmatmul.mubr.f32.gmra.mxu0 %v3031
    %v3168 = vpop.f32.mrf.mxu0
    %v3169 = vadd.f32 0.0, %v3168
    %v3170 = vpop.f32.mrf.mxu0
    %3171 = vmatprep.mubr.f32.mxu0 0.0
    %3172 = vmatmul.mubr.f32.gmra.mxu0 %v3034
    %v3173 = vpop.f32.mrf.mxu0
    %v3174 = vadd.f32 0.0, %v3173
    %v3175 = vpop.f32.mrf.mxu0
    %3176 = vmatprep.mubr.f32.mxu0 0.0
    %3177 = vmatmul.mubr.f32.gmra.mxu0 %v3037
    %v3178 = vpop.f32.mrf.mxu0
    %v3179 = vadd.f32 0.0, %v3178
    %v3180 = vpop.f32.mrf.mxu0
    %3181 = vmatprep.mubr.f32.mxu0 0.0
    %3182 = vmatmul.mubr.f32.gmra.mxu0 %v3040
    %v3183 = vpop.f32.mrf.mxu0
    %v3184 = vadd.f32 0.0, %v3183
    %v3185 = vpop.f32.mrf.mxu0
    %3186 = vdwg.mxu0
    %v3187 = vld [vmem:[#allocation2 + $0x4b0] sm:$0xff]
    %v3188 = vld [vmem:[#allocation2 + $0x4b8] sm:$0xff]
    %v3189 = vld [vmem:[#allocation2 + $0x4c0] sm:$0xff]
    %v3190 = vld [vmem:[#allocation2 + $0x4c8] sm:$0xff]
    %v3191 = vld [vmem:[#allocation2 + $0x4f0] sm:$0xff]
    %v3192 = vld [vmem:[#allocation2 + $0x4f8] sm:$0xff]
    %v3193 = vld [vmem:[#allocation2 + $0x500] sm:$0xff]
    %v3194 = vld [vmem:[#allocation2 + $0x508] sm:$0xff]
    %vm3195 = vcmask 261120
    %v3197 = vsel %vm3195, %v2916, 0
    %v3200 = vsel %vm3195, %v2921, 0
    %v3203 = vsel %vm3195, %v2926, 0
    %v3206 = vsel %vm3195, %v2931, 0
    %v3209 = vsel %vm3195, %v2936, 0
    %v3212 = vsel %vm3195, %v2941, 0
    %v3215 = vsel %vm3195, %v2946, 0
    %v3218 = vsel %vm3195, %v2951, 0
    %v3221 = vsel %vm3195, %v2956, 0
    %v3224 = vsel %vm3195, %v2961, 0
    %v3227 = vsel %vm3195, %v2966, 0
    %v3230 = vsel %vm3195, %v2971, 0
    %v3233 = vsel %vm3195, %v2976, 0
    %v3236 = vsel %vm3195, %v2981, 0
    %v3239 = vsel %vm3195, %v2986, 0
    %v3242 = vsel %vm3195, %v2991, 0
    %3244 = vmatprep.subr.mxu0 0.0
    %3245 = vmatpush1.msra.mxu0 0.0
    %3246 = vmatprep.subr.mxu0 0.0
    %3247 = vmatpush1.msra.mxu0 0.0
    %3248 = vmatprep.subr.mxu0 0.0
    %3249 = vmatpush1.msra.mxu0 0.0
    %3250 = vmatprep.subr.mxu0 0.0
    %3251 = vmatpush1.msra.mxu0 0.0
    %3252 = vmatprep.subr.mxu0 0.0
    %3253 = vmatpush1.msra.mxu0 0.0
    %3254 = vmatprep.subr.mxu0 0.0
    %3255 = vmatpush1.msra.mxu0 0.0
    %3256 = vmatprep.subr.mxu0 0.0
    %3257 = vmatpush1.msra.mxu0 0.0
    %3258 = vmatprep.subr.mxu0 0.0
    %3259 = vmatpush1.msra.mxu0 0.0
    %3260 = vmatprep.subr.mxu0 0.0
    %3261 = vmatpush1.msra.mxu0 0.0
    %3262 = vmatprep.subr.mxu0 0.0
    %3263 = vmatpush1.msra.mxu0 0.0
    %3264 = vmatprep.subr.mxu0 0.0
    %3265 = vmatpush1.msra.mxu0 0.0
    %3266 = vmatprep.subr.mxu0 0.0
    %3267 = vmatpush1.msra.mxu0 0.0
    %3268 = vmatprep.subr.mxu0 0.0
    %3269 = vmatpush1.msra.mxu0 %v3194
    %3270 = vmatprep.subr.mxu0 0.0
    %3271 = vmatpush1.msra.mxu0 %v3193
    %3272 = vmatprep.subr.mxu0 0.0
    %3273 = vmatpush1.msra.mxu0 %v3192
    %3274 = vmatprep.subr.mxu0 0.0
    %3275 = vmatpush1.msra.mxu0 %v3191
    %3276 = vmatprep.subr.mxu0 0.0
    %3277 = vmatpush2.msra.mxu0 0.0
    %3278 = vmatprep.subr.mxu0 0.0
    %3279 = vmatpush2.msra.mxu0 0.0
    %3280 = vmatprep.subr.mxu0 0.0
    %3281 = vmatpush2.msra.mxu0 0.0
    %3282 = vmatprep.subr.mxu0 0.0
    %3283 = vmatpush2.msra.mxu0 0.0
    %3284 = vmatprep.subr.mxu0 0.0
    %3285 = vmatpush2.msra.mxu0 0.0
    %3286 = vmatprep.subr.mxu0 0.0
    %3287 = vmatpush2.msra.mxu0 0.0
    %3288 = vmatprep.subr.mxu0 0.0
    %3289 = vmatpush2.msra.mxu0 0.0
    %3290 = vmatprep.subr.mxu0 0.0
    %3291 = vmatpush2.msra.mxu0 0.0
    %3292 = vmatprep.subr.mxu0 0.0
    %3293 = vmatpush2.msra.mxu0 0.0
    %3294 = vmatprep.subr.mxu0 0.0
    %3295 = vmatpush2.msra.mxu0 0.0
    %3296 = vmatprep.subr.mxu0 0.0
    %3297 = vmatpush2.msra.mxu0 0.0
    %3298 = vmatprep.subr.mxu0 0.0
    %3299 = vmatpush2.msra.mxu0 0.0
    %3300 = vmatprep.subr.mxu0 0.0
    %3301 = vmatpush2.msra.mxu0 0.0
    %3302 = vmatprep.subr.mxu0 0.0
    %3303 = vmatpush2.msra.mxu0 0.0
    %3304 = vmatprep.subr.mxu0 0.0
    %3305 = vmatpush2.msra.mxu0 0.0
    %3306 = vmatprep.subr.mxu0 0.0
    %3307 = vmatpush2.msra.mxu0 0.0
    %3308 = vmatprep.mubr.f32.mxu0 0.0
    %3309 = vmatmul.mubr.f32.gmra.mxu0 %v3197
    %v3310 = vpop.f32.mrf.mxu0
    %v3311 = vadd.f32 0.0, %v3310
    %v3312 = vpop.f32.mrf.mxu0
    %3313 = vmatprep.mubr.f32.mxu0 0.0
    %3314 = vmatmul.mubr.f32.gmra.mxu0 %v3200
    %v3315 = vpop.f32.mrf.mxu0
    %v3316 = vadd.f32 0.0, %v3315
    %v3317 = vpop.f32.mrf.mxu0
    %3318 = vmatprep.mubr.f32.mxu0 0.0
    %3319 = vmatmul.mubr.f32.gmra.mxu0 %v3203
    %v3320 = vpop.f32.mrf.mxu0
    %v3321 = vadd.f32 0.0, %v3320
    %v3322 = vpop.f32.mrf.mxu0
    %3323 = vmatprep.mubr.f32.mxu0 0.0
    %3324 = vmatmul.mubr.f32.gmra.mxu0 %v3206
    %v3325 = vpop.f32.mrf.mxu0
    %v3326 = vadd.f32 0.0, %v3325
    %v3327 = vpop.f32.mrf.mxu0
    %3328 = vmatprep.mubr.f32.mxu0 0.0
    %3329 = vmatmul.mubr.f32.gmra.mxu0 %v3209
    %v3330 = vpop.f32.mrf.mxu0
    %v3331 = vadd.f32 0.0, %v3330
    %v3332 = vpop.f32.mrf.mxu0
    %3333 = vmatprep.mubr.f32.mxu0 0.0
    %3334 = vmatmul.mubr.f32.gmra.mxu0 %v3212
    %v3335 = vpop.f32.mrf.mxu0
    %v3336 = vadd.f32 0.0, %v3335
    %v3337 = vpop.f32.mrf.mxu0
    %3338 = vmatprep.mubr.f32.mxu0 0.0
    %3339 = vmatmul.mubr.f32.gmra.mxu0 %v3215
    %v3340 = vpop.f32.mrf.mxu0
    %v3341 = vadd.f32 0.0, %v3340
    %v3342 = vpop.f32.mrf.mxu0
    %3343 = vmatprep.mubr.f32.mxu0 0.0
    %3344 = vmatmul.mubr.f32.gmra.mxu0 %v3218
    %v3345 = vpop.f32.mrf.mxu0
    %v3346 = vadd.f32 0.0, %v3345
    %v3347 = vpop.f32.mrf.mxu0
    %3348 = vmatprep.mubr.f32.mxu0 0.0
    %3349 = vmatmul.mubr.f32.gmra.mxu0 %v3221
    %v3350 = vpop.f32.mrf.mxu0
    %v3351 = vadd.f32 0.0, %v3350
    %v3352 = vpop.f32.mrf.mxu0
    %3353 = vmatprep.mubr.f32.mxu0 0.0
    %3354 = vmatmul.mubr.f32.gmra.mxu0 %v3224
    %v3355 = vpop.f32.mrf.mxu0
    %v3356 = vadd.f32 0.0, %v3355
    %v3357 = vpop.f32.mrf.mxu0
    %3358 = vmatprep.mubr.f32.mxu0 0.0
    %3359 = vmatmul.mubr.f32.gmra.mxu0 %v3227
    %v3360 = vpop.f32.mrf.mxu0
    %v3361 = vadd.f32 0.0, %v3360
    %v3362 = vpop.f32.mrf.mxu0
    %3363 = vmatprep.mubr.f32.mxu0 0.0
    %3364 = vmatmul.mubr.f32.gmra.mxu0 %v3230
    %v3365 = vpop.f32.mrf.mxu0
    %v3366 = vadd.f32 0.0, %v3365
    %v3367 = vpop.f32.mrf.mxu0
    %3368 = vmatprep.mubr.f32.mxu0 0.0
    %3369 = vmatmul.mubr.f32.gmra.mxu0 %v3233
    %v3370 = vpop.f32.mrf.mxu0
    %v3371 = vadd.f32 0.0, %v3370
    %v3372 = vpop.f32.mrf.mxu0
    %3373 = vmatprep.mubr.f32.mxu0 0.0
    %3374 = vmatmul.mubr.f32.gmra.mxu0 %v3236
    %v3375 = vpop.f32.mrf.mxu0
    %v3376 = vadd.f32 0.0, %v3375
    %v3377 = vpop.f32.mrf.mxu0
    %3378 = vmatprep.mubr.f32.mxu0 0.0
    %3379 = vmatmul.mubr.f32.gmra.mxu0 %v3239
    %v3380 = vpop.f32.mrf.mxu0
    %v3381 = vadd.f32 0.0, %v3380
    %v3382 = vpop.f32.mrf.mxu0
    %3383 = vmatprep.mubr.f32.mxu0 0.0
    %3384 = vmatmul.mubr.f32.gmra.mxu0 %v3242
    %v3385 = vpop.f32.mrf.mxu0
    %v3386 = vadd.f32 0.0, %v3385
    %v3387 = vpop.f32.mrf.mxu0
    %3388 = vdwg.mxu0
    %v3390 = vsel %vm3195, %v3109, 0
    %v3393 = vsel %vm3195, %v3114, 0
    %v3396 = vsel %vm3195, %v3119, 0
    %v3399 = vsel %vm3195, %v3124, 0
    %v3402 = vsel %vm3195, %v3129, 0
    %v3405 = vsel %vm3195, %v3134, 0
    %v3408 = vsel %vm3195, %v3139, 0
    %v3411 = vsel %vm3195, %v3144, 0
    %v3414 = vsel %vm3195, %v3149, 0
    %v3417 = vsel %vm3195, %v3154, 0
    %v3420 = vsel %vm3195, %v3159, 0
    %v3423 = vsel %vm3195, %v3164, 0
    %v3426 = vsel %vm3195, %v3169, 0
    %v3429 = vsel %vm3195, %v3174, 0
    %v3432 = vsel %vm3195, %v3179, 0
    %v3435 = vsel %vm3195, %v3184, 0
    %3437 = vmatprep.subr.mxu0 0.0
    %3438 = vmatpush1.msra.mxu0 0.0
    %3439 = vmatprep.subr.mxu0 0.0
    %3440 = vmatpush1.msra.mxu0 0.0
    %3441 = vmatprep.subr.mxu0 0.0
    %3442 = vmatpush1.msra.mxu0 0.0
    %3443 = vmatprep.subr.mxu0 0.0
    %3444 = vmatpush1.msra.mxu0 0.0
    %3445 = vmatprep.subr.mxu0 0.0
    %3446 = vmatpush1.msra.mxu0 0.0
    %3447 = vmatprep.subr.mxu0 0.0
    %3448 = vmatpush1.msra.mxu0 0.0
    %3449 = vmatprep.subr.mxu0 0.0
    %3450 = vmatpush1.msra.mxu0 0.0
    %3451 = vmatprep.subr.mxu0 0.0
    %3452 = vmatpush1.msra.mxu0 0.0
    %3453 = vmatprep.subr.mxu0 0.0
    %3454 = vmatpush1.msra.mxu0 0.0
    %3455 = vmatprep.subr.mxu0 0.0
    %3456 = vmatpush1.msra.mxu0 0.0
    %3457 = vmatprep.subr.mxu0 0.0
    %3458 = vmatpush1.msra.mxu0 0.0
    %3459 = vmatprep.subr.mxu0 0.0
    %3460 = vmatpush1.msra.mxu0 0.0
    %3461 = vmatprep.subr.mxu0 0.0
    %3462 = vmatpush1.msra.mxu0 %v3190
    %3463 = vmatprep.subr.mxu0 0.0
    %3464 = vmatpush1.msra.mxu0 %v3189
    %3465 = vmatprep.subr.mxu0 0.0
    %3466 = vmatpush1.msra.mxu0 %v3188
    %3467 = vmatprep.subr.mxu0 0.0
    %3468 = vmatpush1.msra.mxu0 %v3187
    %3469 = vmatprep.subr.mxu0 0.0
    %3470 = vmatpush2.msra.mxu0 0.0
    %3471 = vmatprep.subr.mxu0 0.0
    %3472 = vmatpush2.msra.mxu0 0.0
    %3473 = vmatprep.subr.mxu0 0.0
    %3474 = vmatpush2.msra.mxu0 0.0
    %3475 = vmatprep.subr.mxu0 0.0
    %3476 = vmatpush2.msra.mxu0 0.0
    %3477 = vmatprep.subr.mxu0 0.0
    %3478 = vmatpush2.msra.mxu0 0.0
    %3479 = vmatprep.subr.mxu0 0.0
    %3480 = vmatpush2.msra.mxu0 0.0
    %3481 = vmatprep.subr.mxu0 0.0
    %3482 = vmatpush2.msra.mxu0 0.0
    %3483 = vmatprep.subr.mxu0 0.0
    %3484 = vmatpush2.msra.mxu0 0.0
    %3485 = vmatprep.subr.mxu0 0.0
    %3486 = vmatpush2.msra.mxu0 0.0
    %3487 = vmatprep.subr.mxu0 0.0
    %3488 = vmatpush2.msra.mxu0 0.0
    %3489 = vmatprep.subr.mxu0 0.0
    %3490 = vmatpush2.msra.mxu0 0.0
    %3491 = vmatprep.subr.mxu0 0.0
    %3492 = vmatpush2.msra.mxu0 0.0
    %3493 = vmatprep.subr.mxu0 0.0
    %3494 = vmatpush2.msra.mxu0 0.0
    %3495 = vmatprep.subr.mxu0 0.0
    %3496 = vmatpush2.msra.mxu0 0.0
    %3497 = vmatprep.subr.mxu0 0.0
    %3498 = vmatpush2.msra.mxu0 0.0
    %3499 = vmatprep.subr.mxu0 0.0
    %3500 = vmatpush2.msra.mxu0 0.0
    %3501 = vmatprep.mubr.f32.mxu0 0.0
    %3502 = vmatmul.mubr.f32.gmra.mxu0 %v3390
    %v3503 = vpop.f32.mrf.mxu0
    %v3504 = vadd.f32 %v3311, %v3503
    %v3505 = vpop.f32.mrf.mxu0
    %3506 = vmatprep.mubr.f32.mxu0 0.0
    %3507 = vmatmul.mubr.f32.gmra.mxu0 %v3393
    %v3508 = vpop.f32.mrf.mxu0
    %v3509 = vadd.f32 %v3316, %v3508
    %v3510 = vpop.f32.mrf.mxu0
    %3511 = vmatprep.mubr.f32.mxu0 0.0
    %3512 = vmatmul.mubr.f32.gmra.mxu0 %v3396
    %v3513 = vpop.f32.mrf.mxu0
    %v3514 = vadd.f32 %v3321, %v3513
    %v3515 = vpop.f32.mrf.mxu0
    %3516 = vmatprep.mubr.f32.mxu0 0.0
    %3517 = vmatmul.mubr.f32.gmra.mxu0 %v3399
    %v3518 = vpop.f32.mrf.mxu0
    %v3519 = vadd.f32 %v3326, %v3518
    %v3520 = vpop.f32.mrf.mxu0
    %3521 = vmatprep.mubr.f32.mxu0 0.0
    %3522 = vmatmul.mubr.f32.gmra.mxu0 %v3402
    %v3523 = vpop.f32.mrf.mxu0
    %v3524 = vadd.f32 %v3331, %v3523
    %v3525 = vpop.f32.mrf.mxu0
    %3526 = vmatprep.mubr.f32.mxu0 0.0
    %3527 = vmatmul.mubr.f32.gmra.mxu0 %v3405
    %v3528 = vpop.f32.mrf.mxu0
    %v3529 = vadd.f32 %v3336, %v3528
    %v3530 = vpop.f32.mrf.mxu0
    %3531 = vmatprep.mubr.f32.mxu0 0.0
    %3532 = vmatmul.mubr.f32.gmra.mxu0 %v3408
    %v3533 = vpop.f32.mrf.mxu0
    %v3534 = vadd.f32 %v3341, %v3533
    %v3535 = vpop.f32.mrf.mxu0
    %3536 = vmatprep.mubr.f32.mxu0 0.0
    %3537 = vmatmul.mubr.f32.gmra.mxu0 %v3411
    %v3538 = vpop.f32.mrf.mxu0
    %v3539 = vadd.f32 %v3346, %v3538
    %v3540 = vpop.f32.mrf.mxu0
    %3541 = vmatprep.mubr.f32.mxu0 0.0
    %3542 = vmatmul.mubr.f32.gmra.mxu0 %v3414
    %v3543 = vpop.f32.mrf.mxu0
    %v3544 = vadd.f32 %v3351, %v3543
    %v3545 = vpop.f32.mrf.mxu0
    %3546 = vmatprep.mubr.f32.mxu0 0.0
    %3547 = vmatmul.mubr.f32.gmra.mxu0 %v3417
    %v3548 = vpop.f32.mrf.mxu0
    %v3549 = vadd.f32 %v3356, %v3548
    %v3550 = vpop.f32.mrf.mxu0
    %3551 = vmatprep.mubr.f32.mxu0 0.0
    %3552 = vmatmul.mubr.f32.gmra.mxu0 %v3420
    %v3553 = vpop.f32.mrf.mxu0
    %v3554 = vadd.f32 %v3361, %v3553
    %v3555 = vpop.f32.mrf.mxu0
    %3556 = vmatprep.mubr.f32.mxu0 0.0
    %3557 = vmatmul.mubr.f32.gmra.mxu0 %v3423
    %v3558 = vpop.f32.mrf.mxu0
    %v3559 = vadd.f32 %v3366, %v3558
    %v3560 = vpop.f32.mrf.mxu0
    %3561 = vmatprep.mubr.f32.mxu0 0.0
    %3562 = vmatmul.mubr.f32.gmra.mxu0 %v3426
    %v3563 = vpop.f32.mrf.mxu0
    %v3564 = vadd.f32 %v3371, %v3563
    %v3565 = vpop.f32.mrf.mxu0
    %3566 = vmatprep.mubr.f32.mxu0 0.0
    %3567 = vmatmul.mubr.f32.gmra.mxu0 %v3429
    %v3568 = vpop.f32.mrf.mxu0
    %v3569 = vadd.f32 %v3376, %v3568
    %v3570 = vpop.f32.mrf.mxu0
    %3571 = vmatprep.mubr.f32.mxu0 0.0
    %3572 = vmatmul.mubr.f32.gmra.mxu0 %v3432
    %v3573 = vpop.f32.mrf.mxu0
    %v3574 = vadd.f32 %v3381, %v3573
    %v3575 = vpop.f32.mrf.mxu0
    %3576 = vmatprep.mubr.f32.mxu0 0.0
    %3577 = vmatmul.mubr.f32.gmra.mxu0 %v3435
    %v3578 = vpop.f32.mrf.mxu0
    %v3579 = vadd.f32 %v3386, %v3578
    %v3580 = vpop.f32.mrf.mxu0
    %3581 = vdwg.mxu0
    %v3582 = vld [vmem:[#allocation2 + $0x530] sm:$0xff]
    %v3583 = vld [vmem:[#allocation2 + $0x538] sm:$0xff]
    %v3584 = vld [vmem:[#allocation2 + $0x540] sm:$0xff]
    %v3585 = vld [vmem:[#allocation2 + $0x548] sm:$0xff]
    %v3587 = vsel %vm3195, %v2723, 0
    %v3590 = vsel %vm3195, %v2728, 0
    %v3593 = vsel %vm3195, %v2733, 0
    %v3596 = vsel %vm3195, %v2738, 0
    %v3599 = vsel %vm3195, %v2743, 0
    %v3602 = vsel %vm3195, %v2748, 0
    %v3605 = vsel %vm3195, %v2753, 0
    %v3608 = vsel %vm3195, %v2758, 0
    %v3611 = vsel %vm3195, %v2763, 0
    %v3614 = vsel %vm3195, %v2768, 0
    %v3617 = vsel %vm3195, %v2773, 0
    %v3620 = vsel %vm3195, %v2778, 0
    %v3623 = vsel %vm3195, %v2783, 0
    %v3626 = vsel %vm3195, %v2788, 0
    %v3629 = vsel %vm3195, %v2793, 0
    %v3632 = vsel %vm3195, %v2798, 0
    %3634 = vmatprep.subr.mxu0 0.0
    %3635 = vmatpush1.msra.mxu0 0.0
    %3636 = vmatprep.subr.mxu0 0.0
    %3637 = vmatpush1.msra.mxu0 0.0
    %3638 = vmatprep.subr.mxu0 0.0
    %3639 = vmatpush1.msra.mxu0 0.0
    %3640 = vmatprep.subr.mxu0 0.0
    %3641 = vmatpush1.msra.mxu0 0.0
    %3642 = vmatprep.subr.mxu0 0.0
    %3643 = vmatpush1.msra.mxu0 0.0
    %3644 = vmatprep.subr.mxu0 0.0
    %3645 = vmatpush1.msra.mxu0 0.0
    %3646 = vmatprep.subr.mxu0 0.0
    %3647 = vmatpush1.msra.mxu0 0.0
    %3648 = vmatprep.subr.mxu0 0.0
    %3649 = vmatpush1.msra.mxu0 0.0
    %3650 = vmatprep.subr.mxu0 0.0
    %3651 = vmatpush1.msra.mxu0 0.0
    %3652 = vmatprep.subr.mxu0 0.0
    %3653 = vmatpush1.msra.mxu0 0.0
    %3654 = vmatprep.subr.mxu0 0.0
    %3655 = vmatpush1.msra.mxu0 0.0
    %3656 = vmatprep.subr.mxu0 0.0
    %3657 = vmatpush1.msra.mxu0 0.0
    %3658 = vmatprep.subr.mxu0 0.0
    %3659 = vmatpush1.msra.mxu0 %v3585
    %3660 = vmatprep.subr.mxu0 0.0
    %3661 = vmatpush1.msra.mxu0 %v3584
    %3662 = vmatprep.subr.mxu0 0.0
    %3663 = vmatpush1.msra.mxu0 %v3583
    %3664 = vmatprep.subr.mxu0 0.0
    %3665 = vmatpush1.msra.mxu0 %v3582
    %3666 = vmatprep.subr.mxu0 0.0
    %3667 = vmatpush2.msra.mxu0 0.0
    %3668 = vmatprep.subr.mxu0 0.0
    %3669 = vmatpush2.msra.mxu0 0.0
    %3670 = vmatprep.subr.mxu0 0.0
    %3671 = vmatpush2.msra.mxu0 0.0
    %3672 = vmatprep.subr.mxu0 0.0
    %3673 = vmatpush2.msra.mxu0 0.0
    %3674 = vmatprep.subr.mxu0 0.0
    %3675 = vmatpush2.msra.mxu0 0.0
    %3676 = vmatprep.subr.mxu0 0.0
    %3677 = vmatpush2.msra.mxu0 0.0
    %3678 = vmatprep.subr.mxu0 0.0
    %3679 = vmatpush2.msra.mxu0 0.0
    %3680 = vmatprep.subr.mxu0 0.0
    %3681 = vmatpush2.msra.mxu0 0.0
    %3682 = vmatprep.subr.mxu0 0.0
    %3683 = vmatpush2.msra.mxu0 0.0
    %3684 = vmatprep.subr.mxu0 0.0
    %3685 = vmatpush2.msra.mxu0 0.0
    %3686 = vmatprep.subr.mxu0 0.0
    %3687 = vmatpush2.msra.mxu0 0.0
    %3688 = vmatprep.subr.mxu0 0.0
    %3689 = vmatpush2.msra.mxu0 0.0
    %3690 = vmatprep.subr.mxu0 0.0
    %3691 = vmatpush2.msra.mxu0 0.0
    %3692 = vmatprep.subr.mxu0 0.0
    %3693 = vmatpush2.msra.mxu0 0.0
    %3694 = vmatprep.subr.mxu0 0.0
    %3695 = vmatpush2.msra.mxu0 0.0
    %3696 = vmatprep.subr.mxu0 0.0
    %3697 = vmatpush2.msra.mxu0 0.0
    %3698 = vmatprep.mubr.f32.mxu0 0.0
    %3699 = vmatmul.mubr.f32.gmra.mxu0 %v3587
    %v3700 = vpop.f32.mrf.mxu0
    %v3701 = vadd.f32 0.0, %v3700
    %v3702 = vpop.f32.mrf.mxu0
    %3703 = vmatprep.mubr.f32.mxu0 0.0
    %3704 = vmatmul.mubr.f32.gmra.mxu0 %v3590
    %v3705 = vpop.f32.mrf.mxu0
    %v3706 = vadd.f32 0.0, %v3705
    %v3707 = vpop.f32.mrf.mxu0
    %3708 = vmatprep.mubr.f32.mxu0 0.0
    %3709 = vmatmul.mubr.f32.gmra.mxu0 %v3593
    %v3710 = vpop.f32.mrf.mxu0
    %v3711 = vadd.f32 0.0, %v3710
    %v3712 = vpop.f32.mrf.mxu0
    %3713 = vmatprep.mubr.f32.mxu0 0.0
    %3714 = vmatmul.mubr.f32.gmra.mxu0 %v3596
    %v3715 = vpop.f32.mrf.mxu0
    %v3716 = vadd.f32 0.0, %v3715
    %v3717 = vpop.f32.mrf.mxu0
    %3718 = vmatprep.mubr.f32.mxu0 0.0
    %3719 = vmatmul.mubr.f32.gmra.mxu0 %v3599
    %v3720 = vpop.f32.mrf.mxu0
    %v3721 = vadd.f32 0.0, %v3720
    %v3722 = vpop.f32.mrf.mxu0
    %3723 = vmatprep.mubr.f32.mxu0 0.0
    %3724 = vmatmul.mubr.f32.gmra.mxu0 %v3602
    %v3725 = vpop.f32.mrf.mxu0
    %v3726 = vadd.f32 0.0, %v3725
    %v3727 = vpop.f32.mrf.mxu0
    %3728 = vmatprep.mubr.f32.mxu0 0.0
    %3729 = vmatmul.mubr.f32.gmra.mxu0 %v3605
    %v3730 = vpop.f32.mrf.mxu0
    %v3731 = vadd.f32 0.0, %v3730
    %v3732 = vpop.f32.mrf.mxu0
    %3733 = vmatprep.mubr.f32.mxu0 0.0
    %3734 = vmatmul.mubr.f32.gmra.mxu0 %v3608
    %v3735 = vpop.f32.mrf.mxu0
    %v3736 = vadd.f32 0.0, %v3735
    %v3737 = vpop.f32.mrf.mxu0
    %3738 = vmatprep.mubr.f32.mxu0 0.0
    %3739 = vmatmul.mubr.f32.gmra.mxu0 %v3611
    %v3740 = vpop.f32.mrf.mxu0
    %v3741 = vadd.f32 0.0, %v3740
    %v3742 = vpop.f32.mrf.mxu0
    %3743 = vmatprep.mubr.f32.mxu0 0.0
    %3744 = vmatmul.mubr.f32.gmra.mxu0 %v3614
    %v3745 = vpop.f32.mrf.mxu0
    %v3746 = vadd.f32 0.0, %v3745
    %v3747 = vpop.f32.mrf.mxu0
    %3748 = vmatprep.mubr.f32.mxu0 0.0
    %3749 = vmatmul.mubr.f32.gmra.mxu0 %v3617
    %v3750 = vpop.f32.mrf.mxu0
    %v3751 = vadd.f32 0.0, %v3750
    %v3752 = vpop.f32.mrf.mxu0
    %3753 = vmatprep.mubr.f32.mxu0 0.0
    %3754 = vmatmul.mubr.f32.gmra.mxu0 %v3620
    %v3755 = vpop.f32.mrf.mxu0
    %v3756 = vadd.f32 0.0, %v3755
    %v3757 = vpop.f32.mrf.mxu0
    %3758 = vmatprep.mubr.f32.mxu0 0.0
    %3759 = vmatmul.mubr.f32.gmra.mxu0 %v3623
    %v3760 = vpop.f32.mrf.mxu0
    %v3761 = vadd.f32 0.0, %v3760
    %v3762 = vpop.f32.mrf.mxu0
    %3763 = vmatprep.mubr.f32.mxu0 0.0
    %3764 = vmatmul.mubr.f32.gmra.mxu0 %v3626
    %v3765 = vpop.f32.mrf.mxu0
    %v3766 = vadd.f32 0.0, %v3765
    %v3767 = vpop.f32.mrf.mxu0
    %3768 = vmatprep.mubr.f32.mxu0 0.0
    %3769 = vmatmul.mubr.f32.gmra.mxu0 %v3629
    %v3770 = vpop.f32.mrf.mxu0
    %v3771 = vadd.f32 0.0, %v3770
    %v3772 = vpop.f32.mrf.mxu0
    %3773 = vmatprep.mubr.f32.mxu0 0.0
    %3774 = vmatmul.mubr.f32.gmra.mxu0 %v3632
    %v3775 = vpop.f32.mrf.mxu0
    %v3776 = vadd.f32 0.0, %v3775
    %v3777 = vpop.f32.mrf.mxu0
    %3778 = vdwg.mxu0
    %v3779 = vadd.f32 %v3504, %v3701
    %v3780 = vadd.f32 %v3509, %v3706
    %v3781 = vadd.f32 %v3514, %v3711
    %v3782 = vadd.f32 %v3519, %v3716
    %v3783 = vadd.f32 %v3524, %v3721
    %v3784 = vadd.f32 %v3529, %v3726
    %v3785 = vadd.f32 %v3534, %v3731
    %v3786 = vadd.f32 %v3539, %v3736
    %v3787 = vadd.f32 %v3544, %v3741
    %v3788 = vadd.f32 %v3549, %v3746
    %v3789 = vadd.f32 %v3554, %v3751
    %v3790 = vadd.f32 %v3559, %v3756
    %v3791 = vadd.f32 %v3564, %v3761
    %v3792 = vadd.f32 %v3569, %v3766
    %v3793 = vadd.f32 %v3574, %v3771
    %v3794 = vadd.f32 %v3579, %v3776
    %v3795 = vld [vmem:[#allocation2 + $0x570] sm:$0x1]
    %v3796 = vlaneseq
    %v3797 = vshrl.u32 %v3796, 7
    %v3798 = vsub.s32 0, %v3797
    %v3799 = vrot.slane %v3795, %v3798
    %v3800 = vadd.f32 %v3779, %v3799
    %v3801 = vadd.f32 %v3780, %v3799
    %v3802 = vadd.f32 %v3781, %v3799
    %v3803 = vadd.f32 %v3782, %v3799
    %v3804 = vadd.f32 %v3783, %v3799
    %v3805 = vadd.f32 %v3784, %v3799
    %v3806 = vadd.f32 %v3785, %v3799
    %v3807 = vadd.f32 %v3786, %v3799
    %v3808 = vadd.f32 %v3787, %v3799
    %v3809 = vadd.f32 %v3788, %v3799
    %v3810 = vadd.f32 %v3789, %v3799
    %v3811 = vadd.f32 %v3790, %v3799
    %v3812 = vadd.f32 %v3791, %v3799
    %v3813 = vadd.f32 %v3792, %v3799
    %v3814 = vadd.f32 %v3793, %v3799
    %v3815 = vadd.f32 %v3794, %v3799
    %v3816 = vld [vmem:[#allocation2 + $0x5c0] sm:$0xff]
    %v3817 = vld [vmem:[#allocation2 + $0x5c8] sm:$0xff]
    %v3818 = vld [vmem:[#allocation2 + $0x5d0] sm:$0xff]
    %v3819 = vld [vmem:[#allocation2 + $0x5d8] sm:$0xff]
    %v3820 = vld [vmem:[#allocation2 + $0x620] sm:$0x1]
    %v3821 = vlaneseq
    %v3822 = vshrl.u32 %v3821, 7
    %v3823 = vsub.s32 0, %v3822
    %v3824 = vrot.slane %v3820, %v3823
    %v3826 = vsel %vm3195, %v2342, 0
    %v3829 = vsel %vm3195, %v2347, 0
    %v3832 = vsel %vm3195, %v2352, 0
    %v3835 = vsel %vm3195, %v2357, 0
    %v3838 = vsel %vm3195, %v2362, 0
    %v3841 = vsel %vm3195, %v2367, 0
    %v3844 = vsel %vm3195, %v2372, 0
    %v3847 = vsel %vm3195, %v2377, 0
    %3849 = vmatprep.subr.mxu0 0.0
    %3850 = vmatpush1.msra.mxu0 0.0
    %3851 = vmatprep.subr.mxu0 0.0
    %3852 = vmatpush1.msra.mxu0 0.0
    %3853 = vmatprep.subr.mxu0 0.0
    %3854 = vmatpush1.msra.mxu0 0.0
    %3855 = vmatprep.subr.mxu0 0.0
    %3856 = vmatpush1.msra.mxu0 0.0
    %3857 = vmatprep.subr.mxu0 0.0
    %3858 = vmatpush1.msra.mxu0 0.0
    %3859 = vmatprep.subr.mxu0 0.0
    %3860 = vmatpush1.msra.mxu0 0.0
    %3861 = vmatprep.subr.mxu0 0.0
    %3862 = vmatpush1.msra.mxu0 0.0
    %3863 = vmatprep.subr.mxu0 0.0
    %3864 = vmatpush1.msra.mxu0 0.0
    %3865 = vmatprep.subr.mxu0 0.0
    %3866 = vmatpush1.msra.mxu0 0.0
    %3867 = vmatprep.subr.mxu0 0.0
    %3868 = vmatpush1.msra.mxu0 0.0
    %3869 = vmatprep.subr.mxu0 0.0
    %3870 = vmatpush1.msra.mxu0 0.0
    %3871 = vmatprep.subr.mxu0 0.0
    %3872 = vmatpush1.msra.mxu0 0.0
    %3873 = vmatprep.subr.mxu0 0.0
    %3874 = vmatpush1.msra.mxu0 %v3819
    %3875 = vmatprep.subr.mxu0 0.0
    %3876 = vmatpush1.msra.mxu0 %v3818
    %3877 = vmatprep.subr.mxu0 0.0
    %3878 = vmatpush1.msra.mxu0 %v3817
    %3879 = vmatprep.subr.mxu0 0.0
    %3880 = vmatpush1.msra.mxu0 %v3816
    %3881 = vmatprep.subr.mxu0 0.0
    %3882 = vmatpush2.msra.mxu0 0.0
    %3883 = vmatprep.subr.mxu0 0.0
    %3884 = vmatpush2.msra.mxu0 0.0
    %3885 = vmatprep.subr.mxu0 0.0
    %3886 = vmatpush2.msra.mxu0 0.0
    %3887 = vmatprep.subr.mxu0 0.0
    %3888 = vmatpush2.msra.mxu0 0.0
    %3889 = vmatprep.subr.mxu0 0.0
    %3890 = vmatpush2.msra.mxu0 0.0
    %3891 = vmatprep.subr.mxu0 0.0
    %3892 = vmatpush2.msra.mxu0 0.0
    %3893 = vmatprep.subr.mxu0 0.0
    %3894 = vmatpush2.msra.mxu0 0.0
    %3895 = vmatprep.subr.mxu0 0.0
    %3896 = vmatpush2.msra.mxu0 0.0
    %3897 = vmatprep.subr.mxu0 0.0
    %3898 = vmatpush2.msra.mxu0 0.0
    %3899 = vmatprep.subr.mxu0 0.0
    %3900 = vmatpush2.msra.mxu0 0.0
    %3901 = vmatprep.subr.mxu0 0.0
    %3902 = vmatpush2.msra.mxu0 0.0
    %3903 = vmatprep.subr.mxu0 0.0
    %3904 = vmatpush2.msra.mxu0 0.0
    %3905 = vmatprep.subr.mxu0 0.0
    %3906 = vmatpush2.msra.mxu0 0.0
    %3907 = vmatprep.subr.mxu0 0.0
    %3908 = vmatpush2.msra.mxu0 0.0
    %3909 = vmatprep.subr.mxu0 0.0
    %3910 = vmatpush2.msra.mxu0 0.0
    %3911 = vmatprep.subr.mxu0 0.0
    %3912 = vmatpush2.msra.mxu0 0.0
    %3913 = vmatprep.mubr.f32.mxu0 0.0
    %3914 = vmatmul.mubr.f32.gmra.mxu0 %v3826
    %v3915 = vpop.f32.mrf.mxu0
    %v3916 = vadd.f32 %v3824, %v3915
    %v3917 = vpop.f32.mrf.mxu0
    %3918 = vmatprep.mubr.f32.mxu0 0.0
    %3919 = vmatmul.mubr.f32.gmra.mxu0 %v3829
    %v3920 = vpop.f32.mrf.mxu0
    %v3921 = vadd.f32 %v3824, %v3920
    %v3922 = vpop.f32.mrf.mxu0
    %3923 = vmatprep.mubr.f32.mxu0 0.0
    %3924 = vmatmul.mubr.f32.gmra.mxu0 %v3832
    %v3925 = vpop.f32.mrf.mxu0
    %v3926 = vadd.f32 %v3824, %v3925
    %v3927 = vpop.f32.mrf.mxu0
    %3928 = vmatprep.mubr.f32.mxu0 0.0
    %3929 = vmatmul.mubr.f32.gmra.mxu0 %v3835
    %v3930 = vpop.f32.mrf.mxu0
    %v3931 = vadd.f32 %v3824, %v3930
    %v3932 = vpop.f32.mrf.mxu0
    %3933 = vmatprep.mubr.f32.mxu0 0.0
    %3934 = vmatmul.mubr.f32.gmra.mxu0 %v3838
    %v3935 = vpop.f32.mrf.mxu0
    %v3936 = vadd.f32 %v3824, %v3935
    %v3937 = vpop.f32.mrf.mxu0
    %3938 = vmatprep.mubr.f32.mxu0 0.0
    %3939 = vmatmul.mubr.f32.gmra.mxu0 %v3841
    %v3940 = vpop.f32.mrf.mxu0
    %v3941 = vadd.f32 %v3824, %v3940
    %v3942 = vpop.f32.mrf.mxu0
    %3943 = vmatprep.mubr.f32.mxu0 0.0
    %3944 = vmatmul.mubr.f32.gmra.mxu0 %v3844
    %v3945 = vpop.f32.mrf.mxu0
    %v3946 = vadd.f32 %v3824, %v3945
    %v3947 = vpop.f32.mrf.mxu0
    %3948 = vmatprep.mubr.f32.mxu0 0.0
    %3949 = vmatmul.mubr.f32.gmra.mxu0 %v3847
    %v3950 = vpop.f32.mrf.mxu0
    %v3951 = vadd.f32 %v3824, %v3950
    %v3952 = vpop.f32.mrf.mxu0
    %3953 = vdwg.mxu0
    %v3954 = vld [vmem:[#allocation2 + $0x4d0] sm:$0xff]
    %v3955 = vld [vmem:[#allocation2 + $0x4d8] sm:$0xff]
    %v3956 = vld [vmem:[#allocation2 + $0x4e0] sm:$0xff]
    %v3957 = vld [vmem:[#allocation2 + $0x4e8] sm:$0xff]
    %3958 = vmatprep.subr.mxu0 0.0
    %3959 = vmatpush1.msra.mxu0 0.0
    %3960 = vmatprep.subr.mxu0 0.0
    %3961 = vmatpush1.msra.mxu0 0.0
    %3962 = vmatprep.subr.mxu0 0.0
    %3963 = vmatpush1.msra.mxu0 0.0
    %3964 = vmatprep.subr.mxu0 0.0
    %3965 = vmatpush1.msra.mxu0 0.0
    %3966 = vmatprep.subr.mxu0 0.0
    %3967 = vmatpush1.msra.mxu0 0.0
    %3968 = vmatprep.subr.mxu0 0.0
    %3969 = vmatpush1.msra.mxu0 0.0
    %3970 = vmatprep.subr.mxu0 0.0
    %3971 = vmatpush1.msra.mxu0 0.0
    %3972 = vmatprep.subr.mxu0 0.0
    %3973 = vmatpush1.msra.mxu0 0.0
    %3974 = vmatprep.subr.mxu0 0.0
    %3975 = vmatpush1.msra.mxu0 0.0
    %3976 = vmatprep.subr.mxu0 0.0
    %3977 = vmatpush1.msra.mxu0 0.0
    %3978 = vmatprep.subr.mxu0 0.0
    %3979 = vmatpush1.msra.mxu0 0.0
    %3980 = vmatprep.subr.mxu0 0.0
    %3981 = vmatpush1.msra.mxu0 0.0
    %3982 = vmatprep.subr.mxu0 0.0
    %3983 = vmatpush1.msra.mxu0 %v3957
    %3984 = vmatprep.subr.mxu0 0.0
    %3985 = vmatpush1.msra.mxu0 %v3956
    %3986 = vmatprep.subr.mxu0 0.0
    %3987 = vmatpush1.msra.mxu0 %v3955
    %3988 = vmatprep.subr.mxu0 0.0
    %3989 = vmatpush1.msra.mxu0 %v3954
    %3990 = vmatprep.subr.mxu0 0.0
    %3991 = vmatpush2.msra.mxu0 0.0
    %3992 = vmatprep.subr.mxu0 0.0
    %3993 = vmatpush2.msra.mxu0 0.0
    %3994 = vmatprep.subr.mxu0 0.0
    %3995 = vmatpush2.msra.mxu0 0.0
    %3996 = vmatprep.subr.mxu0 0.0
    %3997 = vmatpush2.msra.mxu0 0.0
    %3998 = vmatprep.subr.mxu0 0.0
    %3999 = vmatpush2.msra.mxu0 0.0
    %4000 = vmatprep.subr.mxu0 0.0
    %4001 = vmatpush2.msra.mxu0 0.0
    %4002 = vmatprep.subr.mxu0 0.0
    %4003 = vmatpush2.msra.mxu0 0.0
    %4004 = vmatprep.subr.mxu0 0.0
    %4005 = vmatpush2.msra.mxu0 0.0
    %4006 = vmatprep.subr.mxu0 0.0
    %4007 = vmatpush2.msra.mxu0 0.0
    %4008 = vmatprep.subr.mxu0 0.0
    %4009 = vmatpush2.msra.mxu0 0.0
    %4010 = vmatprep.subr.mxu0 0.0
    %4011 = vmatpush2.msra.mxu0 0.0
    %4012 = vmatprep.subr.mxu0 0.0
    %4013 = vmatpush2.msra.mxu0 0.0
    %4014 = vmatprep.subr.mxu0 0.0
    %4015 = vmatpush2.msra.mxu0 0.0
    %4016 = vmatprep.subr.mxu0 0.0
    %4017 = vmatpush2.msra.mxu0 0.0
    %4018 = vmatprep.subr.mxu0 0.0
    %4019 = vmatpush2.msra.mxu0 0.0
    %4020 = vmatprep.subr.mxu0 0.0
    %4021 = vmatpush2.msra.mxu0 0.0
    %4022 = vmatprep.mubr.f32.mxu0 0.0
    %4023 = vmatmul.mubr.f32.gmra.mxu0 %v3390
    %v4024 = vpop.f32.mrf.mxu0
    %v4025 = vadd.f32 0.0, %v4024
    %v4026 = vpop.f32.mrf.mxu0
    %4027 = vmatprep.mubr.f32.mxu0 0.0
    %4028 = vmatmul.mubr.f32.gmra.mxu0 %v3393
    %v4029 = vpop.f32.mrf.mxu0
    %v4030 = vadd.f32 0.0, %v4029
    %v4031 = vpop.f32.mrf.mxu0
    %4032 = vmatprep.mubr.f32.mxu0 0.0
    %4033 = vmatmul.mubr.f32.gmra.mxu0 %v3396
    %v4034 = vpop.f32.mrf.mxu0
    %v4035 = vadd.f32 0.0, %v4034
    %v4036 = vpop.f32.mrf.mxu0
    %4037 = vmatprep.mubr.f32.mxu0 0.0
    %4038 = vmatmul.mubr.f32.gmra.mxu0 %v3399
    %v4039 = vpop.f32.mrf.mxu0
    %v4040 = vadd.f32 0.0, %v4039
    %v4041 = vpop.f32.mrf.mxu0
    %4042 = vmatprep.mubr.f32.mxu0 0.0
    %4043 = vmatmul.mubr.f32.gmra.mxu0 %v3402
    %v4044 = vpop.f32.mrf.mxu0
    %v4045 = vadd.f32 0.0, %v4044
    %v4046 = vpop.f32.mrf.mxu0
    %4047 = vmatprep.mubr.f32.mxu0 0.0
    %4048 = vmatmul.mubr.f32.gmra.mxu0 %v3405
    %v4049 = vpop.f32.mrf.mxu0
    %v4050 = vadd.f32 0.0, %v4049
    %v4051 = vpop.f32.mrf.mxu0
    %4052 = vmatprep.mubr.f32.mxu0 0.0
    %4053 = vmatmul.mubr.f32.gmra.mxu0 %v3408
    %v4054 = vpop.f32.mrf.mxu0
    %v4055 = vadd.f32 0.0, %v4054
    %v4056 = vpop.f32.mrf.mxu0
    %4057 = vmatprep.mubr.f32.mxu0 0.0
    %4058 = vmatmul.mubr.f32.gmra.mxu0 %v3411
    %v4059 = vpop.f32.mrf.mxu0
    %v4060 = vadd.f32 0.0, %v4059
    %v4061 = vpop.f32.mrf.mxu0
    %4062 = vmatprep.mubr.f32.mxu0 0.0
    %4063 = vmatmul.mubr.f32.gmra.mxu0 %v3414
    %v4064 = vpop.f32.mrf.mxu0
    %v4065 = vadd.f32 0.0, %v4064
    %v4066 = vpop.f32.mrf.mxu0
    %4067 = vmatprep.mubr.f32.mxu0 0.0
    %4068 = vmatmul.mubr.f32.gmra.mxu0 %v3417
    %v4069 = vpop.f32.mrf.mxu0
    %v4070 = vadd.f32 0.0, %v4069
    %v4071 = vpop.f32.mrf.mxu0
    %4072 = vmatprep.mubr.f32.mxu0 0.0
    %4073 = vmatmul.mubr.f32.gmra.mxu0 %v3420
    %v4074 = vpop.f32.mrf.mxu0
    %v4075 = vadd.f32 0.0, %v4074
    %v4076 = vpop.f32.mrf.mxu0
    %4077 = vmatprep.mubr.f32.mxu0 0.0
    %4078 = vmatmul.mubr.f32.gmra.mxu0 %v3423
    %v4079 = vpop.f32.mrf.mxu0
    %v4080 = vadd.f32 0.0, %v4079
    %v4081 = vpop.f32.mrf.mxu0
    %4082 = vmatprep.mubr.f32.mxu0 0.0
    %4083 = vmatmul.mubr.f32.gmra.mxu0 %v3426
    %v4084 = vpop.f32.mrf.mxu0
    %v4085 = vadd.f32 0.0, %v4084
    %v4086 = vpop.f32.mrf.mxu0
    %4087 = vmatprep.mubr.f32.mxu0 0.0
    %4088 = vmatmul.mubr.f32.gmra.mxu0 %v3429
    %v4089 = vpop.f32.mrf.mxu0
    %v4090 = vadd.f32 0.0, %v4089
    %v4091 = vpop.f32.mrf.mxu0
    %4092 = vmatprep.mubr.f32.mxu0 0.0
    %4093 = vmatmul.mubr.f32.gmra.mxu0 %v3432
    %v4094 = vpop.f32.mrf.mxu0
    %v4095 = vadd.f32 0.0, %v4094
    %v4096 = vpop.f32.mrf.mxu0
    %4097 = vmatprep.mubr.f32.mxu0 0.0
    %4098 = vmatmul.mubr.f32.gmra.mxu0 %v3435
    %v4099 = vpop.f32.mrf.mxu0
    %v4100 = vadd.f32 0.0, %v4099
    %v4101 = vpop.f32.mrf.mxu0
    %4102 = vdwg.mxu0
    %v4103 = vadd.f32 %v3800, %v4025
    %v4104 = vadd.f32 %v3801, %v4030
    %v4105 = vadd.f32 %v3802, %v4035
    %v4106 = vadd.f32 %v3803, %v4040
    %v4107 = vadd.f32 %v3804, %v4045
    %v4108 = vadd.f32 %v3805, %v4050
    %v4109 = vadd.f32 %v3806, %v4055
    %v4110 = vadd.f32 %v3807, %v4060
    %v4111 = vadd.f32 %v3808, %v4065
    %v4112 = vadd.f32 %v3809, %v4070
    %v4113 = vadd.f32 %v3810, %v4075
    %v4114 = vadd.f32 %v3811, %v4080
    %v4115 = vadd.f32 %v3812, %v4085
    %v4116 = vadd.f32 %v3813, %v4090
    %v4117 = vadd.f32 %v3814, %v4095
    %v4118 = vadd.f32 %v3815, %v4100
    %v4119 = vld [vmem:[#allocation2 + $0x510] sm:$0xff]
    %v4120 = vld [vmem:[#allocation2 + $0x518] sm:$0xff]
    %v4121 = vld [vmem:[#allocation2 + $0x520] sm:$0xff]
    %v4122 = vld [vmem:[#allocation2 + $0x528] sm:$0xff]
    %4123 = vmatprep.subr.mxu0 0.0
    %4124 = vmatpush1.msra.mxu0 0.0
    %4125 = vmatprep.subr.mxu0 0.0
    %4126 = vmatpush1.msra.mxu0 0.0
    %4127 = vmatprep.subr.mxu0 0.0
    %4128 = vmatpush1.msra.mxu0 0.0
    %4129 = vmatprep.subr.mxu0 0.0
    %4130 = vmatpush1.msra.mxu0 0.0
    %4131 = vmatprep.subr.mxu0 0.0
    %4132 = vmatpush1.msra.mxu0 0.0
    %4133 = vmatprep.subr.mxu0 0.0
    %4134 = vmatpush1.msra.mxu0 0.0
    %4135 = vmatprep.subr.mxu0 0.0
    %4136 = vmatpush1.msra.mxu0 0.0
    %4137 = vmatprep.subr.mxu0 0.0
    %4138 = vmatpush1.msra.mxu0 0.0
    %4139 = vmatprep.subr.mxu0 0.0
    %4140 = vmatpush1.msra.mxu0 0.0
    %4141 = vmatprep.subr.mxu0 0.0
    %4142 = vmatpush1.msra.mxu0 0.0
    %4143 = vmatprep.subr.mxu0 0.0
    %4144 = vmatpush1.msra.mxu0 0.0
    %4145 = vmatprep.subr.mxu0 0.0
    %4146 = vmatpush1.msra.mxu0 0.0
    %4147 = vmatprep.subr.mxu0 0.0
    %4148 = vmatpush1.msra.mxu0 %v4122
    %4149 = vmatprep.subr.mxu0 0.0
    %4150 = vmatpush1.msra.mxu0 %v4121
    %4151 = vmatprep.subr.mxu0 0.0
    %4152 = vmatpush1.msra.mxu0 %v4120
    %4153 = vmatprep.subr.mxu0 0.0
    %4154 = vmatpush1.msra.mxu0 %v4119
    %4155 = vmatprep.subr.mxu0 0.0
    %4156 = vmatpush2.msra.mxu0 0.0
    %4157 = vmatprep.subr.mxu0 0.0
    %4158 = vmatpush2.msra.mxu0 0.0
    %4159 = vmatprep.subr.mxu0 0.0
    %4160 = vmatpush2.msra.mxu0 0.0
    %4161 = vmatprep.subr.mxu0 0.0
    %4162 = vmatpush2.msra.mxu0 0.0
    %4163 = vmatprep.subr.mxu0 0.0
    %4164 = vmatpush2.msra.mxu0 0.0
    %4165 = vmatprep.subr.mxu0 0.0
    %4166 = vmatpush2.msra.mxu0 0.0
    %4167 = vmatprep.subr.mxu0 0.0
    %4168 = vmatpush2.msra.mxu0 0.0
    %4169 = vmatprep.subr.mxu0 0.0
    %4170 = vmatpush2.msra.mxu0 0.0
    %4171 = vmatprep.subr.mxu0 0.0
    %4172 = vmatpush2.msra.mxu0 0.0
    %4173 = vmatprep.subr.mxu0 0.0
    %4174 = vmatpush2.msra.mxu0 0.0
    %4175 = vmatprep.subr.mxu0 0.0
    %4176 = vmatpush2.msra.mxu0 0.0
    %4177 = vmatprep.subr.mxu0 0.0
    %4178 = vmatpush2.msra.mxu0 0.0
    %4179 = vmatprep.subr.mxu0 0.0
    %4180 = vmatpush2.msra.mxu0 0.0
    %4181 = vmatprep.subr.mxu0 0.0
    %4182 = vmatpush2.msra.mxu0 0.0
    %4183 = vmatprep.subr.mxu0 0.0
    %4184 = vmatpush2.msra.mxu0 0.0
    %4185 = vmatprep.subr.mxu0 0.0
    %4186 = vmatpush2.msra.mxu0 0.0
    %4187 = vmatprep.mubr.f32.mxu0 0.0
    %4188 = vmatmul.mubr.f32.gmra.mxu0 %v3197
    %v4189 = vpop.f32.mrf.mxu0
    %v4190 = vadd.f32 0.0, %v4189
    %v4191 = vpop.f32.mrf.mxu0
    %4192 = vmatprep.mubr.f32.mxu0 0.0
    %4193 = vmatmul.mubr.f32.gmra.mxu0 %v3200
    %v4194 = vpop.f32.mrf.mxu0
    %v4195 = vadd.f32 0.0, %v4194
    %v4196 = vpop.f32.mrf.mxu0
    %4197 = vmatprep.mubr.f32.mxu0 0.0
    %4198 = vmatmul.mubr.f32.gmra.mxu0 %v3203
    %v4199 = vpop.f32.mrf.mxu0
    %v4200 = vadd.f32 0.0, %v4199
    %v4201 = vpop.f32.mrf.mxu0
    %4202 = vmatprep.mubr.f32.mxu0 0.0
    %4203 = vmatmul.mubr.f32.gmra.mxu0 %v3206
    %v4204 = vpop.f32.mrf.mxu0
    %v4205 = vadd.f32 0.0, %v4204
    %v4206 = vpop.f32.mrf.mxu0
    %4207 = vmatprep.mubr.f32.mxu0 0.0
    %4208 = vmatmul.mubr.f32.gmra.mxu0 %v3209
    %v4209 = vpop.f32.mrf.mxu0
    %v4210 = vadd.f32 0.0, %v4209
    %v4211 = vpop.f32.mrf.mxu0
    %4212 = vmatprep.mubr.f32.mxu0 0.0
    %4213 = vmatmul.mubr.f32.gmra.mxu0 %v3212
    %v4214 = vpop.f32.mrf.mxu0
    %v4215 = vadd.f32 0.0, %v4214
    %v4216 = vpop.f32.mrf.mxu0
    %4217 = vmatprep.mubr.f32.mxu0 0.0
    %4218 = vmatmul.mubr.f32.gmra.mxu0 %v3215
    %v4219 = vpop.f32.mrf.mxu0
    %v4220 = vadd.f32 0.0, %v4219
    %v4221 = vpop.f32.mrf.mxu0
    %4222 = vmatprep.mubr.f32.mxu0 0.0
    %4223 = vmatmul.mubr.f32.gmra.mxu0 %v3218
    %v4224 = vpop.f32.mrf.mxu0
    %v4225 = vadd.f32 0.0, %v4224
    %v4226 = vpop.f32.mrf.mxu0
    %4227 = vmatprep.mubr.f32.mxu0 0.0
    %4228 = vmatmul.mubr.f32.gmra.mxu0 %v3221
    %v4229 = vpop.f32.mrf.mxu0
    %v4230 = vadd.f32 0.0, %v4229
    %v4231 = vpop.f32.mrf.mxu0
    %4232 = vmatprep.mubr.f32.mxu0 0.0
    %4233 = vmatmul.mubr.f32.gmra.mxu0 %v3224
    %v4234 = vpop.f32.mrf.mxu0
    %v4235 = vadd.f32 0.0, %v4234
    %v4236 = vpop.f32.mrf.mxu0
    %4237 = vmatprep.mubr.f32.mxu0 0.0
    %4238 = vmatmul.mubr.f32.gmra.mxu0 %v3227
    %v4239 = vpop.f32.mrf.mxu0
    %v4240 = vadd.f32 0.0, %v4239
    %v4241 = vpop.f32.mrf.mxu0
    %4242 = vmatprep.mubr.f32.mxu0 0.0
    %4243 = vmatmul.mubr.f32.gmra.mxu0 %v3230
    %v4244 = vpop.f32.mrf.mxu0
    %v4245 = vadd.f32 0.0, %v4244
    %v4246 = vpop.f32.mrf.mxu0
    %4247 = vmatprep.mubr.f32.mxu0 0.0
    %4248 = vmatmul.mubr.f32.gmra.mxu0 %v3233
    %v4249 = vpop.f32.mrf.mxu0
    %v4250 = vadd.f32 0.0, %v4249
    %v4251 = vpop.f32.mrf.mxu0
    %4252 = vmatprep.mubr.f32.mxu0 0.0
    %4253 = vmatmul.mubr.f32.gmra.mxu0 %v3236
    %v4254 = vpop.f32.mrf.mxu0
    %v4255 = vadd.f32 0.0, %v4254
    %v4256 = vpop.f32.mrf.mxu0
    %4257 = vmatprep.mubr.f32.mxu0 0.0
    %4258 = vmatmul.mubr.f32.gmra.mxu0 %v3239
    %v4259 = vpop.f32.mrf.mxu0
    %v4260 = vadd.f32 0.0, %v4259
    %v4261 = vpop.f32.mrf.mxu0
    %4262 = vmatprep.mubr.f32.mxu0 0.0
    %4263 = vmatmul.mubr.f32.gmra.mxu0 %v3242
    %v4264 = vpop.f32.mrf.mxu0
    %v4265 = vadd.f32 0.0, %v4264
    %v4266 = vpop.f32.mrf.mxu0
    %4267 = vdwg.mxu0
    %v4268 = vadd.f32 %v4103, %v4190
    %v4269 = vadd.f32 %v4104, %v4195
    %v4270 = vadd.f32 %v4105, %v4200
    %v4271 = vadd.f32 %v4106, %v4205
    %v4272 = vadd.f32 %v4107, %v4210
    %v4273 = vadd.f32 %v4108, %v4215
    %v4274 = vadd.f32 %v4109, %v4220
    %v4275 = vadd.f32 %v4110, %v4225
    %v4276 = vadd.f32 %v4111, %v4230
    %v4277 = vadd.f32 %v4112, %v4235
    %v4278 = vadd.f32 %v4113, %v4240
    %v4279 = vadd.f32 %v4114, %v4245
    %v4280 = vadd.f32 %v4115, %v4250
    %v4281 = vadd.f32 %v4116, %v4255
    %v4282 = vadd.f32 %v4117, %v4260
    %v4283 = vadd.f32 %v4118, %v4265
    %v4284 = vld [vmem:[#allocation2 + $0x550] sm:$0xff]
    %v4285 = vld [vmem:[#allocation2 + $0x558] sm:$0xff]
    %v4286 = vld [vmem:[#allocation2 + $0x560] sm:$0xff]
    %v4287 = vld [vmem:[#allocation2 + $0x568] sm:$0xff]
    %4288 = vmatprep.subr.mxu0 0.0
    %4289 = vmatpush1.msra.mxu0 0.0
    %4290 = vmatprep.subr.mxu0 0.0
    %4291 = vmatpush1.msra.mxu0 0.0
    %4292 = vmatprep.subr.mxu0 0.0
    %4293 = vmatpush1.msra.mxu0 0.0
    %4294 = vmatprep.subr.mxu0 0.0
    %4295 = vmatpush1.msra.mxu0 0.0
    %4296 = vmatprep.subr.mxu0 0.0
    %4297 = vmatpush1.msra.mxu0 0.0
    %4298 = vmatprep.subr.mxu0 0.0
    %4299 = vmatpush1.msra.mxu0 0.0
    %4300 = vmatprep.subr.mxu0 0.0
    %4301 = vmatpush1.msra.mxu0 0.0
    %4302 = vmatprep.subr.mxu0 0.0
    %4303 = vmatpush1.msra.mxu0 0.0
    %4304 = vmatprep.subr.mxu0 0.0
    %4305 = vmatpush1.msra.mxu0 0.0
    %4306 = vmatprep.subr.mxu0 0.0
    %4307 = vmatpush1.msra.mxu0 0.0
    %4308 = vmatprep.subr.mxu0 0.0
    %4309 = vmatpush1.msra.mxu0 0.0
    %4310 = vmatprep.subr.mxu0 0.0
    %4311 = vmatpush1.msra.mxu0 0.0
    %4312 = vmatprep.subr.mxu0 0.0
    %4313 = vmatpush1.msra.mxu0 %v4287
    %4314 = vmatprep.subr.mxu0 0.0
    %4315 = vmatpush1.msra.mxu0 %v4286
    %4316 = vmatprep.subr.mxu0 0.0
    %4317 = vmatpush1.msra.mxu0 %v4285
    %4318 = vmatprep.subr.mxu0 0.0
    %4319 = vmatpush1.msra.mxu0 %v4284
    %4320 = vmatprep.subr.mxu0 0.0
    %4321 = vmatpush2.msra.mxu0 0.0
    %4322 = vmatprep.subr.mxu0 0.0
    %4323 = vmatpush2.msra.mxu0 0.0
    %4324 = vmatprep.subr.mxu0 0.0
    %4325 = vmatpush2.msra.mxu0 0.0
    %4326 = vmatprep.subr.mxu0 0.0
    %4327 = vmatpush2.msra.mxu0 0.0
    %4328 = vmatprep.subr.mxu0 0.0
    %4329 = vmatpush2.msra.mxu0 0.0
    %4330 = vmatprep.subr.mxu0 0.0
    %4331 = vmatpush2.msra.mxu0 0.0
    %4332 = vmatprep.subr.mxu0 0.0
    %4333 = vmatpush2.msra.mxu0 0.0
    %4334 = vmatprep.subr.mxu0 0.0
    %4335 = vmatpush2.msra.mxu0 0.0
    %4336 = vmatprep.subr.mxu0 0.0
    %4337 = vmatpush2.msra.mxu0 0.0
    %4338 = vmatprep.subr.mxu0 0.0
    %4339 = vmatpush2.msra.mxu0 0.0
    %4340 = vmatprep.subr.mxu0 0.0
    %4341 = vmatpush2.msra.mxu0 0.0
    %4342 = vmatprep.subr.mxu0 0.0
    %4343 = vmatpush2.msra.mxu0 0.0
    %4344 = vmatprep.subr.mxu0 0.0
    %4345 = vmatpush2.msra.mxu0 0.0
    %4346 = vmatprep.subr.mxu0 0.0
    %4347 = vmatpush2.msra.mxu0 0.0
    %4348 = vmatprep.subr.mxu0 0.0
    %4349 = vmatpush2.msra.mxu0 0.0
    %4350 = vmatprep.subr.mxu0 0.0
    %4351 = vmatpush2.msra.mxu0 0.0
    %4352 = vmatprep.mubr.f32.mxu0 0.0
    %4353 = vmatmul.mubr.f32.gmra.mxu0 %v3587
    %v4354 = vpop.f32.mrf.mxu0
    %v4355 = vadd.f32 0.0, %v4354
    %v4356 = vpop.f32.mrf.mxu0
    %4357 = vmatprep.mubr.f32.mxu0 0.0
    %4358 = vmatmul.mubr.f32.gmra.mxu0 %v3590
    %v4359 = vpop.f32.mrf.mxu0
    %v4360 = vadd.f32 0.0, %v4359
    %v4361 = vpop.f32.mrf.mxu0
    %4362 = vmatprep.mubr.f32.mxu0 0.0
    %4363 = vmatmul.mubr.f32.gmra.mxu0 %v3593
    %v4364 = vpop.f32.mrf.mxu0
    %v4365 = vadd.f32 0.0, %v4364
    %v4366 = vpop.f32.mrf.mxu0
    %4367 = vmatprep.mubr.f32.mxu0 0.0
    %4368 = vmatmul.mubr.f32.gmra.mxu0 %v3596
    %v4369 = vpop.f32.mrf.mxu0
    %v4370 = vadd.f32 0.0, %v4369
    %v4371 = vpop.f32.mrf.mxu0
    %4372 = vmatprep.mubr.f32.mxu0 0.0
    %4373 = vmatmul.mubr.f32.gmra.mxu0 %v3599
    %v4374 = vpop.f32.mrf.mxu0
    %v4375 = vadd.f32 0.0, %v4374
    %v4376 = vpop.f32.mrf.mxu0
    %4377 = vmatprep.mubr.f32.mxu0 0.0
    %4378 = vmatmul.mubr.f32.gmra.mxu0 %v3602
    %v4379 = vpop.f32.mrf.mxu0
    %v4380 = vadd.f32 0.0, %v4379
    %v4381 = vpop.f32.mrf.mxu0
    %4382 = vmatprep.mubr.f32.mxu0 0.0
    %4383 = vmatmul.mubr.f32.gmra.mxu0 %v3605
    %v4384 = vpop.f32.mrf.mxu0
    %v4385 = vadd.f32 0.0, %v4384
    %v4386 = vpop.f32.mrf.mxu0
    %4387 = vmatprep.mubr.f32.mxu0 0.0
    %4388 = vmatmul.mubr.f32.gmra.mxu0 %v3608
    %v4389 = vpop.f32.mrf.mxu0
    %v4390 = vadd.f32 0.0, %v4389
    %v4391 = vpop.f32.mrf.mxu0
    %4392 = vmatprep.mubr.f32.mxu0 0.0
    %4393 = vmatmul.mubr.f32.gmra.mxu0 %v3611
    %v4394 = vpop.f32.mrf.mxu0
    %v4395 = vadd.f32 0.0, %v4394
    %v4396 = vpop.f32.mrf.mxu0
    %4397 = vmatprep.mubr.f32.mxu0 0.0
    %4398 = vmatmul.mubr.f32.gmra.mxu0 %v3614
    %v4399 = vpop.f32.mrf.mxu0
    %v4400 = vadd.f32 0.0, %v4399
    %v4401 = vpop.f32.mrf.mxu0
    %4402 = vmatprep.mubr.f32.mxu0 0.0
    %4403 = vmatmul.mubr.f32.gmra.mxu0 %v3617
    %v4404 = vpop.f32.mrf.mxu0
    %v4405 = vadd.f32 0.0, %v4404
    %v4406 = vpop.f32.mrf.mxu0
    %4407 = vmatprep.mubr.f32.mxu0 0.0
    %4408 = vmatmul.mubr.f32.gmra.mxu0 %v3620
    %v4409 = vpop.f32.mrf.mxu0
    %v4410 = vadd.f32 0.0, %v4409
    %v4411 = vpop.f32.mrf.mxu0
    %4412 = vmatprep.mubr.f32.mxu0 0.0
    %4413 = vmatmul.mubr.f32.gmra.mxu0 %v3623
    %v4414 = vpop.f32.mrf.mxu0
    %v4415 = vadd.f32 0.0, %v4414
    %v4416 = vpop.f32.mrf.mxu0
    %4417 = vmatprep.mubr.f32.mxu0 0.0
    %4418 = vmatmul.mubr.f32.gmra.mxu0 %v3626
    %v4419 = vpop.f32.mrf.mxu0
    %v4420 = vadd.f32 0.0, %v4419
    %v4421 = vpop.f32.mrf.mxu0
    %4422 = vmatprep.mubr.f32.mxu0 0.0
    %4423 = vmatmul.mubr.f32.gmra.mxu0 %v3629
    %v4424 = vpop.f32.mrf.mxu0
    %v4425 = vadd.f32 0.0, %v4424
    %v4426 = vpop.f32.mrf.mxu0
    %4427 = vmatprep.mubr.f32.mxu0 0.0
    %4428 = vmatmul.mubr.f32.gmra.mxu0 %v3632
    %v4429 = vpop.f32.mrf.mxu0
    %v4430 = vadd.f32 0.0, %v4429
    %v4431 = vpop.f32.mrf.mxu0
    %4432 = vdwg.mxu0
    %v4433 = vadd.f32 %v4268, %v4355
    %v4434 = vadd.f32 %v4269, %v4360
    %v4435 = vadd.f32 %v4270, %v4365
    %v4436 = vadd.f32 %v4271, %v4370
    %v4437 = vadd.f32 %v4272, %v4375
    %v4438 = vadd.f32 %v4273, %v4380
    %v4439 = vadd.f32 %v4274, %v4385
    %v4440 = vadd.f32 %v4275, %v4390
    %v4441 = vadd.f32 %v4276, %v4395
    %v4442 = vadd.f32 %v4277, %v4400
    %v4443 = vadd.f32 %v4278, %v4405
    %v4444 = vadd.f32 %v4279, %v4410
    %v4445 = vadd.f32 %v4280, %v4415
    %v4446 = vadd.f32 %v4281, %v4420
    %v4447 = vadd.f32 %v4282, %v4425
    %v4448 = vadd.f32 %v4283, %v4430
    %v4449 = vmax.f32 %v4433, 0.0
    %v4450 = vmax.f32 %v4434, 0.0
    %v4451 = vmax.f32 %v4435, 0.0
    %v4452 = vmax.f32 %v4436, 0.0
    %v4453 = vmax.f32 %v4437, 0.0
    %v4454 = vmax.f32 %v4438, 0.0
    %v4455 = vmax.f32 %v4439, 0.0
    %v4456 = vmax.f32 %v4440, 0.0
    %v4457 = vmax.f32 %v4441, 0.0
    %v4458 = vmax.f32 %v4442, 0.0
    %v4459 = vmax.f32 %v4443, 0.0
    %v4460 = vmax.f32 %v4444, 0.0
    %v4461 = vmax.f32 %v4445, 0.0
    %v4462 = vmax.f32 %v4446, 0.0
    %v4463 = vmax.f32 %v4447, 0.0
    %v4464 = vmax.f32 %v4448, 0.0
    %v4465 = vld [vmem:[#allocation2 + $0x578] sm:$0xff]
    %v4466 = vld [vmem:[#allocation2 + $0x580] sm:$0xff]
    %v4467 = vld [vmem:[#allocation2 + $0x588] sm:$0xff]
    %v4468 = vld [vmem:[#allocation2 + $0x590] sm:$0xff]
    %v4469 = vld [vmem:[#allocation2 + $0x598] sm:$0xff]
    %v4470 = vld [vmem:[#allocation2 + $0x5a0] sm:$0xff]
    %v4471 = vld [vmem:[#allocation2 + $0x5a8] sm:$0xff]
    %v4472 = vld [vmem:[#allocation2 + $0x5b0] sm:$0xff]
    %v4473 = vld [vmem:[#allocation2 + $0x5b8] sm:$0x1]
    %v4474 = vlaneseq
    %v4475 = vshrl.u32 %v4474, 7
    %v4476 = vsub.s32 0, %v4475
    %v4477 = vrot.slane %v4473, %v4476
    %v4479 = vsel %vm1830, %v4449, 0
    %v4482 = vsel %vm1830, %v4450, 0
    %v4485 = vsel %vm1830, %v4451, 0
    %v4488 = vsel %vm1830, %v4452, 0
    %v4491 = vsel %vm1830, %v4453, 0
    %v4494 = vsel %vm1830, %v4454, 0
    %v4497 = vsel %vm1830, %v4455, 0
    %v4500 = vsel %vm1830, %v4456, 0
    %v4503 = vsel %vm1830, %v4457, 0
    %v4506 = vsel %vm1830, %v4458, 0
    %v4509 = vsel %vm1830, %v4459, 0
    %v4512 = vsel %vm1830, %v4460, 0
    %v4515 = vsel %vm1830, %v4461, 0
    %v4518 = vsel %vm1830, %v4462, 0
    %v4521 = vsel %vm1830, %v4463, 0
    %v4524 = vsel %vm1830, %v4464, 0
    %4526 = vmatprep.subr.mxu0 0.0
    %4527 = vmatpush1.msra.mxu0 0.0
    %4528 = vmatprep.subr.mxu0 0.0
    %4529 = vmatpush1.msra.mxu0 0.0
    %4530 = vmatprep.subr.mxu0 0.0
    %4531 = vmatpush1.msra.mxu0 0.0
    %4532 = vmatprep.subr.mxu0 0.0
    %4533 = vmatpush1.msra.mxu0 0.0
    %4534 = vmatprep.subr.mxu0 0.0
    %4535 = vmatpush1.msra.mxu0 0.0
    %4536 = vmatprep.subr.mxu0 0.0
    %4537 = vmatpush1.msra.mxu0 0.0
    %4538 = vmatprep.subr.mxu0 0.0
    %4539 = vmatpush1.msra.mxu0 0.0
    %4540 = vmatprep.subr.mxu0 0.0
    %4541 = vmatpush1.msra.mxu0 0.0
    %4542 = vmatprep.subr.mxu0 0.0
    %4543 = vmatpush1.msra.mxu0 %v4472
    %4544 = vmatprep.subr.mxu0 0.0
    %4545 = vmatpush1.msra.mxu0 %v4471
    %4546 = vmatprep.subr.mxu0 0.0
    %4547 = vmatpush1.msra.mxu0 %v4470
    %4548 = vmatprep.subr.mxu0 0.0
    %4549 = vmatpush1.msra.mxu0 %v4469
    %4550 = vmatprep.subr.mxu0 0.0
    %4551 = vmatpush1.msra.mxu0 %v4468
    %4552 = vmatprep.subr.mxu0 0.0
    %4553 = vmatpush1.msra.mxu0 %v4467
    %4554 = vmatprep.subr.mxu0 0.0
    %4555 = vmatpush1.msra.mxu0 %v4466
    %4556 = vmatprep.subr.mxu0 0.0
    %4557 = vmatpush1.msra.mxu0 %v4465
    %4558 = vmatprep.subr.mxu0 0.0
    %4559 = vmatpush2.msra.mxu0 0.0
    %4560 = vmatprep.subr.mxu0 0.0
    %4561 = vmatpush2.msra.mxu0 0.0
    %4562 = vmatprep.subr.mxu0 0.0
    %4563 = vmatpush2.msra.mxu0 0.0
    %4564 = vmatprep.subr.mxu0 0.0
    %4565 = vmatpush2.msra.mxu0 0.0
    %4566 = vmatprep.subr.mxu0 0.0
    %4567 = vmatpush2.msra.mxu0 0.0
    %4568 = vmatprep.subr.mxu0 0.0
    %4569 = vmatpush2.msra.mxu0 0.0
    %4570 = vmatprep.subr.mxu0 0.0
    %4571 = vmatpush2.msra.mxu0 0.0
    %4572 = vmatprep.subr.mxu0 0.0
    %4573 = vmatpush2.msra.mxu0 0.0
    %4574 = vmatprep.subr.mxu0 0.0
    %4575 = vmatpush2.msra.mxu0 0.0
    %4576 = vmatprep.subr.mxu0 0.0
    %4577 = vmatpush2.msra.mxu0 0.0
    %4578 = vmatprep.subr.mxu0 0.0
    %4579 = vmatpush2.msra.mxu0 0.0
    %4580 = vmatprep.subr.mxu0 0.0
    %4581 = vmatpush2.msra.mxu0 0.0
    %4582 = vmatprep.subr.mxu0 0.0
    %4583 = vmatpush2.msra.mxu0 0.0
    %4584 = vmatprep.subr.mxu0 0.0
    %4585 = vmatpush2.msra.mxu0 0.0
    %4586 = vmatprep.subr.mxu0 0.0
    %4587 = vmatpush2.msra.mxu0 0.0
    %4588 = vmatprep.subr.mxu0 0.0
    %4589 = vmatpush2.msra.mxu0 0.0
    %4590 = vmatprep.mubr.f32.mxu0 0.0
    %4591 = vmatmul.mubr.f32.gmra.mxu0 %v4479
    %v4592 = vpop.f32.mrf.mxu0
    %v4593 = vadd.f32 %v4477, %v4592
    %v4594 = vpop.f32.mrf.mxu0
    %4595 = vmatprep.mubr.f32.mxu0 0.0
    %4596 = vmatmul.mubr.f32.gmra.mxu0 %v4482
    %v4597 = vpop.f32.mrf.mxu0
    %v4598 = vadd.f32 %v4477, %v4597
    %v4599 = vpop.f32.mrf.mxu0
    %4600 = vmatprep.mubr.f32.mxu0 0.0
    %4601 = vmatmul.mubr.f32.gmra.mxu0 %v4485
    %v4602 = vpop.f32.mrf.mxu0
    %v4603 = vadd.f32 %v4477, %v4602
    %v4604 = vpop.f32.mrf.mxu0
    %4605 = vmatprep.mubr.f32.mxu0 0.0
    %4606 = vmatmul.mubr.f32.gmra.mxu0 %v4488
    %v4607 = vpop.f32.mrf.mxu0
    %v4608 = vadd.f32 %v4477, %v4607
    %v4609 = vpop.f32.mrf.mxu0
    %4610 = vmatprep.mubr.f32.mxu0 0.0
    %4611 = vmatmul.mubr.f32.gmra.mxu0 %v4491
    %v4612 = vpop.f32.mrf.mxu0
    %v4613 = vadd.f32 %v4477, %v4612
    %v4614 = vpop.f32.mrf.mxu0
    %4615 = vmatprep.mubr.f32.mxu0 0.0
    %4616 = vmatmul.mubr.f32.gmra.mxu0 %v4494
    %v4617 = vpop.f32.mrf.mxu0
    %v4618 = vadd.f32 %v4477, %v4617
    %v4619 = vpop.f32.mrf.mxu0
    %4620 = vmatprep.mubr.f32.mxu0 0.0
    %4621 = vmatmul.mubr.f32.gmra.mxu0 %v4497
    %v4622 = vpop.f32.mrf.mxu0
    %v4623 = vadd.f32 %v4477, %v4622
    %v4624 = vpop.f32.mrf.mxu0
    %4625 = vmatprep.mubr.f32.mxu0 0.0
    %4626 = vmatmul.mubr.f32.gmra.mxu0 %v4500
    %v4627 = vpop.f32.mrf.mxu0
    %v4628 = vadd.f32 %v4477, %v4627
    %v4629 = vpop.f32.mrf.mxu0
    %4630 = vmatprep.mubr.f32.mxu0 0.0
    %4631 = vmatmul.mubr.f32.gmra.mxu0 %v4503
    %v4632 = vpop.f32.mrf.mxu0
    %v4633 = vadd.f32 %v4477, %v4632
    %v4634 = vpop.f32.mrf.mxu0
    %4635 = vmatprep.mubr.f32.mxu0 0.0
    %4636 = vmatmul.mubr.f32.gmra.mxu0 %v4506
    %v4637 = vpop.f32.mrf.mxu0
    %v4638 = vadd.f32 %v4477, %v4637
    %v4639 = vpop.f32.mrf.mxu0
    %4640 = vmatprep.mubr.f32.mxu0 0.0
    %4641 = vmatmul.mubr.f32.gmra.mxu0 %v4509
    %v4642 = vpop.f32.mrf.mxu0
    %v4643 = vadd.f32 %v4477, %v4642
    %v4644 = vpop.f32.mrf.mxu0
    %4645 = vmatprep.mubr.f32.mxu0 0.0
    %4646 = vmatmul.mubr.f32.gmra.mxu0 %v4512
    %v4647 = vpop.f32.mrf.mxu0
    %v4648 = vadd.f32 %v4477, %v4647
    %v4649 = vpop.f32.mrf.mxu0
    %4650 = vmatprep.mubr.f32.mxu0 0.0
    %4651 = vmatmul.mubr.f32.gmra.mxu0 %v4515
    %v4652 = vpop.f32.mrf.mxu0
    %v4653 = vadd.f32 %v4477, %v4652
    %v4654 = vpop.f32.mrf.mxu0
    %4655 = vmatprep.mubr.f32.mxu0 0.0
    %4656 = vmatmul.mubr.f32.gmra.mxu0 %v4518
    %v4657 = vpop.f32.mrf.mxu0
    %v4658 = vadd.f32 %v4477, %v4657
    %v4659 = vpop.f32.mrf.mxu0
    %4660 = vmatprep.mubr.f32.mxu0 0.0
    %4661 = vmatmul.mubr.f32.gmra.mxu0 %v4521
    %v4662 = vpop.f32.mrf.mxu0
    %v4663 = vadd.f32 %v4477, %v4662
    %v4664 = vpop.f32.mrf.mxu0
    %4665 = vmatprep.mubr.f32.mxu0 0.0
    %4666 = vmatmul.mubr.f32.gmra.mxu0 %v4524
    %v4667 = vpop.f32.mrf.mxu0
    %v4668 = vadd.f32 %v4477, %v4667
    %v4669 = vpop.f32.mrf.mxu0
    %4670 = vdwg.mxu0
    %v4671 = vmax.f32 %v4593, 0.0
    %v4672 = vmax.f32 %v4598, 0.0
    %v4673 = vmax.f32 %v4603, 0.0
    %v4674 = vmax.f32 %v4608, 0.0
    %v4675 = vmax.f32 %v4613, 0.0
    %v4676 = vmax.f32 %v4618, 0.0
    %v4677 = vmax.f32 %v4623, 0.0
    %v4678 = vmax.f32 %v4628, 0.0
    %v4679 = vmax.f32 %v4633, 0.0
    %v4680 = vmax.f32 %v4638, 0.0
    %v4681 = vmax.f32 %v4643, 0.0
    %v4682 = vmax.f32 %v4648, 0.0
    %v4683 = vmax.f32 %v4653, 0.0
    %v4684 = vmax.f32 %v4658, 0.0
    %v4685 = vmax.f32 %v4663, 0.0
    %v4686 = vmax.f32 %v4668, 0.0
    %4687 = vxpose.xlu0.b32.start [1/16] %v753, 128
    %4688 = vxpose.xlu0.b32.cont [2/16] %v754, 128
    %4689 = vxpose.xlu0.b32.cont [3/16] %v755, 128
    %4690 = vxpose.xlu0.b32.cont [4/16] %v756, 128
    %4691 = vxpose.xlu0.b32.cont [5/16] %v757, 128
    %4692 = vxpose.xlu0.b32.cont [6/16] %v758, 128
    %4693 = vxpose.xlu0.b32.cont [7/16] %v759, 128
    %4694 = vxpose.xlu0.b32.cont [8/16] %v760, 128
    %4695 = vxpose.xlu0.b32.cont [9/16] %v761, 128
    %4696 = vxpose.xlu0.b32.cont [10/16] %v762, 128
    %4697 = vxpose.xlu0.b32.cont [11/16] %v763, 128
    %4698 = vxpose.xlu0.b32.cont [12/16] %v764, 128
    %4699 = vxpose.xlu0.b32.cont [13/16] %v765, 128
    %4700 = vxpose.xlu0.b32.cont [14/16] %v766, 128
    %4701 = vxpose.xlu0.b32.cont [15/16] %v767, 128
    %4702 = vxpose.xlu0.b32.end [16/16] %v768, 128
    %v4703 = vpop.trf.xlu0
    %v4704 = vpop.trf.xlu0
    %v4705 = vpop.trf.xlu0
    %v4706 = vpop.trf.xlu0
    %v4707 = vpop.trf.xlu0
    %v4708 = vpop.trf.xlu0
    %v4709 = vpop.trf.xlu0
    %v4710 = vpop.trf.xlu0
    %v4711 = vpop.trf.xlu0
    %v4712 = vpop.trf.xlu0
    %v4713 = vpop.trf.xlu0
    %v4714 = vpop.trf.xlu0
    %v4715 = vpop.trf.xlu0
    %v4716 = vpop.trf.xlu0
    %v4717 = vpop.trf.xlu0
    %v4718 = vpop.trf.xlu0
    %4719 = vmatprep.subr.mxu0 0.0
    %4720 = vmatpush1.msra.mxu0 %v4686
    %4721 = vmatprep.subr.mxu0 0.0
    %4722 = vmatpush1.msra.mxu0 %v4685
    %4723 = vmatprep.subr.mxu0 0.0
    %4724 = vmatpush1.msra.mxu0 %v4684
    %4725 = vmatprep.subr.mxu0 0.0
    %4726 = vmatpush1.msra.mxu0 %v4683
    %4727 = vmatprep.subr.mxu0 0.0
    %4728 = vmatpush1.msra.mxu0 %v4682
    %4729 = vmatprep.subr.mxu0 0.0
    %4730 = vmatpush1.msra.mxu0 %v4681
    %4731 = vmatprep.subr.mxu0 0.0
    %4732 = vmatpush1.msra.mxu0 %v4680
    %4733 = vmatprep.subr.mxu0 0.0
    %4734 = vmatpush1.msra.mxu0 %v4679
    %4735 = vmatprep.subr.mxu0 0.0
    %4736 = vmatpush1.msra.mxu0 %v4678
    %4737 = vmatprep.subr.mxu0 0.0
    %4738 = vmatpush1.msra.mxu0 %v4677
    %4739 = vmatprep.subr.mxu0 0.0
    %4740 = vmatpush1.msra.mxu0 %v4676
    %4741 = vmatprep.subr.mxu0 0.0
    %4742 = vmatpush1.msra.mxu0 %v4675
    %4743 = vmatprep.subr.mxu0 0.0
    %4744 = vmatpush1.msra.mxu0 %v4674
    %4745 = vmatprep.subr.mxu0 0.0
    %4746 = vmatpush1.msra.mxu0 %v4673
    %4747 = vmatprep.subr.mxu0 0.0
    %4748 = vmatpush1.msra.mxu0 %v4672
    %4749 = vmatprep.subr.mxu0 0.0
    %4750 = vmatpush1.msra.mxu0 %v4671
    %4751 = vmatprep.subr.mxu0 0.0
    %4752 = vmatpush2.msra.mxu0 0.0
    %4753 = vmatprep.subr.mxu0 0.0
    %4754 = vmatpush2.msra.mxu0 0.0
    %4755 = vmatprep.subr.mxu0 0.0
    %4756 = vmatpush2.msra.mxu0 0.0
    %4757 = vmatprep.subr.mxu0 0.0
    %4758 = vmatpush2.msra.mxu0 0.0
    %4759 = vmatprep.subr.mxu0 0.0
    %4760 = vmatpush2.msra.mxu0 0.0
    %4761 = vmatprep.subr.mxu0 0.0
    %4762 = vmatpush2.msra.mxu0 0.0
    %4763 = vmatprep.subr.mxu0 0.0
    %4764 = vmatpush2.msra.mxu0 0.0
    %4765 = vmatprep.subr.mxu0 0.0
    %4766 = vmatpush2.msra.mxu0 0.0
    %4767 = vmatprep.subr.mxu0 0.0
    %4768 = vmatpush2.msra.mxu0 0.0
    %4769 = vmatprep.subr.mxu0 0.0
    %4770 = vmatpush2.msra.mxu0 0.0
    %4771 = vmatprep.subr.mxu0 0.0
    %4772 = vmatpush2.msra.mxu0 0.0
    %4773 = vmatprep.subr.mxu0 0.0
    %4774 = vmatpush2.msra.mxu0 0.0
    %4775 = vmatprep.subr.mxu0 0.0
    %4776 = vmatpush2.msra.mxu0 0.0
    %4777 = vmatprep.subr.mxu0 0.0
    %4778 = vmatpush2.msra.mxu0 0.0
    %4779 = vmatprep.subr.mxu0 0.0
    %4780 = vmatpush2.msra.mxu0 0.0
    %4781 = vmatprep.subr.mxu0 0.0
    %4782 = vmatpush2.msra.mxu0 0.0
    %4783 = vmatprep.mubr.f32.mxu0 0.0
    %4784 = vmatmul.mubr.f32.gmra.mxu0 %v4703
    %v4785 = vpop.f32.mrf.mxu0
    %v4786 = vadd.f32 0.0, %v4785
    %v4787 = vpop.f32.mrf.mxu0
    %4788 = vmatprep.mubr.f32.mxu0 0.0
    %4789 = vmatmul.mubr.f32.gmra.mxu0 %v4704
    %v4790 = vpop.f32.mrf.mxu0
    %v4791 = vadd.f32 0.0, %v4790
    %v4792 = vpop.f32.mrf.mxu0
    %4793 = vmatprep.mubr.f32.mxu0 0.0
    %4794 = vmatmul.mubr.f32.gmra.mxu0 %v4705
    %v4795 = vpop.f32.mrf.mxu0
    %v4796 = vadd.f32 0.0, %v4795
    %v4797 = vpop.f32.mrf.mxu0
    %4798 = vmatprep.mubr.f32.mxu0 0.0
    %4799 = vmatmul.mubr.f32.gmra.mxu0 %v4706
    %v4800 = vpop.f32.mrf.mxu0
    %v4801 = vadd.f32 0.0, %v4800
    %v4802 = vpop.f32.mrf.mxu0
    %4803 = vmatprep.mubr.f32.mxu0 0.0
    %4804 = vmatmul.mubr.f32.gmra.mxu0 %v4707
    %v4805 = vpop.f32.mrf.mxu0
    %v4806 = vadd.f32 0.0, %v4805
    %v4807 = vpop.f32.mrf.mxu0
    %4808 = vmatprep.mubr.f32.mxu0 0.0
    %4809 = vmatmul.mubr.f32.gmra.mxu0 %v4708
    %v4810 = vpop.f32.mrf.mxu0
    %v4811 = vadd.f32 0.0, %v4810
    %v4812 = vpop.f32.mrf.mxu0
    %4813 = vmatprep.mubr.f32.mxu0 0.0
    %4814 = vmatmul.mubr.f32.gmra.mxu0 %v4709
    %v4815 = vpop.f32.mrf.mxu0
    %v4816 = vadd.f32 0.0, %v4815
    %v4817 = vpop.f32.mrf.mxu0
    %4818 = vmatprep.mubr.f32.mxu0 0.0
    %4819 = vmatmul.mubr.f32.gmra.mxu0 %v4710
    %v4820 = vpop.f32.mrf.mxu0
    %v4821 = vadd.f32 0.0, %v4820
    %v4822 = vpop.f32.mrf.mxu0
    %4823 = vdwg.mxu0
    %v4824 = vld [vmem:[#allocation2 + $0x5e0] sm:$0xff]
    %v4825 = vld [vmem:[#allocation2 + $0x5e8] sm:$0xff]
    %v4826 = vld [vmem:[#allocation2 + $0x5f0] sm:$0xff]
    %v4827 = vld [vmem:[#allocation2 + $0x5f8] sm:$0xff]
    %4828 = vmatprep.subr.mxu0 0.0
    %4829 = vmatpush1.msra.mxu0 0.0
    %4830 = vmatprep.subr.mxu0 0.0
    %4831 = vmatpush1.msra.mxu0 0.0
    %4832 = vmatprep.subr.mxu0 0.0
    %4833 = vmatpush1.msra.mxu0 0.0
    %4834 = vmatprep.subr.mxu0 0.0
    %4835 = vmatpush1.msra.mxu0 0.0
    %4836 = vmatprep.subr.mxu0 0.0
    %4837 = vmatpush1.msra.mxu0 0.0
    %4838 = vmatprep.subr.mxu0 0.0
    %4839 = vmatpush1.msra.mxu0 0.0
    %4840 = vmatprep.subr.mxu0 0.0
    %4841 = vmatpush1.msra.mxu0 0.0
    %4842 = vmatprep.subr.mxu0 0.0
    %4843 = vmatpush1.msra.mxu0 0.0
    %4844 = vmatprep.subr.mxu0 0.0
    %4845 = vmatpush1.msra.mxu0 0.0
    %4846 = vmatprep.subr.mxu0 0.0
    %4847 = vmatpush1.msra.mxu0 0.0
    %4848 = vmatprep.subr.mxu0 0.0
    %4849 = vmatpush1.msra.mxu0 0.0
    %4850 = vmatprep.subr.mxu0 0.0
    %4851 = vmatpush1.msra.mxu0 0.0
    %4852 = vmatprep.subr.mxu0 0.0
    %4853 = vmatpush1.msra.mxu0 %v4827
    %4854 = vmatprep.subr.mxu0 0.0
    %4855 = vmatpush1.msra.mxu0 %v4826
    %4856 = vmatprep.subr.mxu0 0.0
    %4857 = vmatpush1.msra.mxu0 %v4825
    %4858 = vmatprep.subr.mxu0 0.0
    %4859 = vmatpush1.msra.mxu0 %v4824
    %4860 = vmatprep.subr.mxu0 0.0
    %4861 = vmatpush2.msra.mxu0 0.0
    %4862 = vmatprep.subr.mxu0 0.0
    %4863 = vmatpush2.msra.mxu0 0.0
    %4864 = vmatprep.subr.mxu0 0.0
    %4865 = vmatpush2.msra.mxu0 0.0
    %4866 = vmatprep.subr.mxu0 0.0
    %4867 = vmatpush2.msra.mxu0 0.0
    %4868 = vmatprep.subr.mxu0 0.0
    %4869 = vmatpush2.msra.mxu0 0.0
    %4870 = vmatprep.subr.mxu0 0.0
    %4871 = vmatpush2.msra.mxu0 0.0
    %4872 = vmatprep.subr.mxu0 0.0
    %4873 = vmatpush2.msra.mxu0 0.0
    %4874 = vmatprep.subr.mxu0 0.0
    %4875 = vmatpush2.msra.mxu0 0.0
    %4876 = vmatprep.subr.mxu0 0.0
    %4877 = vmatpush2.msra.mxu0 0.0
    %4878 = vmatprep.subr.mxu0 0.0
    %4879 = vmatpush2.msra.mxu0 0.0
    %4880 = vmatprep.subr.mxu0 0.0
    %4881 = vmatpush2.msra.mxu0 0.0
    %4882 = vmatprep.subr.mxu0 0.0
    %4883 = vmatpush2.msra.mxu0 0.0
    %4884 = vmatprep.subr.mxu0 0.0
    %4885 = vmatpush2.msra.mxu0 0.0
    %4886 = vmatprep.subr.mxu0 0.0
    %4887 = vmatpush2.msra.mxu0 0.0
    %4888 = vmatprep.subr.mxu0 0.0
    %4889 = vmatpush2.msra.mxu0 0.0
    %4890 = vmatprep.subr.mxu0 0.0
    %4891 = vmatpush2.msra.mxu0 0.0
    %4892 = vmatprep.mubr.f32.mxu0 0.0
    %4893 = vmatmul.mubr.f32.gmra.mxu0 %v3826
    %v4894 = vpop.f32.mrf.mxu0
    %v4895 = vadd.f32 0.0, %v4894
    %v4896 = vpop.f32.mrf.mxu0
    %4897 = vmatprep.mubr.f32.mxu0 0.0
    %4898 = vmatmul.mubr.f32.gmra.mxu0 %v3829
    %v4899 = vpop.f32.mrf.mxu0
    %v4900 = vadd.f32 0.0, %v4899
    %v4901 = vpop.f32.mrf.mxu0
    %4902 = vmatprep.mubr.f32.mxu0 0.0
    %4903 = vmatmul.mubr.f32.gmra.mxu0 %v3832
    %v4904 = vpop.f32.mrf.mxu0
    %v4905 = vadd.f32 0.0, %v4904
    %v4906 = vpop.f32.mrf.mxu0
    %4907 = vmatprep.mubr.f32.mxu0 0.0
    %4908 = vmatmul.mubr.f32.gmra.mxu0 %v3835
    %v4909 = vpop.f32.mrf.mxu0
    %v4910 = vadd.f32 0.0, %v4909
    %v4911 = vpop.f32.mrf.mxu0
    %4912 = vmatprep.mubr.f32.mxu0 0.0
    %4913 = vmatmul.mubr.f32.gmra.mxu0 %v3838
    %v4914 = vpop.f32.mrf.mxu0
    %v4915 = vadd.f32 0.0, %v4914
    %v4916 = vpop.f32.mrf.mxu0
    %4917 = vmatprep.mubr.f32.mxu0 0.0
    %4918 = vmatmul.mubr.f32.gmra.mxu0 %v3841
    %v4919 = vpop.f32.mrf.mxu0
    %v4920 = vadd.f32 0.0, %v4919
    %v4921 = vpop.f32.mrf.mxu0
    %4922 = vmatprep.mubr.f32.mxu0 0.0
    %4923 = vmatmul.mubr.f32.gmra.mxu0 %v3844
    %v4924 = vpop.f32.mrf.mxu0
    %v4925 = vadd.f32 0.0, %v4924
    %v4926 = vpop.f32.mrf.mxu0
    %4927 = vmatprep.mubr.f32.mxu0 0.0
    %4928 = vmatmul.mubr.f32.gmra.mxu0 %v3847
    %v4929 = vpop.f32.mrf.mxu0
    %v4930 = vadd.f32 0.0, %v4929
    %v4931 = vpop.f32.mrf.mxu0
    %4932 = vdwg.mxu0
    %v4933 = vadd.f32 %v3916, %v4895
    %v4934 = vadd.f32 %v3921, %v4900
    %v4935 = vadd.f32 %v3926, %v4905
    %v4936 = vadd.f32 %v3931, %v4910
    %v4937 = vadd.f32 %v3936, %v4915
    %v4938 = vadd.f32 %v3941, %v4920
    %v4939 = vadd.f32 %v3946, %v4925
    %v4940 = vadd.f32 %v3951, %v4930
    %v4941 = vld [vmem:[#allocation2 + $0x600] sm:$0xff]
    %v4942 = vld [vmem:[#allocation2 + $0x608] sm:$0xff]
    %v4943 = vld [vmem:[#allocation2 + $0x610] sm:$0xff]
    %v4944 = vld [vmem:[#allocation2 + $0x618] sm:$0xff]
    %v4946 = vsel %vm3195, %v4786, 0
    %v4949 = vsel %vm3195, %v4791, 0
    %v4952 = vsel %vm3195, %v4796, 0
    %v4955 = vsel %vm3195, %v4801, 0
    %v4958 = vsel %vm3195, %v4806, 0
    %v4961 = vsel %vm3195, %v4811, 0
    %v4964 = vsel %vm3195, %v4816, 0
    %v4967 = vsel %vm3195, %v4821, 0
    %4969 = vmatprep.subr.mxu0 0.0
    %4970 = vmatpush1.msra.mxu0 0.0
    %4971 = vmatprep.subr.mxu0 0.0
    %4972 = vmatpush1.msra.mxu0 0.0
    %4973 = vmatprep.subr.mxu0 0.0
    %4974 = vmatpush1.msra.mxu0 0.0
    %4975 = vmatprep.subr.mxu0 0.0
    %4976 = vmatpush1.msra.mxu0 0.0
    %4977 = vmatprep.subr.mxu0 0.0
    %4978 = vmatpush1.msra.mxu0 0.0
    %4979 = vmatprep.subr.mxu0 0.0
    %4980 = vmatpush1.msra.mxu0 0.0
    %4981 = vmatprep.subr.mxu0 0.0
    %4982 = vmatpush1.msra.mxu0 0.0
    %4983 = vmatprep.subr.mxu0 0.0
    %4984 = vmatpush1.msra.mxu0 0.0
    %4985 = vmatprep.subr.mxu0 0.0
    %4986 = vmatpush1.msra.mxu0 0.0
    %4987 = vmatprep.subr.mxu0 0.0
    %4988 = vmatpush1.msra.mxu0 0.0
    %4989 = vmatprep.subr.mxu0 0.0
    %4990 = vmatpush1.msra.mxu0 0.0
    %4991 = vmatprep.subr.mxu0 0.0
    %4992 = vmatpush1.msra.mxu0 0.0
    %4993 = vmatprep.subr.mxu0 0.0
    %4994 = vmatpush1.msra.mxu0 %v4944
    %4995 = vmatprep.subr.mxu0 0.0
    %4996 = vmatpush1.msra.mxu0 %v4943
    %4997 = vmatprep.subr.mxu0 0.0
    %4998 = vmatpush1.msra.mxu0 %v4942
    %4999 = vmatprep.subr.mxu0 0.0
    %5000 = vmatpush1.msra.mxu0 %v4941
    %5001 = vmatprep.subr.mxu0 0.0
    %5002 = vmatpush2.msra.mxu0 0.0
    %5003 = vmatprep.subr.mxu0 0.0
    %5004 = vmatpush2.msra.mxu0 0.0
    %5005 = vmatprep.subr.mxu0 0.0
    %5006 = vmatpush2.msra.mxu0 0.0
    %5007 = vmatprep.subr.mxu0 0.0
    %5008 = vmatpush2.msra.mxu0 0.0
    %5009 = vmatprep.subr.mxu0 0.0
    %5010 = vmatpush2.msra.mxu0 0.0
    %5011 = vmatprep.subr.mxu0 0.0
    %5012 = vmatpush2.msra.mxu0 0.0
    %5013 = vmatprep.subr.mxu0 0.0
    %5014 = vmatpush2.msra.mxu0 0.0
    %5015 = vmatprep.subr.mxu0 0.0
    %5016 = vmatpush2.msra.mxu0 0.0
    %5017 = vmatprep.subr.mxu0 0.0
    %5018 = vmatpush2.msra.mxu0 0.0
    %5019 = vmatprep.subr.mxu0 0.0
    %5020 = vmatpush2.msra.mxu0 0.0
    %5021 = vmatprep.subr.mxu0 0.0
    %5022 = vmatpush2.msra.mxu0 0.0
    %5023 = vmatprep.subr.mxu0 0.0
    %5024 = vmatpush2.msra.mxu0 0.0
    %5025 = vmatprep.subr.mxu0 0.0
    %5026 = vmatpush2.msra.mxu0 0.0
    %5027 = vmatprep.subr.mxu0 0.0
    %5028 = vmatpush2.msra.mxu0 0.0
    %5029 = vmatprep.subr.mxu0 0.0
    %5030 = vmatpush2.msra.mxu0 0.0
    %5031 = vmatprep.subr.mxu0 0.0
    %5032 = vmatpush2.msra.mxu0 0.0
    %5033 = vmatprep.mubr.f32.mxu0 0.0
    %5034 = vmatmul.mubr.f32.gmra.mxu0 %v4946
    %v5035 = vpop.f32.mrf.mxu0
    %v5036 = vadd.f32 0.0, %v5035
    %v5037 = vpop.f32.mrf.mxu0
    %5038 = vmatprep.mubr.f32.mxu0 0.0
    %5039 = vmatmul.mubr.f32.gmra.mxu0 %v4949
    %v5040 = vpop.f32.mrf.mxu0
    %v5041 = vadd.f32 0.0, %v5040
    %v5042 = vpop.f32.mrf.mxu0
    %5043 = vmatprep.mubr.f32.mxu0 0.0
    %5044 = vmatmul.mubr.f32.gmra.mxu0 %v4952
    %v5045 = vpop.f32.mrf.mxu0
    %v5046 = vadd.f32 0.0, %v5045
    %v5047 = vpop.f32.mrf.mxu0
    %5048 = vmatprep.mubr.f32.mxu0 0.0
    %5049 = vmatmul.mubr.f32.gmra.mxu0 %v4955
    %v5050 = vpop.f32.mrf.mxu0
    %v5051 = vadd.f32 0.0, %v5050
    %v5052 = vpop.f32.mrf.mxu0
    %5053 = vmatprep.mubr.f32.mxu0 0.0
    %5054 = vmatmul.mubr.f32.gmra.mxu0 %v4958
    %v5055 = vpop.f32.mrf.mxu0
    %v5056 = vadd.f32 0.0, %v5055
    %v5057 = vpop.f32.mrf.mxu0
    %5058 = vmatprep.mubr.f32.mxu0 0.0
    %5059 = vmatmul.mubr.f32.gmra.mxu0 %v4961
    %v5060 = vpop.f32.mrf.mxu0
    %v5061 = vadd.f32 0.0, %v5060
    %v5062 = vpop.f32.mrf.mxu0
    %5063 = vmatprep.mubr.f32.mxu0 0.0
    %5064 = vmatmul.mubr.f32.gmra.mxu0 %v4964
    %v5065 = vpop.f32.mrf.mxu0
    %v5066 = vadd.f32 0.0, %v5065
    %v5067 = vpop.f32.mrf.mxu0
    %5068 = vmatprep.mubr.f32.mxu0 0.0
    %5069 = vmatmul.mubr.f32.gmra.mxu0 %v4967
    %v5070 = vpop.f32.mrf.mxu0
    %v5071 = vadd.f32 0.0, %v5070
    %v5072 = vpop.f32.mrf.mxu0
    %5073 = vdwg.mxu0
    %v5074 = vadd.f32 %v4933, %v5036
    %v5075 = vadd.f32 %v4934, %v5041
    %v5076 = vadd.f32 %v4935, %v5046
    %v5077 = vadd.f32 %v4936, %v5051
    %v5078 = vadd.f32 %v4937, %v5056
    %v5079 = vadd.f32 %v4938, %v5061
    %v5080 = vadd.f32 %v4939, %v5066
    %v5081 = vadd.f32 %v4940, %v5071
    %v5082 = vmax.f32 %v5074, 0.0
    %v5083 = vmax.f32 %v5075, 0.0
    %v5084 = vmax.f32 %v5076, 0.0
    %v5085 = vmax.f32 %v5077, 0.0
    %v5086 = vmax.f32 %v5078, 0.0
    %v5087 = vmax.f32 %v5079, 0.0
    %v5088 = vmax.f32 %v5080, 0.0
    %v5089 = vmax.f32 %v5081, 0.0
    %5090 = vmatprep.subr.mxu0 0.0
    %5091 = vmatpush1.msra.mxu0 0.0
    %5092 = vmatprep.subr.mxu0 0.0
    %5093 = vmatpush1.msra.mxu0 0.0
    %5094 = vmatprep.subr.mxu0 0.0
    %5095 = vmatpush1.msra.mxu0 0.0
    %5096 = vmatprep.subr.mxu0 0.0
    %5097 = vmatpush1.msra.mxu0 0.0
    %5098 = vmatprep.subr.mxu0 0.0
    %5099 = vmatpush1.msra.mxu0 0.0
    %5100 = vmatprep.subr.mxu0 0.0
    %5101 = vmatpush1.msra.mxu0 0.0
    %5102 = vmatprep.subr.mxu0 0.0
    %5103 = vmatpush1.msra.mxu0 0.0
    %5104 = vmatprep.subr.mxu0 0.0
    %5105 = vmatpush1.msra.mxu0 0.0
    %5106 = vmatprep.subr.mxu0 0.0
    %5107 = vmatpush1.msra.mxu0 %v5089
    %5108 = vmatprep.subr.mxu0 0.0
    %5109 = vmatpush1.msra.mxu0 %v5088
    %5110 = vmatprep.subr.mxu0 0.0
    %5111 = vmatpush1.msra.mxu0 %v5087
    %5112 = vmatprep.subr.mxu0 0.0
    %5113 = vmatpush1.msra.mxu0 %v5086
    %5114 = vmatprep.subr.mxu0 0.0
    %5115 = vmatpush1.msra.mxu0 %v5085
    %5116 = vmatprep.subr.mxu0 0.0
    %5117 = vmatpush1.msra.mxu0 %v5084
    %5118 = vmatprep.subr.mxu0 0.0
    %5119 = vmatpush1.msra.mxu0 %v5083
    %5120 = vmatprep.subr.mxu0 0.0
    %5121 = vmatpush1.msra.mxu0 %v5082
    %5122 = vmatprep.subr.mxu0 0.0
    %5123 = vmatpush2.msra.mxu0 0.0
    %5124 = vmatprep.subr.mxu0 0.0
    %5125 = vmatpush2.msra.mxu0 0.0
    %5126 = vmatprep.subr.mxu0 0.0
    %5127 = vmatpush2.msra.mxu0 0.0
    %5128 = vmatprep.subr.mxu0 0.0
    %5129 = vmatpush2.msra.mxu0 0.0
    %5130 = vmatprep.subr.mxu0 0.0
    %5131 = vmatpush2.msra.mxu0 0.0
    %5132 = vmatprep.subr.mxu0 0.0
    %5133 = vmatpush2.msra.mxu0 0.0
    %5134 = vmatprep.subr.mxu0 0.0
    %5135 = vmatpush2.msra.mxu0 0.0
    %5136 = vmatprep.subr.mxu0 0.0
    %5137 = vmatpush2.msra.mxu0 0.0
    %5138 = vmatprep.subr.mxu0 0.0
    %5139 = vmatpush2.msra.mxu0 0.0
    %5140 = vmatprep.subr.mxu0 0.0
    %5141 = vmatpush2.msra.mxu0 0.0
    %5142 = vmatprep.subr.mxu0 0.0
    %5143 = vmatpush2.msra.mxu0 0.0
    %5144 = vmatprep.subr.mxu0 0.0
    %5145 = vmatpush2.msra.mxu0 0.0
    %5146 = vmatprep.subr.mxu0 0.0
    %5147 = vmatpush2.msra.mxu0 0.0
    %5148 = vmatprep.subr.mxu0 0.0
    %5149 = vmatpush2.msra.mxu0 0.0
    %5150 = vmatprep.subr.mxu0 0.0
    %5151 = vmatpush2.msra.mxu0 0.0
    %5152 = vmatprep.subr.mxu0 0.0
    %5153 = vmatpush2.msra.mxu0 0.0
    %5154 = vmatprep.mubr.f32.mxu0 0.0
    %5155 = vmatmul.mubr.f32.gmra.mxu0 %v2802
    %v5156 = vpop.f32.mrf.mxu0
    %v5157 = vadd.f32 0.0, %v5156
    %v5158 = vpop.f32.mrf.mxu0
    %5159 = vmatprep.mubr.f32.mxu0 0.0
    %5160 = vmatmul.mubr.f32.gmra.mxu0 %v2805
    %v5161 = vpop.f32.mrf.mxu0
    %v5162 = vadd.f32 0.0, %v5161
    %v5163 = vpop.f32.mrf.mxu0
    %5164 = vmatprep.mubr.f32.mxu0 0.0
    %5165 = vmatmul.mubr.f32.gmra.mxu0 %v2808
    %v5166 = vpop.f32.mrf.mxu0
    %v5167 = vadd.f32 0.0, %v5166
    %v5168 = vpop.f32.mrf.mxu0
    %5169 = vmatprep.mubr.f32.mxu0 0.0
    %5170 = vmatmul.mubr.f32.gmra.mxu0 %v2811
    %v5171 = vpop.f32.mrf.mxu0
    %v5172 = vadd.f32 0.0, %v5171
    %v5173 = vpop.f32.mrf.mxu0
    %5174 = vmatprep.mubr.f32.mxu0 0.0
    %5175 = vmatmul.mubr.f32.gmra.mxu0 %v2814
    %v5176 = vpop.f32.mrf.mxu0
    %v5177 = vadd.f32 0.0, %v5176
    %v5178 = vpop.f32.mrf.mxu0
    %5179 = vmatprep.mubr.f32.mxu0 0.0
    %5180 = vmatmul.mubr.f32.gmra.mxu0 %v2817
    %v5181 = vpop.f32.mrf.mxu0
    %v5182 = vadd.f32 0.0, %v5181
    %v5183 = vpop.f32.mrf.mxu0
    %5184 = vmatprep.mubr.f32.mxu0 0.0
    %5185 = vmatmul.mubr.f32.gmra.mxu0 %v2820
    %v5186 = vpop.f32.mrf.mxu0
    %v5187 = vadd.f32 0.0, %v5186
    %v5188 = vpop.f32.mrf.mxu0
    %5189 = vmatprep.mubr.f32.mxu0 0.0
    %5190 = vmatmul.mubr.f32.gmra.mxu0 %v2823
    %v5191 = vpop.f32.mrf.mxu0
    %v5192 = vadd.f32 0.0, %v5191
    %v5193 = vpop.f32.mrf.mxu0
    %5194 = vmatprep.mubr.f32.mxu0 0.0
    %5195 = vmatmul.mubr.f32.gmra.mxu0 %v2826
    %v5196 = vpop.f32.mrf.mxu0
    %v5197 = vadd.f32 0.0, %v5196
    %v5198 = vpop.f32.mrf.mxu0
    %5199 = vmatprep.mubr.f32.mxu0 0.0
    %5200 = vmatmul.mubr.f32.gmra.mxu0 %v2829
    %v5201 = vpop.f32.mrf.mxu0
    %v5202 = vadd.f32 0.0, %v5201
    %v5203 = vpop.f32.mrf.mxu0
    %5204 = vmatprep.mubr.f32.mxu0 0.0
    %5205 = vmatmul.mubr.f32.gmra.mxu0 %v2832
    %v5206 = vpop.f32.mrf.mxu0
    %v5207 = vadd.f32 0.0, %v5206
    %v5208 = vpop.f32.mrf.mxu0
    %5209 = vmatprep.mubr.f32.mxu0 0.0
    %5210 = vmatmul.mubr.f32.gmra.mxu0 %v2835
    %v5211 = vpop.f32.mrf.mxu0
    %v5212 = vadd.f32 0.0, %v5211
    %v5213 = vpop.f32.mrf.mxu0
    %5214 = vmatprep.mubr.f32.mxu0 0.0
    %5215 = vmatmul.mubr.f32.gmra.mxu0 %v2838
    %v5216 = vpop.f32.mrf.mxu0
    %v5217 = vadd.f32 0.0, %v5216
    %v5218 = vpop.f32.mrf.mxu0
    %5219 = vmatprep.mubr.f32.mxu0 0.0
    %5220 = vmatmul.mubr.f32.gmra.mxu0 %v2841
    %v5221 = vpop.f32.mrf.mxu0
    %v5222 = vadd.f32 0.0, %v5221
    %v5223 = vpop.f32.mrf.mxu0
    %5224 = vmatprep.mubr.f32.mxu0 0.0
    %5225 = vmatmul.mubr.f32.gmra.mxu0 %v2844
    %v5226 = vpop.f32.mrf.mxu0
    %v5227 = vadd.f32 0.0, %v5226
    %v5228 = vpop.f32.mrf.mxu0
    %5229 = vmatprep.mubr.f32.mxu0 0.0
    %5230 = vmatmul.mubr.f32.gmra.mxu0 %v2847
    %v5231 = vpop.f32.mrf.mxu0
    %v5232 = vadd.f32 0.0, %v5231
    %v5233 = vpop.f32.mrf.mxu0
    %5234 = vdwg.mxu0
    %5235 = vmatprep.subr.mxu0 0.0
    %5236 = vmatpush1.msra.mxu0 0.0
    %5237 = vmatprep.subr.mxu0 0.0
    %5238 = vmatpush1.msra.mxu0 0.0
    %5239 = vmatprep.subr.mxu0 0.0
    %5240 = vmatpush1.msra.mxu0 0.0
    %5241 = vmatprep.subr.mxu0 0.0
    %5242 = vmatpush1.msra.mxu0 0.0
    %5243 = vmatprep.subr.mxu0 0.0
    %5244 = vmatpush1.msra.mxu0 0.0
    %5245 = vmatprep.subr.mxu0 0.0
    %5246 = vmatpush1.msra.mxu0 0.0
    %5247 = vmatprep.subr.mxu0 0.0
    %5248 = vmatpush1.msra.mxu0 0.0
    %5249 = vmatprep.subr.mxu0 0.0
    %5250 = vmatpush1.msra.mxu0 0.0
    %5251 = vmatprep.subr.mxu0 0.0
    %5252 = vmatpush1.msra.mxu0 %v5089
    %5253 = vmatprep.subr.mxu0 0.0
    %5254 = vmatpush1.msra.mxu0 %v5088
    %5255 = vmatprep.subr.mxu0 0.0
    %5256 = vmatpush1.msra.mxu0 %v5087
    %5257 = vmatprep.subr.mxu0 0.0
    %5258 = vmatpush1.msra.mxu0 %v5086
    %5259 = vmatprep.subr.mxu0 0.0
    %5260 = vmatpush1.msra.mxu0 %v5085
    %5261 = vmatprep.subr.mxu0 0.0
    %5262 = vmatpush1.msra.mxu0 %v5084
    %5263 = vmatprep.subr.mxu0 0.0
    %5264 = vmatpush1.msra.mxu0 %v5083
    %5265 = vmatprep.subr.mxu0 0.0
    %5266 = vmatpush1.msra.mxu0 %v5082
    %5267 = vmatprep.subr.mxu0 0.0
    %5268 = vmatpush2.msra.mxu0 0.0
    %5269 = vmatprep.subr.mxu0 0.0
    %5270 = vmatpush2.msra.mxu0 0.0
    %5271 = vmatprep.subr.mxu0 0.0
    %5272 = vmatpush2.msra.mxu0 0.0
    %5273 = vmatprep.subr.mxu0 0.0
    %5274 = vmatpush2.msra.mxu0 0.0
    %5275 = vmatprep.subr.mxu0 0.0
    %5276 = vmatpush2.msra.mxu0 0.0
    %5277 = vmatprep.subr.mxu0 0.0
    %5278 = vmatpush2.msra.mxu0 0.0
    %5279 = vmatprep.subr.mxu0 0.0
    %5280 = vmatpush2.msra.mxu0 0.0
    %5281 = vmatprep.subr.mxu0 0.0
    %5282 = vmatpush2.msra.mxu0 0.0
    %5283 = vmatprep.subr.mxu0 0.0
    %5284 = vmatpush2.msra.mxu0 0.0
    %5285 = vmatprep.subr.mxu0 0.0
    %5286 = vmatpush2.msra.mxu0 0.0
    %5287 = vmatprep.subr.mxu0 0.0
    %5288 = vmatpush2.msra.mxu0 0.0
    %5289 = vmatprep.subr.mxu0 0.0
    %5290 = vmatpush2.msra.mxu0 0.0
    %5291 = vmatprep.subr.mxu0 0.0
    %5292 = vmatpush2.msra.mxu0 0.0
    %5293 = vmatprep.subr.mxu0 0.0
    %5294 = vmatpush2.msra.mxu0 0.0
    %5295 = vmatprep.subr.mxu0 0.0
    %5296 = vmatpush2.msra.mxu0 0.0
    %5297 = vmatprep.subr.mxu0 0.0
    %5298 = vmatpush2.msra.mxu0 0.0
    %5299 = vmatprep.mubr.f32.mxu0 0.0
    %5300 = vmatmul.mubr.f32.gmra.mxu0 %v2995
    %v5301 = vpop.f32.mrf.mxu0
    %v5302 = vadd.f32 0.0, %v5301
    %v5303 = vpop.f32.mrf.mxu0
    %5304 = vmatprep.mubr.f32.mxu0 0.0
    %5305 = vmatmul.mubr.f32.gmra.mxu0 %v2998
    %v5306 = vpop.f32.mrf.mxu0
    %v5307 = vadd.f32 0.0, %v5306
    %v5308 = vpop.f32.mrf.mxu0
    %5309 = vmatprep.mubr.f32.mxu0 0.0
    %5310 = vmatmul.mubr.f32.gmra.mxu0 %v3001
    %v5311 = vpop.f32.mrf.mxu0
    %v5312 = vadd.f32 0.0, %v5311
    %v5313 = vpop.f32.mrf.mxu0
    %5314 = vmatprep.mubr.f32.mxu0 0.0
    %5315 = vmatmul.mubr.f32.gmra.mxu0 %v3004
    %v5316 = vpop.f32.mrf.mxu0
    %v5317 = vadd.f32 0.0, %v5316
    %v5318 = vpop.f32.mrf.mxu0
    %5319 = vmatprep.mubr.f32.mxu0 0.0
    %5320 = vmatmul.mubr.f32.gmra.mxu0 %v3007
    %v5321 = vpop.f32.mrf.mxu0
    %v5322 = vadd.f32 0.0, %v5321
    %v5323 = vpop.f32.mrf.mxu0
    %5324 = vmatprep.mubr.f32.mxu0 0.0
    %5325 = vmatmul.mubr.f32.gmra.mxu0 %v3010
    %v5326 = vpop.f32.mrf.mxu0
    %v5327 = vadd.f32 0.0, %v5326
    %v5328 = vpop.f32.mrf.mxu0
    %5329 = vmatprep.mubr.f32.mxu0 0.0
    %5330 = vmatmul.mubr.f32.gmra.mxu0 %v3013
    %v5331 = vpop.f32.mrf.mxu0
    %v5332 = vadd.f32 0.0, %v5331
    %v5333 = vpop.f32.mrf.mxu0
    %5334 = vmatprep.mubr.f32.mxu0 0.0
    %5335 = vmatmul.mubr.f32.gmra.mxu0 %v3016
    %v5336 = vpop.f32.mrf.mxu0
    %v5337 = vadd.f32 0.0, %v5336
    %v5338 = vpop.f32.mrf.mxu0
    %5339 = vmatprep.mubr.f32.mxu0 0.0
    %5340 = vmatmul.mubr.f32.gmra.mxu0 %v3019
    %v5341 = vpop.f32.mrf.mxu0
    %v5342 = vadd.f32 0.0, %v5341
    %v5343 = vpop.f32.mrf.mxu0
    %5344 = vmatprep.mubr.f32.mxu0 0.0
    %5345 = vmatmul.mubr.f32.gmra.mxu0 %v3022
    %v5346 = vpop.f32.mrf.mxu0
    %v5347 = vadd.f32 0.0, %v5346
    %v5348 = vpop.f32.mrf.mxu0
    %5349 = vmatprep.mubr.f32.mxu0 0.0
    %5350 = vmatmul.mubr.f32.gmra.mxu0 %v3025
    %v5351 = vpop.f32.mrf.mxu0
    %v5352 = vadd.f32 0.0, %v5351
    %v5353 = vpop.f32.mrf.mxu0
    %5354 = vmatprep.mubr.f32.mxu0 0.0
    %5355 = vmatmul.mubr.f32.gmra.mxu0 %v3028
    %v5356 = vpop.f32.mrf.mxu0
    %v5357 = vadd.f32 0.0, %v5356
    %v5358 = vpop.f32.mrf.mxu0
    %5359 = vmatprep.mubr.f32.mxu0 0.0
    %5360 = vmatmul.mubr.f32.gmra.mxu0 %v3031
    %v5361 = vpop.f32.mrf.mxu0
    %v5362 = vadd.f32 0.0, %v5361
    %v5363 = vpop.f32.mrf.mxu0
    %5364 = vmatprep.mubr.f32.mxu0 0.0
    %5365 = vmatmul.mubr.f32.gmra.mxu0 %v3034
    %v5366 = vpop.f32.mrf.mxu0
    %v5367 = vadd.f32 0.0, %v5366
    %v5368 = vpop.f32.mrf.mxu0
    %5369 = vmatprep.mubr.f32.mxu0 0.0
    %5370 = vmatmul.mubr.f32.gmra.mxu0 %v3037
    %v5371 = vpop.f32.mrf.mxu0
    %v5372 = vadd.f32 0.0, %v5371
    %v5373 = vpop.f32.mrf.mxu0
    %5374 = vmatprep.mubr.f32.mxu0 0.0
    %5375 = vmatmul.mubr.f32.gmra.mxu0 %v3040
    %v5376 = vpop.f32.mrf.mxu0
    %v5377 = vadd.f32 0.0, %v5376
    %v5378 = vpop.f32.mrf.mxu0
    %5379 = vdwg.mxu0
    %v5381 = vsel %vm3195, %v5302, 0
    %v5384 = vsel %vm3195, %v5307, 0
    %v5387 = vsel %vm3195, %v5312, 0
    %v5390 = vsel %vm3195, %v5317, 0
    %v5393 = vsel %vm3195, %v5322, 0
    %v5396 = vsel %vm3195, %v5327, 0
    %v5399 = vsel %vm3195, %v5332, 0
    %v5402 = vsel %vm3195, %v5337, 0
    %v5405 = vsel %vm3195, %v5342, 0
    %v5408 = vsel %vm3195, %v5347, 0
    %v5411 = vsel %vm3195, %v5352, 0
    %v5414 = vsel %vm3195, %v5357, 0
    %v5417 = vsel %vm3195, %v5362, 0
    %v5420 = vsel %vm3195, %v5367, 0
    %v5423 = vsel %vm3195, %v5372, 0
    %v5426 = vsel %vm3195, %v5377, 0
    %5428 = vmatprep.subr.mxu0 0.0
    %5429 = vmatpush1.msra.mxu0 0.0
    %5430 = vmatprep.subr.mxu0 0.0
    %5431 = vmatpush1.msra.mxu0 0.0
    %5432 = vmatprep.subr.mxu0 0.0
    %5433 = vmatpush1.msra.mxu0 0.0
    %5434 = vmatprep.subr.mxu0 0.0
    %5435 = vmatpush1.msra.mxu0 0.0
    %5436 = vmatprep.subr.mxu0 0.0
    %5437 = vmatpush1.msra.mxu0 0.0
    %5438 = vmatprep.subr.mxu0 0.0
    %5439 = vmatpush1.msra.mxu0 0.0
    %5440 = vmatprep.subr.mxu0 0.0
    %5441 = vmatpush1.msra.mxu0 0.0
    %5442 = vmatprep.subr.mxu0 0.0
    %5443 = vmatpush1.msra.mxu0 0.0
    %5444 = vmatprep.subr.mxu0 0.0
    %5445 = vmatpush1.msra.mxu0 0.0
    %5446 = vmatprep.subr.mxu0 0.0
    %5447 = vmatpush1.msra.mxu0 0.0
    %5448 = vmatprep.subr.mxu0 0.0
    %5449 = vmatpush1.msra.mxu0 0.0
    %5450 = vmatprep.subr.mxu0 0.0
    %5451 = vmatpush1.msra.mxu0 0.0
    %5452 = vmatprep.subr.mxu0 0.0
    %5453 = vmatpush1.msra.mxu0 %v3957
    %5454 = vmatprep.subr.mxu0 0.0
    %5455 = vmatpush1.msra.mxu0 %v3956
    %5456 = vmatprep.subr.mxu0 0.0
    %5457 = vmatpush1.msra.mxu0 %v3955
    %5458 = vmatprep.subr.mxu0 0.0
    %5459 = vmatpush1.msra.mxu0 %v3954
    %5460 = vmatprep.subr.mxu0 0.0
    %5461 = vmatpush2.msra.mxu0 0.0
    %5462 = vmatprep.subr.mxu0 0.0
    %5463 = vmatpush2.msra.mxu0 0.0
    %5464 = vmatprep.subr.mxu0 0.0
    %5465 = vmatpush2.msra.mxu0 0.0
    %5466 = vmatprep.subr.mxu0 0.0
    %5467 = vmatpush2.msra.mxu0 0.0
    %5468 = vmatprep.subr.mxu0 0.0
    %5469 = vmatpush2.msra.mxu0 0.0
    %5470 = vmatprep.subr.mxu0 0.0
    %5471 = vmatpush2.msra.mxu0 0.0
    %5472 = vmatprep.subr.mxu0 0.0
    %5473 = vmatpush2.msra.mxu0 0.0
    %5474 = vmatprep.subr.mxu0 0.0
    %5475 = vmatpush2.msra.mxu0 0.0
    %5476 = vmatprep.subr.mxu0 0.0
    %5477 = vmatpush2.msra.mxu0 0.0
    %5478 = vmatprep.subr.mxu0 0.0
    %5479 = vmatpush2.msra.mxu0 0.0
    %5480 = vmatprep.subr.mxu0 0.0
    %5481 = vmatpush2.msra.mxu0 0.0
    %5482 = vmatprep.subr.mxu0 0.0
    %5483 = vmatpush2.msra.mxu0 0.0
    %5484 = vmatprep.subr.mxu0 0.0
    %5485 = vmatpush2.msra.mxu0 0.0
    %5486 = vmatprep.subr.mxu0 0.0
    %5487 = vmatpush2.msra.mxu0 0.0
    %5488 = vmatprep.subr.mxu0 0.0
    %5489 = vmatpush2.msra.mxu0 0.0
    %5490 = vmatprep.subr.mxu0 0.0
    %5491 = vmatpush2.msra.mxu0 0.0
    %5492 = vmatprep.mubr.f32.mxu0 0.0
    %5493 = vmatmul.mubr.f32.gmra.mxu0 %v5381
    %v5494 = vpop.f32.mrf.mxu0
    %v5495 = vadd.f32 0.0, %v5494
    %v5496 = vpop.f32.mrf.mxu0
    %5497 = vmatprep.mubr.f32.mxu0 0.0
    %5498 = vmatmul.mubr.f32.gmra.mxu0 %v5384
    %v5499 = vpop.f32.mrf.mxu0
    %v5500 = vadd.f32 0.0, %v5499
    %v5501 = vpop.f32.mrf.mxu0
    %5502 = vmatprep.mubr.f32.mxu0 0.0
    %5503 = vmatmul.mubr.f32.gmra.mxu0 %v5387
    %v5504 = vpop.f32.mrf.mxu0
    %v5505 = vadd.f32 0.0, %v5504
    %v5506 = vpop.f32.mrf.mxu0
    %5507 = vmatprep.mubr.f32.mxu0 0.0
    %5508 = vmatmul.mubr.f32.gmra.mxu0 %v5390
    %v5509 = vpop.f32.mrf.mxu0
    %v5510 = vadd.f32 0.0, %v5509
    %v5511 = vpop.f32.mrf.mxu0
    %5512 = vmatprep.mubr.f32.mxu0 0.0
    %5513 = vmatmul.mubr.f32.gmra.mxu0 %v5393
    %v5514 = vpop.f32.mrf.mxu0
    %v5515 = vadd.f32 0.0, %v5514
    %v5516 = vpop.f32.mrf.mxu0
    %5517 = vmatprep.mubr.f32.mxu0 0.0
    %5518 = vmatmul.mubr.f32.gmra.mxu0 %v5396
    %v5519 = vpop.f32.mrf.mxu0
    %v5520 = vadd.f32 0.0, %v5519
    %v5521 = vpop.f32.mrf.mxu0
    %5522 = vmatprep.mubr.f32.mxu0 0.0
    %5523 = vmatmul.mubr.f32.gmra.mxu0 %v5399
    %v5524 = vpop.f32.mrf.mxu0
    %v5525 = vadd.f32 0.0, %v5524
    %v5526 = vpop.f32.mrf.mxu0
    %5527 = vmatprep.mubr.f32.mxu0 0.0
    %5528 = vmatmul.mubr.f32.gmra.mxu0 %v5402
    %v5529 = vpop.f32.mrf.mxu0
    %v5530 = vadd.f32 0.0, %v5529
    %v5531 = vpop.f32.mrf.mxu0
    %5532 = vmatprep.mubr.f32.mxu0 0.0
    %5533 = vmatmul.mubr.f32.gmra.mxu0 %v5405
    %v5534 = vpop.f32.mrf.mxu0
    %v5535 = vadd.f32 0.0, %v5534
    %v5536 = vpop.f32.mrf.mxu0
    %5537 = vmatprep.mubr.f32.mxu0 0.0
    %5538 = vmatmul.mubr.f32.gmra.mxu0 %v5408
    %v5539 = vpop.f32.mrf.mxu0
    %v5540 = vadd.f32 0.0, %v5539
    %v5541 = vpop.f32.mrf.mxu0
    %5542 = vmatprep.mubr.f32.mxu0 0.0
    %5543 = vmatmul.mubr.f32.gmra.mxu0 %v5411
    %v5544 = vpop.f32.mrf.mxu0
    %v5545 = vadd.f32 0.0, %v5544
    %v5546 = vpop.f32.mrf.mxu0
    %5547 = vmatprep.mubr.f32.mxu0 0.0
    %5548 = vmatmul.mubr.f32.gmra.mxu0 %v5414
    %v5549 = vpop.f32.mrf.mxu0
    %v5550 = vadd.f32 0.0, %v5549
    %v5551 = vpop.f32.mrf.mxu0
    %5552 = vmatprep.mubr.f32.mxu0 0.0
    %5553 = vmatmul.mubr.f32.gmra.mxu0 %v5417
    %v5554 = vpop.f32.mrf.mxu0
    %v5555 = vadd.f32 0.0, %v5554
    %v5556 = vpop.f32.mrf.mxu0
    %5557 = vmatprep.mubr.f32.mxu0 0.0
    %5558 = vmatmul.mubr.f32.gmra.mxu0 %v5420
    %v5559 = vpop.f32.mrf.mxu0
    %v5560 = vadd.f32 0.0, %v5559
    %v5561 = vpop.f32.mrf.mxu0
    %5562 = vmatprep.mubr.f32.mxu0 0.0
    %5563 = vmatmul.mubr.f32.gmra.mxu0 %v5423
    %v5564 = vpop.f32.mrf.mxu0
    %v5565 = vadd.f32 0.0, %v5564
    %v5566 = vpop.f32.mrf.mxu0
    %5567 = vmatprep.mubr.f32.mxu0 0.0
    %5568 = vmatmul.mubr.f32.gmra.mxu0 %v5426
    %v5569 = vpop.f32.mrf.mxu0
    %v5570 = vadd.f32 0.0, %v5569
    %v5571 = vpop.f32.mrf.mxu0
    %5572 = vdwg.mxu0
    %v5573 = vadd.f32 %v3800, %v5495
    %v5574 = vadd.f32 %v3801, %v5500
    %v5575 = vadd.f32 %v3802, %v5505
    %v5576 = vadd.f32 %v3803, %v5510
    %v5577 = vadd.f32 %v3804, %v5515
    %v5578 = vadd.f32 %v3805, %v5520
    %v5579 = vadd.f32 %v3806, %v5525
    %v5580 = vadd.f32 %v3807, %v5530
    %v5581 = vadd.f32 %v3808, %v5535
    %v5582 = vadd.f32 %v3809, %v5540
    %v5583 = vadd.f32 %v3810, %v5545
    %v5584 = vadd.f32 %v3811, %v5550
    %v5585 = vadd.f32 %v3812, %v5555
    %v5586 = vadd.f32 %v3813, %v5560
    %v5587 = vadd.f32 %v3814, %v5565
    %v5588 = vadd.f32 %v3815, %v5570
    %v5590 = vsel %vm3195, %v5157, 0
    %v5593 = vsel %vm3195, %v5162, 0
    %v5596 = vsel %vm3195, %v5167, 0
    %v5599 = vsel %vm3195, %v5172, 0
    %v5602 = vsel %vm3195, %v5177, 0
    %v5605 = vsel %vm3195, %v5182, 0
    %v5608 = vsel %vm3195, %v5187, 0
    %v5611 = vsel %vm3195, %v5192, 0
    %v5614 = vsel %vm3195, %v5197, 0
    %v5617 = vsel %vm3195, %v5202, 0
    %v5620 = vsel %vm3195, %v5207, 0
    %v5623 = vsel %vm3195, %v5212, 0
    %v5626 = vsel %vm3195, %v5217, 0
    %v5629 = vsel %vm3195, %v5222, 0
    %v5632 = vsel %vm3195, %v5227, 0
    %v5635 = vsel %vm3195, %v5232, 0
    %5637 = vmatprep.subr.mxu0 0.0
    %5638 = vmatpush1.msra.mxu0 0.0
    %5639 = vmatprep.subr.mxu0 0.0
    %5640 = vmatpush1.msra.mxu0 0.0
    %5641 = vmatprep.subr.mxu0 0.0
    %5642 = vmatpush1.msra.mxu0 0.0
    %5643 = vmatprep.subr.mxu0 0.0
    %5644 = vmatpush1.msra.mxu0 0.0
    %5645 = vmatprep.subr.mxu0 0.0
    %5646 = vmatpush1.msra.mxu0 0.0
    %5647 = vmatprep.subr.mxu0 0.0
    %5648 = vmatpush1.msra.mxu0 0.0
    %5649 = vmatprep.subr.mxu0 0.0
    %5650 = vmatpush1.msra.mxu0 0.0
    %5651 = vmatprep.subr.mxu0 0.0
    %5652 = vmatpush1.msra.mxu0 0.0
    %5653 = vmatprep.subr.mxu0 0.0
    %5654 = vmatpush1.msra.mxu0 0.0
    %5655 = vmatprep.subr.mxu0 0.0
    %5656 = vmatpush1.msra.mxu0 0.0
    %5657 = vmatprep.subr.mxu0 0.0
    %5658 = vmatpush1.msra.mxu0 0.0
    %5659 = vmatprep.subr.mxu0 0.0
    %5660 = vmatpush1.msra.mxu0 0.0
    %5661 = vmatprep.subr.mxu0 0.0
    %5662 = vmatpush1.msra.mxu0 %v4122
    %5663 = vmatprep.subr.mxu0 0.0
    %5664 = vmatpush1.msra.mxu0 %v4121
    %5665 = vmatprep.subr.mxu0 0.0
    %5666 = vmatpush1.msra.mxu0 %v4120
    %5667 = vmatprep.subr.mxu0 0.0
    %5668 = vmatpush1.msra.mxu0 %v4119
    %5669 = vmatprep.subr.mxu0 0.0
    %5670 = vmatpush2.msra.mxu0 0.0
    %5671 = vmatprep.subr.mxu0 0.0
    %5672 = vmatpush2.msra.mxu0 0.0
    %5673 = vmatprep.subr.mxu0 0.0
    %5674 = vmatpush2.msra.mxu0 0.0
    %5675 = vmatprep.subr.mxu0 0.0
    %5676 = vmatpush2.msra.mxu0 0.0
    %5677 = vmatprep.subr.mxu0 0.0
    %5678 = vmatpush2.msra.mxu0 0.0
    %5679 = vmatprep.subr.mxu0 0.0
    %5680 = vmatpush2.msra.mxu0 0.0
    %5681 = vmatprep.subr.mxu0 0.0
    %5682 = vmatpush2.msra.mxu0 0.0
    %5683 = vmatprep.subr.mxu0 0.0
    %5684 = vmatpush2.msra.mxu0 0.0
    %5685 = vmatprep.subr.mxu0 0.0
    %5686 = vmatpush2.msra.mxu0 0.0
    %5687 = vmatprep.subr.mxu0 0.0
    %5688 = vmatpush2.msra.mxu0 0.0
    %5689 = vmatprep.subr.mxu0 0.0
    %5690 = vmatpush2.msra.mxu0 0.0
    %5691 = vmatprep.subr.mxu0 0.0
    %5692 = vmatpush2.msra.mxu0 0.0
    %5693 = vmatprep.subr.mxu0 0.0
    %5694 = vmatpush2.msra.mxu0 0.0
    %5695 = vmatprep.subr.mxu0 0.0
    %5696 = vmatpush2.msra.mxu0 0.0
    %5697 = vmatprep.subr.mxu0 0.0
    %5698 = vmatpush2.msra.mxu0 0.0
    %5699 = vmatprep.subr.mxu0 0.0
    %5700 = vmatpush2.msra.mxu0 0.0
    %5701 = vmatprep.mubr.f32.mxu0 0.0
    %5702 = vmatmul.mubr.f32.gmra.mxu0 %v5590
    %v5703 = vpop.f32.mrf.mxu0
    %v5704 = vadd.f32 0.0, %v5703
    %v5705 = vpop.f32.mrf.mxu0
    %5706 = vmatprep.mubr.f32.mxu0 0.0
    %5707 = vmatmul.mubr.f32.gmra.mxu0 %v5593
    %v5708 = vpop.f32.mrf.mxu0
    %v5709 = vadd.f32 0.0, %v5708
    %v5710 = vpop.f32.mrf.mxu0
    %5711 = vmatprep.mubr.f32.mxu0 0.0
    %5712 = vmatmul.mubr.f32.gmra.mxu0 %v5596
    %v5713 = vpop.f32.mrf.mxu0
    %v5714 = vadd.f32 0.0, %v5713
    %v5715 = vpop.f32.mrf.mxu0
    %5716 = vmatprep.mubr.f32.mxu0 0.0
    %5717 = vmatmul.mubr.f32.gmra.mxu0 %v5599
    %v5718 = vpop.f32.mrf.mxu0
    %v5719 = vadd.f32 0.0, %v5718
    %v5720 = vpop.f32.mrf.mxu0
    %5721 = vmatprep.mubr.f32.mxu0 0.0
    %5722 = vmatmul.mubr.f32.gmra.mxu0 %v5602
    %v5723 = vpop.f32.mrf.mxu0
    %v5724 = vadd.f32 0.0, %v5723
    %v5725 = vpop.f32.mrf.mxu0
    %5726 = vmatprep.mubr.f32.mxu0 0.0
    %5727 = vmatmul.mubr.f32.gmra.mxu0 %v5605
    %v5728 = vpop.f32.mrf.mxu0
    %v5729 = vadd.f32 0.0, %v5728
    %v5730 = vpop.f32.mrf.mxu0
    %5731 = vmatprep.mubr.f32.mxu0 0.0
    %5732 = vmatmul.mubr.f32.gmra.mxu0 %v5608
    %v5733 = vpop.f32.mrf.mxu0
    %v5734 = vadd.f32 0.0, %v5733
    %v5735 = vpop.f32.mrf.mxu0
    %5736 = vmatprep.mubr.f32.mxu0 0.0
    %5737 = vmatmul.mubr.f32.gmra.mxu0 %v5611
    %v5738 = vpop.f32.mrf.mxu0
    %v5739 = vadd.f32 0.0, %v5738
    %v5740 = vpop.f32.mrf.mxu0
    %5741 = vmatprep.mubr.f32.mxu0 0.0
    %5742 = vmatmul.mubr.f32.gmra.mxu0 %v5614
    %v5743 = vpop.f32.mrf.mxu0
    %v5744 = vadd.f32 0.0, %v5743
    %v5745 = vpop.f32.mrf.mxu0
    %5746 = vmatprep.mubr.f32.mxu0 0.0
    %5747 = vmatmul.mubr.f32.gmra.mxu0 %v5617
    %v5748 = vpop.f32.mrf.mxu0
    %v5749 = vadd.f32 0.0, %v5748
    %v5750 = vpop.f32.mrf.mxu0
    %5751 = vmatprep.mubr.f32.mxu0 0.0
    %5752 = vmatmul.mubr.f32.gmra.mxu0 %v5620
    %v5753 = vpop.f32.mrf.mxu0
    %v5754 = vadd.f32 0.0, %v5753
    %v5755 = vpop.f32.mrf.mxu0
    %5756 = vmatprep.mubr.f32.mxu0 0.0
    %5757 = vmatmul.mubr.f32.gmra.mxu0 %v5623
    %v5758 = vpop.f32.mrf.mxu0
    %v5759 = vadd.f32 0.0, %v5758
    %v5760 = vpop.f32.mrf.mxu0
    %5761 = vmatprep.mubr.f32.mxu0 0.0
    %5762 = vmatmul.mubr.f32.gmra.mxu0 %v5626
    %v5763 = vpop.f32.mrf.mxu0
    %v5764 = vadd.f32 0.0, %v5763
    %v5765 = vpop.f32.mrf.mxu0
    %5766 = vmatprep.mubr.f32.mxu0 0.0
    %5767 = vmatmul.mubr.f32.gmra.mxu0 %v5629
    %v5768 = vpop.f32.mrf.mxu0
    %v5769 = vadd.f32 0.0, %v5768
    %v5770 = vpop.f32.mrf.mxu0
    %5771 = vmatprep.mubr.f32.mxu0 0.0
    %5772 = vmatmul.mubr.f32.gmra.mxu0 %v5632
    %v5773 = vpop.f32.mrf.mxu0
    %v5774 = vadd.f32 0.0, %v5773
    %v5775 = vpop.f32.mrf.mxu0
    %5776 = vmatprep.mubr.f32.mxu0 0.0
    %5777 = vmatmul.mubr.f32.gmra.mxu0 %v5635
    %v5778 = vpop.f32.mrf.mxu0
    %v5779 = vadd.f32 0.0, %v5778
    %v5780 = vpop.f32.mrf.mxu0
    %5781 = vdwg.mxu0
    %v5782 = vadd.f32 %v5573, %v5704
    %v5783 = vadd.f32 %v5574, %v5709
    %v5784 = vadd.f32 %v5575, %v5714
    %v5785 = vadd.f32 %v5576, %v5719
    %v5786 = vadd.f32 %v5577, %v5724
    %v5787 = vadd.f32 %v5578, %v5729
    %v5788 = vadd.f32 %v5579, %v5734
    %v5789 = vadd.f32 %v5580, %v5739
    %v5790 = vadd.f32 %v5581, %v5744
    %v5791 = vadd.f32 %v5582, %v5749
    %v5792 = vadd.f32 %v5583, %v5754
    %v5793 = vadd.f32 %v5584, %v5759
    %v5794 = vadd.f32 %v5585, %v5764
    %v5795 = vadd.f32 %v5586, %v5769
    %v5796 = vadd.f32 %v5587, %v5774
    %v5797 = vadd.f32 %v5588, %v5779
    %v5799 = vsel %vm3195, %v4671, 0
    %v5802 = vsel %vm3195, %v4672, 0
    %v5805 = vsel %vm3195, %v4673, 0
    %v5808 = vsel %vm3195, %v4674, 0
    %v5811 = vsel %vm3195, %v4675, 0
    %v5814 = vsel %vm3195, %v4676, 0
    %v5817 = vsel %vm3195, %v4677, 0
    %v5820 = vsel %vm3195, %v4678, 0
    %v5823 = vsel %vm3195, %v4679, 0
    %v5826 = vsel %vm3195, %v4680, 0
    %v5829 = vsel %vm3195, %v4681, 0
    %v5832 = vsel %vm3195, %v4682, 0
    %v5835 = vsel %vm3195, %v4683, 0
    %v5838 = vsel %vm3195, %v4684, 0
    %v5841 = vsel %vm3195, %v4685, 0
    %v5844 = vsel %vm3195, %v4686, 0
    %5846 = vmatprep.subr.mxu0 0.0
    %5847 = vmatpush1.msra.mxu0 0.0
    %5848 = vmatprep.subr.mxu0 0.0
    %5849 = vmatpush1.msra.mxu0 0.0
    %5850 = vmatprep.subr.mxu0 0.0
    %5851 = vmatpush1.msra.mxu0 0.0
    %5852 = vmatprep.subr.mxu0 0.0
    %5853 = vmatpush1.msra.mxu0 0.0
    %5854 = vmatprep.subr.mxu0 0.0
    %5855 = vmatpush1.msra.mxu0 0.0
    %5856 = vmatprep.subr.mxu0 0.0
    %5857 = vmatpush1.msra.mxu0 0.0
    %5858 = vmatprep.subr.mxu0 0.0
    %5859 = vmatpush1.msra.mxu0 0.0
    %5860 = vmatprep.subr.mxu0 0.0
    %5861 = vmatpush1.msra.mxu0 0.0
    %5862 = vmatprep.subr.mxu0 0.0
    %5863 = vmatpush1.msra.mxu0 0.0
    %5864 = vmatprep.subr.mxu0 0.0
    %5865 = vmatpush1.msra.mxu0 0.0
    %5866 = vmatprep.subr.mxu0 0.0
    %5867 = vmatpush1.msra.mxu0 0.0
    %5868 = vmatprep.subr.mxu0 0.0
    %5869 = vmatpush1.msra.mxu0 0.0
    %5870 = vmatprep.subr.mxu0 0.0
    %5871 = vmatpush1.msra.mxu0 %v4287
    %5872 = vmatprep.subr.mxu0 0.0
    %5873 = vmatpush1.msra.mxu0 %v4286
    %5874 = vmatprep.subr.mxu0 0.0
    %5875 = vmatpush1.msra.mxu0 %v4285
    %5876 = vmatprep.subr.mxu0 0.0
    %5877 = vmatpush1.msra.mxu0 %v4284
    %5878 = vmatprep.subr.mxu0 0.0
    %5879 = vmatpush2.msra.mxu0 0.0
    %5880 = vmatprep.subr.mxu0 0.0
    %5881 = vmatpush2.msra.mxu0 0.0
    %5882 = vmatprep.subr.mxu0 0.0
    %5883 = vmatpush2.msra.mxu0 0.0
    %5884 = vmatprep.subr.mxu0 0.0
    %5885 = vmatpush2.msra.mxu0 0.0
    %5886 = vmatprep.subr.mxu0 0.0
    %5887 = vmatpush2.msra.mxu0 0.0
    %5888 = vmatprep.subr.mxu0 0.0
    %5889 = vmatpush2.msra.mxu0 0.0
    %5890 = vmatprep.subr.mxu0 0.0
    %5891 = vmatpush2.msra.mxu0 0.0
    %5892 = vmatprep.subr.mxu0 0.0
    %5893 = vmatpush2.msra.mxu0 0.0
    %5894 = vmatprep.subr.mxu0 0.0
    %5895 = vmatpush2.msra.mxu0 0.0
    %5896 = vmatprep.subr.mxu0 0.0
    %5897 = vmatpush2.msra.mxu0 0.0
    %5898 = vmatprep.subr.mxu0 0.0
    %5899 = vmatpush2.msra.mxu0 0.0
    %5900 = vmatprep.subr.mxu0 0.0
    %5901 = vmatpush2.msra.mxu0 0.0
    %5902 = vmatprep.subr.mxu0 0.0
    %5903 = vmatpush2.msra.mxu0 0.0
    %5904 = vmatprep.subr.mxu0 0.0
    %5905 = vmatpush2.msra.mxu0 0.0
    %5906 = vmatprep.subr.mxu0 0.0
    %5907 = vmatpush2.msra.mxu0 0.0
    %5908 = vmatprep.subr.mxu0 0.0
    %5909 = vmatpush2.msra.mxu0 0.0
    %5910 = vmatprep.mubr.f32.mxu0 0.0
    %5911 = vmatmul.mubr.f32.gmra.mxu0 %v5799
    %v5912 = vpop.f32.mrf.mxu0
    %v5913 = vadd.f32 0.0, %v5912
    %v5914 = vpop.f32.mrf.mxu0
    %5915 = vmatprep.mubr.f32.mxu0 0.0
    %5916 = vmatmul.mubr.f32.gmra.mxu0 %v5802
    %v5917 = vpop.f32.mrf.mxu0
    %v5918 = vadd.f32 0.0, %v5917
    %v5919 = vpop.f32.mrf.mxu0
    %5920 = vmatprep.mubr.f32.mxu0 0.0
    %5921 = vmatmul.mubr.f32.gmra.mxu0 %v5805
    %v5922 = vpop.f32.mrf.mxu0
    %v5923 = vadd.f32 0.0, %v5922
    %v5924 = vpop.f32.mrf.mxu0
    %5925 = vmatprep.mubr.f32.mxu0 0.0
    %5926 = vmatmul.mubr.f32.gmra.mxu0 %v5808
    %v5927 = vpop.f32.mrf.mxu0
    %v5928 = vadd.f32 0.0, %v5927
    %v5929 = vpop.f32.mrf.mxu0
    %5930 = vmatprep.mubr.f32.mxu0 0.0
    %5931 = vmatmul.mubr.f32.gmra.mxu0 %v5811
    %v5932 = vpop.f32.mrf.mxu0
    %v5933 = vadd.f32 0.0, %v5932
    %v5934 = vpop.f32.mrf.mxu0
    %5935 = vmatprep.mubr.f32.mxu0 0.0
    %5936 = vmatmul.mubr.f32.gmra.mxu0 %v5814
    %v5937 = vpop.f32.mrf.mxu0
    %v5938 = vadd.f32 0.0, %v5937
    %v5939 = vpop.f32.mrf.mxu0
    %5940 = vmatprep.mubr.f32.mxu0 0.0
    %5941 = vmatmul.mubr.f32.gmra.mxu0 %v5817
    %v5942 = vpop.f32.mrf.mxu0
    %v5943 = vadd.f32 0.0, %v5942
    %v5944 = vpop.f32.mrf.mxu0
    %5945 = vmatprep.mubr.f32.mxu0 0.0
    %5946 = vmatmul.mubr.f32.gmra.mxu0 %v5820
    %v5947 = vpop.f32.mrf.mxu0
    %v5948 = vadd.f32 0.0, %v5947
    %v5949 = vpop.f32.mrf.mxu0
    %5950 = vmatprep.mubr.f32.mxu0 0.0
    %5951 = vmatmul.mubr.f32.gmra.mxu0 %v5823
    %v5952 = vpop.f32.mrf.mxu0
    %v5953 = vadd.f32 0.0, %v5952
    %v5954 = vpop.f32.mrf.mxu0
    %5955 = vmatprep.mubr.f32.mxu0 0.0
    %5956 = vmatmul.mubr.f32.gmra.mxu0 %v5826
    %v5957 = vpop.f32.mrf.mxu0
    %v5958 = vadd.f32 0.0, %v5957
    %v5959 = vpop.f32.mrf.mxu0
    %5960 = vmatprep.mubr.f32.mxu0 0.0
    %5961 = vmatmul.mubr.f32.gmra.mxu0 %v5829
    %v5962 = vpop.f32.mrf.mxu0
    %v5963 = vadd.f32 0.0, %v5962
    %v5964 = vpop.f32.mrf.mxu0
    %5965 = vmatprep.mubr.f32.mxu0 0.0
    %5966 = vmatmul.mubr.f32.gmra.mxu0 %v5832
    %v5967 = vpop.f32.mrf.mxu0
    %v5968 = vadd.f32 0.0, %v5967
    %v5969 = vpop.f32.mrf.mxu0
    %5970 = vmatprep.mubr.f32.mxu0 0.0
    %5971 = vmatmul.mubr.f32.gmra.mxu0 %v5835
    %v5972 = vpop.f32.mrf.mxu0
    %v5973 = vadd.f32 0.0, %v5972
    %v5974 = vpop.f32.mrf.mxu0
    %5975 = vmatprep.mubr.f32.mxu0 0.0
    %5976 = vmatmul.mubr.f32.gmra.mxu0 %v5838
    %v5977 = vpop.f32.mrf.mxu0
    %v5978 = vadd.f32 0.0, %v5977
    %v5979 = vpop.f32.mrf.mxu0
    %5980 = vmatprep.mubr.f32.mxu0 0.0
    %5981 = vmatmul.mubr.f32.gmra.mxu0 %v5841
    %v5982 = vpop.f32.mrf.mxu0
    %v5983 = vadd.f32 0.0, %v5982
    %v5984 = vpop.f32.mrf.mxu0
    %5985 = vmatprep.mubr.f32.mxu0 0.0
    %5986 = vmatmul.mubr.f32.gmra.mxu0 %v5844
    %v5987 = vpop.f32.mrf.mxu0
    %v5988 = vadd.f32 0.0, %v5987
    %v5989 = vpop.f32.mrf.mxu0
    %5990 = vdwg.mxu0
    %v5991 = vadd.f32 %v5782, %v5913
    %v5992 = vadd.f32 %v5783, %v5918
    %v5993 = vadd.f32 %v5784, %v5923
    %v5994 = vadd.f32 %v5785, %v5928
    %v5995 = vadd.f32 %v5786, %v5933
    %v5996 = vadd.f32 %v5787, %v5938
    %v5997 = vadd.f32 %v5788, %v5943
    %v5998 = vadd.f32 %v5789, %v5948
    %v5999 = vadd.f32 %v5790, %v5953
    %v6000 = vadd.f32 %v5791, %v5958
    %v6001 = vadd.f32 %v5792, %v5963
    %v6002 = vadd.f32 %v5793, %v5968
    %v6003 = vadd.f32 %v5794, %v5973
    %v6004 = vadd.f32 %v5795, %v5978
    %v6005 = vadd.f32 %v5796, %v5983
    %v6006 = vadd.f32 %v5797, %v5988
    %v6007 = vmax.f32 %v5991, 0.0
    %v6008 = vmax.f32 %v5992, 0.0
    %v6009 = vmax.f32 %v5993, 0.0
    %v6010 = vmax.f32 %v5994, 0.0
    %v6011 = vmax.f32 %v5995, 0.0
    %v6012 = vmax.f32 %v5996, 0.0
    %v6013 = vmax.f32 %v5997, 0.0
    %v6014 = vmax.f32 %v5998, 0.0
    %v6015 = vmax.f32 %v5999, 0.0
    %v6016 = vmax.f32 %v6000, 0.0
    %v6017 = vmax.f32 %v6001, 0.0
    %v6018 = vmax.f32 %v6002, 0.0
    %v6019 = vmax.f32 %v6003, 0.0
    %v6020 = vmax.f32 %v6004, 0.0
    %v6021 = vmax.f32 %v6005, 0.0
    %v6022 = vmax.f32 %v6006, 0.0
    %v6024 = vsel %vm1830, %v6007, 0
    %v6027 = vsel %vm1830, %v6008, 0
    %v6030 = vsel %vm1830, %v6009, 0
    %v6033 = vsel %vm1830, %v6010, 0
    %v6036 = vsel %vm1830, %v6011, 0
    %v6039 = vsel %vm1830, %v6012, 0
    %v6042 = vsel %vm1830, %v6013, 0
    %v6045 = vsel %vm1830, %v6014, 0
    %v6048 = vsel %vm1830, %v6015, 0
    %v6051 = vsel %vm1830, %v6016, 0
    %v6054 = vsel %vm1830, %v6017, 0
    %v6057 = vsel %vm1830, %v6018, 0
    %v6060 = vsel %vm1830, %v6019, 0
    %v6063 = vsel %vm1830, %v6020, 0
    %v6066 = vsel %vm1830, %v6021, 0
    %v6069 = vsel %vm1830, %v6022, 0
    %6071 = vmatprep.subr.mxu0 0.0
    %6072 = vmatpush1.msra.mxu0 0.0
    %6073 = vmatprep.subr.mxu0 0.0
    %6074 = vmatpush1.msra.mxu0 0.0
    %6075 = vmatprep.subr.mxu0 0.0
    %6076 = vmatpush1.msra.mxu0 0.0
    %6077 = vmatprep.subr.mxu0 0.0
    %6078 = vmatpush1.msra.mxu0 0.0
    %6079 = vmatprep.subr.mxu0 0.0
    %6080 = vmatpush1.msra.mxu0 0.0
    %6081 = vmatprep.subr.mxu0 0.0
    %6082 = vmatpush1.msra.mxu0 0.0
    %6083 = vmatprep.subr.mxu0 0.0
    %6084 = vmatpush1.msra.mxu0 0.0
    %6085 = vmatprep.subr.mxu0 0.0
    %6086 = vmatpush1.msra.mxu0 0.0
    %6087 = vmatprep.subr.mxu0 0.0
    %6088 = vmatpush1.msra.mxu0 %v4472
    %6089 = vmatprep.subr.mxu0 0.0
    %6090 = vmatpush1.msra.mxu0 %v4471
    %6091 = vmatprep.subr.mxu0 0.0
    %6092 = vmatpush1.msra.mxu0 %v4470
    %6093 = vmatprep.subr.mxu0 0.0
    %6094 = vmatpush1.msra.mxu0 %v4469
    %6095 = vmatprep.subr.mxu0 0.0
    %6096 = vmatpush1.msra.mxu0 %v4468
    %6097 = vmatprep.subr.mxu0 0.0
    %6098 = vmatpush1.msra.mxu0 %v4467
    %6099 = vmatprep.subr.mxu0 0.0
    %6100 = vmatpush1.msra.mxu0 %v4466
    %6101 = vmatprep.subr.mxu0 0.0
    %6102 = vmatpush1.msra.mxu0 %v4465
    %6103 = vmatprep.subr.mxu0 0.0
    %6104 = vmatpush2.msra.mxu0 0.0
    %6105 = vmatprep.subr.mxu0 0.0
    %6106 = vmatpush2.msra.mxu0 0.0
    %6107 = vmatprep.subr.mxu0 0.0
    %6108 = vmatpush2.msra.mxu0 0.0
    %6109 = vmatprep.subr.mxu0 0.0
    %6110 = vmatpush2.msra.mxu0 0.0
    %6111 = vmatprep.subr.mxu0 0.0
    %6112 = vmatpush2.msra.mxu0 0.0
    %6113 = vmatprep.subr.mxu0 0.0
    %6114 = vmatpush2.msra.mxu0 0.0
    %6115 = vmatprep.subr.mxu0 0.0
    %6116 = vmatpush2.msra.mxu0 0.0
    %6117 = vmatprep.subr.mxu0 0.0
    %6118 = vmatpush2.msra.mxu0 0.0
    %6119 = vmatprep.subr.mxu0 0.0
    %6120 = vmatpush2.msra.mxu0 0.0
    %6121 = vmatprep.subr.mxu0 0.0
    %6122 = vmatpush2.msra.mxu0 0.0
    %6123 = vmatprep.subr.mxu0 0.0
    %6124 = vmatpush2.msra.mxu0 0.0
    %6125 = vmatprep.subr.mxu0 0.0
    %6126 = vmatpush2.msra.mxu0 0.0
    %6127 = vmatprep.subr.mxu0 0.0
    %6128 = vmatpush2.msra.mxu0 0.0
    %6129 = vmatprep.subr.mxu0 0.0
    %6130 = vmatpush2.msra.mxu0 0.0
    %6131 = vmatprep.subr.mxu0 0.0
    %6132 = vmatpush2.msra.mxu0 0.0
    %6133 = vmatprep.subr.mxu0 0.0
    %6134 = vmatpush2.msra.mxu0 0.0
    %6135 = vmatprep.mubr.f32.mxu0 0.0
    %6136 = vmatmul.mubr.f32.gmra.mxu0 %v6024
    %v6137 = vpop.f32.mrf.mxu0
    %v6138 = vadd.f32 %v4477, %v6137
    %v6139 = vpop.f32.mrf.mxu0
    %6140 = vmatprep.mubr.f32.mxu0 0.0
    %6141 = vmatmul.mubr.f32.gmra.mxu0 %v6027
    %v6142 = vpop.f32.mrf.mxu0
    %v6143 = vadd.f32 %v4477, %v6142
    %v6144 = vpop.f32.mrf.mxu0
    %6145 = vmatprep.mubr.f32.mxu0 0.0
    %6146 = vmatmul.mubr.f32.gmra.mxu0 %v6030
    %v6147 = vpop.f32.mrf.mxu0
    %v6148 = vadd.f32 %v4477, %v6147
    %v6149 = vpop.f32.mrf.mxu0
    %6150 = vmatprep.mubr.f32.mxu0 0.0
    %6151 = vmatmul.mubr.f32.gmra.mxu0 %v6033
    %v6152 = vpop.f32.mrf.mxu0
    %v6153 = vadd.f32 %v4477, %v6152
    %v6154 = vpop.f32.mrf.mxu0
    %6155 = vmatprep.mubr.f32.mxu0 0.0
    %6156 = vmatmul.mubr.f32.gmra.mxu0 %v6036
    %v6157 = vpop.f32.mrf.mxu0
    %v6158 = vadd.f32 %v4477, %v6157
    %v6159 = vpop.f32.mrf.mxu0
    %6160 = vmatprep.mubr.f32.mxu0 0.0
    %6161 = vmatmul.mubr.f32.gmra.mxu0 %v6039
    %v6162 = vpop.f32.mrf.mxu0
    %v6163 = vadd.f32 %v4477, %v6162
    %v6164 = vpop.f32.mrf.mxu0
    %6165 = vmatprep.mubr.f32.mxu0 0.0
    %6166 = vmatmul.mubr.f32.gmra.mxu0 %v6042
    %v6167 = vpop.f32.mrf.mxu0
    %v6168 = vadd.f32 %v4477, %v6167
    %v6169 = vpop.f32.mrf.mxu0
    %6170 = vmatprep.mubr.f32.mxu0 0.0
    %6171 = vmatmul.mubr.f32.gmra.mxu0 %v6045
    %v6172 = vpop.f32.mrf.mxu0
    %v6173 = vadd.f32 %v4477, %v6172
    %v6174 = vpop.f32.mrf.mxu0
    %6175 = vmatprep.mubr.f32.mxu0 0.0
    %6176 = vmatmul.mubr.f32.gmra.mxu0 %v6048
    %v6177 = vpop.f32.mrf.mxu0
    %v6178 = vadd.f32 %v4477, %v6177
    %v6179 = vpop.f32.mrf.mxu0
    %6180 = vmatprep.mubr.f32.mxu0 0.0
    %6181 = vmatmul.mubr.f32.gmra.mxu0 %v6051
    %v6182 = vpop.f32.mrf.mxu0
    %v6183 = vadd.f32 %v4477, %v6182
    %v6184 = vpop.f32.mrf.mxu0
    %6185 = vmatprep.mubr.f32.mxu0 0.0
    %6186 = vmatmul.mubr.f32.gmra.mxu0 %v6054
    %v6187 = vpop.f32.mrf.mxu0
    %v6188 = vadd.f32 %v4477, %v6187
    %v6189 = vpop.f32.mrf.mxu0
    %6190 = vmatprep.mubr.f32.mxu0 0.0
    %6191 = vmatmul.mubr.f32.gmra.mxu0 %v6057
    %v6192 = vpop.f32.mrf.mxu0
    %v6193 = vadd.f32 %v4477, %v6192
    %v6194 = vpop.f32.mrf.mxu0
    %6195 = vmatprep.mubr.f32.mxu0 0.0
    %6196 = vmatmul.mubr.f32.gmra.mxu0 %v6060
    %v6197 = vpop.f32.mrf.mxu0
    %v6198 = vadd.f32 %v4477, %v6197
    %v6199 = vpop.f32.mrf.mxu0
    %6200 = vmatprep.mubr.f32.mxu0 0.0
    %6201 = vmatmul.mubr.f32.gmra.mxu0 %v6063
    %v6202 = vpop.f32.mrf.mxu0
    %v6203 = vadd.f32 %v4477, %v6202
    %v6204 = vpop.f32.mrf.mxu0
    %6205 = vmatprep.mubr.f32.mxu0 0.0
    %6206 = vmatmul.mubr.f32.gmra.mxu0 %v6066
    %v6207 = vpop.f32.mrf.mxu0
    %v6208 = vadd.f32 %v4477, %v6207
    %v6209 = vpop.f32.mrf.mxu0
    %6210 = vmatprep.mubr.f32.mxu0 0.0
    %6211 = vmatmul.mubr.f32.gmra.mxu0 %v6069
    %v6212 = vpop.f32.mrf.mxu0
    %v6213 = vadd.f32 %v4477, %v6212
    %v6214 = vpop.f32.mrf.mxu0
    %6215 = vdwg.mxu0
    %v6216 = vmax.f32 %v6138, 0.0
    %v6217 = vmax.f32 %v6143, 0.0
    %v6218 = vmax.f32 %v6148, 0.0
    %v6219 = vmax.f32 %v6153, 0.0
    %v6220 = vmax.f32 %v6158, 0.0
    %v6221 = vmax.f32 %v6163, 0.0
    %v6222 = vmax.f32 %v6168, 0.0
    %v6223 = vmax.f32 %v6173, 0.0
    %v6224 = vmax.f32 %v6178, 0.0
    %v6225 = vmax.f32 %v6183, 0.0
    %v6226 = vmax.f32 %v6188, 0.0
    %v6227 = vmax.f32 %v6193, 0.0
    %v6228 = vmax.f32 %v6198, 0.0
    %v6229 = vmax.f32 %v6203, 0.0
    %v6230 = vmax.f32 %v6208, 0.0
    %v6231 = vmax.f32 %v6213, 0.0
    %6232 = vmatprep.subr.mxu0 0.0
    %6233 = vmatpush1.msra.mxu0 %v6231
    %6234 = vmatprep.subr.mxu0 0.0
    %6235 = vmatpush1.msra.mxu0 %v6230
    %6236 = vmatprep.subr.mxu0 0.0
    %6237 = vmatpush1.msra.mxu0 %v6229
    %6238 = vmatprep.subr.mxu0 0.0
    %6239 = vmatpush1.msra.mxu0 %v6228
    %6240 = vmatprep.subr.mxu0 0.0
    %6241 = vmatpush1.msra.mxu0 %v6227
    %6242 = vmatprep.subr.mxu0 0.0
    %6243 = vmatpush1.msra.mxu0 %v6226
    %6244 = vmatprep.subr.mxu0 0.0
    %6245 = vmatpush1.msra.mxu0 %v6225
    %6246 = vmatprep.subr.mxu0 0.0
    %6247 = vmatpush1.msra.mxu0 %v6224
    %6248 = vmatprep.subr.mxu0 0.0
    %6249 = vmatpush1.msra.mxu0 %v6223
    %6250 = vmatprep.subr.mxu0 0.0
    %6251 = vmatpush1.msra.mxu0 %v6222
    %6252 = vmatprep.subr.mxu0 0.0
    %6253 = vmatpush1.msra.mxu0 %v6221
    %6254 = vmatprep.subr.mxu0 0.0
    %6255 = vmatpush1.msra.mxu0 %v6220
    %6256 = vmatprep.subr.mxu0 0.0
    %6257 = vmatpush1.msra.mxu0 %v6219
    %6258 = vmatprep.subr.mxu0 0.0
    %6259 = vmatpush1.msra.mxu0 %v6218
    %6260 = vmatprep.subr.mxu0 0.0
    %6261 = vmatpush1.msra.mxu0 %v6217
    %6262 = vmatprep.subr.mxu0 0.0
    %6263 = vmatpush1.msra.mxu0 %v6216
    %6264 = vmatprep.subr.mxu0 0.0
    %6265 = vmatpush2.msra.mxu0 0.0
    %6266 = vmatprep.subr.mxu0 0.0
    %6267 = vmatpush2.msra.mxu0 0.0
    %6268 = vmatprep.subr.mxu0 0.0
    %6269 = vmatpush2.msra.mxu0 0.0
    %6270 = vmatprep.subr.mxu0 0.0
    %6271 = vmatpush2.msra.mxu0 0.0
    %6272 = vmatprep.subr.mxu0 0.0
    %6273 = vmatpush2.msra.mxu0 0.0
    %6274 = vmatprep.subr.mxu0 0.0
    %6275 = vmatpush2.msra.mxu0 0.0
    %6276 = vmatprep.subr.mxu0 0.0
    %6277 = vmatpush2.msra.mxu0 0.0
    %6278 = vmatprep.subr.mxu0 0.0
    %6279 = vmatpush2.msra.mxu0 0.0
    %6280 = vmatprep.subr.mxu0 0.0
    %6281 = vmatpush2.msra.mxu0 0.0
    %6282 = vmatprep.subr.mxu0 0.0
    %6283 = vmatpush2.msra.mxu0 0.0
    %6284 = vmatprep.subr.mxu0 0.0
    %6285 = vmatpush2.msra.mxu0 0.0
    %6286 = vmatprep.subr.mxu0 0.0
    %6287 = vmatpush2.msra.mxu0 0.0
    %6288 = vmatprep.subr.mxu0 0.0
    %6289 = vmatpush2.msra.mxu0 0.0
    %6290 = vmatprep.subr.mxu0 0.0
    %6291 = vmatpush2.msra.mxu0 0.0
    %6292 = vmatprep.subr.mxu0 0.0
    %6293 = vmatpush2.msra.mxu0 0.0
    %6294 = vmatprep.subr.mxu0 0.0
    %6295 = vmatpush2.msra.mxu0 0.0
    %6296 = vmatprep.mubr.f32.mxu0 0.0
    %6297 = vmatmul.mubr.f32.gmra.mxu0 %v4703
    %v6298 = vpop.f32.mrf.mxu0
    %v6299 = vadd.f32 0.0, %v6298
    %v6300 = vpop.f32.mrf.mxu0
    %6301 = vmatprep.mubr.f32.mxu0 0.0
    %6302 = vmatmul.mubr.f32.gmra.mxu0 %v4704
    %v6303 = vpop.f32.mrf.mxu0
    %v6304 = vadd.f32 0.0, %v6303
    %v6305 = vpop.f32.mrf.mxu0
    %6306 = vmatprep.mubr.f32.mxu0 0.0
    %6307 = vmatmul.mubr.f32.gmra.mxu0 %v4705
    %v6308 = vpop.f32.mrf.mxu0
    %v6309 = vadd.f32 0.0, %v6308
    %v6310 = vpop.f32.mrf.mxu0
    %6311 = vmatprep.mubr.f32.mxu0 0.0
    %6312 = vmatmul.mubr.f32.gmra.mxu0 %v4706
    %v6313 = vpop.f32.mrf.mxu0
    %v6314 = vadd.f32 0.0, %v6313
    %v6315 = vpop.f32.mrf.mxu0
    %6316 = vmatprep.mubr.f32.mxu0 0.0
    %6317 = vmatmul.mubr.f32.gmra.mxu0 %v4707
    %v6318 = vpop.f32.mrf.mxu0
    %v6319 = vadd.f32 0.0, %v6318
    %v6320 = vpop.f32.mrf.mxu0
    %6321 = vmatprep.mubr.f32.mxu0 0.0
    %6322 = vmatmul.mubr.f32.gmra.mxu0 %v4708
    %v6323 = vpop.f32.mrf.mxu0
    %v6324 = vadd.f32 0.0, %v6323
    %v6325 = vpop.f32.mrf.mxu0
    %6326 = vmatprep.mubr.f32.mxu0 0.0
    %6327 = vmatmul.mubr.f32.gmra.mxu0 %v4709
    %v6328 = vpop.f32.mrf.mxu0
    %v6329 = vadd.f32 0.0, %v6328
    %v6330 = vpop.f32.mrf.mxu0
    %6331 = vmatprep.mubr.f32.mxu0 0.0
    %6332 = vmatmul.mubr.f32.gmra.mxu0 %v4710
    %v6333 = vpop.f32.mrf.mxu0
    %v6334 = vadd.f32 0.0, %v6333
    %v6335 = vpop.f32.mrf.mxu0
    %6336 = vdwg.mxu0
    %v6338 = vsel %vm3195, %v5082, 0
    %v6341 = vsel %vm3195, %v5083, 0
    %v6344 = vsel %vm3195, %v5084, 0
    %v6347 = vsel %vm3195, %v5085, 0
    %v6350 = vsel %vm3195, %v5086, 0
    %v6353 = vsel %vm3195, %v5087, 0
    %v6356 = vsel %vm3195, %v5088, 0
    %v6359 = vsel %vm3195, %v5089, 0
    %6361 = vmatprep.subr.mxu0 0.0
    %6362 = vmatpush1.msra.mxu0 0.0
    %6363 = vmatprep.subr.mxu0 0.0
    %6364 = vmatpush1.msra.mxu0 0.0
    %6365 = vmatprep.subr.mxu0 0.0
    %6366 = vmatpush1.msra.mxu0 0.0
    %6367 = vmatprep.subr.mxu0 0.0
    %6368 = vmatpush1.msra.mxu0 0.0
    %6369 = vmatprep.subr.mxu0 0.0
    %6370 = vmatpush1.msra.mxu0 0.0
    %6371 = vmatprep.subr.mxu0 0.0
    %6372 = vmatpush1.msra.mxu0 0.0
    %6373 = vmatprep.subr.mxu0 0.0
    %6374 = vmatpush1.msra.mxu0 0.0
    %6375 = vmatprep.subr.mxu0 0.0
    %6376 = vmatpush1.msra.mxu0 0.0
    %6377 = vmatprep.subr.mxu0 0.0
    %6378 = vmatpush1.msra.mxu0 0.0
    %6379 = vmatprep.subr.mxu0 0.0
    %6380 = vmatpush1.msra.mxu0 0.0
    %6381 = vmatprep.subr.mxu0 0.0
    %6382 = vmatpush1.msra.mxu0 0.0
    %6383 = vmatprep.subr.mxu0 0.0
    %6384 = vmatpush1.msra.mxu0 0.0
    %6385 = vmatprep.subr.mxu0 0.0
    %6386 = vmatpush1.msra.mxu0 %v4827
    %6387 = vmatprep.subr.mxu0 0.0
    %6388 = vmatpush1.msra.mxu0 %v4826
    %6389 = vmatprep.subr.mxu0 0.0
    %6390 = vmatpush1.msra.mxu0 %v4825
    %6391 = vmatprep.subr.mxu0 0.0
    %6392 = vmatpush1.msra.mxu0 %v4824
    %6393 = vmatprep.subr.mxu0 0.0
    %6394 = vmatpush2.msra.mxu0 0.0
    %6395 = vmatprep.subr.mxu0 0.0
    %6396 = vmatpush2.msra.mxu0 0.0
    %6397 = vmatprep.subr.mxu0 0.0
    %6398 = vmatpush2.msra.mxu0 0.0
    %6399 = vmatprep.subr.mxu0 0.0
    %6400 = vmatpush2.msra.mxu0 0.0
    %6401 = vmatprep.subr.mxu0 0.0
    %6402 = vmatpush2.msra.mxu0 0.0
    %6403 = vmatprep.subr.mxu0 0.0
    %6404 = vmatpush2.msra.mxu0 0.0
    %6405 = vmatprep.subr.mxu0 0.0
    %6406 = vmatpush2.msra.mxu0 0.0
    %6407 = vmatprep.subr.mxu0 0.0
    %6408 = vmatpush2.msra.mxu0 0.0
    %6409 = vmatprep.subr.mxu0 0.0
    %6410 = vmatpush2.msra.mxu0 0.0
    %6411 = vmatprep.subr.mxu0 0.0
    %6412 = vmatpush2.msra.mxu0 0.0
    %6413 = vmatprep.subr.mxu0 0.0
    %6414 = vmatpush2.msra.mxu0 0.0
    %6415 = vmatprep.subr.mxu0 0.0
    %6416 = vmatpush2.msra.mxu0 0.0
    %6417 = vmatprep.subr.mxu0 0.0
    %6418 = vmatpush2.msra.mxu0 0.0
    %6419 = vmatprep.subr.mxu0 0.0
    %6420 = vmatpush2.msra.mxu0 0.0
    %6421 = vmatprep.subr.mxu0 0.0
    %6422 = vmatpush2.msra.mxu0 0.0
    %6423 = vmatprep.subr.mxu0 0.0
    %6424 = vmatpush2.msra.mxu0 0.0
    %6425 = vmatprep.mubr.f32.mxu0 0.0
    %6426 = vmatmul.mubr.f32.gmra.mxu0 %v6338
    %v6427 = vpop.f32.mrf.mxu0
    %v6428 = vadd.f32 0.0, %v6427
    %v6429 = vpop.f32.mrf.mxu0
    %6430 = vmatprep.mubr.f32.mxu0 0.0
    %6431 = vmatmul.mubr.f32.gmra.mxu0 %v6341
    %v6432 = vpop.f32.mrf.mxu0
    %v6433 = vadd.f32 0.0, %v6432
    %v6434 = vpop.f32.mrf.mxu0
    %6435 = vmatprep.mubr.f32.mxu0 0.0
    %6436 = vmatmul.mubr.f32.gmra.mxu0 %v6344
    %v6437 = vpop.f32.mrf.mxu0
    %v6438 = vadd.f32 0.0, %v6437
    %v6439 = vpop.f32.mrf.mxu0
    %6440 = vmatprep.mubr.f32.mxu0 0.0
    %6441 = vmatmul.mubr.f32.gmra.mxu0 %v6347
    %v6442 = vpop.f32.mrf.mxu0
    %v6443 = vadd.f32 0.0, %v6442
    %v6444 = vpop.f32.mrf.mxu0
    %6445 = vmatprep.mubr.f32.mxu0 0.0
    %6446 = vmatmul.mubr.f32.gmra.mxu0 %v6350
    %v6447 = vpop.f32.mrf.mxu0
    %v6448 = vadd.f32 0.0, %v6447
    %v6449 = vpop.f32.mrf.mxu0
    %6450 = vmatprep.mubr.f32.mxu0 0.0
    %6451 = vmatmul.mubr.f32.gmra.mxu0 %v6353
    %v6452 = vpop.f32.mrf.mxu0
    %v6453 = vadd.f32 0.0, %v6452
    %v6454 = vpop.f32.mrf.mxu0
    %6455 = vmatprep.mubr.f32.mxu0 0.0
    %6456 = vmatmul.mubr.f32.gmra.mxu0 %v6356
    %v6457 = vpop.f32.mrf.mxu0
    %v6458 = vadd.f32 0.0, %v6457
    %v6459 = vpop.f32.mrf.mxu0
    %6460 = vmatprep.mubr.f32.mxu0 0.0
    %6461 = vmatmul.mubr.f32.gmra.mxu0 %v6359
    %v6462 = vpop.f32.mrf.mxu0
    %v6463 = vadd.f32 0.0, %v6462
    %v6464 = vpop.f32.mrf.mxu0
    %6465 = vdwg.mxu0
    %v6466 = vadd.f32 %v3916, %v6428
    %v6467 = vadd.f32 %v3921, %v6433
    %v6468 = vadd.f32 %v3926, %v6438
    %v6469 = vadd.f32 %v3931, %v6443
    %v6470 = vadd.f32 %v3936, %v6448
    %v6471 = vadd.f32 %v3941, %v6453
    %v6472 = vadd.f32 %v3946, %v6458
    %v6473 = vadd.f32 %v3951, %v6463
    %v6475 = vsel %vm3195, %v6299, 0
    %v6478 = vsel %vm3195, %v6304, 0
    %v6481 = vsel %vm3195, %v6309, 0
    %v6484 = vsel %vm3195, %v6314, 0
    %v6487 = vsel %vm3195, %v6319, 0
    %v6490 = vsel %vm3195, %v6324, 0
    %v6493 = vsel %vm3195, %v6329, 0
    %v6496 = vsel %vm3195, %v6334, 0
    %6498 = vmatprep.subr.mxu0 0.0
    %6499 = vmatpush1.msra.mxu0 0.0
    %6500 = vmatprep.subr.mxu0 0.0
    %6501 = vmatpush1.msra.mxu0 0.0
    %6502 = vmatprep.subr.mxu0 0.0
    %6503 = vmatpush1.msra.mxu0 0.0
    %6504 = vmatprep.subr.mxu0 0.0
    %6505 = vmatpush1.msra.mxu0 0.0
    %6506 = vmatprep.subr.mxu0 0.0
    %6507 = vmatpush1.msra.mxu0 0.0
    %6508 = vmatprep.subr.mxu0 0.0
    %6509 = vmatpush1.msra.mxu0 0.0
    %6510 = vmatprep.subr.mxu0 0.0
    %6511 = vmatpush1.msra.mxu0 0.0
    %6512 = vmatprep.subr.mxu0 0.0
    %6513 = vmatpush1.msra.mxu0 0.0
    %6514 = vmatprep.subr.mxu0 0.0
    %6515 = vmatpush1.msra.mxu0 0.0
    %6516 = vmatprep.subr.mxu0 0.0
    %6517 = vmatpush1.msra.mxu0 0.0
    %6518 = vmatprep.subr.mxu0 0.0
    %6519 = vmatpush1.msra.mxu0 0.0
    %6520 = vmatprep.subr.mxu0 0.0
    %6521 = vmatpush1.msra.mxu0 0.0
    %6522 = vmatprep.subr.mxu0 0.0
    %6523 = vmatpush1.msra.mxu0 %v4944
    %6524 = vmatprep.subr.mxu0 0.0
    %6525 = vmatpush1.msra.mxu0 %v4943
    %6526 = vmatprep.subr.mxu0 0.0
    %6527 = vmatpush1.msra.mxu0 %v4942
    %6528 = vmatprep.subr.mxu0 0.0
    %6529 = vmatpush1.msra.mxu0 %v4941
    %6530 = vmatprep.subr.mxu0 0.0
    %6531 = vmatpush2.msra.mxu0 0.0
    %6532 = vmatprep.subr.mxu0 0.0
    %6533 = vmatpush2.msra.mxu0 0.0
    %6534 = vmatprep.subr.mxu0 0.0
    %6535 = vmatpush2.msra.mxu0 0.0
    %6536 = vmatprep.subr.mxu0 0.0
    %6537 = vmatpush2.msra.mxu0 0.0
    %6538 = vmatprep.subr.mxu0 0.0
    %6539 = vmatpush2.msra.mxu0 0.0
    %6540 = vmatprep.subr.mxu0 0.0
    %6541 = vmatpush2.msra.mxu0 0.0
    %6542 = vmatprep.subr.mxu0 0.0
    %6543 = vmatpush2.msra.mxu0 0.0
    %6544 = vmatprep.subr.mxu0 0.0
    %6545 = vmatpush2.msra.mxu0 0.0
    %6546 = vmatprep.subr.mxu0 0.0
    %6547 = vmatpush2.msra.mxu0 0.0
    %6548 = vmatprep.subr.mxu0 0.0
    %6549 = vmatpush2.msra.mxu0 0.0
    %6550 = vmatprep.subr.mxu0 0.0
    %6551 = vmatpush2.msra.mxu0 0.0
    %6552 = vmatprep.subr.mxu0 0.0
    %6553 = vmatpush2.msra.mxu0 0.0
    %6554 = vmatprep.subr.mxu0 0.0
    %6555 = vmatpush2.msra.mxu0 0.0
    %6556 = vmatprep.subr.mxu0 0.0
    %6557 = vmatpush2.msra.mxu0 0.0
    %6558 = vmatprep.subr.mxu0 0.0
    %6559 = vmatpush2.msra.mxu0 0.0
    %6560 = vmatprep.subr.mxu0 0.0
    %6561 = vmatpush2.msra.mxu0 0.0
    %6562 = vmatprep.mubr.f32.mxu0 0.0
    %6563 = vmatmul.mubr.f32.gmra.mxu0 %v6475
    %v6564 = vpop.f32.mrf.mxu0
    %v6565 = vadd.f32 0.0, %v6564
    %v6566 = vpop.f32.mrf.mxu0
    %6567 = vmatprep.mubr.f32.mxu0 0.0
    %6568 = vmatmul.mubr.f32.gmra.mxu0 %v6478
    %v6569 = vpop.f32.mrf.mxu0
    %v6570 = vadd.f32 0.0, %v6569
    %v6571 = vpop.f32.mrf.mxu0
    %6572 = vmatprep.mubr.f32.mxu0 0.0
    %6573 = vmatmul.mubr.f32.gmra.mxu0 %v6481
    %v6574 = vpop.f32.mrf.mxu0
    %v6575 = vadd.f32 0.0, %v6574
    %v6576 = vpop.f32.mrf.mxu0
    %6577 = vmatprep.mubr.f32.mxu0 0.0
    %6578 = vmatmul.mubr.f32.gmra.mxu0 %v6484
    %v6579 = vpop.f32.mrf.mxu0
    %v6580 = vadd.f32 0.0, %v6579
    %v6581 = vpop.f32.mrf.mxu0
    %6582 = vmatprep.mubr.f32.mxu0 0.0
    %6583 = vmatmul.mubr.f32.gmra.mxu0 %v6487
    %v6584 = vpop.f32.mrf.mxu0
    %v6585 = vadd.f32 0.0, %v6584
    %v6586 = vpop.f32.mrf.mxu0
    %6587 = vmatprep.mubr.f32.mxu0 0.0
    %6588 = vmatmul.mubr.f32.gmra.mxu0 %v6490
    %v6589 = vpop.f32.mrf.mxu0
    %v6590 = vadd.f32 0.0, %v6589
    %v6591 = vpop.f32.mrf.mxu0
    %6592 = vmatprep.mubr.f32.mxu0 0.0
    %6593 = vmatmul.mubr.f32.gmra.mxu0 %v6493
    %v6594 = vpop.f32.mrf.mxu0
    %v6595 = vadd.f32 0.0, %v6594
    %v6596 = vpop.f32.mrf.mxu0
    %6597 = vmatprep.mubr.f32.mxu0 0.0
    %6598 = vmatmul.mubr.f32.gmra.mxu0 %v6496
    %v6599 = vpop.f32.mrf.mxu0
    %v6600 = vadd.f32 0.0, %v6599
    %v6601 = vpop.f32.mrf.mxu0
    %6602 = vdwg.mxu0
    %v6603 = vadd.f32 %v6466, %v6565
    %v6604 = vadd.f32 %v6467, %v6570
    %v6605 = vadd.f32 %v6468, %v6575
    %v6606 = vadd.f32 %v6469, %v6580
    %v6607 = vadd.f32 %v6470, %v6585
    %v6608 = vadd.f32 %v6471, %v6590
    %v6609 = vadd.f32 %v6472, %v6595
    %v6610 = vadd.f32 %v6473, %v6600
    %v6611 = vmax.f32 %v6603, 0.0
    %v6612 = vmax.f32 %v6604, 0.0
    %v6613 = vmax.f32 %v6605, 0.0
    %v6614 = vmax.f32 %v6606, 0.0
    %v6615 = vmax.f32 %v6607, 0.0
    %v6616 = vmax.f32 %v6608, 0.0
    %v6617 = vmax.f32 %v6609, 0.0
    %v6618 = vmax.f32 %v6610, 0.0
    %v6619 = vld [vmem:[#allocation2 + $0x678] sm:$0xff]
    %v6620 = vld [vmem:[#allocation2 + $0x680] sm:$0xff]
    %v6621 = vld [vmem:[#allocation2 + $0x688] sm:$0xff]
    %v6622 = vld [vmem:[#allocation2 + $0x690] sm:$0xff]
    %v6623 = vld [vmem:[#allocation2 + $0x698] sm:$0x1]
    %v6624 = vlaneseq
    %v6625 = vshrl.u32 %v6624, 7
    %v6626 = vsub.s32 0, %v6625
    %v6627 = vrot.slane %v6623, %v6626
    %v6629 = vsel %vm3195, %v6611, 0
    %v6632 = vsel %vm3195, %v6612, 0
    %v6635 = vsel %vm3195, %v6613, 0
    %v6638 = vsel %vm3195, %v6614, 0
    %v6641 = vsel %vm3195, %v6615, 0
    %v6644 = vsel %vm3195, %v6616, 0
    %v6647 = vsel %vm3195, %v6617, 0
    %v6650 = vsel %vm3195, %v6618, 0
    %6652 = vmatprep.subr.mxu0 0.0
    %6653 = vmatpush1.msra.mxu0 0.0
    %6654 = vmatprep.subr.mxu0 0.0
    %6655 = vmatpush1.msra.mxu0 0.0
    %6656 = vmatprep.subr.mxu0 0.0
    %6657 = vmatpush1.msra.mxu0 0.0
    %6658 = vmatprep.subr.mxu0 0.0
    %6659 = vmatpush1.msra.mxu0 0.0
    %6660 = vmatprep.subr.mxu0 0.0
    %6661 = vmatpush1.msra.mxu0 0.0
    %6662 = vmatprep.subr.mxu0 0.0
    %6663 = vmatpush1.msra.mxu0 0.0
    %6664 = vmatprep.subr.mxu0 0.0
    %6665 = vmatpush1.msra.mxu0 0.0
    %6666 = vmatprep.subr.mxu0 0.0
    %6667 = vmatpush1.msra.mxu0 0.0
    %6668 = vmatprep.subr.mxu0 0.0
    %6669 = vmatpush1.msra.mxu0 0.0
    %6670 = vmatprep.subr.mxu0 0.0
    %6671 = vmatpush1.msra.mxu0 0.0
    %6672 = vmatprep.subr.mxu0 0.0
    %6673 = vmatpush1.msra.mxu0 0.0
    %6674 = vmatprep.subr.mxu0 0.0
    %6675 = vmatpush1.msra.mxu0 0.0
    %6676 = vmatprep.subr.mxu0 0.0
    %6677 = vmatpush1.msra.mxu0 %v6622
    %6678 = vmatprep.subr.mxu0 0.0
    %6679 = vmatpush1.msra.mxu0 %v6621
    %6680 = vmatprep.subr.mxu0 0.0
    %6681 = vmatpush1.msra.mxu0 %v6620
    %6682 = vmatprep.subr.mxu0 0.0
    %6683 = vmatpush1.msra.mxu0 %v6619
    %6684 = vmatprep.subr.mxu0 0.0
    %6685 = vmatpush2.msra.mxu0 0.0
    %6686 = vmatprep.subr.mxu0 0.0
    %6687 = vmatpush2.msra.mxu0 0.0
    %6688 = vmatprep.subr.mxu0 0.0
    %6689 = vmatpush2.msra.mxu0 0.0
    %6690 = vmatprep.subr.mxu0 0.0
    %6691 = vmatpush2.msra.mxu0 0.0
    %6692 = vmatprep.subr.mxu0 0.0
    %6693 = vmatpush2.msra.mxu0 0.0
    %6694 = vmatprep.subr.mxu0 0.0
    %6695 = vmatpush2.msra.mxu0 0.0
    %6696 = vmatprep.subr.mxu0 0.0
    %6697 = vmatpush2.msra.mxu0 0.0
    %6698 = vmatprep.subr.mxu0 0.0
    %6699 = vmatpush2.msra.mxu0 0.0
    %6700 = vmatprep.subr.mxu0 0.0
    %6701 = vmatpush2.msra.mxu0 0.0
    %6702 = vmatprep.subr.mxu0 0.0
    %6703 = vmatpush2.msra.mxu0 0.0
    %6704 = vmatprep.subr.mxu0 0.0
    %6705 = vmatpush2.msra.mxu0 0.0
    %6706 = vmatprep.subr.mxu0 0.0
    %6707 = vmatpush2.msra.mxu0 0.0
    %6708 = vmatprep.subr.mxu0 0.0
    %6709 = vmatpush2.msra.mxu0 0.0
    %6710 = vmatprep.subr.mxu0 0.0
    %6711 = vmatpush2.msra.mxu0 0.0
    %6712 = vmatprep.subr.mxu0 0.0
    %6713 = vmatpush2.msra.mxu0 0.0
    %6714 = vmatprep.subr.mxu0 0.0
    %6715 = vmatpush2.msra.mxu0 0.0
    %6716 = vmatprep.mubr.f32.mxu0 0.0
    %6717 = vmatmul.mubr.f32.gmra.mxu0 %v6629
    %v6718 = vpop.f32.mrf.mxu0
    %v6719 = vadd.f32 %v6627, %v6718
    %v6720 = vpop.f32.mrf.mxu0
    %6721 = vmatprep.mubr.f32.mxu0 0.0
    %6722 = vmatmul.mubr.f32.gmra.mxu0 %v6632
    %v6723 = vpop.f32.mrf.mxu0
    %v6724 = vadd.f32 %v6627, %v6723
    %v6725 = vpop.f32.mrf.mxu0
    %6726 = vmatprep.mubr.f32.mxu0 0.0
    %6727 = vmatmul.mubr.f32.gmra.mxu0 %v6635
    %v6728 = vpop.f32.mrf.mxu0
    %v6729 = vadd.f32 %v6627, %v6728
    %v6730 = vpop.f32.mrf.mxu0
    %6731 = vmatprep.mubr.f32.mxu0 0.0
    %6732 = vmatmul.mubr.f32.gmra.mxu0 %v6638
    %v6733 = vpop.f32.mrf.mxu0
    %v6734 = vadd.f32 %v6627, %v6733
    %v6735 = vpop.f32.mrf.mxu0
    %6736 = vmatprep.mubr.f32.mxu0 0.0
    %6737 = vmatmul.mubr.f32.gmra.mxu0 %v6641
    %v6738 = vpop.f32.mrf.mxu0
    %v6739 = vadd.f32 %v6627, %v6738
    %v6740 = vpop.f32.mrf.mxu0
    %6741 = vmatprep.mubr.f32.mxu0 0.0
    %6742 = vmatmul.mubr.f32.gmra.mxu0 %v6644
    %v6743 = vpop.f32.mrf.mxu0
    %v6744 = vadd.f32 %v6627, %v6743
    %v6745 = vpop.f32.mrf.mxu0
    %6746 = vmatprep.mubr.f32.mxu0 0.0
    %6747 = vmatmul.mubr.f32.gmra.mxu0 %v6647
    %v6748 = vpop.f32.mrf.mxu0
    %v6749 = vadd.f32 %v6627, %v6748
    %v6750 = vpop.f32.mrf.mxu0
    %6751 = vmatprep.mubr.f32.mxu0 0.0
    %6752 = vmatmul.mubr.f32.gmra.mxu0 %v6650
    %v6753 = vpop.f32.mrf.mxu0
    %v6754 = vadd.f32 %v6627, %v6753
    %v6755 = vpop.f32.mrf.mxu0
    %6756 = vdwg.mxu0
    %v6757 = vmax.f32 %v6719, 0.0
    %v6758 = vmax.f32 %v6724, 0.0
    %v6759 = vmax.f32 %v6729, 0.0
    %v6760 = vmax.f32 %v6734, 0.0
    %v6761 = vmax.f32 %v6739, 0.0
    %v6762 = vmax.f32 %v6744, 0.0
    %v6763 = vmax.f32 %v6749, 0.0
    %v6764 = vmax.f32 %v6754, 0.0
    %v6765 = vld [vmem:[#allocation2 + $0x6a0] sm:$0xff]
    %v6766 = vld [vmem:[#allocation2 + $0x6a8] sm:$0xff]
    %v6767 = vld [vmem:[#allocation2 + $0x6b0] sm:$0xff]
    %v6768 = vld [vmem:[#allocation2 + $0x6b8] sm:$0xff]
    %v6769 = vld [vmem:[#allocation2 + $0x6c0] sm:$0xff]
    %v6770 = vld [vmem:[#allocation2 + $0x6c8] sm:$0xff]
    %v6771 = vld [vmem:[#allocation2 + $0x6d0] sm:$0xff]
    %v6772 = vld [vmem:[#allocation2 + $0x6d8] sm:$0xff]
    %v6773 = vld [vmem:[#allocation2 + $0x6e0] sm:$0x1]
    %v6774 = vlaneseq
    %v6775 = vshrl.u32 %v6774, 7
    %v6776 = vsub.s32 0, %v6775
    %v6777 = vrot.slane %v6773, %v6776
    %v6779 = vsel %vm1830, %v6757, 0
    %v6782 = vsel %vm1830, %v6758, 0
    %v6785 = vsel %vm1830, %v6759, 0
    %v6788 = vsel %vm1830, %v6760, 0
    %v6791 = vsel %vm1830, %v6761, 0
    %v6794 = vsel %vm1830, %v6762, 0
    %v6797 = vsel %vm1830, %v6763, 0
    %v6800 = vsel %vm1830, %v6764, 0
    %6802 = vmatprep.subr.mxu0 0.0
    %6803 = vmatpush1.msra.mxu0 0.0
    %6804 = vmatprep.subr.mxu0 0.0
    %6805 = vmatpush1.msra.mxu0 0.0
    %6806 = vmatprep.subr.mxu0 0.0
    %6807 = vmatpush1.msra.mxu0 0.0
    %6808 = vmatprep.subr.mxu0 0.0
    %6809 = vmatpush1.msra.mxu0 0.0
    %6810 = vmatprep.subr.mxu0 0.0
    %6811 = vmatpush1.msra.mxu0 0.0
    %6812 = vmatprep.subr.mxu0 0.0
    %6813 = vmatpush1.msra.mxu0 0.0
    %6814 = vmatprep.subr.mxu0 0.0
    %6815 = vmatpush1.msra.mxu0 0.0
    %6816 = vmatprep.subr.mxu0 0.0
    %6817 = vmatpush1.msra.mxu0 0.0
    %6818 = vmatprep.subr.mxu0 0.0
    %6819 = vmatpush1.msra.mxu0 %v6772
    %6820 = vmatprep.subr.mxu0 0.0
    %6821 = vmatpush1.msra.mxu0 %v6771
    %6822 = vmatprep.subr.mxu0 0.0
    %6823 = vmatpush1.msra.mxu0 %v6770
    %6824 = vmatprep.subr.mxu0 0.0
    %6825 = vmatpush1.msra.mxu0 %v6769
    %6826 = vmatprep.subr.mxu0 0.0
    %6827 = vmatpush1.msra.mxu0 %v6768
    %6828 = vmatprep.subr.mxu0 0.0
    %6829 = vmatpush1.msra.mxu0 %v6767
    %6830 = vmatprep.subr.mxu0 0.0
    %6831 = vmatpush1.msra.mxu0 %v6766
    %6832 = vmatprep.subr.mxu0 0.0
    %6833 = vmatpush1.msra.mxu0 %v6765
    %6834 = vmatprep.subr.mxu0 0.0
    %6835 = vmatpush2.msra.mxu0 0.0
    %6836 = vmatprep.subr.mxu0 0.0
    %6837 = vmatpush2.msra.mxu0 0.0
    %6838 = vmatprep.subr.mxu0 0.0
    %6839 = vmatpush2.msra.mxu0 0.0
    %6840 = vmatprep.subr.mxu0 0.0
    %6841 = vmatpush2.msra.mxu0 0.0
    %6842 = vmatprep.subr.mxu0 0.0
    %6843 = vmatpush2.msra.mxu0 0.0
    %6844 = vmatprep.subr.mxu0 0.0
    %6845 = vmatpush2.msra.mxu0 0.0
    %6846 = vmatprep.subr.mxu0 0.0
    %6847 = vmatpush2.msra.mxu0 0.0
    %6848 = vmatprep.subr.mxu0 0.0
    %6849 = vmatpush2.msra.mxu0 0.0
    %6850 = vmatprep.subr.mxu0 0.0
    %6851 = vmatpush2.msra.mxu0 0.0
    %6852 = vmatprep.subr.mxu0 0.0
    %6853 = vmatpush2.msra.mxu0 0.0
    %6854 = vmatprep.subr.mxu0 0.0
    %6855 = vmatpush2.msra.mxu0 0.0
    %6856 = vmatprep.subr.mxu0 0.0
    %6857 = vmatpush2.msra.mxu0 0.0
    %6858 = vmatprep.subr.mxu0 0.0
    %6859 = vmatpush2.msra.mxu0 0.0
    %6860 = vmatprep.subr.mxu0 0.0
    %6861 = vmatpush2.msra.mxu0 0.0
    %6862 = vmatprep.subr.mxu0 0.0
    %6863 = vmatpush2.msra.mxu0 0.0
    %6864 = vmatprep.subr.mxu0 0.0
    %6865 = vmatpush2.msra.mxu0 0.0
    %6866 = vmatprep.mubr.f32.mxu0 0.0
    %6867 = vmatmul.mubr.f32.gmra.mxu0 %v6779
    %v6868 = vpop.f32.mrf.mxu0
    %v6869 = vadd.f32 %v6777, %v6868
    %v6870 = vpop.f32.mrf.mxu0
    %6871 = vmatprep.mubr.f32.mxu0 0.0
    %6872 = vmatmul.mubr.f32.gmra.mxu0 %v6782
    %v6873 = vpop.f32.mrf.mxu0
    %v6874 = vadd.f32 %v6777, %v6873
    %v6875 = vpop.f32.mrf.mxu0
    %6876 = vmatprep.mubr.f32.mxu0 0.0
    %6877 = vmatmul.mubr.f32.gmra.mxu0 %v6785
    %v6878 = vpop.f32.mrf.mxu0
    %v6879 = vadd.f32 %v6777, %v6878
    %v6880 = vpop.f32.mrf.mxu0
    %6881 = vmatprep.mubr.f32.mxu0 0.0
    %6882 = vmatmul.mubr.f32.gmra.mxu0 %v6788
    %v6883 = vpop.f32.mrf.mxu0
    %v6884 = vadd.f32 %v6777, %v6883
    %v6885 = vpop.f32.mrf.mxu0
    %6886 = vmatprep.mubr.f32.mxu0 0.0
    %6887 = vmatmul.mubr.f32.gmra.mxu0 %v6791
    %v6888 = vpop.f32.mrf.mxu0
    %v6889 = vadd.f32 %v6777, %v6888
    %v6890 = vpop.f32.mrf.mxu0
    %6891 = vmatprep.mubr.f32.mxu0 0.0
    %6892 = vmatmul.mubr.f32.gmra.mxu0 %v6794
    %v6893 = vpop.f32.mrf.mxu0
    %v6894 = vadd.f32 %v6777, %v6893
    %v6895 = vpop.f32.mrf.mxu0
    %6896 = vmatprep.mubr.f32.mxu0 0.0
    %6897 = vmatmul.mubr.f32.gmra.mxu0 %v6797
    %v6898 = vpop.f32.mrf.mxu0
    %v6899 = vadd.f32 %v6777, %v6898
    %v6900 = vpop.f32.mrf.mxu0
    %6901 = vmatprep.mubr.f32.mxu0 0.0
    %6902 = vmatmul.mubr.f32.gmra.mxu0 %v6800
    %v6903 = vpop.f32.mrf.mxu0
    %v6904 = vadd.f32 %v6777, %v6903
    %v6905 = vpop.f32.mrf.mxu0
    %6906 = vdwg.mxu0
    %6907 = vst [vmem:[%s4] sm:$0xff] %v6869
    %6908 = vst [vmem:[%s4 + $0x8] sm:$0xff] %v6874
    %6909 = vst [vmem:[%s4 + $0x10] sm:$0xff] %v6879
    %6910 = vst [vmem:[%s4 + $0x18] sm:$0xff] %v6884
    %6911 = vst [vmem:[%s4 + $0x20] sm:$0xff] %v6889
    %6912 = vst [vmem:[%s4 + $0x28] sm:$0xff] %v6894
    %6913 = vst [vmem:[%s4 + $0x30] sm:$0xff] %v6899
    %6914 = vst [vmem:[%s4 + $0x38] sm:$0xff] %v6904
    %v6915 = vld [vmem:[#allocation2 + $0x628] sm:$0xff]
    %v6916 = vld [vmem:[#allocation2 + $0x630] sm:$0xff]
    %v6917 = vld [vmem:[#allocation2 + $0x638] sm:$0xff]
    %v6918 = vld [vmem:[#allocation2 + $0x640] sm:$0xff]
    %v6919 = vld [vmem:[#allocation2 + $0x648] sm:$0x1]
    %v6920 = vlaneseq
    %v6921 = vshrl.u32 %v6920, 7
    %v6922 = vsub.s32 0, %v6921
    %v6923 = vrot.slane %v6919, %v6922
    %v6925 = vsel %vm3195, %v6216, 0
    %v6928 = vsel %vm3195, %v6217, 0
    %v6931 = vsel %vm3195, %v6218, 0
    %v6934 = vsel %vm3195, %v6219, 0
    %v6937 = vsel %vm3195, %v6220, 0
    %v6940 = vsel %vm3195, %v6221, 0
    %v6943 = vsel %vm3195, %v6222, 0
    %v6946 = vsel %vm3195, %v6223, 0
    %v6949 = vsel %vm3195, %v6224, 0
    %v6952 = vsel %vm3195, %v6225, 0
    %v6955 = vsel %vm3195, %v6226, 0
    %v6958 = vsel %vm3195, %v6227, 0
    %v6961 = vsel %vm3195, %v6228, 0
    %v6964 = vsel %vm3195, %v6229, 0
    %v6967 = vsel %vm3195, %v6230, 0
    %v6970 = vsel %vm3195, %v6231, 0
    %6972 = vmatprep.subr.mxu0 0.0
    %6973 = vmatpush1.msra.mxu0 0.0
    %6974 = vmatprep.subr.mxu0 0.0
    %6975 = vmatpush1.msra.mxu0 0.0
    %6976 = vmatprep.subr.mxu0 0.0
    %6977 = vmatpush1.msra.mxu0 0.0
    %6978 = vmatprep.subr.mxu0 0.0
    %6979 = vmatpush1.msra.mxu0 0.0
    %6980 = vmatprep.subr.mxu0 0.0
    %6981 = vmatpush1.msra.mxu0 0.0
    %6982 = vmatprep.subr.mxu0 0.0
    %6983 = vmatpush1.msra.mxu0 0.0
    %6984 = vmatprep.subr.mxu0 0.0
    %6985 = vmatpush1.msra.mxu0 0.0
    %6986 = vmatprep.subr.mxu0 0.0
    %6987 = vmatpush1.msra.mxu0 0.0
    %6988 = vmatprep.subr.mxu0 0.0
    %6989 = vmatpush1.msra.mxu0 0.0
    %6990 = vmatprep.subr.mxu0 0.0
    %6991 = vmatpush1.msra.mxu0 0.0
    %6992 = vmatprep.subr.mxu0 0.0
    %6993 = vmatpush1.msra.mxu0 0.0
    %6994 = vmatprep.subr.mxu0 0.0
    %6995 = vmatpush1.msra.mxu0 0.0
    %6996 = vmatprep.subr.mxu0 0.0
    %6997 = vmatpush1.msra.mxu0 %v6918
    %6998 = vmatprep.subr.mxu0 0.0
    %6999 = vmatpush1.msra.mxu0 %v6917
    %7000 = vmatprep.subr.mxu0 0.0
    %7001 = vmatpush1.msra.mxu0 %v6916
    %7002 = vmatprep.subr.mxu0 0.0
    %7003 = vmatpush1.msra.mxu0 %v6915
    %7004 = vmatprep.subr.mxu0 0.0
    %7005 = vmatpush2.msra.mxu0 0.0
    %7006 = vmatprep.subr.mxu0 0.0
    %7007 = vmatpush2.msra.mxu0 0.0
    %7008 = vmatprep.subr.mxu0 0.0
    %7009 = vmatpush2.msra.mxu0 0.0
    %7010 = vmatprep.subr.mxu0 0.0
    %7011 = vmatpush2.msra.mxu0 0.0
    %7012 = vmatprep.subr.mxu0 0.0
    %7013 = vmatpush2.msra.mxu0 0.0
    %7014 = vmatprep.subr.mxu0 0.0
    %7015 = vmatpush2.msra.mxu0 0.0
    %7016 = vmatprep.subr.mxu0 0.0
    %7017 = vmatpush2.msra.mxu0 0.0
    %7018 = vmatprep.subr.mxu0 0.0
    %7019 = vmatpush2.msra.mxu0 0.0
    %7020 = vmatprep.subr.mxu0 0.0
    %7021 = vmatpush2.msra.mxu0 0.0
    %7022 = vmatprep.subr.mxu0 0.0
    %7023 = vmatpush2.msra.mxu0 0.0
    %7024 = vmatprep.subr.mxu0 0.0
    %7025 = vmatpush2.msra.mxu0 0.0
    %7026 = vmatprep.subr.mxu0 0.0
    %7027 = vmatpush2.msra.mxu0 0.0
    %7028 = vmatprep.subr.mxu0 0.0
    %7029 = vmatpush2.msra.mxu0 0.0
    %7030 = vmatprep.subr.mxu0 0.0
    %7031 = vmatpush2.msra.mxu0 0.0
    %7032 = vmatprep.subr.mxu0 0.0
    %7033 = vmatpush2.msra.mxu0 0.0
    %7034 = vmatprep.subr.mxu0 0.0
    %7035 = vmatpush2.msra.mxu0 0.0
    %7036 = vmatprep.mubr.f32.mxu0 0.0
    %7037 = vmatmul.mubr.f32.gmra.mxu0 %v6925
    %v7038 = vpop.f32.mrf.mxu0
    %v7039 = vadd.f32 %v6923, %v7038
    %v7040 = vpop.f32.mrf.mxu0
    %7041 = vmatprep.mubr.f32.mxu0 0.0
    %7042 = vmatmul.mubr.f32.gmra.mxu0 %v6928
    %v7043 = vpop.f32.mrf.mxu0
    %v7044 = vadd.f32 %v6923, %v7043
    %v7045 = vpop.f32.mrf.mxu0
    %7046 = vmatprep.mubr.f32.mxu0 0.0
    %7047 = vmatmul.mubr.f32.gmra.mxu0 %v6931
    %v7048 = vpop.f32.mrf.mxu0
    %v7049 = vadd.f32 %v6923, %v7048
    %v7050 = vpop.f32.mrf.mxu0
    %7051 = vmatprep.mubr.f32.mxu0 0.0
    %7052 = vmatmul.mubr.f32.gmra.mxu0 %v6934
    %v7053 = vpop.f32.mrf.mxu0
    %v7054 = vadd.f32 %v6923, %v7053
    %v7055 = vpop.f32.mrf.mxu0
    %7056 = vmatprep.mubr.f32.mxu0 0.0
    %7057 = vmatmul.mubr.f32.gmra.mxu0 %v6937
    %v7058 = vpop.f32.mrf.mxu0
    %v7059 = vadd.f32 %v6923, %v7058
    %v7060 = vpop.f32.mrf.mxu0
    %7061 = vmatprep.mubr.f32.mxu0 0.0
    %7062 = vmatmul.mubr.f32.gmra.mxu0 %v6940
    %v7063 = vpop.f32.mrf.mxu0
    %v7064 = vadd.f32 %v6923, %v7063
    %v7065 = vpop.f32.mrf.mxu0
    %7066 = vmatprep.mubr.f32.mxu0 0.0
    %7067 = vmatmul.mubr.f32.gmra.mxu0 %v6943
    %v7068 = vpop.f32.mrf.mxu0
    %v7069 = vadd.f32 %v6923, %v7068
    %v7070 = vpop.f32.mrf.mxu0
    %7071 = vmatprep.mubr.f32.mxu0 0.0
    %7072 = vmatmul.mubr.f32.gmra.mxu0 %v6946
    %v7073 = vpop.f32.mrf.mxu0
    %v7074 = vadd.f32 %v6923, %v7073
    %v7075 = vpop.f32.mrf.mxu0
    %7076 = vmatprep.mubr.f32.mxu0 0.0
    %7077 = vmatmul.mubr.f32.gmra.mxu0 %v6949
    %v7078 = vpop.f32.mrf.mxu0
    %v7079 = vadd.f32 %v6923, %v7078
    %v7080 = vpop.f32.mrf.mxu0
    %7081 = vmatprep.mubr.f32.mxu0 0.0
    %7082 = vmatmul.mubr.f32.gmra.mxu0 %v6952
    %v7083 = vpop.f32.mrf.mxu0
    %v7084 = vadd.f32 %v6923, %v7083
    %v7085 = vpop.f32.mrf.mxu0
    %7086 = vmatprep.mubr.f32.mxu0 0.0
    %7087 = vmatmul.mubr.f32.gmra.mxu0 %v6955
    %v7088 = vpop.f32.mrf.mxu0
    %v7089 = vadd.f32 %v6923, %v7088
    %v7090 = vpop.f32.mrf.mxu0
    %7091 = vmatprep.mubr.f32.mxu0 0.0
    %7092 = vmatmul.mubr.f32.gmra.mxu0 %v6958
    %v7093 = vpop.f32.mrf.mxu0
    %v7094 = vadd.f32 %v6923, %v7093
    %v7095 = vpop.f32.mrf.mxu0
    %7096 = vmatprep.mubr.f32.mxu0 0.0
    %7097 = vmatmul.mubr.f32.gmra.mxu0 %v6961
    %v7098 = vpop.f32.mrf.mxu0
    %v7099 = vadd.f32 %v6923, %v7098
    %v7100 = vpop.f32.mrf.mxu0
    %7101 = vmatprep.mubr.f32.mxu0 0.0
    %7102 = vmatmul.mubr.f32.gmra.mxu0 %v6964
    %v7103 = vpop.f32.mrf.mxu0
    %v7104 = vadd.f32 %v6923, %v7103
    %v7105 = vpop.f32.mrf.mxu0
    %7106 = vmatprep.mubr.f32.mxu0 0.0
    %7107 = vmatmul.mubr.f32.gmra.mxu0 %v6967
    %v7108 = vpop.f32.mrf.mxu0
    %v7109 = vadd.f32 %v6923, %v7108
    %v7110 = vpop.f32.mrf.mxu0
    %7111 = vmatprep.mubr.f32.mxu0 0.0
    %7112 = vmatmul.mubr.f32.gmra.mxu0 %v6970
    %v7113 = vpop.f32.mrf.mxu0
    %v7114 = vadd.f32 %v6923, %v7113
    %v7115 = vpop.f32.mrf.mxu0
    %7116 = vdwg.mxu0
    %v7117 = vmax.f32 %v7039, 0.0
    %v7118 = vmax.f32 %v7044, 0.0
    %v7119 = vmax.f32 %v7049, 0.0
    %v7120 = vmax.f32 %v7054, 0.0
    %v7121 = vmax.f32 %v7059, 0.0
    %v7122 = vmax.f32 %v7064, 0.0
    %v7123 = vmax.f32 %v7069, 0.0
    %v7124 = vmax.f32 %v7074, 0.0
    %v7125 = vmax.f32 %v7079, 0.0
    %v7126 = vmax.f32 %v7084, 0.0
    %v7127 = vmax.f32 %v7089, 0.0
    %v7128 = vmax.f32 %v7094, 0.0
    %v7129 = vmax.f32 %v7099, 0.0
    %v7130 = vmax.f32 %v7104, 0.0
    %v7131 = vmax.f32 %v7109, 0.0
    %v7132 = vmax.f32 %v7114, 0.0
    %v7133 = vld [vmem:[#allocation2 + $0x650] sm:$0xff]
    %v7134 = vld [vmem:[#allocation2 + $0x658] sm:$0xff]
    %v7135 = vld [vmem:[#allocation2 + $0x660] sm:$0xff]
    %v7136 = vld [vmem:[#allocation2 + $0x668] sm:$0xff]
    %v7137 = vld [vmem:[#allocation2 + $0x670] sm:$0x1]
    %v7138 = vlaneseq
    %v7139 = vshrl.u32 %v7138, 7
    %v7140 = vsub.s32 0, %v7139
    %v7141 = vrot.slane %v7137, %v7140
    %v7143 = vsel %vm3195, %v7117, 0
    %v7146 = vsel %vm3195, %v7118, 0
    %v7149 = vsel %vm3195, %v7119, 0
    %v7152 = vsel %vm3195, %v7120, 0
    %v7155 = vsel %vm3195, %v7121, 0
    %v7158 = vsel %vm3195, %v7122, 0
    %v7161 = vsel %vm3195, %v7123, 0
    %v7164 = vsel %vm3195, %v7124, 0
    %v7167 = vsel %vm3195, %v7125, 0
    %v7170 = vsel %vm3195, %v7126, 0
    %v7173 = vsel %vm3195, %v7127, 0
    %v7176 = vsel %vm3195, %v7128, 0
    %v7179 = vsel %vm3195, %v7129, 0
    %v7182 = vsel %vm3195, %v7130, 0
    %v7185 = vsel %vm3195, %v7131, 0
    %v7188 = vsel %vm3195, %v7132, 0
    %7190 = vmatprep.subr.mxu0 0.0
    %7191 = vmatpush1.msra.mxu0 0.0
    %7192 = vmatprep.subr.mxu0 0.0
    %7193 = vmatpush1.msra.mxu0 0.0
    %7194 = vmatprep.subr.mxu0 0.0
    %7195 = vmatpush1.msra.mxu0 0.0
    %7196 = vmatprep.subr.mxu0 0.0
    %7197 = vmatpush1.msra.mxu0 0.0
    %7198 = vmatprep.subr.mxu0 0.0
    %7199 = vmatpush1.msra.mxu0 0.0
    %7200 = vmatprep.subr.mxu0 0.0
    %7201 = vmatpush1.msra.mxu0 0.0
    %7202 = vmatprep.subr.mxu0 0.0
    %7203 = vmatpush1.msra.mxu0 0.0
    %7204 = vmatprep.subr.mxu0 0.0
    %7205 = vmatpush1.msra.mxu0 0.0
    %7206 = vmatprep.subr.mxu0 0.0
    %7207 = vmatpush1.msra.mxu0 0.0
    %7208 = vmatprep.subr.mxu0 0.0
    %7209 = vmatpush1.msra.mxu0 0.0
    %7210 = vmatprep.subr.mxu0 0.0
    %7211 = vmatpush1.msra.mxu0 0.0
    %7212 = vmatprep.subr.mxu0 0.0
    %7213 = vmatpush1.msra.mxu0 0.0
    %7214 = vmatprep.subr.mxu0 0.0
    %7215 = vmatpush1.msra.mxu0 %v7136
    %7216 = vmatprep.subr.mxu0 0.0
    %7217 = vmatpush1.msra.mxu0 %v7135
    %7218 = vmatprep.subr.mxu0 0.0
    %7219 = vmatpush1.msra.mxu0 %v7134
    %7220 = vmatprep.subr.mxu0 0.0
    %7221 = vmatpush1.msra.mxu0 %v7133
    %7222 = vmatprep.subr.mxu0 0.0
    %7223 = vmatpush2.msra.mxu0 0.0
    %7224 = vmatprep.subr.mxu0 0.0
    %7225 = vmatpush2.msra.mxu0 0.0
    %7226 = vmatprep.subr.mxu0 0.0
    %7227 = vmatpush2.msra.mxu0 0.0
    %7228 = vmatprep.subr.mxu0 0.0
    %7229 = vmatpush2.msra.mxu0 0.0
    %7230 = vmatprep.subr.mxu0 0.0
    %7231 = vmatpush2.msra.mxu0 0.0
    %7232 = vmatprep.subr.mxu0 0.0
    %7233 = vmatpush2.msra.mxu0 0.0
    %7234 = vmatprep.subr.mxu0 0.0
    %7235 = vmatpush2.msra.mxu0 0.0
    %7236 = vmatprep.subr.mxu0 0.0
    %7237 = vmatpush2.msra.mxu0 0.0
    %7238 = vmatprep.subr.mxu0 0.0
    %7239 = vmatpush2.msra.mxu0 0.0
    %7240 = vmatprep.subr.mxu0 0.0
    %7241 = vmatpush2.msra.mxu0 0.0
    %7242 = vmatprep.subr.mxu0 0.0
    %7243 = vmatpush2.msra.mxu0 0.0
    %7244 = vmatprep.subr.mxu0 0.0
    %7245 = vmatpush2.msra.mxu0 0.0
    %7246 = vmatprep.subr.mxu0 0.0
    %7247 = vmatpush2.msra.mxu0 0.0
    %7248 = vmatprep.subr.mxu0 0.0
    %7249 = vmatpush2.msra.mxu0 0.0
    %7250 = vmatprep.subr.mxu0 0.0
    %7251 = vmatpush2.msra.mxu0 0.0
    %7252 = vmatprep.subr.mxu0 0.0
    %7253 = vmatpush2.msra.mxu0 0.0
    %7254 = vmatprep.mubr.f32.mxu0 0.0
    %7255 = vmatmul.mubr.f32.gmra.mxu0 %v7143
    %v7256 = vpop.f32.mrf.mxu0
    %v7257 = vadd.f32 %v7141, %v7256
    %v7258 = vpop.f32.mrf.mxu0
    %7259 = vmatprep.mubr.f32.mxu0 0.0
    %7260 = vmatmul.mubr.f32.gmra.mxu0 %v7146
    %v7261 = vpop.f32.mrf.mxu0
    %v7262 = vadd.f32 %v7141, %v7261
    %v7263 = vpop.f32.mrf.mxu0
    %7264 = vmatprep.mubr.f32.mxu0 0.0
    %7265 = vmatmul.mubr.f32.gmra.mxu0 %v7149
    %v7266 = vpop.f32.mrf.mxu0
    %v7267 = vadd.f32 %v7141, %v7266
    %v7268 = vpop.f32.mrf.mxu0
    %7269 = vmatprep.mubr.f32.mxu0 0.0
    %7270 = vmatmul.mubr.f32.gmra.mxu0 %v7152
    %v7271 = vpop.f32.mrf.mxu0
    %v7272 = vadd.f32 %v7141, %v7271
    %v7273 = vpop.f32.mrf.mxu0
    %7274 = vmatprep.mubr.f32.mxu0 0.0
    %7275 = vmatmul.mubr.f32.gmra.mxu0 %v7155
    %v7276 = vpop.f32.mrf.mxu0
    %v7277 = vadd.f32 %v7141, %v7276
    %v7278 = vpop.f32.mrf.mxu0
    %7279 = vmatprep.mubr.f32.mxu0 0.0
    %7280 = vmatmul.mubr.f32.gmra.mxu0 %v7158
    %v7281 = vpop.f32.mrf.mxu0
    %v7282 = vadd.f32 %v7141, %v7281
    %v7283 = vpop.f32.mrf.mxu0
    %7284 = vmatprep.mubr.f32.mxu0 0.0
    %7285 = vmatmul.mubr.f32.gmra.mxu0 %v7161
    %v7286 = vpop.f32.mrf.mxu0
    %v7287 = vadd.f32 %v7141, %v7286
    %v7288 = vpop.f32.mrf.mxu0
    %7289 = vmatprep.mubr.f32.mxu0 0.0
    %7290 = vmatmul.mubr.f32.gmra.mxu0 %v7164
    %v7291 = vpop.f32.mrf.mxu0
    %v7292 = vadd.f32 %v7141, %v7291
    %v7293 = vpop.f32.mrf.mxu0
    %7294 = vmatprep.mubr.f32.mxu0 0.0
    %7295 = vmatmul.mubr.f32.gmra.mxu0 %v7167
    %v7296 = vpop.f32.mrf.mxu0
    %v7297 = vadd.f32 %v7141, %v7296
    %v7298 = vpop.f32.mrf.mxu0
    %7299 = vmatprep.mubr.f32.mxu0 0.0
    %7300 = vmatmul.mubr.f32.gmra.mxu0 %v7170
    %v7301 = vpop.f32.mrf.mxu0
    %v7302 = vadd.f32 %v7141, %v7301
    %v7303 = vpop.f32.mrf.mxu0
    %7304 = vmatprep.mubr.f32.mxu0 0.0
    %7305 = vmatmul.mubr.f32.gmra.mxu0 %v7173
    %v7306 = vpop.f32.mrf.mxu0
    %v7307 = vadd.f32 %v7141, %v7306
    %v7308 = vpop.f32.mrf.mxu0
    %7309 = vmatprep.mubr.f32.mxu0 0.0
    %7310 = vmatmul.mubr.f32.gmra.mxu0 %v7176
    %v7311 = vpop.f32.mrf.mxu0
    %v7312 = vadd.f32 %v7141, %v7311
    %v7313 = vpop.f32.mrf.mxu0
    %7314 = vmatprep.mubr.f32.mxu0 0.0
    %7315 = vmatmul.mubr.f32.gmra.mxu0 %v7179
    %v7316 = vpop.f32.mrf.mxu0
    %v7317 = vadd.f32 %v7141, %v7316
    %v7318 = vpop.f32.mrf.mxu0
    %7319 = vmatprep.mubr.f32.mxu0 0.0
    %7320 = vmatmul.mubr.f32.gmra.mxu0 %v7182
    %v7321 = vpop.f32.mrf.mxu0
    %v7322 = vadd.f32 %v7141, %v7321
    %v7323 = vpop.f32.mrf.mxu0
    %7324 = vmatprep.mubr.f32.mxu0 0.0
    %7325 = vmatmul.mubr.f32.gmra.mxu0 %v7185
    %v7326 = vpop.f32.mrf.mxu0
    %v7327 = vadd.f32 %v7141, %v7326
    %v7328 = vpop.f32.mrf.mxu0
    %7329 = vmatprep.mubr.f32.mxu0 0.0
    %7330 = vmatmul.mubr.f32.gmra.mxu0 %v7188
    %v7331 = vpop.f32.mrf.mxu0
    %v7332 = vadd.f32 %v7141, %v7331
    %v7333 = vpop.f32.mrf.mxu0
    %7334 = vdwg.mxu0
    %7335 = vst [vmem:[%s4 + $0x40] sm:$0xff] %v7257
    %7336 = vst [vmem:[%s4 + $0x48] sm:$0xff] %v7262
    %7337 = vst [vmem:[%s4 + $0x50] sm:$0xff] %v7267
    %7338 = vst [vmem:[%s4 + $0x58] sm:$0xff] %v7272
    %7339 = vst [vmem:[%s4 + $0x60] sm:$0xff] %v7277
    %7340 = vst [vmem:[%s4 + $0x68] sm:$0xff] %v7282
    %7341 = vst [vmem:[%s4 + $0x70] sm:$0xff] %v7287
    %7342 = vst [vmem:[%s4 + $0x78] sm:$0xff] %v7292
    %7343 = vst [vmem:[%s4 + $0x80] sm:$0xff] %v7297
    %7344 = vst [vmem:[%s4 + $0x88] sm:$0xff] %v7302
    %7345 = vst [vmem:[%s4 + $0x90] sm:$0xff] %v7307
    %7346 = vst [vmem:[%s4 + $0x98] sm:$0xff] %v7312
    %7347 = vst [vmem:[%s4 + $0xa0] sm:$0xff] %v7317
    %7348 = vst [vmem:[%s4 + $0xa8] sm:$0xff] %v7322
    %7349 = vst [vmem:[%s4 + $0xb0] sm:$0xff] %v7327
    %7350 = vst [vmem:[%s4 + $0xb8] sm:$0xff] %v7332
    // Predicated region
    $region22: #{forward.1} parent=1 // pred_check
      _
    $region23: #{forward.1} parent=1 // pred_check_branch
      %7352 = sbr.rel (0) target = $region25
    $region24: #{forward.1} parent=1 // pred_region
      _
    $region25: #{forward.1} parent=1 // pred_fallthru
      _
    // Predicated region
    $region26: #{forward.1} parent=1 // pred_check
      _
    $region27: #{forward.1} parent=1 // pred_check_branch
      %7354 = sbr.rel (0) target = $region29
    $region28: #{forward.1} parent=1 // pred_region
      _
    $region29: #{forward.1} parent=1 // pred_fallthru
      _
    %7355 = vsyncpa [#allocation3], 1

</llo_original>
